<compile_context>
chip_gen: v7x
topology: tpu7x:2x2x1
jax: 0.10.0
libtpu: 0.0.40
codegen_flags: <defaults>
</compile_context>

<pallas_src>
import functools

import jax
import jax.numpy as jnp
from jax import lax
from jax.experimental import pallas as pl
from jax.experimental.pallas import tpu as pltpu

_MXU_DTYPE = jnp.bfloat16   # MXU input dtype / HBM intermediate dtype


def _pick_row_tile(h, target):
    """Largest divisor of h that is <= target (>= 1)."""
    t = max(1, min(h, target))
    while h % t:
        t -= 1
    return t


# ---------------------------------------------------------------------------
# Pallas kernels
# ---------------------------------------------------------------------------
def _conv3x3_bn_stats_kernel(x_ref, xt_ref, xb_ref, w_ref, scale_ref, bias_ref,
                             o_ref, sum_ref, ssq_ref, xp_scr,
                             *, apply_input_act):
    """3x3 'same' conv on one (batch, row-tile) block + BN batch-stat partials.

    x_ref     : (1, TH, W, Cin)  bf16  main row tile (raw prev-conv output when
                                       apply_input_act=True)
    xt_ref    : (1, 1, W, Cin)   bf16  row above the tile (clamped at border)
    xb_ref    : (1, 1, W, Cin)   bf16  row below the tile (clamped at border)
    w_ref     : (9, Cin, Cout)   bf16  tap-major conv weights
    scale_ref : (1, Cin)         f32   prev-stage folded-BN scale (iff apply_input_act)
    bias_ref  : (1, Cin)         f32   prev-stage folded-BN bias  (iff apply_input_act)
    o_ref     : (1, TH, W, Cout) bf16  raw conv output
    sum_ref   : (1, 1, 1, Cout)  f32   per-block partial sum   (BN batch stats)
    ssq_ref   : (1, 1, 1, Cout)  f32   per-block partial sum of squares
    xp_scr    : VMEM (TH+2, W+2, Cin) bf16 halo scratch
    """
    TH, W, Cin = x_ref.shape[1], x_ref.shape[2], x_ref.shape[3]
    Cout = o_ref.shape[3]
    h = pl.program_id(1)
    n_h = pl.num_programs(1)

    def prep(v):
        # Previous-stage BatchNorm affine + ReLU fused into this conv's input
        # path; applied once, in f32, before the single bf16 cast.
        if apply_input_act:
            v = jnp.maximum(v.astype(jnp.float32) * scale_ref[0] + bias_ref[0], 0.0)
        return v.astype(_MXU_DTYPE)

    xm = prep(x_ref[0])                                   # (TH, W, Cin)
    top_valid = (h > 0).astype(_MXU_DTYPE)                # zero halo at image border
    bot_valid = (h < n_h - 1).astype(_MXU_DTYPE)
    xt = prep(xt_ref[0, 0]) * top_valid                   # (W, Cin)
    xb = prep(xb_ref[0, 0]) * bot_valid

    # 1-pixel halo built in VMEM.  Only the two side columns are re-zeroed each
    # step (tiny); interior + top/bottom halo rows are fully overwritten below.
    zcol = jnp.zeros((TH + 2, Cin), _MXU_DTYPE)
    xp_scr[:, 0, :] = zcol
    xp_scr[:, W + 1, :] = zcol
    xp_scr[0, 1:W + 1, :] = xt
    xp_scr[TH + 1, 1:W + 1, :] = xb
    xp_scr[1:TH + 1, 1:W + 1, :] = xm

    # 9 accumulated MXU matmuls (one per tap) -- no (TH*W, 9*Cin) patch copy.
    acc = jnp.zeros((TH * W, Cout), jnp.float32)
    for k in range(9):
        dh, dw = k // 3, k % 3
        tap = xp_scr[dh:dh + TH, dw:dw + W, :].reshape(TH * W, Cin)
        acc = acc + jnp.dot(tap, w_ref[k], preferred_element_type=jnp.float32)

    o_ref[0] = acc.reshape(TH, W, Cout).astype(o_ref.dtype)
    sum_ref[0, 0] = jnp.sum(acc, axis=0, keepdims=True)         # (1, Cout)
    ssq_ref[0, 0] = jnp.sum(acc * acc, axis=0, keepdims=True)   # (1, Cout)


def _bn_relu_kernel(y_ref, scale_ref, bias_ref, o_ref):
    """Folded-BatchNorm affine + ReLU on one (batch, row-tile) block."""
    y = y_ref[...].astype(jnp.float32)
    o_ref[...] = jnp.maximum(y * scale_ref[...] + bias_ref[...], 0.0)


# ---------------------------------------------------------------------------
# Wrappers (thin JAX glue, hot path in Pallas)
# ---------------------------------------------------------------------------
def conv3x3_bn_stats(x, w9, in_scale, in_bias, *, apply_input_act, row_tile):
    """x: (N,H,W,Cin) bf16, w9: (9,Cin,Cout) bf16.

    Returns (raw conv output (N,H,W,Cout) bf16,
             partial sums (N,n_h,1,Cout) f32, partial sum-of-squares f32).
    """
    N, H, W, Cin = x.shape
    Cout = w9.shape[2]
    th = _pick_row_tile(H, row_tile)
    n_h = H // th

    kernel = functools.partial(_conv3x3_bn_stats_kernel,
                               apply_input_act=apply_input_act)

    flops = 2 * N * H * W * 9 * Cin * Cout
    bytes_accessed = (x.size * x.dtype.itemsize + w9.size * 2
                      + N * H * W * Cout * 2 + 2 * N * n_h * Cout * 4)

    # Constant-index inputs never change across grid steps -> single-buffered.
    const_mode = pl.Buffered(1)

    return pl.pallas_call(
        kernel,
        out_shape=(
            jax.ShapeDtypeStruct((N, H, W, Cout), _MXU_DTYPE),
            jax.ShapeDtypeStruct((N, n_h, 1, Cout), jnp.float32),
            jax.ShapeDtypeStruct((N, n_h, 1, Cout), jnp.float32),
        ),
        grid=(N, n_h),
        in_specs=[
            # main row tile (auto double-buffered / pipelined)
            pl.BlockSpec((1, th, W, Cin), lambda n, h: (n, h, 0, 0)),
            # 1-row top / bottom halos: block H == 1, so the index map addresses
            # individual rows; clamped at the image border, zeroed in-kernel.
            pl.BlockSpec((1, 1, W, Cin),
                         lambda n, h: (n, jnp.maximum(h * th - 1, 0), 0, 0)),
            pl.BlockSpec((1, 1, W, Cin),
                         lambda n, h: (n, jnp.minimum(h * th + th, H - 1), 0, 0)),
            pl.BlockSpec((9, Cin, Cout), lambda n, h: (0, 0, 0),
                         pipeline_mode=const_mode),
            pl.BlockSpec((1, Cin), lambda n, h: (0, 0), pipeline_mode=const_mode),
            pl.BlockSpec((1, Cin), lambda n, h: (0, 0), pipeline_mode=const_mode),
        ],
        out_specs=(
            pl.BlockSpec((1, th, W, Cout), lambda n, h: (n, h, 0, 0)),
            pl.BlockSpec((1, 1, 1, Cout), lambda n, h: (n, h, 0, 0)),
            pl.BlockSpec((1, 1, 1, Cout), lambda n, h: (n, h, 0, 0)),
        ),
        scratch_shapes=[pltpu.VMEM((th + 2, W + 2, Cin), _MXU_DTYPE)],
        compiler_params=pltpu.CompilerParams(
            dimension_semantics=("parallel", "parallel"),
            vmem_limit_bytes=64 * 1024 * 1024),
        cost_estimate=pl.CostEstimate(flops=flops, transcendentals=0,
                                      bytes_accessed=bytes_accessed),
    )(x, x, x, w9, in_scale, in_bias)


def bn_relu_pallas(y, scale, bias, *, row_tile=256):
    """Folded BN affine + ReLU, tiled over (batch, rows); output f32, true Cout."""
    N, H, W, C = y.shape
    th = _pick_row_tile(H, row_tile)
    scale4 = scale.reshape(1, 1, 1, C).astype(jnp.float32)
    bias4 = bias.reshape(1, 1, 1, C).astype(jnp.float32)
    const_mode = pl.Buffered(1)
    return pl.pallas_call(
        _bn_relu_kernel,
        out_shape=jax.ShapeDtypeStruct((N, H, W, C), jnp.float32),
        grid=(N, H // th),
        in_specs=[
            pl.BlockSpec((1, th, W, C), lambda n, h: (n, h, 0, 0)),
            pl.BlockSpec((1, 1, 1, C), lambda n, h: (0, 0, 0, 0),
                         pipeline_mode=const_mode),
            pl.BlockSpec((1, 1, 1, C), lambda n, h: (0, 0, 0, 0),
                         pipeline_mode=const_mode),
        ],
        out_specs=pl.BlockSpec((1, th, W, C), lambda n, h: (n, h, 0, 0)),
        compiler_params=pltpu.CompilerParams(
            dimension_semantics=("parallel", "parallel")),
    )(y, scale4, bias4)


def bn_fold(sum_p, ssq_p, gamma, beta, count, eps=1e-5):
    """Training-mode BN (batch stats, biased variance) folded to scale/bias."""
    # TODO(synk): E[x^2]-E[x]^2 loses precision when |mean| >> std; switch to a
    #             centered two-pass / Welford combine if tighter parity is needed.
    s = jnp.sum(sum_p, axis=(0, 1, 2))
    q = jnp.sum(ssq_p, axis=(0, 1, 2))
    mean = s / count
    var = jnp.maximum(q / count - mean * mean, 0.0)
    scale = gamma / jnp.sqrt(var + eps)
    bias = beta - mean * scale
    return scale, bias


def _interp_matrix(in_size, out_size):
    """Row-interpolation matrix for bilinear upsample with align_corners=True."""
    if in_size == 1:
        return jnp.ones((out_size, 1), jnp.float32)
    pos = jnp.arange(out_size, dtype=jnp.float32) * (in_size - 1) / (out_size - 1)
    lo = jnp.clip(jnp.floor(pos).astype(jnp.int32), 0, in_size - 2)
    frac = pos - lo.astype(jnp.float32)
    m = jnp.zeros((out_size, in_size), jnp.float32)
    rows = jnp.arange(out_size)
    m = m.at[rows, lo].add(1.0 - frac)
    m = m.at[rows, lo + 1].add(frac)
    return m


def upsample_bilinear_nhwc(x_nhwc, scale_factor=2):
    """nn.Upsample(bilinear, align_corners=True) in NHWC as two small matmuls."""
    N, H, W, C = x_nhwc.shape
    Mh = _interp_matrix(H, H * scale_factor)   # (Ho, H)
    Mw = _interp_matrix(W, W * scale_factor)   # (Wo, W)
    return jnp.einsum("oh,nhwc,pw->nopc", Mh, x_nhwc, Mw)


class UpPallas:
    """JAX/Pallas re-implementation of the PyTorch `Up` module (synthetic weights)."""

    def __init__(self, in_channels, out_channels, scale_factor=2, key=None,
                 conv_row_tile=64):
        if key is None:
            key = jax.random.PRNGKey(0)
        k1, k2 = jax.random.split(key)
        self.in_channels = in_channels
        self.out_channels = out_channels
        self.scale_factor = scale_factor
        self.conv_row_tile = conv_row_tile

        # Deterministic synthetic conv weights (Conv2d has bias=False),
        # stored tap-major (9, Cin, Cout) in bf16 (MXU input dtype).
        w1 = (jax.random.normal(k1, (3, 3, in_channels, out_channels), jnp.float32)
              * (1.0 / jnp.sqrt(9.0 * in_channels)))
        w2 = (jax.random.normal(k2, (3, 3, out_channels, out_channels), jnp.float32)
              * (1.0 / jnp.sqrt(9.0 * out_channels)))
        self.w1 = w1.reshape(9, in_channels, out_channels).astype(_MXU_DTYPE)
        self.w2 = w2.reshape(9, out_channels, out_channels).astype(_MXU_DTYPE)

        # BatchNorm2d default init: weight=1, bias=0.
        self.gamma1 = jnp.ones((out_channels,), jnp.float32)
        self.beta1 = jnp.zeros((out_channels,), jnp.float32)
        self.gamma2 = jnp.ones((out_channels,), jnp.float32)
        self.beta2 = jnp.zeros((out_channels,), jnp.float32)

        # Identity affine for conv1 (its input gets no BN/ReLU).
        self._id_scale = jnp.ones((1, in_channels), jnp.float32)
        self._id_bias = jnp.zeros((1, in_channels), jnp.float32)

    @functools.partial(jax.jit, static_argnums=0)
    def __call__(self, x1_nchw, x2_nchw):
        # NCHW -> NHWC once at the boundary.
        x1 = jnp.transpose(x1_nchw, (0, 2, 3, 1)).astype(jnp.float32)
        x2 = jnp.transpose(x2_nchw, (0, 2, 3, 1)).astype(jnp.float32)

        # 1) bilinear upsample (align_corners=True), directly in NHWC.
        x1u = upsample_bilinear_nhwc(x1, self.scale_factor)

        # 2) channel concat [x2, x1] at the TRUE channel count, stored bf16
        #    (the MXU consumes bf16 anyway; no 128-padded concat in HBM).
        N, H, W, C2 = x2.shape
        assert C2 + x1u.shape[3] == self.in_channels
        x = jnp.concatenate([x2, x1u], axis=-1).astype(_MXU_DTYPE)

        cnt = float(N * H * W)

        # 3) conv1 (raw, bf16 out) + BN1 batch-stat partials.
        y1, s1, q1 = conv3x3_bn_stats(x, self.w1, self._id_scale, self._id_bias,
                                      apply_input_act=False,
                                      row_tile=self.conv_row_tile)
        scale1, bias1 = bn_fold(s1, q1, self.gamma1, self.beta1, cnt)

        # 4) conv2 with BN1 affine + ReLU fused into its input path; BN2 partials.
        y2, s2, q2 = conv3x3_bn_stats(y1, self.w2,
                                      scale1.reshape(1, -1), bias1.reshape(1, -1),
                                      apply_input_act=True,
                                      row_tile=self.conv_row_tile)
        scale2, bias2 = bn_fold(s2, q2, self.gamma2, self.beta2, cnt)

        # 5) final BN2 affine + ReLU (f32 out, already at true Cout), back to NCHW.
        y = bn_relu_pallas(y2, scale2, bias2)
        return jnp.transpose(y, (0, 3, 1, 2))


def _reference_up(model, x1_nchw, x2_nchw):
    """Pure-XLA reference of the same forward pass (f32 conv, same weights)."""
    x1 = jnp.transpose(x1_nchw, (0, 2, 3, 1)).astype(jnp.float32)
    x2 = jnp.transpose(x2_nchw, (0, 2, 3, 1)).astype(jnp.float32)
    x1u = upsample_bilinear_nhwc(x1, model.scale_factor)
    x = jnp.concatenate([x2, x1u], axis=-1)

    def conv_bn_relu(x, w9, gamma, beta):
        cin, cout = w9.shape[1], w9.shape[2]
        w = w9.astype(jnp.float32).reshape(3, 3, cin, cout)
        y = lax.conv_general_dilated(x, w, window_strides=(1, 1), padding="SAME",
                                     dimension_numbers=("NHWC", "HWIO", "NHWC"))
        mean = jnp.mean(y, axis=(0, 1, 2))
        var = jnp.mean((y - mean) ** 2, axis=(0, 1, 2))
        yn = (y - mean) / jnp.sqrt(var + 1e-5) * gamma + beta
        return jnp.maximum(yn, 0.0)

    y = conv_bn_relu(x, model.w1, model.gamma1, model.beta1)
    y = conv_bn_relu(y, model.w2, model.gamma2, model.beta2)
    return jnp.transpose(y, (0, 3, 1, 2))


if __name__ == "__main__":
    key = jax.random.PRNGKey(0)
    k_x1, k_x2, k_w = jax.random.split(key, 3)

    # x1: (N, C1, H, W) gets upsampled 2x; x2: (N, C2, 2H, 2W); in_channels = C1 + C2
    N, C1, H, W = 2, 3, 8, 8
    C2 = 5
    in_channels, out_channels = C1 + C2, 8

    x1 = jax.random.normal(k_x1, (N, C1, H, W), jnp.float32)
    x2 = jax.random.normal(k_x2, (N, C2, 2 * H, 2 * W), jnp.float32)

    # conv_row_tile=8 -> two row tiles per image at this demo size, so the
    # halo-row path is exercised (default 64 for real feature maps).
    model = UpPallas(in_channels, out_channels, scale_factor=2, key=k_w,
                     conv_row_tile=8)
    out = model(x1, x2)
    out = jax.block_until_ready(out)

    assert out.shape == (N, out_channels, 2 * H, 2 * W), out.shape
    assert bool(jnp.all(jnp.isfinite(out)))
    assert bool(jnp.all(out >= 0.0))  # final ReLU

    # Loose numerical check vs. pure-XLA f32 reference (bf16 MXU / intermediates).
    ref = jax.block_until_ready(_reference_up(model, x1, x2))
    err = float(jnp.max(jnp.abs(out - ref)))
    tol = 0.1 * float(jnp.max(jnp.abs(ref))) + 1e-2
    assert err < tol, (err, tol)

    print("KERNEL_OK")
</pallas_src>

<mosaic_0001>
module attributes {stable_mosaic.version = 11 : i64} {
  func.func private @main(%arg0: i32) attributes {dimension_semantics = [#tpu.dimension_semantics<core_parallel>], iteration_bounds = array<i64: 2>, tpu.core_type = #tpu.core_type<sc_scalar_subcore>, window_params = []} {
    return
  }
}

module attributes {stable_mosaic.version = 11 : i64} {
  func.func private @main(%arg0: i32) attributes {dimension_semantics = [#tpu.dimension_semantics<core_parallel>], iteration_bounds = array<i64: 2>, tpu.core_type = #tpu.core_type<sc_scalar_subcore>, window_params = []} {
    return
  }
}

module attributes {stable_mosaic.version = 11 : i64} {
  func.func @_conv3x3_bn_stats_kernel(%arg0: i32, %arg1: i32, %arg2: memref<1x8x16x8xbf16, #tpu.memory_space<vmem>>, %arg3: memref<1x1x16x8xbf16, #tpu.memory_space<vmem>>, %arg4: memref<1x1x16x8xbf16, #tpu.memory_space<vmem>>, %arg5: memref<9x8x8xbf16, #tpu.memory_space<vmem>>, %arg6: memref<1x8xf32, #tpu.memory_space<vmem>>, %arg7: memref<1x8xf32, #tpu.memory_space<vmem>>, %arg8: memref<1x8x16x8xbf16, #tpu.memory_space<vmem>>, %arg9: memref<1x1x1x8xf32, #tpu.memory_space<vmem>>, %arg10: memref<1x1x1x8xf32, #tpu.memory_space<vmem>>, %arg11: memref<10x18x8xbf16, #tpu.memory_space<vmem>>) attributes {dimension_semantics = [#tpu.dimension_semantics<parallel>, #tpu.dimension_semantics<parallel>], iteration_bounds = array<i64: 2, 2>, scalar_prefetch = 0 : i64, scratch_operands = 1 : i64, tpu.core_type = #tpu.core_type<tc>, window_params = [{transform_indices = @transform_0, window_bounds = array<i64: 1, 8, 16, 8>}, {transform_indices = @transform_1, window_bounds = array<i64: 1, 1, 16, 8>}, {transform_indices = @transform_2, window_bounds = array<i64: 1, 1, 16, 8>}, {pipeline_mode = #tpu.pipeline_mode<synchronous>, transform_indices = @transform_3, window_bounds = array<i64: 9, 8, 8>}, {pipeline_mode = #tpu.pipeline_mode<synchronous>, transform_indices = @transform_4, window_bounds = array<i64: 1, 8>}, {pipeline_mode = #tpu.pipeline_mode<synchronous>, transform_indices = @transform_5, window_bounds = array<i64: 1, 8>}, {transform_indices = @transform_6, window_bounds = array<i64: 1, 8, 16, 8>}, {transform_indices = @transform_7, window_bounds = array<i64: 1, 1, 1, 8>}, {transform_indices = @transform_8, window_bounds = array<i64: 1, 1, 1, 8>}]} {
    %c0 = arith.constant 0 : index
    %c0_0 = arith.constant 0 : index
    %c0_1 = arith.constant 0 : index
    %c0_2 = arith.constant 0 : index
    %0 = vector.load %arg2[%c0, %c0_0, %c0_1, %c0_2] : memref<1x8x16x8xbf16, #tpu.memory_space<vmem>>, vector<1x8x16x8xbf16>
    %1 = vector.shape_cast %0 : vector<1x8x16x8xbf16> to vector<8x16x8xbf16>
    %c0_i32 = arith.constant 0 : i32
    %2 = arith.cmpi sgt, %arg1, %c0_i32 : i32
    %3 = arith.extui %2 : i1 to i32
    %4 = arith.sitofp %3 : i32 to f32
    %5 = arith.truncf %4 : f32 to bf16
    %c1_i32 = arith.constant 1 : i32
    %6 = arith.cmpi slt, %arg1, %c1_i32 : i32
    %7 = arith.extui %6 : i1 to i32
    %8 = arith.sitofp %7 : i32 to f32
    %9 = arith.truncf %8 : f32 to bf16
    %c0_3 = arith.constant 0 : index
    %c0_4 = arith.constant 0 : index
    %c0_5 = arith.constant 0 : index
    %c0_6 = arith.constant 0 : index
    %10 = vector.load %arg3[%c0_3, %c0_4, %c0_5, %c0_6] : memref<1x1x16x8xbf16, #tpu.memory_space<vmem>>, vector<1x1x16x8xbf16>
    %11 = vector.shape_cast %10 : vector<1x1x16x8xbf16> to vector<16x8xbf16>
    %12 = vector.broadcast %5 : bf16 to vector<16x8xbf16>
    %13 = arith.mulf %11, %12 : vector<16x8xbf16>
    %c0_7 = arith.constant 0 : index
    %c0_8 = arith.constant 0 : index
    %c0_9 = arith.constant 0 : index
    %c0_10 = arith.constant 0 : index
    %14 = vector.load %arg4[%c0_7, %c0_8, %c0_9, %c0_10] : memref<1x1x16x8xbf16, #tpu.memory_space<vmem>>, vector<1x1x16x8xbf16>
    %15 = vector.shape_cast %14 : vector<1x1x16x8xbf16> to vector<16x8xbf16>
    %16 = vector.broadcast %9 : bf16 to vector<16x8xbf16>
    %17 = arith.mulf %15, %16 : vector<16x8xbf16>
    %cst = arith.constant 0.000000e+00 : bf16
    %18 = vector.broadcast %cst : bf16 to vector<10x8xbf16>
    %c0_11 = arith.constant 0 : index
    %c0_12 = arith.constant 0 : index
    %c0_13 = arith.constant 0 : index
    %19 = vector.load %arg11[%c0_11, %c0_12, %c0_13] : memref<10x18x8xbf16, #tpu.memory_space<vmem>>, vector<10x1x8xbf16>
    %20 = vector.shape_cast %19 : vector<10x1x8xbf16> to vector<10x8xbf16>
    %21 = vector.shape_cast %18 : vector<10x8xbf16> to vector<10x1x8xbf16>
    tpu.vector_store %arg11[%c0_11, %c0_12, %c0_13], %21 {strides = array<i32>} : memref<10x18x8xbf16, #tpu.memory_space<vmem>>, vector<10x1x8xbf16>,
    %c0_14 = arith.constant 0 : index
    %c17 = arith.constant 17 : index
    %c0_15 = arith.constant 0 : index
    %22 = vector.load %arg11[%c0_14, %c17, %c0_15] : memref<10x18x8xbf16, #tpu.memory_space<vmem>>, vector<10x1x8xbf16>
    %23 = vector.shape_cast %22 : vector<10x1x8xbf16> to vector<10x8xbf16>
    %24 = vector.shape_cast %18 : vector<10x8xbf16> to vector<10x1x8xbf16>
    tpu.vector_store %arg11[%c0_14, %c17, %c0_15], %24 {strides = array<i32>} : memref<10x18x8xbf16, #tpu.memory_space<vmem>>, vector<10x1x8xbf16>,
    %c0_16 = arith.constant 0 : index
    %c1 = arith.constant 1 : index
    %c0_17 = arith.constant 0 : index
    %25 = vector.load %arg11[%c0_16, %c1, %c0_17] : memref<10x18x8xbf16, #tpu.memory_space<vmem>>, vector<1x16x8xbf16>
    %26 = vector.shape_cast %25 : vector<1x16x8xbf16> to vector<16x8xbf16>
    %27 = vector.shape_cast %13 : vector<16x8xbf16> to vector<1x16x8xbf16>
    tpu.vector_store %arg11[%c0_16, %c1, %c0_17], %27 {strides = array<i32>} : memref<10x18x8xbf16, #tpu.memory_space<vmem>>, vector<1x16x8xbf16>,
    %c9 = arith.constant 9 : index
    %c1_18 = arith.constant 1 : index
    %c0_19 = arith.constant 0 : index
    %28 = vector.load %arg11[%c9, %c1_18, %c0_19] : memref<10x18x8xbf16, #tpu.memory_space<vmem>>, vector<1x16x8xbf16>
    %29 = vector.shape_cast %28 : vector<1x16x8xbf16> to vector<16x8xbf16>
    %30 = vector.shape_cast %17 : vector<16x8xbf16> to vector<1x16x8xbf16>
    tpu.vector_store %arg11[%c9, %c1_18, %c0_19], %30 {strides = array<i32>} : memref<10x18x8xbf16, #tpu.memory_space<vmem>>, vector<1x16x8xbf16>,
    %c1_20 = arith.constant 1 : index
    %c1_21 = arith.constant 1 : index
    %c0_22 = arith.constant 0 : index
    %31 = vector.load %arg11[%c1_20, %c1_21, %c0_22] : memref<10x18x8xbf16, #tpu.memory_space<vmem>>, vector<8x16x8xbf16>
    tpu.vector_store %arg11[%c1_20, %c1_21, %c0_22], %1 {strides = array<i32>} : memref<10x18x8xbf16, #tpu.memory_space<vmem>>, vector<8x16x8xbf16>,
    %cst_23 = arith.constant 0.000000e+00 : f32
    %32 = vector.broadcast %cst_23 : f32 to vector<128x8xf32>
    %c0_24 = arith.constant 0 : index
    %c0_25 = arith.constant 0 : index
    %c0_26 = arith.constant 0 : index
    %33 = vector.load %arg11[%c0_24, %c0_25, %c0_26] : memref<10x18x8xbf16, #tpu.memory_space<vmem>>, vector<8x16x8xbf16>
    %34 = vector.shape_cast %33 : vector<8x16x8xbf16> to vector<128x8xbf16>
    %c0_27 = arith.constant 0 : index
    %c0_28 = arith.constant 0 : index
    %c0_29 = arith.constant 0 : index
    %35 = vector.load %arg5[%c0_27, %c0_28, %c0_29] : memref<9x8x8xbf16, #tpu.memory_space<vmem>>, vector<1x8x8xbf16>
    %36 = vector.shape_cast %35 : vector<1x8x8xbf16> to vector<8x8xbf16>
    %cst_30 = arith.constant dense<0.000000e+00> : vector<128x8xf32>
    %37 = tpu.matmul %34, %36, %cst_30 {dimension_numbers = #tpu.dot_dimension_numbers<[1], [0], [0], [1], [0, 0, 1, 1], [], []>} : vector<128x8xbf16>, vector<8x8xbf16>, vector<128x8xf32> -> vector<128x8xf32>
    %38 = arith.addf %32, %37 : vector<128x8xf32>
    %c0_31 = arith.constant 0 : index
    %c1_32 = arith.constant 1 : index
    %c0_33 = arith.constant 0 : index
    %39 = vector.load %arg11[%c0_31, %c1_32, %c0_33] : memref<10x18x8xbf16, #tpu.memory_space<vmem>>, vector<8x16x8xbf16>
    %40 = vector.shape_cast %39 : vector<8x16x8xbf16> to vector<128x8xbf16>
    %c1_34 = arith.constant 1 : index
    %c0_35 = arith.constant 0 : index
    %c0_36 = arith.constant 0 : index
    %41 = vector.load %arg5[%c1_34, %c0_35, %c0_36] : memref<9x8x8xbf16, #tpu.memory_space<vmem>>, vector<1x8x8xbf16>
    %42 = vector.shape_cast %41 : vector<1x8x8xbf16> to vector<8x8xbf16>
    %cst_37 = arith.constant dense<0.000000e+00> : vector<128x8xf32>
    %43 = tpu.matmul %40, %42, %cst_37 {dimension_numbers = #tpu.dot_dimension_numbers<[1], [0], [0], [1], [0, 0, 1, 1], [], []>} : vector<128x8xbf16>, vector<8x8xbf16>, vector<128x8xf32> -> vector<128x8xf32>
    %44 = arith.addf %38, %43 : vector<128x8xf32>
    %c0_38 = arith.constant 0 : index
    %c2 = arith.constant 2 : index
    %c0_39 = arith.constant 0 : index
    %45 = vector.load %arg11[%c0_38, %c2, %c0_39] : memref<10x18x8xbf16, #tpu.memory_space<vmem>>, vector<8x16x8xbf16>
    %46 = vector.shape_cast %45 : vector<8x16x8xbf16> to vector<128x8xbf16>
    %c2_40 = arith.constant 2 : index
    %c0_41 = arith.constant 0 : index
    %c0_42 = arith.constant 0 : index
    %47 = vector.load %arg5[%c2_40, %c0_41, %c0_42] : memref<9x8x8xbf16, #tpu.memory_space<vmem>>, vector<1x8x8xbf16>
    %48 = vector.shape_cast %47 : vector<1x8x8xbf16> to vector<8x8xbf16>
    %cst_43 = arith.constant dense<0.000000e+00> : vector<128x8xf32>
    %49 = tpu.matmul %46, %48, %cst_43 {dimension_numbers = #tpu.dot_dimension_numbers<[1], [0], [0], [1], [0, 0, 1, 1], [], []>} : vector<128x8xbf16>, vector<8x8xbf16>, vector<128x8xf32> -> vector<128x8xf32>
    %50 = arith.addf %44, %49 : vector<128x8xf32>
    %c1_44 = arith.constant 1 : index
    %c0_45 = arith.constant 0 : index
    %c0_46 = arith.constant 0 : index
    %51 = vector.load %arg11[%c1_44, %c0_45, %c0_46] : memref<10x18x8xbf16, #tpu.memory_space<vmem>>, vector<8x16x8xbf16>
    %52 = vector.shape_cast %51 : vector<8x16x8xbf16> to vector<128x8xbf16>
    %c3 = arith.constant 3 : index
    %c0_47 = arith.constant 0 : index
    %c0_48 = arith.constant 0 : index
    %53 = vector.load %arg5[%c3, %c0_47, %c0_48] : memref<9x8x8xbf16, #tpu.memory_space<vmem>>, vector<1x8x8xbf16>
    %54 = vector.shape_cast %53 : vector<1x8x8xbf16> to vector<8x8xbf16>
    %cst_49 = arith.constant dense<0.000000e+00> : vector<128x8xf32>
    %55 = tpu.matmul %52, %54, %cst_49 {dimension_numbers = #tpu.dot_dimension_numbers<[1], [0], [0], [1], [0, 0, 1, 1], [], []>} : vector<128x8xbf16>, vector<8x8xbf16>, vector<128x8xf32> -> vector<128x8xf32>
    %56 = arith.addf %50, %55 : vector<128x8xf32>
    %c1_50 = arith.constant 1 : index
    %c1_51 = arith.constant 1 : index
    %c0_52 = arith.constant 0 : index
    %57 = vector.load %arg11[%c1_50, %c1_51, %c0_52] : memref<10x18x8xbf16, #tpu.memory_space<vmem>>, vector<8x16x8xbf16>
    %58 = vector.shape_cast %57 : vector<8x16x8xbf16> to vector<128x8xbf16>
    %c4 = arith.constant 4 : index
    %c0_53 = arith.constant 0 : index
    %c0_54 = arith.constant 0 : index
    %59 = vector.load %arg5[%c4, %c0_53, %c0_54] : memref<9x8x8xbf16, #tpu.memory_space<vmem>>, vector<1x8x8xbf16>
    %60 = vector.shape_cast %59 : vector<1x8x8xbf16> to vector<8x8xbf16>
    %cst_55 = arith.constant dense<0.000000e+00> : vector<128x8xf32>
    %61 = tpu.matmul %58, %60, %cst_55 {dimension_numbers = #tpu.dot_dimension_numbers<[1], [0], [0], [1], [0, 0, 1, 1], [], []>} : vector<128x8xbf16>, vector<8x8xbf16>, vector<128x8xf32> -> vector<128x8xf32>
    %62 = arith.addf %56, %61 : vector<128x8xf32>
    %c1_56 = arith.constant 1 : index
    %c2_57 = arith.constant 2 : index
    %c0_58 = arith.constant 0 : index
    %63 = vector.load %arg11[%c1_56, %c2_57, %c0_58] : memref<10x18x8xbf16, #tpu.memory_space<vmem>>, vector<8x16x8xbf16>
    %64 = vector.shape_cast %63 : vector<8x16x8xbf16> to vector<128x8xbf16>
    %c5 = arith.constant 5 : index
    %c0_59 = arith.constant 0 : index
    %c0_60 = arith.constant 0 : index
    %65 = vector.load %arg5[%c5, %c0_59, %c0_60] : memref<9x8x8xbf16, #tpu.memory_space<vmem>>, vector<1x8x8xbf16>
    %66 = vector.shape_cast %65 : vector<1x8x8xbf16> to vector<8x8xbf16>
    %cst_61 = arith.constant dense<0.000000e+00> : vector<128x8xf32>
    %67 = tpu.matmul %64, %66, %cst_61 {dimension_numbers = #tpu.dot_dimension_numbers<[1], [0], [0], [1], [0, 0, 1, 1], [], []>} : vector<128x8xbf16>, vector<8x8xbf16>, vector<128x8xf32> -> vector<128x8xf32>
    %68 = arith.addf %62, %67 : vector<128x8xf32>
    %c2_62 = arith.constant 2 : index
    %c0_63 = arith.constant 0 : index
    %c0_64 = arith.constant 0 : index
    %69 = vector.load %arg11[%c2_62, %c0_63, %c0_64] : memref<10x18x8xbf16, #tpu.memory_space<vmem>>, vector<8x16x8xbf16>
    %70 = vector.shape_cast %69 : vector<8x16x8xbf16> to vector<128x8xbf16>
    %c6 = arith.constant 6 : index
    %c0_65 = arith.constant 0 : index
    %c0_66 = arith.constant 0 : index
    %71 = vector.load %arg5[%c6, %c0_65, %c0_66] : memref<9x8x8xbf16, #tpu.memory_space<vmem>>, vector<1x8x8xbf16>
    %72 = vector.shape_cast %71 : vector<1x8x8xbf16> to vector<8x8xbf16>
    %cst_67 = arith.constant dense<0.000000e+00> : vector<128x8xf32>
    %73 = tpu.matmul %70, %72, %cst_67 {dimension_numbers = #tpu.dot_dimension_numbers<[1], [0], [0], [1], [0, 0, 1, 1], [], []>} : vector<128x8xbf16>, vector<8x8xbf16>, vector<128x8xf32> -> vector<128x8xf32>
    %74 = arith.addf %68, %73 : vector<128x8xf32>
    %c2_68 = arith.constant 2 : index
    %c1_69 = arith.constant 1 : index
    %c0_70 = arith.constant 0 : index
    %75 = vector.load %arg11[%c2_68, %c1_69, %c0_70] : memref<10x18x8xbf16, #tpu.memory_space<vmem>>, vector<8x16x8xbf16>
    %76 = vector.shape_cast %75 : vector<8x16x8xbf16> to vector<128x8xbf16>
    %c7 = arith.constant 7 : index
    %c0_71 = arith.constant 0 : index
    %c0_72 = arith.constant 0 : index
    %77 = vector.load %arg5[%c7, %c0_71, %c0_72] : memref<9x8x8xbf16, #tpu.memory_space<vmem>>, vector<1x8x8xbf16>
    %78 = vector.shape_cast %77 : vector<1x8x8xbf16> to vector<8x8xbf16>
    %cst_73 = arith.constant dense<0.000000e+00> : vector<128x8xf32>
    %79 = tpu.matmul %76, %78, %cst_73 {dimension_numbers = #tpu.dot_dimension_numbers<[1], [0], [0], [1], [0, 0, 1, 1], [], []>} : vector<128x8xbf16>, vector<8x8xbf16>, vector<128x8xf32> -> vector<128x8xf32>
    %80 = arith.addf %74, %79 : vector<128x8xf32>
    %c2_74 = arith.constant 2 : index
    %c2_75 = arith.constant 2 : index
    %c0_76 = arith.constant 0 : index
    %81 = vector.load %arg11[%c2_74, %c2_75, %c0_76] : memref<10x18x8xbf16, #tpu.memory_space<vmem>>, vector<8x16x8xbf16>
    %82 = vector.shape_cast %81 : vector<8x16x8xbf16> to vector<128x8xbf16>
    %c8 = arith.constant 8 : index
    %c0_77 = arith.constant 0 : index
    %c0_78 = arith.constant 0 : index
    %83 = vector.load %arg5[%c8, %c0_77, %c0_78] : memref<9x8x8xbf16, #tpu.memory_space<vmem>>, vector<1x8x8xbf16>
    %84 = vector.shape_cast %83 : vector<1x8x8xbf16> to vector<8x8xbf16>
    %cst_79 = arith.constant dense<0.000000e+00> : vector<128x8xf32>
    %85 = tpu.matmul %82, %84, %cst_79 {dimension_numbers = #tpu.dot_dimension_numbers<[1], [0], [0], [1], [0, 0, 1, 1], [], []>} : vector<128x8xbf16>, vector<8x8xbf16>, vector<128x8xf32> -> vector<128x8xf32>
    %86 = arith.addf %80, %85 : vector<128x8xf32>
    %87 = vector.shape_cast %86 : vector<128x8xf32> to vector<8x16x8xf32>
    %88 = arith.truncf %87 : vector<8x16x8xf32> to vector<8x16x8xbf16>
    %c0_80 = arith.constant 0 : index
    %c0_81 = arith.constant 0 : index
    %c0_82 = arith.constant 0 : index
    %c0_83 = arith.constant 0 : index
    %89 = vector.load %arg8[%c0_80, %c0_81, %c0_82, %c0_83] : memref<1x8x16x8xbf16, #tpu.memory_space<vmem>>, vector<1x8x16x8xbf16>
    %90 = vector.shape_cast %89 : vector<1x8x16x8xbf16> to vector<8x16x8xbf16>
    %91 = vector.shape_cast %88 : vector<8x16x8xbf16> to vector<1x8x16x8xbf16>
    tpu.vector_store %arg8[%c0_80, %c0_81, %c0_82, %c0_83], %91 {strides = array<i32>} : memref<1x8x16x8xbf16, #tpu.memory_space<vmem>>, vector<1x8x16x8xbf16>,
    %cst_84 = arith.constant dense<0.000000e+00> : vector<8xf32>
    %92 = vector.multi_reduction <add>, %86, %cst_84 [0] : vector<128x8xf32> to vector<8xf32>
    %93 = vector.shape_cast %92 : vector<8xf32> to vector<1x8xf32>
    %c0_85 = arith.constant 0 : index
    %c0_86 = arith.constant 0 : index
    %c0_87 = arith.constant 0 : index
    %c0_88 = arith.constant 0 : index
    %94 = vector.load %arg9[%c0_85, %c0_86, %c0_87, %c0_88] : memref<1x1x1x8xf32, #tpu.memory_space<vmem>>, vector<1x1x1x8xf32>
    %95 = vector.shape_cast %94 : vector<1x1x1x8xf32> to vector<1x8xf32>
    %96 = vector.shape_cast %93 : vector<1x8xf32> to vector<1x1x1x8xf32>
    tpu.vector_store %arg9[%c0_85, %c0_86, %c0_87, %c0_88], %96 {strides = array<i32>} : memref<1x1x1x8xf32, #tpu.memory_space<vmem>>, vector<1x1x1x8xf32>,
    %97 = arith.mulf %86, %86 : vector<128x8xf32>
    %cst_89 = arith.constant dense<0.000000e+00> : vector<8xf32>
    %98 = vector.multi_reduction <add>, %97, %cst_89 [0] : vector<128x8xf32> to vector<8xf32>
    %99 = vector.shape_cast %98 : vector<8xf32> to vector<1x8xf32>
    %c0_90 = arith.constant 0 : index
    %c0_91 = arith.constant 0 : index
    %c0_92 = arith.constant 0 : index
    %c0_93 = arith.constant 0 : index
    %100 = vector.load %arg10[%c0_90, %c0_91, %c0_92, %c0_93] : memref<1x1x1x8xf32, #tpu.memory_space<vmem>>, vector<1x1x1x8xf32>
    %101 = vector.shape_cast %100 : vector<1x1x1x8xf32> to vector<1x8xf32>
    %102 = vector.shape_cast %99 : vector<1x8xf32> to vector<1x1x1x8xf32>
    tpu.vector_store %arg10[%c0_90, %c0_91, %c0_92, %c0_93], %102 {strides = array<i32>} : memref<1x1x1x8xf32, #tpu.memory_space<vmem>>, vector<1x1x1x8xf32>,
    return
  }
  func.func @transform_0(%arg0: i32, %arg1: i32) -> (i32, i32, i32, i32) {
    %c0_i32 = arith.constant 0 : i32
    %c0_i32_0 = arith.constant 0 : i32
    %c0_i32_1 = arith.constant 0 : i32
    return %arg0, %arg1, %c0_i32, %c0_i32_0 : i32, i32, i32, i32
  }
  func.func @transform_1(%arg0: i32, %arg1: i32) -> (i32, i32, i32, i32) {
    %c8_i32 = arith.constant 8 : i32
    %0 = arith.muli %arg1, %c8_i32 : i32
    %c1_i32 = arith.constant 1 : i32
    %1 = arith.subi %0, %c1_i32 : i32
    %c0_i32 = arith.constant 0 : i32
    %2 = arith.maxsi %1, %c0_i32 : i32
    %c0_i32_0 = arith.constant 0 : i32
    %c0_i32_1 = arith.constant 0 : i32
    %c0_i32_2 = arith.constant 0 : i32
    return %arg0, %2, %c0_i32_0, %c0_i32_1 : i32, i32, i32, i32
  }
  func.func @transform_2(%arg0: i32, %arg1: i32) -> (i32, i32, i32, i32) {
    %c8_i32 = arith.constant 8 : i32
    %0 = arith.muli %arg1, %c8_i32 : i32
    %c8_i32_0 = arith.constant 8 : i32
    %1 = arith.addi %0, %c8_i32_0 : i32
    %c15_i32 = arith.constant 15 : i32
    %2 = arith.minsi %1, %c15_i32 : i32
    %c0_i32 = arith.constant 0 : i32
    %c0_i32_1 = arith.constant 0 : i32
    %c0_i32_2 = arith.constant 0 : i32
    return %arg0, %2, %c0_i32, %c0_i32_1 : i32, i32, i32, i32
  }
  func.func @transform_3(%arg0: i32, %arg1: i32) -> (i32, i32, i32) {
    %c0_i32 = arith.constant 0 : i32
    %c0_i32_0 = arith.constant 0 : i32
    %c0_i32_1 = arith.constant 0 : i32
    %c0_i32_2 = arith.constant 0 : i32
    return %c0_i32, %c0_i32_0, %c0_i32_1 : i32, i32, i32
  }
  func.func @transform_4(%arg0: i32, %arg1: i32) -> (i32, i32) {
    %c0_i32 = arith.constant 0 : i32
    %c0_i32_0 = arith.constant 0 : i32
    %c0_i32_1 = arith.constant 0 : i32
    return %c0_i32, %c0_i32_0 : i32, i32
  }
  func.func @transform_5(%arg0: i32, %arg1: i32) -> (i32, i32) {
    %c0_i32 = arith.constant 0 : i32
    %c0_i32_0 = arith.constant 0 : i32
    %c0_i32_1 = arith.constant 0 : i32
    return %c0_i32, %c0_i32_0 : i32, i32
  }
  func.func @transform_6(%arg0: i32, %arg1: i32) -> (i32, i32, i32, i32) {
    %c0_i32 = arith.constant 0 : i32
    %c0_i32_0 = arith.constant 0 : i32
    %c0_i32_1 = arith.constant 0 : i32
    return %arg0, %arg1, %c0_i32, %c0_i32_0 : i32, i32, i32, i32
  }
  func.func @transform_7(%arg0: i32, %arg1: i32) -> (i32, i32, i32, i32) {
    %c0_i32 = arith.constant 0 : i32
    %c0_i32_0 = arith.constant 0 : i32
    %c0_i32_1 = arith.constant 0 : i32
    return %arg0, %arg1, %c0_i32, %c0_i32_0 : i32, i32, i32, i32
  }
  func.func @transform_8(%arg0: i32, %arg1: i32) -> (i32, i32, i32, i32) {
    %c0_i32 = arith.constant 0 : i32
    %c0_i32_0 = arith.constant 0 : i32
    %c0_i32_1 = arith.constant 0 : i32
    return %arg0, %arg1, %c0_i32, %c0_i32_0 : i32, i32, i32, i32
  }
}

module attributes {stable_mosaic.version = 11 : i64} {
  func.func @_conv3x3_bn_stats_kernel(%arg0: i32, %arg1: i32, %arg2: memref<1x8x16x8xbf16, #tpu.memory_space<vmem>>, %arg3: memref<1x1x16x8xbf16, #tpu.memory_space<vmem>>, %arg4: memref<1x1x16x8xbf16, #tpu.memory_space<vmem>>, %arg5: memref<9x8x8xbf16, #tpu.memory_space<vmem>>, %arg6: memref<1x8xf32, #tpu.memory_space<vmem>>, %arg7: memref<1x8xf32, #tpu.memory_space<vmem>>, %arg8: memref<1x8x16x8xbf16, #tpu.memory_space<vmem>>, %arg9: memref<1x1x1x8xf32, #tpu.memory_space<vmem>>, %arg10: memref<1x1x1x8xf32, #tpu.memory_space<vmem>>, %arg11: memref<10x18x8xbf16, #tpu.memory_space<vmem>>) attributes {dimension_semantics = [#tpu.dimension_semantics<parallel>, #tpu.dimension_semantics<parallel>], iteration_bounds = array<i64: 2, 2>, scalar_prefetch = 0 : i64, scratch_operands = 1 : i64, tpu.core_type = #tpu.core_type<tc>, window_params = [{transform_indices = @transform_0, window_bounds = array<i64: 1, 8, 16, 8>}, {transform_indices = @transform_1, window_bounds = array<i64: 1, 1, 16, 8>}, {transform_indices = @transform_2, window_bounds = array<i64: 1, 1, 16, 8>}, {pipeline_mode = #tpu.pipeline_mode<synchronous>, transform_indices = @transform_3, window_bounds = array<i64: 9, 8, 8>}, {pipeline_mode = #tpu.pipeline_mode<synchronous>, transform_indices = @transform_4, window_bounds = array<i64: 1, 8>}, {pipeline_mode = #tpu.pipeline_mode<synchronous>, transform_indices = @transform_5, window_bounds = array<i64: 1, 8>}, {transform_indices = @transform_6, window_bounds = array<i64: 1, 8, 16, 8>}, {transform_indices = @transform_7, window_bounds = array<i64: 1, 1, 1, 8>}, {transform_indices = @transform_8, window_bounds = array<i64: 1, 1, 1, 8>}]} {
    %c0 = arith.constant 0 : index
    %c0_0 = arith.constant 0 : index
    %c0_1 = arith.constant 0 : index
    %c0_2 = arith.constant 0 : index
    %0 = vector.load %arg2[%c0, %c0_0, %c0_1, %c0_2] : memref<1x8x16x8xbf16, #tpu.memory_space<vmem>>, vector<1x8x16x8xbf16>
    %1 = vector.shape_cast %0 : vector<1x8x16x8xbf16> to vector<8x16x8xbf16>
    %2 = arith.extf %1 : vector<8x16x8xbf16> to vector<8x16x8xf32>
    %c0_3 = arith.constant 0 : index
    %c0_4 = arith.constant 0 : index
    %3 = vector.load %arg6[%c0_3, %c0_4] : memref<1x8xf32, #tpu.memory_space<vmem>>, vector<1x8xf32>
    %4 = vector.shape_cast %3 : vector<1x8xf32> to vector<8xf32>
    %5 = vector.shape_cast %4 : vector<8xf32> to vector<1x1x8xf32>
    %6 = vector.broadcast %5 : vector<1x1x8xf32> to vector<8x16x8xf32>
    %7 = arith.mulf %2, %6 : vector<8x16x8xf32>
    %c0_5 = arith.constant 0 : index
    %c0_6 = arith.constant 0 : index
    %8 = vector.load %arg7[%c0_5, %c0_6] : memref<1x8xf32, #tpu.memory_space<vmem>>, vector<1x8xf32>
    %9 = vector.shape_cast %8 : vector<1x8xf32> to vector<8xf32>
    %10 = vector.shape_cast %9 : vector<8xf32> to vector<1x1x8xf32>
    %11 = vector.broadcast %10 : vector<1x1x8xf32> to vector<8x16x8xf32>
    %12 = arith.addf %7, %11 : vector<8x16x8xf32>
    %cst = arith.constant 0.000000e+00 : f32
    %13 = vector.broadcast %cst : f32 to vector<8x16x8xf32>
    %14 = arith.maximumf %12, %13 : vector<8x16x8xf32>
    %15 = arith.truncf %14 : vector<8x16x8xf32> to vector<8x16x8xbf16>
    %c0_i32 = arith.constant 0 : i32
    %16 = arith.cmpi sgt, %arg1, %c0_i32 : i32
    %17 = arith.extui %16 : i1 to i32
    %18 = arith.sitofp %17 : i32 to f32
    %19 = arith.truncf %18 : f32 to bf16
    %c1_i32 = arith.constant 1 : i32
    %20 = arith.cmpi slt, %arg1, %c1_i32 : i32
    %21 = arith.extui %20 : i1 to i32
    %22 = arith.sitofp %21 : i32 to f32
    %23 = arith.truncf %22 : f32 to bf16
    %c0_7 = arith.constant 0 : index
    %c0_8 = arith.constant 0 : index
    %c0_9 = arith.constant 0 : index
    %c0_10 = arith.constant 0 : index
    %24 = vector.load %arg3[%c0_7, %c0_8, %c0_9, %c0_10] : memref<1x1x16x8xbf16, #tpu.memory_space<vmem>>, vector<1x1x16x8xbf16>
    %25 = vector.shape_cast %24 : vector<1x1x16x8xbf16> to vector<16x8xbf16>
    %26 = arith.extf %25 : vector<16x8xbf16> to vector<16x8xf32>
    %c0_11 = arith.constant 0 : index
    %c0_12 = arith.constant 0 : index
    %27 = vector.load %arg6[%c0_11, %c0_12] : memref<1x8xf32, #tpu.memory_space<vmem>>, vector<1x8xf32>
    %28 = vector.shape_cast %27 : vector<1x8xf32> to vector<8xf32>
    %29 = vector.shape_cast %28 : vector<8xf32> to vector<1x8xf32>
    %30 = vector.broadcast %29 : vector<1x8xf32> to vector<16x8xf32>
    %31 = arith.mulf %26, %30 : vector<16x8xf32>
    %c0_13 = arith.constant 0 : index
    %c0_14 = arith.constant 0 : index
    %32 = vector.load %arg7[%c0_13, %c0_14] : memref<1x8xf32, #tpu.memory_space<vmem>>, vector<1x8xf32>
    %33 = vector.shape_cast %32 : vector<1x8xf32> to vector<8xf32>
    %34 = vector.shape_cast %33 : vector<8xf32> to vector<1x8xf32>
    %35 = vector.broadcast %34 : vector<1x8xf32> to vector<16x8xf32>
    %36 = arith.addf %31, %35 : vector<16x8xf32>
    %cst_15 = arith.constant 0.000000e+00 : f32
    %37 = vector.broadcast %cst_15 : f32 to vector<16x8xf32>
    %38 = arith.maximumf %36, %37 : vector<16x8xf32>
    %39 = arith.truncf %38 : vector<16x8xf32> to vector<16x8xbf16>
    %40 = vector.broadcast %19 : bf16 to vector<16x8xbf16>
    %41 = arith.mulf %39, %40 : vector<16x8xbf16>
    %c0_16 = arith.constant 0 : index
    %c0_17 = arith.constant 0 : index
    %c0_18 = arith.constant 0 : index
    %c0_19 = arith.constant 0 : index
    %42 = vector.load %arg4[%c0_16, %c0_17, %c0_18, %c0_19] : memref<1x1x16x8xbf16, #tpu.memory_space<vmem>>, vector<1x1x16x8xbf16>
    %43 = vector.shape_cast %42 : vector<1x1x16x8xbf16> to vector<16x8xbf16>
    %44 = arith.extf %43 : vector<16x8xbf16> to vector<16x8xf32>
    %c0_20 = arith.constant 0 : index
    %c0_21 = arith.constant 0 : index
    %45 = vector.load %arg6[%c0_20, %c0_21] : memref<1x8xf32, #tpu.memory_space<vmem>>, vector<1x8xf32>
    %46 = vector.shape_cast %45 : vector<1x8xf32> to vector<8xf32>
    %47 = vector.shape_cast %46 : vector<8xf32> to vector<1x8xf32>
    %48 = vector.broadcast %47 : vector<1x8xf32> to vector<16x8xf32>
    %49 = arith.mulf %44, %48 : vector<16x8xf32>
    %c0_22 = arith.constant 0 : index
    %c0_23 = arith.constant 0 : index
    %50 = vector.load %arg7[%c0_22, %c0_23] : memref<1x8xf32, #tpu.memory_space<vmem>>, vector<1x8xf32>
    %51 = vector.shape_cast %50 : vector<1x8xf32> to vector<8xf32>
    %52 = vector.shape_cast %51 : vector<8xf32> to vector<1x8xf32>
    %53 = vector.broadcast %52 : vector<1x8xf32> to vector<16x8xf32>
    %54 = arith.addf %49, %53 : vector<16x8xf32>
    %cst_24 = arith.constant 0.000000e+00 : f32
    %55 = vector.broadcast %cst_24 : f32 to vector<16x8xf32>
    %56 = arith.maximumf %54, %55 : vector<16x8xf32>
    %57 = arith.truncf %56 : vector<16x8xf32> to vector<16x8xbf16>
    %58 = vector.broadcast %23 : bf16 to vector<16x8xbf16>
    %59 = arith.mulf %57, %58 : vector<16x8xbf16>
    %cst_25 = arith.constant 0.000000e+00 : bf16
    %60 = vector.broadcast %cst_25 : bf16 to vector<10x8xbf16>
    %c0_26 = arith.constant 0 : index
    %c0_27 = arith.constant 0 : index
    %c0_28 = arith.constant 0 : index
    %61 = vector.load %arg11[%c0_26, %c0_27, %c0_28] : memref<10x18x8xbf16, #tpu.memory_space<vmem>>, vector<10x1x8xbf16>
    %62 = vector.shape_cast %61 : vector<10x1x8xbf16> to vector<10x8xbf16>
    %63 = vector.shape_cast %60 : vector<10x8xbf16> to vector<10x1x8xbf16>
    tpu.vector_store %arg11[%c0_26, %c0_27, %c0_28], %63 {strides = array<i32>} : memref<10x18x8xbf16, #tpu.memory_space<vmem>>, vector<10x1x8xbf16>,
    %c0_29 = arith.constant 0 : index
    %c17 = arith.constant 17 : index
    %c0_30 = arith.constant 0 : index
    %64 = vector.load %arg11[%c0_29, %c17, %c0_30] : memref<10x18x8xbf16, #tpu.memory_space<vmem>>, vector<10x1x8xbf16>
    %65 = vector.shape_cast %64 : vector<10x1x8xbf16> to vector<10x8xbf16>
    %66 = vector.shape_cast %60 : vector<10x8xbf16> to vector<10x1x8xbf16>
    tpu.vector_store %arg11[%c0_29, %c17, %c0_30], %66 {strides = array<i32>} : memref<10x18x8xbf16, #tpu.memory_space<vmem>>, vector<10x1x8xbf16>,
    %c0_31 = arith.constant 0 : index
    %c1 = arith.constant 1 : index
    %c0_32 = arith.constant 0 : index
    %67 = vector.load %arg11[%c0_31, %c1, %c0_32] : memref<10x18x8xbf16, #tpu.memory_space<vmem>>, vector<1x16x8xbf16>
    %68 = vector.shape_cast %67 : vector<1x16x8xbf16> to vector<16x8xbf16>
    %69 = vector.shape_cast %41 : vector<16x8xbf16> to vector<1x16x8xbf16>
    tpu.vector_store %arg11[%c0_31, %c1, %c0_32], %69 {strides = array<i32>} : memref<10x18x8xbf16, #tpu.memory_space<vmem>>, vector<1x16x8xbf16>,
    %c9 = arith.constant 9 : index
    %c1_33 = arith.constant 1 : index
    %c0_34 = arith.constant 0 : index
    %70 = vector.load %arg11[%c9, %c1_33, %c0_34] : memref<10x18x8xbf16, #tpu.memory_space<vmem>>, vector<1x16x8xbf16>
    %71 = vector.shape_cast %70 : vector<1x16x8xbf16> to vector<16x8xbf16>
    %72 = vector.shape_cast %59 : vector<16x8xbf16> to vector<1x16x8xbf16>
    tpu.vector_store %arg11[%c9, %c1_33, %c0_34], %72 {strides = array<i32>} : memref<10x18x8xbf16, #tpu.memory_space<vmem>>, vector<1x16x8xbf16>,
    %c1_35 = arith.constant 1 : index
    %c1_36 = arith.constant 1 : index
    %c0_37 = arith.constant 0 : index
    %73 = vector.load %arg11[%c1_35, %c1_36, %c0_37] : memref<10x18x8xbf16, #tpu.memory_space<vmem>>, vector<8x16x8xbf16>
    tpu.vector_store %arg11[%c1_35, %c1_36, %c0_37], %15 {strides = array<i32>} : memref<10x18x8xbf16, #tpu.memory_space<vmem>>, vector<8x16x8xbf16>,
    %cst_38 = arith.constant 0.000000e+00 : f32
    %74 = vector.broadcast %cst_38 : f32 to vector<128x8xf32>
    %c0_39 = arith.constant 0 : index
    %c0_40 = arith.constant 0 : index
    %c0_41 = arith.constant 0 : index
    %75 = vector.load %arg11[%c0_39, %c0_40, %c0_41] : memref<10x18x8xbf16, #tpu.memory_space<vmem>>, vector<8x16x8xbf16>
    %76 = vector.shape_cast %75 : vector<8x16x8xbf16> to vector<128x8xbf16>
    %c0_42 = arith.constant 0 : index
    %c0_43 = arith.constant 0 : index
    %c0_44 = arith.constant 0 : index
    %77 = vector.load %arg5[%c0_42, %c0_43, %c0_44] : memref<9x8x8xbf16, #tpu.memory_space<vmem>>, vector<1x8x8xbf16>
    %78 = vector.shape_cast %77 : vector<1x8x8xbf16> to vector<8x8xbf16>
    %cst_45 = arith.constant dense<0.000000e+00> : vector<128x8xf32>
    %79 = tpu.matmul %76, %78, %cst_45 {dimension_numbers = #tpu.dot_dimension_numbers<[1], [0], [0], [1], [0, 0, 1, 1], [], []>} : vector<128x8xbf16>, vector<8x8xbf16>, vector<128x8xf32> -> vector<128x8xf32>
    %80 = arith.addf %74, %79 : vector<128x8xf32>
    %c0_46 = arith.constant 0 : index
    %c1_47 = arith.constant 1 : index
    %c0_48 = arith.constant 0 : index
    %81 = vector.load %arg11[%c0_46, %c1_47, %c0_48] : memref<10x18x8xbf16, #tpu.memory_space<vmem>>, vector<8x16x8xbf16>
    %82 = vector.shape_cast %81 : vector<8x16x8xbf16> to vector<128x8xbf16>
    %c1_49 = arith.constant 1 : index
    %c0_50 = arith.constant 0 : index
    %c0_51 = arith.constant 0 : index
    %83 = vector.load %arg5[%c1_49, %c0_50, %c0_51] : memref<9x8x8xbf16, #tpu.memory_space<vmem>>, vector<1x8x8xbf16>
    %84 = vector.shape_cast %83 : vector<1x8x8xbf16> to vector<8x8xbf16>
    %cst_52 = arith.constant dense<0.000000e+00> : vector<128x8xf32>
    %85 = tpu.matmul %82, %84, %cst_52 {dimension_numbers = #tpu.dot_dimension_numbers<[1], [0], [0], [1], [0, 0, 1, 1], [], []>} : vector<128x8xbf16>, vector<8x8xbf16>, vector<128x8xf32> -> vector<128x8xf32>
    %86 = arith.addf %80, %85 : vector<128x8xf32>
    %c0_53 = arith.constant 0 : index
    %c2 = arith.constant 2 : index
    %c0_54 = arith.constant 0 : index
    %87 = vector.load %arg11[%c0_53, %c2, %c0_54] : memref<10x18x8xbf16, #tpu.memory_space<vmem>>, vector<8x16x8xbf16>
    %88 = vector.shape_cast %87 : vector<8x16x8xbf16> to vector<128x8xbf16>
    %c2_55 = arith.constant 2 : index
    %c0_56 = arith.constant 0 : index
    %c0_57 = arith.constant 0 : index
    %89 = vector.load %arg5[%c2_55, %c0_56, %c0_57] : memref<9x8x8xbf16, #tpu.memory_space<vmem>>, vector<1x8x8xbf16>
    %90 = vector.shape_cast %89 : vector<1x8x8xbf16> to vector<8x8xbf16>
    %cst_58 = arith.constant dense<0.000000e+00> : vector<128x8xf32>
    %91 = tpu.matmul %88, %90, %cst_58 {dimension_numbers = #tpu.dot_dimension_numbers<[1], [0], [0], [1], [0, 0, 1, 1], [], []>} : vector<128x8xbf16>, vector<8x8xbf16>, vector<128x8xf32> -> vector<128x8xf32>
    %92 = arith.addf %86, %91 : vector<128x8xf32>
    %c1_59 = arith.constant 1 : index
    %c0_60 = arith.constant 0 : index
    %c0_61 = arith.constant 0 : index
    %93 = vector.load %arg11[%c1_59, %c0_60, %c0_61] : memref<10x18x8xbf16, #tpu.memory_space<vmem>>, vector<8x16x8xbf16>
    %94 = vector.shape_cast %93 : vector<8x16x8xbf16> to vector<128x8xbf16>
    %c3 = arith.constant 3 : index
    %c0_62 = arith.constant 0 : index
    %c0_63 = arith.constant 0 : index
    %95 = vector.load %arg5[%c3, %c0_62, %c0_63] : memref<9x8x8xbf16, #tpu.memory_space<vmem>>, vector<1x8x8xbf16>
    %96 = vector.shape_cast %95 : vector<1x8x8xbf16> to vector<8x8xbf16>
    %cst_64 = arith.constant dense<0.000000e+00> : vector<128x8xf32>
    %97 = tpu.matmul %94, %96, %cst_64 {dimension_numbers = #tpu.dot_dimension_numbers<[1], [0], [0], [1], [0, 0, 1, 1], [], []>} : vector<128x8xbf16>, vector<8x8xbf16>, vector<128x8xf32> -> vector<128x8xf32>
    %98 = arith.addf %92, %97 : vector<128x8xf32>
    %c1_65 = arith.constant 1 : index
    %c1_66 = arith.constant 1 : index
    %c0_67 = arith.constant 0 : index
    %99 = vector.load %arg11[%c1_65, %c1_66, %c0_67] : memref<10x18x8xbf16, #tpu.memory_space<vmem>>, vector<8x16x8xbf16>
    %100 = vector.shape_cast %99 : vector<8x16x8xbf16> to vector<128x8xbf16>
    %c4 = arith.constant 4 : index
    %c0_68 = arith.constant 0 : index
    %c0_69 = arith.constant 0 : index
    %101 = vector.load %arg5[%c4, %c0_68, %c0_69] : memref<9x8x8xbf16, #tpu.memory_space<vmem>>, vector<1x8x8xbf16>
    %102 = vector.shape_cast %101 : vector<1x8x8xbf16> to vector<8x8xbf16>
    %cst_70 = arith.constant dense<0.000000e+00> : vector<128x8xf32>
    %103 = tpu.matmul %100, %102, %cst_70 {dimension_numbers = #tpu.dot_dimension_numbers<[1], [0], [0], [1], [0, 0, 1, 1], [], []>} : vector<128x8xbf16>, vector<8x8xbf16>, vector<128x8xf32> -> vector<128x8xf32>
    %104 = arith.addf %98, %103 : vector<128x8xf32>
    %c1_71 = arith.constant 1 : index
    %c2_72 = arith.constant 2 : index
    %c0_73 = arith.constant 0 : index
    %105 = vector.load %arg11[%c1_71, %c2_72, %c0_73] : memref<10x18x8xbf16, #tpu.memory_space<vmem>>, vector<8x16x8xbf16>
    %106 = vector.shape_cast %105 : vector<8x16x8xbf16> to vector<128x8xbf16>
    %c5 = arith.constant 5 : index
    %c0_74 = arith.constant 0 : index
    %c0_75 = arith.constant 0 : index
    %107 = vector.load %arg5[%c5, %c0_74, %c0_75] : memref<9x8x8xbf16, #tpu.memory_space<vmem>>, vector<1x8x8xbf16>
    %108 = vector.shape_cast %107 : vector<1x8x8xbf16> to vector<8x8xbf16>
    %cst_76 = arith.constant dense<0.000000e+00> : vector<128x8xf32>
    %109 = tpu.matmul %106, %108, %cst_76 {dimension_numbers = #tpu.dot_dimension_numbers<[1], [0], [0], [1], [0, 0, 1, 1], [], []>} : vector<128x8xbf16>, vector<8x8xbf16>, vector<128x8xf32> -> vector<128x8xf32>
    %110 = arith.addf %104, %109 : vector<128x8xf32>
    %c2_77 = arith.constant 2 : index
    %c0_78 = arith.constant 0 : index
    %c0_79 = arith.constant 0 : index
    %111 = vector.load %arg11[%c2_77, %c0_78, %c0_79] : memref<10x18x8xbf16, #tpu.memory_space<vmem>>, vector<8x16x8xbf16>
    %112 = vector.shape_cast %111 : vector<8x16x8xbf16> to vector<128x8xbf16>
    %c6 = arith.constant 6 : index
    %c0_80 = arith.constant 0 : index
    %c0_81 = arith.constant 0 : index
    %113 = vector.load %arg5[%c6, %c0_80, %c0_81] : memref<9x8x8xbf16, #tpu.memory_space<vmem>>, vector<1x8x8xbf16>
    %114 = vector.shape_cast %113 : vector<1x8x8xbf16> to vector<8x8xbf16>
    %cst_82 = arith.constant dense<0.000000e+00> : vector<128x8xf32>
    %115 = tpu.matmul %112, %114, %cst_82 {dimension_numbers = #tpu.dot_dimension_numbers<[1], [0], [0], [1], [0, 0, 1, 1], [], []>} : vector<128x8xbf16>, vector<8x8xbf16>, vector<128x8xf32> -> vector<128x8xf32>
    %116 = arith.addf %110, %115 : vector<128x8xf32>
    %c2_83 = arith.constant 2 : index
    %c1_84 = arith.constant 1 : index
    %c0_85 = arith.constant 0 : index
    %117 = vector.load %arg11[%c2_83, %c1_84, %c0_85] : memref<10x18x8xbf16, #tpu.memory_space<vmem>>, vector<8x16x8xbf16>
    %118 = vector.shape_cast %117 : vector<8x16x8xbf16> to vector<128x8xbf16>
    %c7 = arith.constant 7 : index
    %c0_86 = arith.constant 0 : index
    %c0_87 = arith.constant 0 : index
    %119 = vector.load %arg5[%c7, %c0_86, %c0_87] : memref<9x8x8xbf16, #tpu.memory_space<vmem>>, vector<1x8x8xbf16>
    %120 = vector.shape_cast %119 : vector<1x8x8xbf16> to vector<8x8xbf16>
    %cst_88 = arith.constant dense<0.000000e+00> : vector<128x8xf32>
    %121 = tpu.matmul %118, %120, %cst_88 {dimension_numbers = #tpu.dot_dimension_numbers<[1], [0], [0], [1], [0, 0, 1, 1], [], []>} : vector<128x8xbf16>, vector<8x8xbf16>, vector<128x8xf32> -> vector<128x8xf32>
    %122 = arith.addf %116, %121 : vector<128x8xf32>
    %c2_89 = arith.constant 2 : index
    %c2_90 = arith.constant 2 : index
    %c0_91 = arith.constant 0 : index
    %123 = vector.load %arg11[%c2_89, %c2_90, %c0_91] : memref<10x18x8xbf16, #tpu.memory_space<vmem>>, vector<8x16x8xbf16>
    %124 = vector.shape_cast %123 : vector<8x16x8xbf16> to vector<128x8xbf16>
    %c8 = arith.constant 8 : index
    %c0_92 = arith.constant 0 : index
    %c0_93 = arith.constant 0 : index
    %125 = vector.load %arg5[%c8, %c0_92, %c0_93] : memref<9x8x8xbf16, #tpu.memory_space<vmem>>, vector<1x8x8xbf16>
    %126 = vector.shape_cast %125 : vector<1x8x8xbf16> to vector<8x8xbf16>
    %cst_94 = arith.constant dense<0.000000e+00> : vector<128x8xf32>
    %127 = tpu.matmul %124, %126, %cst_94 {dimension_numbers = #tpu.dot_dimension_numbers<[1], [0], [0], [1], [0, 0, 1, 1], [], []>} : vector<128x8xbf16>, vector<8x8xbf16>, vector<128x8xf32> -> vector<128x8xf32>
    %128 = arith.addf %122, %127 : vector<128x8xf32>
    %129 = vector.shape_cast %128 : vector<128x8xf32> to vector<8x16x8xf32>
    %130 = arith.truncf %129 : vector<8x16x8xf32> to vector<8x16x8xbf16>
    %c0_95 = arith.constant 0 : index
    %c0_96 = arith.constant 0 : index
    %c0_97 = arith.constant 0 : index
    %c0_98 = arith.constant 0 : index
    %131 = vector.load %arg8[%c0_95, %c0_96, %c0_97, %c0_98] : memref<1x8x16x8xbf16, #tpu.memory_space<vmem>>, vector<1x8x16x8xbf16>
    %132 = vector.shape_cast %131 : vector<1x8x16x8xbf16> to vector<8x16x8xbf16>
    %133 = vector.shape_cast %130 : vector<8x16x8xbf16> to vector<1x8x16x8xbf16>
    tpu.vector_store %arg8[%c0_95, %c0_96, %c0_97, %c0_98], %133 {strides = array<i32>} : memref<1x8x16x8xbf16, #tpu.memory_space<vmem>>, vector<1x8x16x8xbf16>,
    %cst_99 = arith.constant dense<0.000000e+00> : vector<8xf32>
    %134 = vector.multi_reduction <add>, %128, %cst_99 [0] : vector<128x8xf32> to vector<8xf32>
    %135 = vector.shape_cast %134 : vector<8xf32> to vector<1x8xf32>
    %c0_100 = arith.constant 0 : index
    %c0_101 = arith.constant 0 : index
    %c0_102 = arith.constant 0 : index
    %c0_103 = arith.constant 0 : index
    %136 = vector.load %arg9[%c0_100, %c0_101, %c0_102, %c0_103] : memref<1x1x1x8xf32, #tpu.memory_space<vmem>>, vector<1x1x1x8xf32>
    %137 = vector.shape_cast %136 : vector<1x1x1x8xf32> to vector<1x8xf32>
    %138 = vector.shape_cast %135 : vector<1x8xf32> to vector<1x1x1x8xf32>
    tpu.vector_store %arg9[%c0_100, %c0_101, %c0_102, %c0_103], %138 {strides = array<i32>} : memref<1x1x1x8xf32, #tpu.memory_space<vmem>>, vector<1x1x1x8xf32>,
    %139 = arith.mulf %128, %128 : vector<128x8xf32>
    %cst_104 = arith.constant dense<0.000000e+00> : vector<8xf32>
    %140 = vector.multi_reduction <add>, %139, %cst_104 [0] : vector<128x8xf32> to vector<8xf32>
    %141 = vector.shape_cast %140 : vector<8xf32> to vector<1x8xf32>
    %c0_105 = arith.constant 0 : index
    %c0_106 = arith.constant 0 : index
    %c0_107 = arith.constant 0 : index
    %c0_108 = arith.constant 0 : index
    %142 = vector.load %arg10[%c0_105, %c0_106, %c0_107, %c0_108] : memref<1x1x1x8xf32, #tpu.memory_space<vmem>>, vector<1x1x1x8xf32>
    %143 = vector.shape_cast %142 : vector<1x1x1x8xf32> to vector<1x8xf32>
    %144 = vector.shape_cast %141 : vector<1x8xf32> to vector<1x1x1x8xf32>
    tpu.vector_store %arg10[%c0_105, %c0_106, %c0_107, %c0_108], %144 {strides = array<i32>} : memref<1x1x1x8xf32, #tpu.memory_space<vmem>>, vector<1x1x1x8xf32>,
    return
  }
  func.func @transform_0(%arg0: i32, %arg1: i32) -> (i32, i32, i32, i32) {
    %c0_i32 = arith.constant 0 : i32
    %c0_i32_0 = arith.constant 0 : i32
    %c0_i32_1 = arith.constant 0 : i32
    return %arg0, %arg1, %c0_i32, %c0_i32_0 : i32, i32, i32, i32
  }
  func.func @transform_1(%arg0: i32, %arg1: i32) -> (i32, i32, i32, i32) {
    %c8_i32 = arith.constant 8 : i32
    %0 = arith.muli %arg1, %c8_i32 : i32
    %c1_i32 = arith.constant 1 : i32
    %1 = arith.subi %0, %c1_i32 : i32
    %c0_i32 = arith.constant 0 : i32
    %2 = arith.maxsi %1, %c0_i32 : i32
    %c0_i32_0 = arith.constant 0 : i32
    %c0_i32_1 = arith.constant 0 : i32
    %c0_i32_2 = arith.constant 0 : i32
    return %arg0, %2, %c0_i32_0, %c0_i32_1 : i32, i32, i32, i32
  }
  func.func @transform_2(%arg0: i32, %arg1: i32) -> (i32, i32, i32, i32) {
    %c8_i32 = arith.constant 8 : i32
    %0 = arith.muli %arg1, %c8_i32 : i32
    %c8_i32_0 = arith.constant 8 : i32
    %1 = arith.addi %0, %c8_i32_0 : i32
    %c15_i32 = arith.constant 15 : i32
    %2 = arith.minsi %1, %c15_i32 : i32
    %c0_i32 = arith.constant 0 : i32
    %c0_i32_1 = arith.constant 0 : i32
    %c0_i32_2 = arith.constant 0 : i32
    return %arg0, %2, %c0_i32, %c0_i32_1 : i32, i32, i32, i32
  }
  func.func @transform_3(%arg0: i32, %arg1: i32) -> (i32, i32, i32) {
    %c0_i32 = arith.constant 0 : i32
    %c0_i32_0 = arith.constant 0 : i32
    %c0_i32_1 = arith.constant 0 : i32
    %c0_i32_2 = arith.constant 0 : i32
    return %c0_i32, %c0_i32_0, %c0_i32_1 : i32, i32, i32
  }
  func.func @transform_4(%arg0: i32, %arg1: i32) -> (i32, i32) {
    %c0_i32 = arith.constant 0 : i32
    %c0_i32_0 = arith.constant 0 : i32
    %c0_i32_1 = arith.constant 0 : i32
    return %c0_i32, %c0_i32_0 : i32, i32
  }
  func.func @transform_5(%arg0: i32, %arg1: i32) -> (i32, i32) {
    %c0_i32 = arith.constant 0 : i32
    %c0_i32_0 = arith.constant 0 : i32
    %c0_i32_1 = arith.constant 0 : i32
    return %c0_i32, %c0_i32_0 : i32, i32
  }
  func.func @transform_6(%arg0: i32, %arg1: i32) -> (i32, i32, i32, i32) {
    %c0_i32 = arith.constant 0 : i32
    %c0_i32_0 = arith.constant 0 : i32
    %c0_i32_1 = arith.constant 0 : i32
    return %arg0, %arg1, %c0_i32, %c0_i32_0 : i32, i32, i32, i32
  }
  func.func @transform_7(%arg0: i32, %arg1: i32) -> (i32, i32, i32, i32) {
    %c0_i32 = arith.constant 0 : i32
    %c0_i32_0 = arith.constant 0 : i32
    %c0_i32_1 = arith.constant 0 : i32
    return %arg0, %arg1, %c0_i32, %c0_i32_0 : i32, i32, i32, i32
  }
  func.func @transform_8(%arg0: i32, %arg1: i32) -> (i32, i32, i32, i32) {
    %c0_i32 = arith.constant 0 : i32
    %c0_i32_0 = arith.constant 0 : i32
    %c0_i32_1 = arith.constant 0 : i32
    return %arg0, %arg1, %c0_i32, %c0_i32_0 : i32, i32, i32, i32
  }
}

module attributes {stable_mosaic.version = 11 : i64} {
  func.func @_bn_relu_kernel(%arg0: i32, %arg1: i32, %arg2: memref<1x16x16x8xbf16, #tpu.memory_space<vmem>>, %arg3: memref<1x1x1x8xf32, #tpu.memory_space<vmem>>, %arg4: memref<1x1x1x8xf32, #tpu.memory_space<vmem>>, %arg5: memref<1x16x16x8xf32, #tpu.memory_space<vmem>>) attributes {dimension_semantics = [#tpu.dimension_semantics<parallel>, #tpu.dimension_semantics<parallel>], iteration_bounds = array<i64: 2, 1>, scalar_prefetch = 0 : i64, scratch_operands = 0 : i64, tpu.core_type = #tpu.core_type<tc>, window_params = [{transform_indices = @transform_0, window_bounds = array<i64: 1, 16, 16, 8>}, {pipeline_mode = #tpu.pipeline_mode<synchronous>, transform_indices = @transform_1, window_bounds = array<i64: 1, 1, 1, 8>}, {pipeline_mode = #tpu.pipeline_mode<synchronous>, transform_indices = @transform_2, window_bounds = array<i64: 1, 1, 1, 8>}, {transform_indices = @transform_3, window_bounds = array<i64: 1, 16, 16, 8>}]} {
    %c0 = arith.constant 0 : index
    %c0_0 = arith.constant 0 : index
    %c0_1 = arith.constant 0 : index
    %c0_2 = arith.constant 0 : index
    %0 = vector.load %arg2[%c0, %c0_0, %c0_1, %c0_2] : memref<1x16x16x8xbf16, #tpu.memory_space<vmem>>, vector<1x16x16x8xbf16>
    %1 = arith.extf %0 : vector<1x16x16x8xbf16> to vector<1x16x16x8xf32>
    %c0_3 = arith.constant 0 : index
    %c0_4 = arith.constant 0 : index
    %c0_5 = arith.constant 0 : index
    %c0_6 = arith.constant 0 : index
    %2 = vector.load %arg3[%c0_3, %c0_4, %c0_5, %c0_6] : memref<1x1x1x8xf32, #tpu.memory_space<vmem>>, vector<1x1x1x8xf32>
    %3 = vector.broadcast %2 : vector<1x1x1x8xf32> to vector<1x16x16x8xf32>
    %4 = arith.mulf %1, %3 : vector<1x16x16x8xf32>
    %c0_7 = arith.constant 0 : index
    %c0_8 = arith.constant 0 : index
    %c0_9 = arith.constant 0 : index
    %c0_10 = arith.constant 0 : index
    %5 = vector.load %arg4[%c0_7, %c0_8, %c0_9, %c0_10] : memref<1x1x1x8xf32, #tpu.memory_space<vmem>>, vector<1x1x1x8xf32>
    %6 = vector.broadcast %5 : vector<1x1x1x8xf32> to vector<1x16x16x8xf32>
    %7 = arith.addf %4, %6 : vector<1x16x16x8xf32>
    %cst = arith.constant 0.000000e+00 : f32
    %8 = vector.broadcast %cst : f32 to vector<1x16x16x8xf32>
    %9 = arith.maximumf %7, %8 : vector<1x16x16x8xf32>
    %c0_11 = arith.constant 0 : index
    %c0_12 = arith.constant 0 : index
    %c0_13 = arith.constant 0 : index
    %c0_14 = arith.constant 0 : index
    %10 = vector.load %arg5[%c0_11, %c0_12, %c0_13, %c0_14] : memref<1x16x16x8xf32, #tpu.memory_space<vmem>>, vector<1x16x16x8xf32>
    tpu.vector_store %arg5[%c0_11, %c0_12, %c0_13, %c0_14], %9 {strides = array<i32>} : memref<1x16x16x8xf32, #tpu.memory_space<vmem>>, vector<1x16x16x8xf32>,
    return
  }
  func.func @transform_0(%arg0: i32, %arg1: i32) -> (i32, i32, i32, i32) {
    %c0_i32 = arith.constant 0 : i32
    %c0_i32_0 = arith.constant 0 : i32
    %c0_i32_1 = arith.constant 0 : i32
    return %arg0, %arg1, %c0_i32, %c0_i32_0 : i32, i32, i32, i32
  }
  func.func @transform_1(%arg0: i32, %arg1: i32) -> (i32, i32, i32, i32) {
    %c0_i32 = arith.constant 0 : i32
    %c0_i32_0 = arith.constant 0 : i32
    %c0_i32_1 = arith.constant 0 : i32
    %c0_i32_2 = arith.constant 0 : i32
    %c0_i32_3 = arith.constant 0 : i32
    return %c0_i32, %c0_i32_0, %c0_i32_1, %c0_i32_2 : i32, i32, i32, i32
  }
  func.func @transform_2(%arg0: i32, %arg1: i32) -> (i32, i32, i32, i32) {
    %c0_i32 = arith.constant 0 : i32
    %c0_i32_0 = arith.constant 0 : i32
    %c0_i32_1 = arith.constant 0 : i32
    %c0_i32_2 = arith.constant 0 : i32
    %c0_i32_3 = arith.constant 0 : i32
    return %c0_i32, %c0_i32_0, %c0_i32_1, %c0_i32_2 : i32, i32, i32, i32
  }
  func.func @transform_3(%arg0: i32, %arg1: i32) -> (i32, i32, i32, i32) {
    %c0_i32 = arith.constant 0 : i32
    %c0_i32_0 = arith.constant 0 : i32
    %c0_i32_1 = arith.constant 0 : i32
    return %arg0, %arg1, %c0_i32, %c0_i32_0 : i32, i32, i32, i32
  }
}

</mosaic_0001>

<llo_original>
// kernel: a_call__.5
$region0: #{a_call__.5}
  #allocation0 [shape = 'u32[]', space=smem, size = 0x4, offset = 0x4, fixed_abs, tag = 'smem constant byte address 0x4 - core index']
  #allocation1 [shape = 'u32[144,128]{1,0:T(1,128)}', space=vmem, size = 0x12000, scoped, tag = 'internal scratch']
  %s0 = inlined_call_operand.hbm [shape: bf16[2,16,16,8], index: 0, kind: input, shape index: {}]
  %s1 = inlined_call_operand.vmem [shape: f32[1,1,1,8], index: 1, kind: input, shape index: {}]
  %s2 = inlined_call_operand.vmem [shape: f32[1,1,1,8], index: 2, kind: input, shape index: {}]
  %s3 = inlined_call_operand.vmem [shape: f32[2,16,16,8], index: 3, kind: output, shape index: {}]
  %s4 = sld [smem:[#allocation0]]
  $region49: #{a_call__.5} parent=0
    _
  %s6 = ssub.s32 1, %s4
  %s7 = scalar_select 0, %s6, %s4
  $region1: #{a_call__.5} parent=0
    #allocation2 [shape = 'u8[131072]{0}', space=vmem, size = 0x20000, scoped, tag = 'input window, operand 0']
    #allocation3 [shape = 's32[2]{0}', space=sflag, size = 0x8, scoped, tag = 'scoped memory for a_call__.5']
    %8 = vsyncpa [#allocation3], 0
    %s9 = scalar_lea.sflag [#allocation3], 1
    %10 = vsyncpa %s9, 0
    loop: start=0, step=1, limit=4
    $region2: #{a_call__.5} parent=1 // loop_pre_header
      _
    $region3: #{a_call__.5} parent=1 // loop_header
      %s12 = sphi 0, %s16
      %p13 = scmp.ge.s32.totalorder %s12, 4
      %s19 = sphi 0, %s31
      %s20 = sphi 0, %s27
      %s21 = sphi 0, %s19
      %s22 = sphi 0, %s20
      %s23 = sphi 0, %s21
      %s24 = sphi 0, %s22
      %s36 = sphi 0, %s38
      %s39 = sphi 0, %s36
      %s40 = sphi 0, %s39
      %s56 = sphi 0, %s40
      %s60 = sphi 0, %s60
      %s62 = sphi 0, %s60
      %s63 = sphi 0, %s62
      %s77 = sphi 0, %s63
      %s81 = sphi 0, %s81
      %s83 = sphi 0, %s81
      %s84 = sphi 0, %s83
      %s98 = sphi 0, %s84
      %s106 = sphi 0, %s108
      %s109 = sphi 0, %s106
      %s110 = sphi 0, %s109
      %s126 = sphi 0, %s110
    $region4: #{a_call__.5} parent=1 // loop_header_branch
      %15 = sbr.rel (%p13) target = $region8
    $region5: #{a_call__.5} parent=1 // loop_body
      %s17 = ssub.s32 %s12, 1
      %s18 = ssub.s32 %s12, 2
      %s25 = sadd.s32 1, %s20
      %p26 = scmp.ge.s32.totalorder %s25, 1
      %s27 = scalar_select %p26, 0, %s25
      %s28 = sadd.s32 1, %s19
      %s29 = scalar_select %p26, %s28, %s19
      %p30 = scmp.ge.s32.totalorder %s29, 2
      %s31 = scalar_select %p30, 0, %s29
      %s32 = ssub.s32 %s19, %s31
      %s33 = ssub.s32 %s20, %s27
      %s34 = sor.u32 %s32, %s33
      %p35 = scmp.eq.s32.totalorder %s34, 0
      %s37 = sadd.s32 %s36, 1
      %s38 = scalar_select %p35, %s36, %s37
      %p41 = pneg %p35
      %p42 = scmp.eq.s32.totalorder %s12, 1
      %p43 = por %p41, %p42
      %p44 = scmp.ne.s32.totalorder %s36, %s39
      %p45 = scmp.eq.s32.totalorder %s12, 0
      %p46 = por %p44, %p45
      %p47 = scmp.ne.s32.totalorder %s36, %s39
      %p48 = scmp.eq.s32.totalorder %s17, 1
      %p49 = por %p47, %p48
      %p50 = scmp.ne.s32.totalorder %s39, %s40
      %p51 = scmp.eq.s32.totalorder %s17, 0
      %p52 = por %p50, %p51
      %p53 = scmp.ne.s32.totalorder %s39, %s40
      %p54 = scmp.eq.s32.totalorder %s18, 1
      %p55 = por %p53, %p54
      %p57 = scmp.ne.s32.totalorder %s40, %s56
      %p58 = scmp.eq.s32.totalorder %s18, 0
      %p59 = por %p57, %p58
      %s61 = sadd.s32 %s60, 1
      %p64 = scmp.eq.s32.totalorder %s12, 1
      %p65 = scmp.ne.s32.totalorder %s60, %s62
      %p66 = scmp.eq.s32.totalorder %s12, 0
      %p67 = por %p65, %p66
      %p68 = scmp.ne.s32.totalorder %s60, %s62
      %p69 = scmp.eq.s32.totalorder %s17, 1
      %p70 = por %p68, %p69
      %p71 = scmp.ne.s32.totalorder %s62, %s63
      %p72 = scmp.eq.s32.totalorder %s17, 0
      %p73 = por %p71, %p72
      %p74 = scmp.ne.s32.totalorder %s62, %s63
      %p75 = scmp.eq.s32.totalorder %s18, 1
      %p76 = por %p74, %p75
      %p78 = scmp.ne.s32.totalorder %s63, %s77
      %p79 = scmp.eq.s32.totalorder %s18, 0
      %p80 = por %p78, %p79
      %s82 = sadd.s32 %s81, 1
      %p85 = scmp.eq.s32.totalorder %s12, 1
      %p86 = scmp.ne.s32.totalorder %s81, %s83
      %p87 = scmp.eq.s32.totalorder %s12, 0
      %p88 = por %p86, %p87
      %p89 = scmp.ne.s32.totalorder %s81, %s83
      %p90 = scmp.eq.s32.totalorder %s17, 1
      %p91 = por %p89, %p90
      %p92 = scmp.ne.s32.totalorder %s83, %s84
      %p93 = scmp.eq.s32.totalorder %s17, 0
      %p94 = por %p92, %p93
      %p95 = scmp.ne.s32.totalorder %s83, %s84
      %p96 = scmp.eq.s32.totalorder %s18, 1
      %p97 = por %p95, %p96
      %p99 = scmp.ne.s32.totalorder %s84, %s98
      %p100 = scmp.eq.s32.totalorder %s18, 0
      %p101 = por %p99, %p100
      %s102 = ssub.s32 %s19, %s31
      %s103 = ssub.s32 %s20, %s27
      %s104 = sor.u32 %s102, %s103
      %p105 = scmp.eq.s32.totalorder %s104, 0
      %s107 = sadd.s32 %s106, 1
      %s108 = scalar_select %p105, %s106, %s107
      %p111 = pneg %p105
      %p112 = scmp.eq.s32.totalorder %s12, 1
      %p113 = por %p111, %p112
      %p114 = scmp.ne.s32.totalorder %s106, %s109
      %p115 = scmp.eq.s32.totalorder %s12, 0
      %p116 = por %p114, %p115
      %p117 = scmp.ne.s32.totalorder %s106, %s109
      %p118 = scmp.eq.s32.totalorder %s17, 1
      %p119 = por %p117, %p118
      %p120 = scmp.ne.s32.totalorder %s109, %s110
      %p121 = scmp.eq.s32.totalorder %s17, 0
      %p122 = por %p120, %p121
      %p123 = scmp.ne.s32.totalorder %s109, %s110
      %p124 = scmp.eq.s32.totalorder %s18, 1
      %p125 = por %p123, %p124
      %p127 = scmp.ne.s32.totalorder %s110, %s126
      %p128 = scmp.eq.s32.totalorder %s18, 0
      %p129 = por %p127, %p128
      %p130 = scmp.le.s32.totalorder 1, %s12
      %p131 = scmp.lt.s32.totalorder %s12, 3
      %p132 = pnand %p130, %p131
      %p133 = pneg %p132
      // Predicated region
      $region9: #{a_call__.5} parent=5 // pred_check
        _
      $region10: #{a_call__.5} parent=5 // pred_check_branch
        %135 = sbr.rel (%p132) target = $region12
      $region11: #{a_call__.5} parent=5 // pred_region
        %s136 = ssub.s32 %s12, 1
        // Predicated region
        $region13: #{a_call__.5} parent=11 // pred_check
          %p137 = pneg %p73
        $region14: #{a_call__.5} parent=11 // pred_check_branch
          %139 = sbr.rel (%p137) target = $region16
        $region15: #{a_call__.5} parent=11 // pred_region
          _
        $region16: #{a_call__.5} parent=11 // pred_fallthru
          _
        // Predicated region
        $region17: #{a_call__.5} parent=11 // pred_check
          %p140 = pneg %p94
        $region18: #{a_call__.5} parent=11 // pred_check_branch
          %142 = sbr.rel (%p140) target = $region20
        $region19: #{a_call__.5} parent=11 // pred_region
          _
        $region20: #{a_call__.5} parent=11 // pred_fallthru
          _
      $region12: #{a_call__.5} parent=5 // pred_fallthru
        _
      %p143 = scmp.lt.s32.totalorder %s12, 2
      // Predicated region
      $region21: #{a_call__.5} parent=5 // pred_check
        %p144 = pneg %p143
      $region22: #{a_call__.5} parent=5 // pred_check_branch
        %146 = sbr.rel (%p144) target = $region24
      $region23: #{a_call__.5} parent=5 // pred_region
        // Predicated region
        $region25: #{a_call__.5} parent=23 // pred_check
          %p147 = pneg %p46
        $region26: #{a_call__.5} parent=23 // pred_check_branch
          %149 = sbr.rel (%p147) target = $region28
        $region27: #{a_call__.5} parent=23 // pred_region
          %s150 = sand.u32 %s36, 1
          %s151 = scalar_lea.sflag [#allocation3], %s150
          %s152 = sand.u32 %s36, 1
          %s153 = smul.addr %s152, 128
          %s154 = scalar_lea.vmem [#allocation2], %s153
          %s155 = smul.u32 16, %s20
          %s157 = ssub.s32 2048, 2048
          %158 = vsyncadd %s151, %s157
          %s159 = smul.addr %s155, 2
          %s160 = smul.addr %s19, 32
          %s161 = sadd.s32 %s159, %s160
          %s162 = smul.addr %s161, 64
          %s163 = scalar_lea.hbm %s0, %s162
          %s164 = sshll.u32 %s154, 4
          %s165 = int_to_ptr.vmem [resolvable:$true] %s164
          %170 = dma.hbm_to_vmem [thread:$0]  %s163, 2048, %s165, %s151, 64, 64, 4
        $region28: #{a_call__.5} parent=23 // pred_fallthru
          _
      $region24: #{a_call__.5} parent=5 // pred_fallthru
        _
      %p171 = scmp.le.s32.totalorder 1, %s12
      %p172 = scmp.lt.s32.totalorder %s12, 3
      %p173 = pnand %p171, %p172
      %p174 = pneg %p173
      // Predicated region
      $region29: #{a_call__.5} parent=5 // pred_check
        _
      $region30: #{a_call__.5} parent=5 // pred_check_branch
        %176 = sbr.rel (%p173) target = $region32
      $region31: #{a_call__.5} parent=5 // pred_region
        %s177 = ssub.s32 %s12, 1
        %s178 = sand.u32 %s39, 1
        %s179 = scalar_lea.sflag [#allocation3], %s178
        %s180 = sand.u32 %s39, 1
        %s181 = smul.addr %s180, 128
        %s182 = scalar_lea.vmem [#allocation2], %s181
        // Predicated region
        $region33: #{a_call__.5} parent=31 // pred_check
          %p183 = pneg %p52
        $region34: #{a_call__.5} parent=31 // pred_check_branch
          %185 = sbr.rel (%p183) target = $region36
        $region35: #{a_call__.5} parent=31 // pred_region
          %186 = dma.done %s179, 2048
        $region36: #{a_call__.5} parent=31 // pred_fallthru
          _
        %s187 = sand.u32 %s39, 1
        %s188 = scalar_lea.sflag [#allocation3], %s187
        %s189 = sand.u32 %s39, 1
        %s190 = smul.addr %s189, 128
        %s191 = scalar_lea.vmem [#allocation2], %s190
        %p192 = pneg %p52
        %p193 = pneg %p49
        %p194 = pneg %p73
        %p195 = pneg %p70
        %p196 = pneg %p94
        %p197 = pneg %p91
        %p198 = pneg %p122
        %p199 = pneg %p119
        %s200 = smul.u32 16, %s22
        %p201 = scmp.lt.s32.totalorder %s21, 1
        %s202 = scalar_select %p201, %s21, 1
        %p203 = scmp.lt.s32.totalorder %s200, 15
        %s204 = scalar_select %p203, %s200, 15
        %s205 = smul.addr %s204, 2
        %s206 = smul.addr %s202, 32
        %s207 = sadd.s32 %s205, %s206
        %s208 = smul.addr %s207, 8
        %s209 = scalar_lea.vmem %s3, %s208
        %s210 = smul.u32 16, %s22
        %s211 = smul.u32 16, %s22
        %p212 = scmp.lt.s32.totalorder %s21, 1
        %s213 = scalar_select %p212, %s21, 1
        %p214 = scmp.lt.s32.totalorder %s211, 15
        %s215 = scalar_select %p214, %s211, 15
        %s216 = smul.addr %s215, 2
        %s217 = smul.addr %s213, 32
        %s218 = sadd.s32 %s216, %s217
        %s219 = smul.addr %s218, 8
        %s220 = scalar_lea.vmem %s3, %s219
        %s221 = smul.u32 16, %s22
        %v222 = vld [vmem:[%s182] sm:$0xf]
        %v223 = vld [vmem:[%s182 + $0x4] sm:$0xf]
        %v224 = vld [vmem:[%s182 + $0x8] sm:$0xf]
        %v225 = vld [vmem:[%s182 + $0xc] sm:$0xf]
        %v226 = vld [vmem:[%s182 + $0x10] sm:$0xf]
        %v227 = vld [vmem:[%s182 + $0x14] sm:$0xf]
        %v228 = vld [vmem:[%s182 + $0x18] sm:$0xf]
        %v229 = vld [vmem:[%s182 + $0x1c] sm:$0xf]
        %v230 = vld [vmem:[%s182 + $0x20] sm:$0xf]
        %v231 = vld [vmem:[%s182 + $0x24] sm:$0xf]
        %v232 = vld [vmem:[%s182 + $0x28] sm:$0xf]
        %v233 = vld [vmem:[%s182 + $0x2c] sm:$0xf]
        %v234 = vld [vmem:[%s182 + $0x30] sm:$0xf]
        %v235 = vld [vmem:[%s182 + $0x34] sm:$0xf]
        %v236 = vld [vmem:[%s182 + $0x38] sm:$0xf]
        %v237 = vld [vmem:[%s182 + $0x3c] sm:$0xf]
        %v238 = vld [vmem:[%s182 + $0x40] sm:$0xf]
        %v239 = vld [vmem:[%s182 + $0x44] sm:$0xf]
        %v240 = vld [vmem:[%s182 + $0x48] sm:$0xf]
        %v241 = vld [vmem:[%s182 + $0x4c] sm:$0xf]
        %v242 = vld [vmem:[%s182 + $0x50] sm:$0xf]
        %v243 = vld [vmem:[%s182 + $0x54] sm:$0xf]
        %v244 = vld [vmem:[%s182 + $0x58] sm:$0xf]
        %v245 = vld [vmem:[%s182 + $0x5c] sm:$0xf]
        %v246 = vld [vmem:[%s182 + $0x60] sm:$0xf]
        %v247 = vld [vmem:[%s182 + $0x64] sm:$0xf]
        %v248 = vld [vmem:[%s182 + $0x68] sm:$0xf]
        %v249 = vld [vmem:[%s182 + $0x6c] sm:$0xf]
        %v250 = vld [vmem:[%s182 + $0x70] sm:$0xf]
        %v251 = vld [vmem:[%s182 + $0x74] sm:$0xf]
        %v252 = vld [vmem:[%s182 + $0x78] sm:$0xf]
        %v253 = vld [vmem:[%s182 + $0x7c] sm:$0xf]
        %v254 = vunpack.c.l.bf16 %v222
        %v255 = vunpack.c.l.bf16 %v223
        %v256 = vunpack.c.l.bf16 %v224
        %v257 = vunpack.c.l.bf16 %v225
        %v258 = vunpack.c.l.bf16 %v226
        %v259 = vunpack.c.l.bf16 %v227
        %v260 = vunpack.c.l.bf16 %v228
        %v261 = vunpack.c.l.bf16 %v229
        %v262 = vunpack.c.l.bf16 %v230
        %v263 = vunpack.c.l.bf16 %v231
        %v264 = vunpack.c.l.bf16 %v232
        %v265 = vunpack.c.l.bf16 %v233
        %v266 = vunpack.c.l.bf16 %v234
        %v267 = vunpack.c.l.bf16 %v235
        %v268 = vunpack.c.l.bf16 %v236
        %v269 = vunpack.c.l.bf16 %v237
        %v270 = vunpack.c.l.bf16 %v238
        %v271 = vunpack.c.l.bf16 %v239
        %v272 = vunpack.c.l.bf16 %v240
        %v273 = vunpack.c.l.bf16 %v241
        %v274 = vunpack.c.l.bf16 %v242
        %v275 = vunpack.c.l.bf16 %v243
        %v276 = vunpack.c.l.bf16 %v244
        %v277 = vunpack.c.l.bf16 %v245
        %v278 = vunpack.c.l.bf16 %v246
        %v279 = vunpack.c.l.bf16 %v247
        %v280 = vunpack.c.l.bf16 %v248
        %v281 = vunpack.c.l.bf16 %v249
        %v282 = vunpack.c.l.bf16 %v250
        %v283 = vunpack.c.l.bf16 %v251
        %v284 = vunpack.c.l.bf16 %v252
        %v285 = vunpack.c.l.bf16 %v253
        %v286 = vld [vmem:[%s1] sm:$0x1]
        %v288 = vlaneseq
        %v289 = vshrl.u32 %v288, 7
        %v290 = vsub.s32 0, %v289
        %v291 = vrot.slane %v286, %v290
        %v293 = vmul.f32 %v254, %v291
        %v294 = vmul.f32 %v255, %v291
        %v295 = vmul.f32 %v256, %v291
        %v296 = vmul.f32 %v257, %v291
        %v297 = vmul.f32 %v258, %v291
        %v298 = vmul.f32 %v259, %v291
        %v299 = vmul.f32 %v260, %v291
        %v300 = vmul.f32 %v261, %v291
        %v301 = vmul.f32 %v262, %v291
        %v302 = vmul.f32 %v263, %v291
        %v303 = vmul.f32 %v264, %v291
        %v304 = vmul.f32 %v265, %v291
        %v305 = vmul.f32 %v266, %v291
        %v306 = vmul.f32 %v267, %v291
        %v307 = vmul.f32 %v268, %v291
        %v308 = vmul.f32 %v269, %v291
        %v309 = vmul.f32 %v270, %v291
        %v310 = vmul.f32 %v271, %v291
        %v311 = vmul.f32 %v272, %v291
        %v312 = vmul.f32 %v273, %v291
        %v313 = vmul.f32 %v274, %v291
        %v314 = vmul.f32 %v275, %v291
        %v315 = vmul.f32 %v276, %v291
        %v316 = vmul.f32 %v277, %v291
        %v317 = vmul.f32 %v278, %v291
        %v318 = vmul.f32 %v279, %v291
        %v319 = vmul.f32 %v280, %v291
        %v320 = vmul.f32 %v281, %v291
        %v321 = vmul.f32 %v282, %v291
        %v322 = vmul.f32 %v283, %v291
        %v323 = vmul.f32 %v284, %v291
        %v324 = vmul.f32 %v285, %v291
        %v325 = vld [vmem:[%s2] sm:$0x1]
        %v327 = vlaneseq
        %v328 = vshrl.u32 %v327, 7
        %v329 = vsub.s32 0, %v328
        %v330 = vrot.slane %v325, %v329
        %v332 = vadd.f32 %v293, %v330
        %v333 = vadd.f32 %v294, %v330
        %v334 = vadd.f32 %v295, %v330
        %v335 = vadd.f32 %v296, %v330
        %v336 = vadd.f32 %v297, %v330
        %v337 = vadd.f32 %v298, %v330
        %v338 = vadd.f32 %v299, %v330
        %v339 = vadd.f32 %v300, %v330
        %v340 = vadd.f32 %v301, %v330
        %v341 = vadd.f32 %v302, %v330
        %v342 = vadd.f32 %v303, %v330
        %v343 = vadd.f32 %v304, %v330
        %v344 = vadd.f32 %v305, %v330
        %v345 = vadd.f32 %v306, %v330
        %v346 = vadd.f32 %v307, %v330
        %v347 = vadd.f32 %v308, %v330
        %v348 = vadd.f32 %v309, %v330
        %v349 = vadd.f32 %v310, %v330
        %v350 = vadd.f32 %v311, %v330
        %v351 = vadd.f32 %v312, %v330
        %v352 = vadd.f32 %v313, %v330
        %v353 = vadd.f32 %v314, %v330
        %v354 = vadd.f32 %v315, %v330
        %v355 = vadd.f32 %v316, %v330
        %v356 = vadd.f32 %v317, %v330
        %v357 = vadd.f32 %v318, %v330
        %v358 = vadd.f32 %v319, %v330
        %v359 = vadd.f32 %v320, %v330
        %v360 = vadd.f32 %v321, %v330
        %v361 = vadd.f32 %v322, %v330
        %v362 = vadd.f32 %v323, %v330
        %v363 = vadd.f32 %v324, %v330
        %v364 = vmax.f32 %v332, 0.0
        %v365 = vmax.f32 %v333, 0.0
        %v366 = vmax.f32 %v334, 0.0
        %v367 = vmax.f32 %v335, 0.0
        %v368 = vmax.f32 %v336, 0.0
        %v369 = vmax.f32 %v337, 0.0
        %v370 = vmax.f32 %v338, 0.0
        %v371 = vmax.f32 %v339, 0.0
        %v372 = vmax.f32 %v340, 0.0
        %v373 = vmax.f32 %v341, 0.0
        %v374 = vmax.f32 %v342, 0.0
        %v375 = vmax.f32 %v343, 0.0
        %v376 = vmax.f32 %v344, 0.0
        %v377 = vmax.f32 %v345, 0.0
        %v378 = vmax.f32 %v346, 0.0
        %v379 = vmax.f32 %v347, 0.0
        %v380 = vmax.f32 %v348, 0.0
        %v381 = vmax.f32 %v349, 0.0
        %v382 = vmax.f32 %v350, 0.0
        %v383 = vmax.f32 %v351, 0.0
        %v384 = vmax.f32 %v352, 0.0
        %v385 = vmax.f32 %v353, 0.0
        %v386 = vmax.f32 %v354, 0.0
        %v387 = vmax.f32 %v355, 0.0
        %v388 = vmax.f32 %v356, 0.0
        %v389 = vmax.f32 %v357, 0.0
        %v390 = vmax.f32 %v358, 0.0
        %v391 = vmax.f32 %v359, 0.0
        %v392 = vmax.f32 %v360, 0.0
        %v393 = vmax.f32 %v361, 0.0
        %v394 = vmax.f32 %v362, 0.0
        %v395 = vmax.f32 %v363, 0.0
        %vm396 = vcmask 64512
        %397 = vst.msk [vmem:[%s220] sm:$0xff] %vm396, %v364
        %398 = vst.msk [vmem:[%s220 + $0x8] sm:$0xff] %vm396, %v365
        %399 = vst.msk [vmem:[%s220 + $0x10] sm:$0xff] %vm396, %v366
        %400 = vst.msk [vmem:[%s220 + $0x18] sm:$0xff] %vm396, %v367
        %401 = vst.msk [vmem:[%s220 + $0x20] sm:$0xff] %vm396, %v368
        %402 = vst.msk [vmem:[%s220 + $0x28] sm:$0xff] %vm396, %v369
        %403 = vst.msk [vmem:[%s220 + $0x30] sm:$0xff] %vm396, %v370
        %404 = vst.msk [vmem:[%s220 + $0x38] sm:$0xff] %vm396, %v371
        %405 = vst.msk [vmem:[%s220 + $0x40] sm:$0xff] %vm396, %v372
        %406 = vst.msk [vmem:[%s220 + $0x48] sm:$0xff] %vm396, %v373
        %407 = vst.msk [vmem:[%s220 + $0x50] sm:$0xff] %vm396, %v374
        %408 = vst.msk [vmem:[%s220 + $0x58] sm:$0xff] %vm396, %v375
        %409 = vst.msk [vmem:[%s220 + $0x60] sm:$0xff] %vm396, %v376
        %410 = vst.msk [vmem:[%s220 + $0x68] sm:$0xff] %vm396, %v377
        %411 = vst.msk [vmem:[%s220 + $0x70] sm:$0xff] %vm396, %v378
        %412 = vst.msk [vmem:[%s220 + $0x78] sm:$0xff] %vm396, %v379
        %413 = vst.msk [vmem:[%s220 + $0x80] sm:$0xff] %vm396, %v380
        %414 = vst.msk [vmem:[%s220 + $0x88] sm:$0xff] %vm396, %v381
        %415 = vst.msk [vmem:[%s220 + $0x90] sm:$0xff] %vm396, %v382
        %416 = vst.msk [vmem:[%s220 + $0x98] sm:$0xff] %vm396, %v383
        %417 = vst.msk [vmem:[%s220 + $0xa0] sm:$0xff] %vm396, %v384
        %418 = vst.msk [vmem:[%s220 + $0xa8] sm:$0xff] %vm396, %v385
        %419 = vst.msk [vmem:[%s220 + $0xb0] sm:$0xff] %vm396, %v386
        %420 = vst.msk [vmem:[%s220 + $0xb8] sm:$0xff] %vm396, %v387
        %421 = vst.msk [vmem:[%s220 + $0xc0] sm:$0xff] %vm396, %v388
        %422 = vst.msk [vmem:[%s220 + $0xc8] sm:$0xff] %vm396, %v389
        %423 = vst.msk [vmem:[%s220 + $0xd0] sm:$0xff] %vm396, %v390
        %424 = vst.msk [vmem:[%s220 + $0xd8] sm:$0xff] %vm396, %v391
        %425 = vst.msk [vmem:[%s220 + $0xe0] sm:$0xff] %vm396, %v392
        %426 = vst.msk [vmem:[%s220 + $0xe8] sm:$0xff] %vm396, %v393
        %427 = vst.msk [vmem:[%s220 + $0xf0] sm:$0xff] %vm396, %v394
        %428 = vst.msk [vmem:[%s220 + $0xf8] sm:$0xff] %vm396, %v395
        %s429 = smul.u32 16, %s22
        %p430 = scmp.lt.s32.totalorder %s21, 1
        %s431 = scalar_select %p430, %s21, 1
        %p432 = scmp.lt.s32.totalorder %s429, 15
        %s433 = scalar_select %p432, %s429, 15
        %s434 = smul.addr %s433, 2
        %s435 = smul.addr %s431, 32
        %s436 = sadd.s32 %s434, %s435
        %s437 = smul.addr %s436, 8
        %s438 = scalar_lea.vmem %s3, %s437
        // Predicated region
        $region37: #{a_call__.5} parent=31 // pred_check
          %p439 = pneg %p119
        $region38: #{a_call__.5} parent=31 // pred_check_branch
          %441 = sbr.rel (%p439) target = $region40
        $region39: #{a_call__.5} parent=31 // pred_region
          %s442 = smul.u32 16, %s22
        $region40: #{a_call__.5} parent=31 // pred_fallthru
          _
      $region32: #{a_call__.5} parent=5 // pred_fallthru
        _
      %p443 = scmp.le.s32.totalorder 2, %s12
      // Predicated region
      $region41: #{a_call__.5} parent=5 // pred_check
        %p444 = pneg %p443
      $region42: #{a_call__.5} parent=5 // pred_check_branch
        %446 = sbr.rel (%p444) target = $region44
      $region43: #{a_call__.5} parent=5 // pred_region
        %s447 = ssub.s32 %s12, 2
        // Predicated region
        $region45: #{a_call__.5} parent=43 // pred_check
          %p448 = pneg %p125
        $region46: #{a_call__.5} parent=43 // pred_check_branch
          %450 = sbr.rel (%p448) target = $region48
        $region47: #{a_call__.5} parent=43 // pred_region
          %s451 = smul.u32 16, %s24
          %p452 = scmp.lt.s32.totalorder %s23, 1
          %s453 = scalar_select %p452, %s23, 1
          %p454 = scmp.lt.s32.totalorder %s451, 15
          %s455 = scalar_select %p454, %s451, 15
          %s456 = smul.addr %s455, 2
          %s457 = smul.addr %s453, 32
          %s458 = sadd.s32 %s456, %s457
          %s459 = smul.addr %s458, 8
          %s460 = scalar_lea.vmem %s3, %s459
        $region48: #{a_call__.5} parent=43 // pred_fallthru
          _
      $region44: #{a_call__.5} parent=5 // pred_fallthru
        _
    $region6: #{a_call__.5} parent=1 // loop_footer
      %s16 = sadd.s32 1, %s12
    $region7: #{a_call__.5} parent=1 // loop_footer_branch
      %11 = sbr.rel target = $region3
    $region8: #{a_call__.5} parent=1 // loop_exit
      _
    %461 = vsyncpa [#allocation3], 1
    %s462 = scalar_lea.sflag [#allocation3], 1
    %463 = vsyncpa %s462, 1

// kernel: a_call__.3
$region0: #{a_call__.3}
  #allocation0 [shape = 'u32[]', space=smem, size = 0x4, offset = 0x4, fixed_abs, tag = 'smem constant byte address 0x4 - core index']
  #allocation1 [shape = 'u32[144,128]{1,0:T(1,128)}', space=vmem, size = 0x12000, scoped, tag = 'internal scratch']
  #allocation2 [shape = 'bf16[10,18,8]{2,1,0:T(8,128)(2,1)}', space=vmem, size = 0xf000, scoped, tag = 'scratch operand']
  %s0 = inlined_call_operand.hbm [shape: bf16[2,16,16,8], index: 0, kind: input, shape index: {}, may-alias: {0,1,2}]
  %s1 = inlined_call_operand.hbm [shape: bf16[2,16,16,8], index: 1, kind: input, shape index: {}, may-alias: {0,1,2}]
  %s2 = inlined_call_operand.hbm [shape: bf16[2,16,16,8], index: 2, kind: input, shape index: {}, may-alias: {0,1,2}]
  %s3 = inlined_call_operand.hbm [shape: bf16[9,8,8], index: 3, kind: input, shape index: {}]
  %s4 = inlined_call_operand.hbm [shape: f32[1,8], index: 4, kind: input, shape index: {}]
  %s5 = inlined_call_operand.hbm [shape: f32[1,8], index: 5, kind: input, shape index: {}]
  %s6 = inlined_call_operand.hbm [shape: bf16[2,16,16,8], index: 6, kind: output, shape index: {0}]
  %s7 = inlined_call_operand.hbm [shape: f32[2,2,1,8], index: 7, kind: output, shape index: {1}]
  %s8 = inlined_call_operand.hbm [shape: f32[2,2,1,8], index: 8, kind: output, shape index: {2}]
  %9 = xla_tuple %s6, %s7, %s8
  %s10 = sld [smem:[#allocation0]]
  $region97: #{a_call__.3} parent=0
    _
  %s12 = ssub.s32 1, %s10
  %s13 = scalar_select 0, %s12, %s10
  $region1: #{a_call__.3} parent=0
    #allocation3 [shape = 'u8[65536]{0}', space=vmem, size = 0x10000, scoped, tag = 'input window, operand 0']
    #allocation4 [shape = 's32[2]{0}', space=sflag, size = 0x8, scoped, tag = 'scoped memory for a_call__.3']
    #allocation5 [shape = 's32[2]{0}', space=sflag, size = 0x8, scoped, tag = 'scoped memory for a_call__.3']
    #allocation6 [shape = 'u8[8192]{0}', space=vmem, size = 0x2000, scoped, tag = 'input window, operand 1']
    #allocation7 [shape = 's32[2]{0}', space=sflag, size = 0x8, scoped, tag = 'scoped memory for a_call__.3']
    #allocation8 [shape = 'u8[8192]{0}', space=vmem, size = 0x2000, scoped, tag = 'input window, operand 2']
    #allocation9 [shape = 'u8[18432]{0}', space=vmem, size = 0x4800, scoped, tag = 'input window, operand 3, single buffered']
    #allocation10 [shape = 's32[1]{0}', space=sflag, size = 0x4, scoped, tag = 'scoped memory for a_call__.3']
    #allocation11 [shape = 'u8[512]{0}', space=vmem, size = 0x400, scoped, tag = 'input window, operand 4, single buffered']
    #allocation12 [shape = 'u8[512]{0}', space=vmem, size = 0x400, scoped, tag = 'input window, operand 5, single buffered']
    #allocation13 [shape = 's32[1]{0}', space=sflag, size = 0x4, scoped, tag = 'scoped memory for a_call__.3']
    #allocation14 [shape = 'u8[65536]{0}', space=vmem, size = 0x10000, scoped, tag = 'output window, operand 0']
    #allocation15 [shape = 'u8[1024]{0}', space=vmem, size = 0x400, scoped, tag = 'output window, operand 1']
    #allocation16 [shape = 's32[2]{0}', space=sflag, size = 0x8, scoped, tag = 'scoped memory for a_call__.3']
    #allocation17 [shape = 'u8[1024]{0}', space=vmem, size = 0x400, scoped, tag = 'output window, operand 2']
    %14 = vsyncpa [#allocation4], 0
    %s15 = scalar_lea.sflag [#allocation4], 1
    %16 = vsyncpa %s15, 0
    %17 = vsyncpa [#allocation7], 0
    %s18 = scalar_lea.sflag [#allocation7], 1
    %19 = vsyncpa %s18, 0
    %20 = vsyncpa [#allocation10], 0
    %21 = vsyncpa [#allocation13], 0
    %22 = vsyncpa [#allocation5], 0
    %s23 = scalar_lea.sflag [#allocation5], 1
    %24 = vsyncpa %s23, 0
    %25 = vsyncpa [#allocation16], 0
    %s26 = scalar_lea.sflag [#allocation16], 1
    %27 = vsyncpa %s26, 0
    loop: start=0, step=1, limit=6
    $region2: #{a_call__.3} parent=1 // loop_pre_header
      _
    $region3: #{a_call__.3} parent=1 // loop_header
      %s29 = sphi 0, %s33
      %p30 = scmp.ge.s32.totalorder %s29, 6
      %s36 = sphi 0, %s48
      %s37 = sphi 0, %s44
      %s38 = sphi 0, %s36
      %s39 = sphi 0, %s37
      %s40 = sphi 0, %s38
      %s41 = sphi 0, %s39
      %s53 = sphi 0, %s55
      %s56 = sphi 0, %s53
      %s57 = sphi 0, %s56
      %s73 = sphi 0, %s57
      %s89 = sphi 0, %s91
      %s92 = sphi 0, %s89
      %s93 = sphi 0, %s92
      %s109 = sphi 0, %s93
      %s125 = sphi 0, %s127
      %s128 = sphi 0, %s125
      %s129 = sphi 0, %s128
      %s145 = sphi 0, %s129
      %s149 = sphi 0, %s149
      %s151 = sphi 0, %s149
      %s152 = sphi 0, %s151
      %s166 = sphi 0, %s152
      %s170 = sphi 0, %s170
      %s172 = sphi 0, %s170
      %s173 = sphi 0, %s172
      %s187 = sphi 0, %s173
      %s191 = sphi 0, %s191
      %s193 = sphi 0, %s191
      %s194 = sphi 0, %s193
      %s208 = sphi 0, %s194
      %s216 = sphi 0, %s218
      %s219 = sphi 0, %s216
      %s220 = sphi 0, %s219
      %s236 = sphi 0, %s220
      %s244 = sphi 0, %s246
      %s247 = sphi 0, %s244
      %s248 = sphi 0, %s247
      %s264 = sphi 0, %s248
      %s272 = sphi 0, %s274
      %s275 = sphi 0, %s272
      %s276 = sphi 0, %s275
      %s292 = sphi 0, %s276
    $region4: #{a_call__.3} parent=1 // loop_header_branch
      %32 = sbr.rel (%p30) target = $region8
    $region5: #{a_call__.3} parent=1 // loop_body
      %s34 = ssub.s32 %s29, 1
      %s35 = ssub.s32 %s29, 2
      %s42 = sadd.s32 1, %s37
      %p43 = scmp.ge.s32.totalorder %s42, 2
      %s44 = scalar_select %p43, 0, %s42
      %s45 = sadd.s32 1, %s36
      %s46 = scalar_select %p43, %s45, %s36
      %p47 = scmp.ge.s32.totalorder %s46, 2
      %s48 = scalar_select %p47, 0, %s46
      %s49 = ssub.s32 %s36, %s48
      %s50 = ssub.s32 %s37, %s44
      %s51 = sor.u32 %s49, %s50
      %p52 = scmp.eq.s32.totalorder %s51, 0
      %s54 = sadd.s32 %s53, 1
      %s55 = scalar_select %p52, %s53, %s54
      %p58 = pneg %p52
      %p59 = scmp.eq.s32.totalorder %s29, 3
      %p60 = por %p58, %p59
      %p61 = scmp.ne.s32.totalorder %s53, %s56
      %p62 = scmp.eq.s32.totalorder %s29, 0
      %p63 = por %p61, %p62
      %p64 = scmp.ne.s32.totalorder %s53, %s56
      %p65 = scmp.eq.s32.totalorder %s34, 3
      %p66 = por %p64, %p65
      %p67 = scmp.ne.s32.totalorder %s56, %s57
      %p68 = scmp.eq.s32.totalorder %s34, 0
      %p69 = por %p67, %p68
      %p70 = scmp.ne.s32.totalorder %s56, %s57
      %p71 = scmp.eq.s32.totalorder %s35, 3
      %p72 = por %p70, %p71
      %p74 = scmp.ne.s32.totalorder %s57, %s73
      %p75 = scmp.eq.s32.totalorder %s35, 0
      %p76 = por %p74, %p75
      %s77 = smul.u32 %s37, 8
      %s78 = ssub.s32 %s77, 1
      %p79 = scmp.gt.s32.totalorder %s78, 0
      %s80 = scalar_select %p79, %s78, 0
      %s81 = smul.u32 %s44, 8
      %s82 = ssub.s32 %s81, 1
      %p83 = scmp.gt.s32.totalorder %s82, 0
      %s84 = scalar_select %p83, %s82, 0
      %s85 = ssub.s32 %s36, %s48
      %s86 = ssub.s32 %s80, %s84
      %s87 = sor.u32 %s85, %s86
      %p88 = scmp.eq.s32.totalorder %s87, 0
      %s90 = sadd.s32 %s89, 1
      %s91 = scalar_select %p88, %s89, %s90
      %p94 = pneg %p88
      %p95 = scmp.eq.s32.totalorder %s29, 3
      %p96 = por %p94, %p95
      %p97 = scmp.ne.s32.totalorder %s89, %s92
      %p98 = scmp.eq.s32.totalorder %s29, 0
      %p99 = por %p97, %p98
      %p100 = scmp.ne.s32.totalorder %s89, %s92
      %p101 = scmp.eq.s32.totalorder %s34, 3
      %p102 = por %p100, %p101
      %p103 = scmp.ne.s32.totalorder %s92, %s93
      %p104 = scmp.eq.s32.totalorder %s34, 0
      %p105 = por %p103, %p104
      %p106 = scmp.ne.s32.totalorder %s92, %s93
      %p107 = scmp.eq.s32.totalorder %s35, 3
      %p108 = por %p106, %p107
      %p110 = scmp.ne.s32.totalorder %s93, %s109
      %p111 = scmp.eq.s32.totalorder %s35, 0
      %p112 = por %p110, %p111
      %s113 = smul.u32 %s37, 8
      %s114 = sadd.s32 %s113, 8
      %p115 = scmp.lt.s32.totalorder %s114, 15
      %s116 = scalar_select %p115, %s114, 15
      %s117 = smul.u32 %s44, 8
      %s118 = sadd.s32 %s117, 8
      %p119 = scmp.lt.s32.totalorder %s118, 15
      %s120 = scalar_select %p119, %s118, 15
      %s121 = ssub.s32 %s36, %s48
      %s122 = ssub.s32 %s116, %s120
      %s123 = sor.u32 %s121, %s122
      %p124 = scmp.eq.s32.totalorder %s123, 0
      %s126 = sadd.s32 %s125, 1
      %s127 = scalar_select %p124, %s125, %s126
      %p130 = pneg %p124
      %p131 = scmp.eq.s32.totalorder %s29, 3
      %p132 = por %p130, %p131
      %p133 = scmp.ne.s32.totalorder %s125, %s128
      %p134 = scmp.eq.s32.totalorder %s29, 0
      %p135 = por %p133, %p134
      %p136 = scmp.ne.s32.totalorder %s125, %s128
      %p137 = scmp.eq.s32.totalorder %s34, 3
      %p138 = por %p136, %p137
      %p139 = scmp.ne.s32.totalorder %s128, %s129
      %p140 = scmp.eq.s32.totalorder %s34, 0
      %p141 = por %p139, %p140
      %p142 = scmp.ne.s32.totalorder %s128, %s129
      %p143 = scmp.eq.s32.totalorder %s35, 3
      %p144 = por %p142, %p143
      %p146 = scmp.ne.s32.totalorder %s129, %s145
      %p147 = scmp.eq.s32.totalorder %s35, 0
      %p148 = por %p146, %p147
      %s150 = sadd.s32 %s149, 1
      %p153 = scmp.eq.s32.totalorder %s29, 3
      %p154 = scmp.ne.s32.totalorder %s149, %s151
      %p155 = scmp.eq.s32.totalorder %s29, 0
      %p156 = por %p154, %p155
      %p157 = scmp.ne.s32.totalorder %s149, %s151
      %p158 = scmp.eq.s32.totalorder %s34, 3
      %p159 = por %p157, %p158
      %p160 = scmp.ne.s32.totalorder %s151, %s152
      %p161 = scmp.eq.s32.totalorder %s34, 0
      %p162 = por %p160, %p161
      %p163 = scmp.ne.s32.totalorder %s151, %s152
      %p164 = scmp.eq.s32.totalorder %s35, 3
      %p165 = por %p163, %p164
      %p167 = scmp.ne.s32.totalorder %s152, %s166
      %p168 = scmp.eq.s32.totalorder %s35, 0
      %p169 = por %p167, %p168
      %s171 = sadd.s32 %s170, 1
      %p174 = scmp.eq.s32.totalorder %s29, 3
      %p175 = scmp.ne.s32.totalorder %s170, %s172
      %p176 = scmp.eq.s32.totalorder %s29, 0
      %p177 = por %p175, %p176
      %p178 = scmp.ne.s32.totalorder %s170, %s172
      %p179 = scmp.eq.s32.totalorder %s34, 3
      %p180 = por %p178, %p179
      %p181 = scmp.ne.s32.totalorder %s172, %s173
      %p182 = scmp.eq.s32.totalorder %s34, 0
      %p183 = por %p181, %p182
      %p184 = scmp.ne.s32.totalorder %s172, %s173
      %p185 = scmp.eq.s32.totalorder %s35, 3
      %p186 = por %p184, %p185
      %p188 = scmp.ne.s32.totalorder %s173, %s187
      %p189 = scmp.eq.s32.totalorder %s35, 0
      %p190 = por %p188, %p189
      %s192 = sadd.s32 %s191, 1
      %p195 = scmp.eq.s32.totalorder %s29, 3
      %p196 = scmp.ne.s32.totalorder %s191, %s193
      %p197 = scmp.eq.s32.totalorder %s29, 0
      %p198 = por %p196, %p197
      %p199 = scmp.ne.s32.totalorder %s191, %s193
      %p200 = scmp.eq.s32.totalorder %s34, 3
      %p201 = por %p199, %p200
      %p202 = scmp.ne.s32.totalorder %s193, %s194
      %p203 = scmp.eq.s32.totalorder %s34, 0
      %p204 = por %p202, %p203
      %p205 = scmp.ne.s32.totalorder %s193, %s194
      %p206 = scmp.eq.s32.totalorder %s35, 3
      %p207 = por %p205, %p206
      %p209 = scmp.ne.s32.totalorder %s194, %s208
      %p210 = scmp.eq.s32.totalorder %s35, 0
      %p211 = por %p209, %p210
      %s212 = ssub.s32 %s36, %s48
      %s213 = ssub.s32 %s37, %s44
      %s214 = sor.u32 %s212, %s213
      %p215 = scmp.eq.s32.totalorder %s214, 0
      %s217 = sadd.s32 %s216, 1
      %s218 = scalar_select %p215, %s216, %s217
      %p221 = pneg %p215
      %p222 = scmp.eq.s32.totalorder %s29, 3
      %p223 = por %p221, %p222
      %p224 = scmp.ne.s32.totalorder %s216, %s219
      %p225 = scmp.eq.s32.totalorder %s29, 0
      %p226 = por %p224, %p225
      %p227 = scmp.ne.s32.totalorder %s216, %s219
      %p228 = scmp.eq.s32.totalorder %s34, 3
      %p229 = por %p227, %p228
      %p230 = scmp.ne.s32.totalorder %s219, %s220
      %p231 = scmp.eq.s32.totalorder %s34, 0
      %p232 = por %p230, %p231
      %p233 = scmp.ne.s32.totalorder %s219, %s220
      %p234 = scmp.eq.s32.totalorder %s35, 3
      %p235 = por %p233, %p234
      %p237 = scmp.ne.s32.totalorder %s220, %s236
      %p238 = scmp.eq.s32.totalorder %s35, 0
      %p239 = por %p237, %p238
      %s240 = ssub.s32 %s36, %s48
      %s241 = ssub.s32 %s37, %s44
      %s242 = sor.u32 %s240, %s241
      %p243 = scmp.eq.s32.totalorder %s242, 0
      %s245 = sadd.s32 %s244, 1
      %s246 = scalar_select %p243, %s244, %s245
      %p249 = pneg %p243
      %p250 = scmp.eq.s32.totalorder %s29, 3
      %p251 = por %p249, %p250
      %p252 = scmp.ne.s32.totalorder %s244, %s247
      %p253 = scmp.eq.s32.totalorder %s29, 0
      %p254 = por %p252, %p253
      %p255 = scmp.ne.s32.totalorder %s244, %s247
      %p256 = scmp.eq.s32.totalorder %s34, 3
      %p257 = por %p255, %p256
      %p258 = scmp.ne.s32.totalorder %s247, %s248
      %p259 = scmp.eq.s32.totalorder %s34, 0
      %p260 = por %p258, %p259
      %p261 = scmp.ne.s32.totalorder %s247, %s248
      %p262 = scmp.eq.s32.totalorder %s35, 3
      %p263 = por %p261, %p262
      %p265 = scmp.ne.s32.totalorder %s248, %s264
      %p266 = scmp.eq.s32.totalorder %s35, 0
      %p267 = por %p265, %p266
      %s268 = ssub.s32 %s36, %s48
      %s269 = ssub.s32 %s37, %s44
      %s270 = sor.u32 %s268, %s269
      %p271 = scmp.eq.s32.totalorder %s270, 0
      %s273 = sadd.s32 %s272, 1
      %s274 = scalar_select %p271, %s272, %s273
      %p277 = pneg %p271
      %p278 = scmp.eq.s32.totalorder %s29, 3
      %p279 = por %p277, %p278
      %p280 = scmp.ne.s32.totalorder %s272, %s275
      %p281 = scmp.eq.s32.totalorder %s29, 0
      %p282 = por %p280, %p281
      %p283 = scmp.ne.s32.totalorder %s272, %s275
      %p284 = scmp.eq.s32.totalorder %s34, 3
      %p285 = por %p283, %p284
      %p286 = scmp.ne.s32.totalorder %s275, %s276
      %p287 = scmp.eq.s32.totalorder %s34, 0
      %p288 = por %p286, %p287
      %p289 = scmp.ne.s32.totalorder %s275, %s276
      %p290 = scmp.eq.s32.totalorder %s35, 3
      %p291 = por %p289, %p290
      %p293 = scmp.ne.s32.totalorder %s276, %s292
      %p294 = scmp.eq.s32.totalorder %s35, 0
      %p295 = por %p293, %p294
      %p296 = scmp.le.s32.totalorder 1, %s29
      %p297 = scmp.lt.s32.totalorder %s29, 5
      %p298 = pnand %p296, %p297
      %p299 = pneg %p298
      // Predicated region
      $region9: #{a_call__.3} parent=5 // pred_check
        _
      $region10: #{a_call__.3} parent=5 // pred_check_branch
        %301 = sbr.rel (%p298) target = $region12
      $region11: #{a_call__.3} parent=5 // pred_region
        %s302 = ssub.s32 %s29, 1
        // Predicated region
        $region13: #{a_call__.3} parent=11 // pred_check
          %p303 = pneg %p162
        $region14: #{a_call__.3} parent=11 // pred_check_branch
          %305 = sbr.rel (%p303) target = $region16
        $region15: #{a_call__.3} parent=11 // pred_region
          %s307 = ssub.s32 576, 576
          %308 = vsyncadd [#allocation10], %s307
          %s309 = sshll.u32 [#allocation9], 4
          %s310 = int_to_ptr.vmem [resolvable:$true] %s309
          %315 = dma.hbm_to_vmem [thread:$0]  %s3, 576, %s310, [#allocation10], 64, 64, 4
        $region16: #{a_call__.3} parent=11 // pred_fallthru
          _
        // Predicated region
        $region17: #{a_call__.3} parent=11 // pred_check
          %p316 = pneg %p183
        $region18: #{a_call__.3} parent=11 // pred_check_branch
          %318 = sbr.rel (%p316) target = $region20
        $region19: #{a_call__.3} parent=11 // pred_region
          %s320 = ssub.s32 16, 16
          %321 = vsyncadd [#allocation10], %s320
          %s323 = sshll.u32 [#allocation11], 4
          %s324 = int_to_ptr.vmem [resolvable:$true] %s323
          %326 = dma.hbm_to_vmem [thread:$0]  %s4, 16, %s324, [#allocation10]
        $region20: #{a_call__.3} parent=11 // pred_fallthru
          _
        // Predicated region
        $region21: #{a_call__.3} parent=11 // pred_check
          %p327 = pneg %p204
        $region22: #{a_call__.3} parent=11 // pred_check_branch
          %329 = sbr.rel (%p327) target = $region24
        $region23: #{a_call__.3} parent=11 // pred_region
          %s331 = ssub.s32 16, 16
          %332 = vsyncadd [#allocation13], %s331
          %s334 = sshll.u32 [#allocation12], 4
          %s335 = int_to_ptr.vmem [resolvable:$true] %s334
          %337 = dma.hbm_to_vmem [thread:$0]  %s5, 16, %s335, [#allocation13]
        $region24: #{a_call__.3} parent=11 // pred_fallthru
          _
      $region12: #{a_call__.3} parent=5 // pred_fallthru
        _
      %p338 = scmp.lt.s32.totalorder %s29, 4
      // Predicated region
      $region25: #{a_call__.3} parent=5 // pred_check
        %p339 = pneg %p338
      $region26: #{a_call__.3} parent=5 // pred_check_branch
        %341 = sbr.rel (%p339) target = $region28
      $region27: #{a_call__.3} parent=5 // pred_region
        // Predicated region
        $region29: #{a_call__.3} parent=27 // pred_check
          %p342 = pneg %p63
        $region30: #{a_call__.3} parent=27 // pred_check_branch
          %344 = sbr.rel (%p342) target = $region32
        $region31: #{a_call__.3} parent=27 // pred_region
          %s345 = sand.u32 %s53, 1
          %s346 = scalar_lea.sflag [#allocation4], %s345
          %s347 = sand.u32 %s53, 1
          %s348 = smul.addr %s347, 64
          %s349 = scalar_lea.vmem [#allocation3], %s348
          %s350 = smul.u32 8, %s37
          %s352 = ssub.s32 1024, 1024
          %353 = vsyncadd %s346, %s352
          %s354 = smul.addr %s350, 2
          %s355 = smul.addr %s36, 32
          %s356 = sadd.s32 %s354, %s355
          %s357 = smul.addr %s356, 64
          %s358 = scalar_lea.hbm %s0, %s357
          %s359 = sshll.u32 %s349, 4
          %s360 = int_to_ptr.vmem [resolvable:$true] %s359
          %365 = dma.hbm_to_vmem [thread:$0]  %s358, 1024, %s360, %s346, 64, 64, 4
        $region32: #{a_call__.3} parent=27 // pred_fallthru
          _
        // Predicated region
        $region33: #{a_call__.3} parent=27 // pred_check
          %p366 = pneg %p99
        $region34: #{a_call__.3} parent=27 // pred_check_branch
          %368 = sbr.rel (%p366) target = $region36
        $region35: #{a_call__.3} parent=27 // pred_region
          %s369 = sand.u32 %s29, 1
          %s370 = scalar_lea.sflag [#allocation7], %s369
          %s371 = sand.u32 %s89, 1
          %s372 = smul.addr %s371, 8
          %s373 = scalar_lea.vmem [#allocation6], %s372
          %s374 = smul.u32 %s37, 8
          %s375 = ssub.s32 %s374, 1
          %p376 = scmp.gt.s32.totalorder %s375, 0
          %s377 = scalar_select %p376, %s375, 0
          %s379 = ssub.s32 128, 128
          %380 = vsyncadd %s370, %s379
          %s381 = smul.addr %s377, 2
          %s382 = smul.addr %s36, 32
          %s383 = sadd.s32 %s381, %s382
          %s384 = smul.addr %s383, 64
          %s385 = scalar_lea.hbm %s1, %s384
          %s386 = sshll.u32 %s373, 4
          %s387 = int_to_ptr.vmem [resolvable:$true] %s386
          %392 = dma.hbm_to_vmem [thread:$0]  %s385, 128, %s387, %s370, 64, 64, 4
        $region36: #{a_call__.3} parent=27 // pred_fallthru
          _
        // Predicated region
        $region37: #{a_call__.3} parent=27 // pred_check
          %p393 = pneg %p135
        $region38: #{a_call__.3} parent=27 // pred_check_branch
          %395 = sbr.rel (%p393) target = $region40
        $region39: #{a_call__.3} parent=27 // pred_region
          %s396 = sand.u32 %s29, 1
          %s397 = scalar_lea.sflag [#allocation7], %s396
          %s398 = sand.u32 %s125, 1
          %s399 = smul.addr %s398, 8
          %s400 = scalar_lea.vmem [#allocation8], %s399
          %s401 = smul.u32 %s37, 8
          %s402 = sadd.s32 %s401, 8
          %p403 = scmp.lt.s32.totalorder %s402, 15
          %s404 = scalar_select %p403, %s402, 15
          %s406 = ssub.s32 128, 128
          %407 = vsyncadd %s397, %s406
          %s408 = smul.addr %s404, 2
          %s409 = smul.addr %s36, 32
          %s410 = sadd.s32 %s408, %s409
          %s411 = smul.addr %s410, 64
          %s412 = scalar_lea.hbm %s2, %s411
          %s413 = sshll.u32 %s400, 4
          %s414 = int_to_ptr.vmem [resolvable:$true] %s413
          %419 = dma.hbm_to_vmem [thread:$0]  %s412, 128, %s414, %s397, 64, 64, 4
        $region40: #{a_call__.3} parent=27 // pred_fallthru
          _
      $region28: #{a_call__.3} parent=5 // pred_fallthru
        _
      %p420 = scmp.le.s32.totalorder 1, %s29
      %p421 = scmp.lt.s32.totalorder %s29, 5
      %p422 = pnand %p420, %p421
      %p423 = pneg %p422
      // Predicated region
      $region41: #{a_call__.3} parent=5 // pred_check
        _
      $region42: #{a_call__.3} parent=5 // pred_check_branch
        %425 = sbr.rel (%p422) target = $region44
      $region43: #{a_call__.3} parent=5 // pred_region
        %s426 = ssub.s32 %s29, 1
        %s427 = sand.u32 %s56, 1
        %s428 = scalar_lea.sflag [#allocation4], %s427
        %s429 = sand.u32 %s56, 1
        %s430 = smul.addr %s429, 64
        %s431 = scalar_lea.vmem [#allocation3], %s430
        // Predicated region
        $region45: #{a_call__.3} parent=43 // pred_check
          %p432 = pneg %p69
        $region46: #{a_call__.3} parent=43 // pred_check_branch
          %434 = sbr.rel (%p432) target = $region48
        $region47: #{a_call__.3} parent=43 // pred_region
          %435 = dma.done %s428, 1024
        $region48: #{a_call__.3} parent=43 // pred_fallthru
          _
        %s436 = sand.u32 %s34, 1
        %s437 = scalar_lea.sflag [#allocation7], %s436
        %s438 = sand.u32 %s92, 1
        %s439 = smul.addr %s438, 8
        %s440 = scalar_lea.vmem [#allocation6], %s439
        // Predicated region
        $region49: #{a_call__.3} parent=43 // pred_check
          %p441 = pneg %p105
        $region50: #{a_call__.3} parent=43 // pred_check_branch
          %443 = sbr.rel (%p441) target = $region52
        $region51: #{a_call__.3} parent=43 // pred_region
          %444 = dma.done %s437, 128
        $region52: #{a_call__.3} parent=43 // pred_fallthru
          _
        %s445 = sand.u32 %s34, 1
        %s446 = scalar_lea.sflag [#allocation7], %s445
        %s447 = sand.u32 %s128, 1
        %s448 = smul.addr %s447, 8
        %s449 = scalar_lea.vmem [#allocation8], %s448
        // Predicated region
        $region53: #{a_call__.3} parent=43 // pred_check
          %p450 = pneg %p141
        $region54: #{a_call__.3} parent=43 // pred_check_branch
          %452 = sbr.rel (%p450) target = $region56
        $region55: #{a_call__.3} parent=43 // pred_region
          %453 = dma.done %s446, 128
        $region56: #{a_call__.3} parent=43 // pred_fallthru
          _
        // Predicated region
        $region57: #{a_call__.3} parent=43 // pred_check
          %p454 = pneg %p162
        $region58: #{a_call__.3} parent=43 // pred_check_branch
          %456 = sbr.rel (%p454) target = $region60
        $region59: #{a_call__.3} parent=43 // pred_region
          %457 = dma.done [#allocation10], 576
        $region60: #{a_call__.3} parent=43 // pred_fallthru
          _
        // Predicated region
        $region61: #{a_call__.3} parent=43 // pred_check
          %p458 = pneg %p183
        $region62: #{a_call__.3} parent=43 // pred_check_branch
          %460 = sbr.rel (%p458) target = $region64
        $region63: #{a_call__.3} parent=43 // pred_region
          %461 = dma.done [#allocation10], 16
        $region64: #{a_call__.3} parent=43 // pred_fallthru
          _
        // Predicated region
        $region65: #{a_call__.3} parent=43 // pred_check
          %p462 = pneg %p204
        $region66: #{a_call__.3} parent=43 // pred_check_branch
          %464 = sbr.rel (%p462) target = $region68
        $region67: #{a_call__.3} parent=43 // pred_region
          %465 = dma.done [#allocation13], 16
        $region68: #{a_call__.3} parent=43 // pred_fallthru
          _
        %s466 = sand.u32 %s56, 1
        %s467 = scalar_lea.sflag [#allocation4], %s466
        %s468 = sand.u32 %s56, 1
        %s469 = smul.addr %s468, 64
        %s470 = scalar_lea.vmem [#allocation3], %s469
        %p471 = pneg %p69
        %p472 = pneg %p66
        %s473 = sand.u32 %s34, 1
        %s474 = scalar_lea.sflag [#allocation7], %s473
        %s475 = sand.u32 %s92, 1
        %s476 = smul.addr %s475, 8
        %s477 = scalar_lea.vmem [#allocation6], %s476
        %p478 = pneg %p105
        %p479 = pneg %p102
        %s480 = sand.u32 %s34, 1
        %s481 = scalar_lea.sflag [#allocation7], %s480
        %s482 = sand.u32 %s128, 1
        %s483 = smul.addr %s482, 8
        %s484 = scalar_lea.vmem [#allocation8], %s483
        %p485 = pneg %p141
        %p486 = pneg %p138
        %p487 = pneg %p162
        %p488 = pneg %p159
        %p489 = pneg %p183
        %p490 = pneg %p180
        %p491 = pneg %p204
        %p492 = pneg %p201
        %p493 = pneg %p232
        %p494 = pneg %p229
        %s495 = sand.u32 %s219, 1
        %s496 = scalar_lea.sflag [#allocation5], %s495
        %s497 = sand.u32 %s219, 1
        %s498 = smul.addr %s497, 64
        %s499 = scalar_lea.vmem [#allocation14], %s498
        %p500 = pneg %p260
        %p501 = pneg %p257
        %s502 = sand.u32 %s34, 1
        %s503 = scalar_lea.sflag [#allocation16], %s502
        %s504 = sand.u32 %s247, 1
        %s505 = scalar_lea.vmem [#allocation15], %s504
        %p506 = pneg %p288
        %p507 = pneg %p285
        %s508 = sand.u32 %s34, 1
        %s509 = scalar_lea.sflag [#allocation16], %s508
        %s510 = sand.u32 %s275, 1
        %s511 = scalar_lea.vmem [#allocation17], %s510
        %s512 = smul.u32 8, %s39
        %s513 = smul.u32 %s39, 8
        %s514 = ssub.s32 %s513, 1
        %p515 = scmp.gt.s32.totalorder %s514, 0
        %s516 = scalar_select %p515, %s514, 0
        %s517 = smul.u32 %s39, 8
        %s518 = sadd.s32 %s517, 8
        %p519 = scmp.lt.s32.totalorder %s518, 15
        %s520 = scalar_select %p519, %s518, 15
        %s521 = smul.u32 8, %s39
        %v523 = vld [vmem:[%s431] sm:$0xf]
        %v524 = vld [vmem:[%s431 + $0x4] sm:$0xf]
        %v525 = vld [vmem:[%s431 + $0x8] sm:$0xf]
        %v526 = vld [vmem:[%s431 + $0xc] sm:$0xf]
        %v527 = vld [vmem:[%s431 + $0x10] sm:$0xf]
        %v528 = vld [vmem:[%s431 + $0x14] sm:$0xf]
        %v529 = vld [vmem:[%s431 + $0x18] sm:$0xf]
        %v530 = vld [vmem:[%s431 + $0x1c] sm:$0xf]
        %v531 = vld [vmem:[%s431 + $0x20] sm:$0xf]
        %v532 = vld [vmem:[%s431 + $0x24] sm:$0xf]
        %v533 = vld [vmem:[%s431 + $0x28] sm:$0xf]
        %v534 = vld [vmem:[%s431 + $0x2c] sm:$0xf]
        %v535 = vld [vmem:[%s431 + $0x30] sm:$0xf]
        %v536 = vld [vmem:[%s431 + $0x34] sm:$0xf]
        %v537 = vld [vmem:[%s431 + $0x38] sm:$0xf]
        %v538 = vld [vmem:[%s431 + $0x3c] sm:$0xf]
        %p539 = scmp.gt.s32.totalorder %s39, 0
        %s540 = scalar_select %p539, 1, 0
        %s541 = scvt.s32.f32 %s540
        %p543 = scmp.ne.f32.partialorder %s541, %s541
        %s544 = sshrl.u32 %s541, 16
        %s545 = sand.u32 %s544, 1
        %s546 = sadd.s32 32767, %s545
        %s547 = sadd.s32 %s541, %s546
        %s548 = sand.u32 %s547, 4294901760
        %s549 = scalar_select %p543, 2143289344, %s548
        %s551 = sshrl.u32 %s549, 16
        %p552 = scmp.lt.s32.totalorder %s39, 1
        %s553 = scalar_select %p552, 1, 0
        %s554 = scvt.s32.f32 %s553
        %p556 = scmp.ne.f32.partialorder %s554, %s554
        %s557 = sshrl.u32 %s554, 16
        %s558 = sand.u32 %s557, 1
        %s559 = sadd.s32 32767, %s558
        %s560 = sadd.s32 %s554, %s559
        %s561 = sand.u32 %s560, 4294901760
        %s562 = scalar_select %p556, 2143289344, %s561
        %s564 = sshrl.u32 %s562, 16
        %v565 = vld [vmem:[%s440] sm:$0xf]
        %v566 = vld [vmem:[%s440 + $0x4] sm:$0xf]
        %s567 = sshll.u32 %s551, 16
        %s568 = sor.u32 %s551, %s567
        %v569 = vstv %s568
        %v571 = vmul.bf16 %v565, %v569
        %v572 = vmul.bf16 %v566, %v569
        %v573 = vld [vmem:[%s449] sm:$0xf]
        %v574 = vld [vmem:[%s449 + $0x4] sm:$0xf]
        %s575 = sshll.u32 %s564, 16
        %s576 = sor.u32 %s564, %s575
        %v577 = vstv %s576
        %v579 = vmul.bf16 %v573, %v577
        %v580 = vmul.bf16 %v574, %v577
        %vm581 = vcmask 57344
        %vm582 = vsmask.f32 256
        %vm583 = vmand %vm581, %vm582
        %v584 = vld [vmem:[#allocation2] sm:$0x1]
        %v585 = vsel %vm583, 0, %v584
        %586 = vst [vmem:[#allocation2] sm:$0x1] %v585
        %v587 = vld [vmem:[#allocation2 + $0xc] sm:$0x1]
        %v588 = vsel %vm583, 0, %v587
        %589 = vst [vmem:[#allocation2 + $0xc] sm:$0x1] %v588
        %v590 = vld [vmem:[#allocation2 + $0x18] sm:$0x1]
        %v591 = vsel %vm583, 0, %v590
        %592 = vst [vmem:[#allocation2 + $0x18] sm:$0x1] %v591
        %v593 = vld [vmem:[#allocation2 + $0x24] sm:$0x1]
        %v594 = vsel %vm583, 0, %v593
        %595 = vst [vmem:[#allocation2 + $0x24] sm:$0x1] %v594
        %v596 = vld [vmem:[#allocation2 + $0x30] sm:$0x1]
        %v597 = vsel %vm583, 0, %v596
        %598 = vst [vmem:[#allocation2 + $0x30] sm:$0x1] %v597
        %v599 = vld [vmem:[#allocation2 + $0x3c] sm:$0x1]
        %v600 = vsel %vm583, 0, %v599
        %601 = vst [vmem:[#allocation2 + $0x3c] sm:$0x1] %v600
        %v602 = vld [vmem:[#allocation2 + $0x48] sm:$0x1]
        %v603 = vsel %vm583, 0, %v602
        %604 = vst [vmem:[#allocation2 + $0x48] sm:$0x1] %v603
        %v605 = vld [vmem:[#allocation2 + $0x54] sm:$0x1]
        %v606 = vsel %vm583, 0, %v605
        %607 = vst [vmem:[#allocation2 + $0x54] sm:$0x1] %v606
        %v608 = vld [vmem:[#allocation2 + $0x60] sm:$0x1]
        %v609 = vsel %vm583, 0, %v608
        %610 = vst [vmem:[#allocation2 + $0x60] sm:$0x1] %v609
        %v611 = vld [vmem:[#allocation2 + $0x6c] sm:$0x1]
        %v612 = vsel %vm583, 0, %v611
        %613 = vst [vmem:[#allocation2 + $0x6c] sm:$0x1] %v612
        %vm614 = vsmask.f32 7938
        %vm615 = vmand %vm581, %vm614
        %v616 = vld [vmem:[#allocation2 + $0x8] sm:$0x1]
        %v617 = vsel %vm615, 0, %v616
        %618 = vst [vmem:[#allocation2 + $0x8] sm:$0x1] %v617
        %v619 = vld [vmem:[#allocation2 + $0x14] sm:$0x1]
        %v620 = vsel %vm615, 0, %v619
        %621 = vst [vmem:[#allocation2 + $0x14] sm:$0x1] %v620
        %v622 = vld [vmem:[#allocation2 + $0x20] sm:$0x1]
        %v623 = vsel %vm615, 0, %v622
        %624 = vst [vmem:[#allocation2 + $0x20] sm:$0x1] %v623
        %v625 = vld [vmem:[#allocation2 + $0x2c] sm:$0x1]
        %v626 = vsel %vm615, 0, %v625
        %627 = vst [vmem:[#allocation2 + $0x2c] sm:$0x1] %v626
        %v628 = vld [vmem:[#allocation2 + $0x38] sm:$0x1]
        %v629 = vsel %vm615, 0, %v628
        %630 = vst [vmem:[#allocation2 + $0x38] sm:$0x1] %v629
        %v631 = vld [vmem:[#allocation2 + $0x44] sm:$0x1]
        %v632 = vsel %vm615, 0, %v631
        %633 = vst [vmem:[#allocation2 + $0x44] sm:$0x1] %v632
        %v634 = vld [vmem:[#allocation2 + $0x50] sm:$0x1]
        %v635 = vsel %vm615, 0, %v634
        %636 = vst [vmem:[#allocation2 + $0x50] sm:$0x1] %v635
        %v637 = vld [vmem:[#allocation2 + $0x5c] sm:$0x1]
        %v638 = vsel %vm615, 0, %v637
        %639 = vst [vmem:[#allocation2 + $0x5c] sm:$0x1] %v638
        %v640 = vld [vmem:[#allocation2 + $0x68] sm:$0x1]
        %v641 = vsel %vm615, 0, %v640
        %642 = vst [vmem:[#allocation2 + $0x68] sm:$0x1] %v641
        %v643 = vld [vmem:[#allocation2 + $0x74] sm:$0x1]
        %v644 = vsel %vm615, 0, %v643
        %645 = vst [vmem:[#allocation2 + $0x74] sm:$0x1] %v644
        %vm646 = vsmask.f32 4368
        %vm647 = vmor %vm582, %vm646
        %v649 = vshrl.u32 %v571, 16
        %v651 = vrot.slane %v649, 7
        %v652 = vshll.u32 %v571, 16
        %v654 = vor.u32 %v651, %v652
        %v655 = vrot.slane %v651, 4
        %v657 = vshrl.u32 %v572, 16
        %v659 = vrot.slane %v657, 7
        %v660 = vshll.u32 %v572, 16
        %v662 = vor.u32 %v659, %v660
        %v663 = vsel %vm647, %v655, %v662
        %v664 = vrot.slane %v659, 4
        %vm668 = vcmask 60416
        %vm669 = vmand %vm668, %vm614
        %v670 = vld [vmem:[#allocation2] sm:$0xf]
        %v671 = vsel %vm669, %v654, %v670
        %672 = vst [vmem:[#allocation2] sm:$0xf] %v671
        %vm673 = vcmask 60416
        %674 = vst.msk [vmem:[#allocation2 + $0x4] sm:$0xf] %vm673, %v663
        %v675 = vld [vmem:[#allocation2 + $0x8] sm:$0x1]
        %v676 = vsel %vm583, %v664, %v675
        %677 = vst [vmem:[#allocation2 + $0x8] sm:$0x1] %v676
        %v679 = vshrl.u32 %v579, 16
        %v681 = vrot.slane %v679, 7
        %v682 = vshll.u32 %v579, 16
        %v684 = vor.u32 %v681, %v682
        %v685 = vrot.slane %v681, 4
        %v687 = vshrl.u32 %v580, 16
        %v689 = vrot.slane %v687, 7
        %v690 = vshll.u32 %v580, 16
        %v692 = vor.u32 %v689, %v690
        %v693 = vsel %vm647, %v685, %v692
        %v694 = vrot.slane %v689, 4
        %s698 = scalar_lea.vmem [#allocation2], 108
        %v699 = vld [vmem:[%s698] sm:$0xf]
        %v700 = vsel %vm669, %v684, %v699
        %701 = vst [vmem:[%s698] sm:$0xf] %v700
        %702 = vst.msk [vmem:[%s698 + $0x4] sm:$0xf] %vm673, %v693
        %v703 = vld [vmem:[%s698 + $0x8] sm:$0x1]
        %v704 = vsel %vm583, %v694, %v703
        %705 = vst [vmem:[%s698 + $0x8] sm:$0x1] %v704
        %v707 = vshrl.u32 %v523, 16
        %v709 = vrot.slane %v707, 7
        %v710 = vshll.u32 %v523, 16
        %v712 = vor.u32 %v709, %v710
        %v713 = vrot.slane %v709, 4
        %v715 = vshrl.u32 %v524, 16
        %v717 = vrot.slane %v715, 7
        %v718 = vshll.u32 %v524, 16
        %v720 = vor.u32 %v717, %v718
        %v721 = vsel %vm647, %v713, %v720
        %v722 = vrot.slane %v717, 4
        %v724 = vshrl.u32 %v525, 16
        %v726 = vrot.slane %v724, 7
        %v727 = vshll.u32 %v525, 16
        %v729 = vor.u32 %v726, %v727
        %v730 = vrot.slane %v726, 4
        %v732 = vshrl.u32 %v526, 16
        %v734 = vrot.slane %v732, 7
        %v735 = vshll.u32 %v526, 16
        %v737 = vor.u32 %v734, %v735
        %v738 = vsel %vm647, %v730, %v737
        %v739 = vrot.slane %v734, 4
        %v741 = vshrl.u32 %v527, 16
        %v743 = vrot.slane %v741, 7
        %v744 = vshll.u32 %v527, 16
        %v746 = vor.u32 %v743, %v744
        %v747 = vrot.slane %v743, 4
        %v749 = vshrl.u32 %v528, 16
        %v751 = vrot.slane %v749, 7
        %v752 = vshll.u32 %v528, 16
        %v754 = vor.u32 %v751, %v752
        %v755 = vsel %vm647, %v747, %v754
        %v756 = vrot.slane %v751, 4
        %v758 = vshrl.u32 %v529, 16
        %v760 = vrot.slane %v758, 7
        %v761 = vshll.u32 %v529, 16
        %v763 = vor.u32 %v760, %v761
        %v764 = vrot.slane %v760, 4
        %v766 = vshrl.u32 %v530, 16
        %v768 = vrot.slane %v766, 7
        %v769 = vshll.u32 %v530, 16
        %v771 = vor.u32 %v768, %v769
        %v772 = vsel %vm647, %v764, %v771
        %v773 = vrot.slane %v768, 4
        %v775 = vshrl.u32 %v531, 16
        %v777 = vrot.slane %v775, 7
        %v778 = vshll.u32 %v531, 16
        %v780 = vor.u32 %v777, %v778
        %v781 = vrot.slane %v777, 4
        %v783 = vshrl.u32 %v532, 16
        %v785 = vrot.slane %v783, 7
        %v786 = vshll.u32 %v532, 16
        %v788 = vor.u32 %v785, %v786
        %v789 = vsel %vm647, %v781, %v788
        %v790 = vrot.slane %v785, 4
        %v792 = vshrl.u32 %v533, 16
        %v794 = vrot.slane %v792, 7
        %v795 = vshll.u32 %v533, 16
        %v797 = vor.u32 %v794, %v795
        %v798 = vrot.slane %v794, 4
        %v800 = vshrl.u32 %v534, 16
        %v802 = vrot.slane %v800, 7
        %v803 = vshll.u32 %v534, 16
        %v805 = vor.u32 %v802, %v803
        %v806 = vsel %vm647, %v798, %v805
        %v807 = vrot.slane %v802, 4
        %v809 = vshrl.u32 %v535, 16
        %v811 = vrot.slane %v809, 7
        %v812 = vshll.u32 %v535, 16
        %v814 = vor.u32 %v811, %v812
        %v815 = vrot.slane %v811, 4
        %v817 = vshrl.u32 %v536, 16
        %v819 = vrot.slane %v817, 7
        %v820 = vshll.u32 %v536, 16
        %v822 = vor.u32 %v819, %v820
        %v823 = vsel %vm647, %v815, %v822
        %v824 = vrot.slane %v819, 4
        %v826 = vshrl.u32 %v537, 16
        %v828 = vrot.slane %v826, 7
        %v829 = vshll.u32 %v537, 16
        %v831 = vor.u32 %v828, %v829
        %v832 = vrot.slane %v828, 4
        %v834 = vshrl.u32 %v538, 16
        %v836 = vrot.slane %v834, 7
        %v837 = vshll.u32 %v538, 16
        %v839 = vor.u32 %v836, %v837
        %v840 = vsel %vm647, %v832, %v839
        %v841 = vrot.slane %v836, 4
        %s866 = scalar_lea.vmem [#allocation2], 12
        %v867 = vld [vmem:[%s866] sm:$0xf]
        %v868 = vsel %vm669, %v712, %v867
        %869 = vst [vmem:[%s866] sm:$0xf] %v868
        %870 = vst.msk [vmem:[%s866 + $0x4] sm:$0xf] %vm673, %v721
        %v871 = vld [vmem:[%s866 + $0x8] sm:$0x1]
        %v872 = vsel %vm583, %v722, %v871
        %873 = vst [vmem:[%s866 + $0x8] sm:$0x1] %v872
        %v874 = vld [vmem:[%s866 + $0xc] sm:$0xf]
        %v875 = vsel %vm669, %v729, %v874
        %876 = vst [vmem:[%s866 + $0xc] sm:$0xf] %v875
        %877 = vst.msk [vmem:[%s866 + $0x10] sm:$0xf] %vm673, %v738
        %v878 = vld [vmem:[%s866 + $0x14] sm:$0x1]
        %v879 = vsel %vm583, %v739, %v878
        %880 = vst [vmem:[%s866 + $0x14] sm:$0x1] %v879
        %v881 = vld [vmem:[%s866 + $0x18] sm:$0xf]
        %v882 = vsel %vm669, %v746, %v881
        %883 = vst [vmem:[%s866 + $0x18] sm:$0xf] %v882
        %884 = vst.msk [vmem:[%s866 + $0x1c] sm:$0xf] %vm673, %v755
        %v885 = vld [vmem:[%s866 + $0x20] sm:$0x1]
        %v886 = vsel %vm583, %v756, %v885
        %887 = vst [vmem:[%s866 + $0x20] sm:$0x1] %v886
        %v888 = vld [vmem:[%s866 + $0x24] sm:$0xf]
        %v889 = vsel %vm669, %v763, %v888
        %890 = vst [vmem:[%s866 + $0x24] sm:$0xf] %v889
        %891 = vst.msk [vmem:[%s866 + $0x28] sm:$0xf] %vm673, %v772
        %v892 = vld [vmem:[%s866 + $0x2c] sm:$0x1]
        %v893 = vsel %vm583, %v773, %v892
        %894 = vst [vmem:[%s866 + $0x2c] sm:$0x1] %v893
        %v895 = vld [vmem:[%s866 + $0x30] sm:$0xf]
        %v896 = vsel %vm669, %v780, %v895
        %897 = vst [vmem:[%s866 + $0x30] sm:$0xf] %v896
        %898 = vst.msk [vmem:[%s866 + $0x34] sm:$0xf] %vm673, %v789
        %v899 = vld [vmem:[%s866 + $0x38] sm:$0x1]
        %v900 = vsel %vm583, %v790, %v899
        %901 = vst [vmem:[%s866 + $0x38] sm:$0x1] %v900
        %v902 = vld [vmem:[%s866 + $0x3c] sm:$0xf]
        %v903 = vsel %vm669, %v797, %v902
        %904 = vst [vmem:[%s866 + $0x3c] sm:$0xf] %v903
        %905 = vst.msk [vmem:[%s866 + $0x40] sm:$0xf] %vm673, %v806
        %v906 = vld [vmem:[%s866 + $0x44] sm:$0x1]
        %v907 = vsel %vm583, %v807, %v906
        %908 = vst [vmem:[%s866 + $0x44] sm:$0x1] %v907
        %v909 = vld [vmem:[%s866 + $0x48] sm:$0xf]
        %v910 = vsel %vm669, %v814, %v909
        %911 = vst [vmem:[%s866 + $0x48] sm:$0xf] %v910
        %912 = vst.msk [vmem:[%s866 + $0x4c] sm:$0xf] %vm673, %v823
        %v913 = vld [vmem:[%s866 + $0x50] sm:$0x1]
        %v914 = vsel %vm583, %v824, %v913
        %915 = vst [vmem:[%s866 + $0x50] sm:$0x1] %v914
        %v916 = vld [vmem:[%s866 + $0x54] sm:$0xf]
        %v917 = vsel %vm669, %v831, %v916
        %918 = vst [vmem:[%s866 + $0x54] sm:$0xf] %v917
        %919 = vst.msk [vmem:[%s866 + $0x58] sm:$0xf] %vm673, %v840
        %v920 = vld [vmem:[%s866 + $0x5c] sm:$0x1]
        %v921 = vsel %vm583, %v841, %v920
        %922 = vst [vmem:[%s866 + $0x5c] sm:$0x1] %v921
        %v923 = vld [vmem:[#allocation2] sm:$0xf]
        %v924 = vld [vmem:[#allocation2 + $0x4] sm:$0xf]
        %v925 = vld [vmem:[#allocation2 + $0xc] sm:$0xf]
        %v926 = vld [vmem:[#allocation2 + $0x10] sm:$0xf]
        %v927 = vld [vmem:[#allocation2 + $0x18] sm:$0xf]
        %v928 = vld [vmem:[#allocation2 + $0x1c] sm:$0xf]
        %v929 = vld [vmem:[#allocation2 + $0x24] sm:$0xf]
        %v930 = vld [vmem:[#allocation2 + $0x28] sm:$0xf]
        %v931 = vld [vmem:[#allocation2 + $0x30] sm:$0xf]
        %v932 = vld [vmem:[#allocation2 + $0x34] sm:$0xf]
        %v933 = vld [vmem:[#allocation2 + $0x3c] sm:$0xf]
        %v934 = vld [vmem:[#allocation2 + $0x40] sm:$0xf]
        %v935 = vld [vmem:[#allocation2 + $0x48] sm:$0xf]
        %v936 = vld [vmem:[#allocation2 + $0x4c] sm:$0xf]
        %v937 = vld [vmem:[#allocation2 + $0x54] sm:$0xf]
        %v938 = vld [vmem:[#allocation2 + $0x58] sm:$0xf]
        %v939 = vld [vmem:[#allocation9] sm:$0xf]
        %v940 = vld [vmem:[#allocation2 + $0x8] sm:$0x1]
        %v941 = vld [vmem:[#allocation2 + $0x14] sm:$0x1]
        %v942 = vld [vmem:[#allocation2 + $0x20] sm:$0x1]
        %v943 = vld [vmem:[#allocation2 + $0x2c] sm:$0x1]
        %v944 = vld [vmem:[#allocation2 + $0x38] sm:$0x1]
        %v945 = vld [vmem:[#allocation2 + $0x44] sm:$0x1]
        %v946 = vld [vmem:[#allocation2 + $0x50] sm:$0x1]
        %v947 = vld [vmem:[#allocation2 + $0x5c] sm:$0x1]
        %vm948 = vsmask.f32 3328
        %vm949 = vsmask.f32 7440
        %vm950 = vmor %vm948, %vm949
        %v952 = vshrl.u32 %v923, 16
        %v954 = vrot.slane %v952, 4
        %v955 = vshll.u32 %v923, 16
        %v957 = vrot.slane %v955, 5
        %v958 = vor.u32 %v954, %v957
        %v959 = vrot.slane %v958, 4
        %v961 = vshll.u32 %v924, 16
        %v963 = vrot.slane %v961, 5
        %v964 = vsel %vm950, %v959, %v963
        %v965 = vshrl.u32 %v924, 16
        %v967 = vrot.slane %v965, 4
        %v968 = vor.u32 %v967, %v963
        %v969 = vrot.slane %v968, 4
        %v971 = vshll.u32 %v940, 16
        %v973 = vrot.slane %v971, 5
        %v974 = vsel %vm950, %v969, %v973
        %v976 = vshrl.u32 %v925, 16
        %v978 = vrot.slane %v976, 4
        %v979 = vshll.u32 %v925, 16
        %v981 = vrot.slane %v979, 5
        %v982 = vor.u32 %v978, %v981
        %v983 = vrot.slane %v982, 4
        %v985 = vshll.u32 %v926, 16
        %v987 = vrot.slane %v985, 5
        %v988 = vsel %vm950, %v983, %v987
        %v989 = vshrl.u32 %v926, 16
        %v991 = vrot.slane %v989, 4
        %v992 = vor.u32 %v991, %v987
        %v993 = vrot.slane %v992, 4
        %v995 = vshll.u32 %v941, 16
        %v997 = vrot.slane %v995, 5
        %v998 = vsel %vm950, %v993, %v997
        %v1000 = vshrl.u32 %v927, 16
        %v1002 = vrot.slane %v1000, 4
        %v1003 = vshll.u32 %v927, 16
        %v1005 = vrot.slane %v1003, 5
        %v1006 = vor.u32 %v1002, %v1005
        %v1007 = vrot.slane %v1006, 4
        %v1009 = vshll.u32 %v928, 16
        %v1011 = vrot.slane %v1009, 5
        %v1012 = vsel %vm950, %v1007, %v1011
        %v1013 = vshrl.u32 %v928, 16
        %v1015 = vrot.slane %v1013, 4
        %v1016 = vor.u32 %v1015, %v1011
        %v1017 = vrot.slane %v1016, 4
        %v1019 = vshll.u32 %v942, 16
        %v1021 = vrot.slane %v1019, 5
        %v1022 = vsel %vm950, %v1017, %v1021
        %v1024 = vshrl.u32 %v929, 16
        %v1026 = vrot.slane %v1024, 4
        %v1027 = vshll.u32 %v929, 16
        %v1029 = vrot.slane %v1027, 5
        %v1030 = vor.u32 %v1026, %v1029
        %v1031 = vrot.slane %v1030, 4
        %v1033 = vshll.u32 %v930, 16
        %v1035 = vrot.slane %v1033, 5
        %v1036 = vsel %vm950, %v1031, %v1035
        %v1037 = vshrl.u32 %v930, 16
        %v1039 = vrot.slane %v1037, 4
        %v1040 = vor.u32 %v1039, %v1035
        %v1041 = vrot.slane %v1040, 4
        %v1043 = vshll.u32 %v943, 16
        %v1045 = vrot.slane %v1043, 5
        %v1046 = vsel %vm950, %v1041, %v1045
        %v1048 = vshrl.u32 %v931, 16
        %v1050 = vrot.slane %v1048, 4
        %v1051 = vshll.u32 %v931, 16
        %v1053 = vrot.slane %v1051, 5
        %v1054 = vor.u32 %v1050, %v1053
        %v1055 = vrot.slane %v1054, 4
        %v1057 = vshll.u32 %v932, 16
        %v1059 = vrot.slane %v1057, 5
        %v1060 = vsel %vm950, %v1055, %v1059
        %v1061 = vshrl.u32 %v932, 16
        %v1063 = vrot.slane %v1061, 4
        %v1064 = vor.u32 %v1063, %v1059
        %v1065 = vrot.slane %v1064, 4
        %v1067 = vshll.u32 %v944, 16
        %v1069 = vrot.slane %v1067, 5
        %v1070 = vsel %vm950, %v1065, %v1069
        %v1072 = vshrl.u32 %v933, 16
        %v1074 = vrot.slane %v1072, 4
        %v1075 = vshll.u32 %v933, 16
        %v1077 = vrot.slane %v1075, 5
        %v1078 = vor.u32 %v1074, %v1077
        %v1079 = vrot.slane %v1078, 4
        %v1081 = vshll.u32 %v934, 16
        %v1083 = vrot.slane %v1081, 5
        %v1084 = vsel %vm950, %v1079, %v1083
        %v1085 = vshrl.u32 %v934, 16
        %v1087 = vrot.slane %v1085, 4
        %v1088 = vor.u32 %v1087, %v1083
        %v1089 = vrot.slane %v1088, 4
        %v1091 = vshll.u32 %v945, 16
        %v1093 = vrot.slane %v1091, 5
        %v1094 = vsel %vm950, %v1089, %v1093
        %v1096 = vshrl.u32 %v935, 16
        %v1098 = vrot.slane %v1096, 4
        %v1099 = vshll.u32 %v935, 16
        %v1101 = vrot.slane %v1099, 5
        %v1102 = vor.u32 %v1098, %v1101
        %v1103 = vrot.slane %v1102, 4
        %v1105 = vshll.u32 %v936, 16
        %v1107 = vrot.slane %v1105, 5
        %v1108 = vsel %vm950, %v1103, %v1107
        %v1109 = vshrl.u32 %v936, 16
        %v1111 = vrot.slane %v1109, 4
        %v1112 = vor.u32 %v1111, %v1107
        %v1113 = vrot.slane %v1112, 4
        %v1115 = vshll.u32 %v946, 16
        %v1117 = vrot.slane %v1115, 5
        %v1118 = vsel %vm950, %v1113, %v1117
        %v1120 = vshrl.u32 %v937, 16
        %v1122 = vrot.slane %v1120, 4
        %v1123 = vshll.u32 %v937, 16
        %v1125 = vrot.slane %v1123, 5
        %v1126 = vor.u32 %v1122, %v1125
        %v1127 = vrot.slane %v1126, 4
        %v1129 = vshll.u32 %v938, 16
        %v1131 = vrot.slane %v1129, 5
        %v1132 = vsel %vm950, %v1127, %v1131
        %v1133 = vshrl.u32 %v938, 16
        %v1135 = vrot.slane %v1133, 4
        %v1136 = vor.u32 %v1135, %v1131
        %v1137 = vrot.slane %v1136, 4
        %v1139 = vshll.u32 %v947, 16
        %v1141 = vrot.slane %v1139, 5
        %v1142 = vsel %vm950, %v1137, %v1141
        %s1143 = scalar_lea.vmem [#allocation9], 4
        %v1144 = vld [vmem:[%s1143] sm:$0xf]
        %v1145 = vunpack.c.l.b16 %v964
        %v1146 = vunpack.c.l.b16 %v974
        %v1147 = vunpack.c.l.b16 %v988
        %v1148 = vunpack.c.l.b16 %v998
        %v1149 = vunpack.c.l.b16 %v1012
        %v1150 = vunpack.c.l.b16 %v1022
        %v1151 = vunpack.c.l.b16 %v1036
        %v1152 = vunpack.c.l.b16 %v1046
        %v1153 = vunpack.c.l.b16 %v1060
        %v1154 = vunpack.c.l.b16 %v1070
        %v1155 = vunpack.c.l.b16 %v1084
        %v1156 = vunpack.c.l.b16 %v1094
        %v1157 = vunpack.c.l.b16 %v1108
        %v1158 = vunpack.c.l.b16 %v1118
        %v1159 = vunpack.c.l.b16 %v1132
        %v1160 = vunpack.c.l.b16 %v1142
        %v1161 = vpack.c.b16 %v1146, %v1145
        %v1162 = vpack.c.b16 %v1148, %v1147
        %v1163 = vpack.c.b16 %v1150, %v1149
        %v1164 = vpack.c.b16 %v1152, %v1151
        %v1165 = vpack.c.b16 %v1154, %v1153
        %v1166 = vpack.c.b16 %v1156, %v1155
        %v1167 = vpack.c.b16 %v1158, %v1157
        %v1168 = vpack.c.b16 %v1160, %v1159
        %vm1169 = vcmask 64512
        %v1171 = vsel %vm1169, %v1161, 0
        %v1174 = vsel %vm1169, %v1162, 0
        %v1177 = vsel %vm1169, %v1163, 0
        %v1180 = vsel %vm1169, %v1164, 0
        %v1183 = vsel %vm1169, %v1165, 0
        %v1186 = vsel %vm1169, %v1166, 0
        %v1189 = vsel %vm1169, %v1167, 0
        %v1192 = vsel %vm1169, %v1168, 0
        %vm1194 = vcmask 1043456
        %v1196 = vsel %vm1194, %v1144, 0
        %1198 = vmatprep.subr.bf16.mxu0 0
        %1199 = vmatpush1.bf16.msra.mxu0 %v1196
        %1200 = vmatprep.subr.bf16.mxu0 0
        %1201 = vmatpush1.bf16.msra.mxu0 0
        %1202 = vmatprep.subr.bf16.mxu0 0
        %1203 = vmatpush1.bf16.msra.mxu0 0
        %1204 = vmatprep.subr.bf16.mxu0 0
        %1205 = vmatpush1.bf16.msra.mxu0 0
        %1206 = vmatprep.subr.bf16.mxu0 0
        %1207 = vmatpush1.bf16.msra.mxu0 0
        %1208 = vmatprep.subr.bf16.mxu0 0
        %1209 = vmatpush1.bf16.msra.mxu0 0
        %1210 = vmatprep.subr.bf16.mxu0 0
        %1211 = vmatpush1.bf16.msra.mxu0 0
        %1212 = vmatprep.subr.bf16.mxu0 0
        %1213 = vmatpush1.bf16.msra.mxu0 0
        %1214 = vmatprep.subr.bf16.mxu0 0
        %1215 = vmatpush1.bf16.msra.mxu0 0
        %1216 = vmatprep.subr.bf16.mxu0 0
        %1217 = vmatpush1.bf16.msra.mxu0 0
        %1218 = vmatprep.subr.bf16.mxu0 0
        %1219 = vmatpush1.bf16.msra.mxu0 0
        %1220 = vmatprep.subr.bf16.mxu0 0
        %1221 = vmatpush1.bf16.msra.mxu0 0
        %1222 = vmatprep.subr.bf16.mxu0 0
        %1223 = vmatpush1.bf16.msra.mxu0 0
        %1224 = vmatprep.subr.bf16.mxu0 0
        %1225 = vmatpush1.bf16.msra.mxu0 0
        %1226 = vmatprep.subr.bf16.mxu0 0
        %1227 = vmatpush1.bf16.msra.mxu0 0
        %1228 = vmatprep.subr.bf16.mxu0 0
        %1229 = vmatpush1.bf16.msra.mxu0 0
        %1230 = vmatprep.mubr.bf16.mxu0 0
        %1231 = vmatmul.mubr.bf16.gmra.mrb[0].mxu0 %v1171
        %v1232 = vpop.f32.mrb[0].mxu0
        %v1233 = vadd.f32 0.0, %v1232
        %v1234 = vpop.f32.mrb[0].mxu0
        %v1235 = vpop.f32.mrb[0].mxu0
        %v1236 = vadd.f32 0.0, %v1235
        %v1237 = vpop.f32.mrb[0].mxu0
        %1238 = vmatprep.mubr.bf16.mxu0 0
        %1239 = vmatmul.mubr.bf16.gmra.mrb[0].mxu0 %v1174
        %v1240 = vpop.f32.mrb[0].mxu0
        %v1241 = vadd.f32 0.0, %v1240
        %v1242 = vpop.f32.mrb[0].mxu0
        %v1243 = vpop.f32.mrb[0].mxu0
        %v1244 = vadd.f32 0.0, %v1243
        %v1245 = vpop.f32.mrb[0].mxu0
        %1246 = vmatprep.mubr.bf16.mxu0 0
        %1247 = vmatmul.mubr.bf16.gmra.mrb[0].mxu0 %v1177
        %v1248 = vpop.f32.mrb[0].mxu0
        %v1249 = vadd.f32 0.0, %v1248
        %v1250 = vpop.f32.mrb[0].mxu0
        %v1251 = vpop.f32.mrb[0].mxu0
        %v1252 = vadd.f32 0.0, %v1251
        %v1253 = vpop.f32.mrb[0].mxu0
        %1254 = vmatprep.mubr.bf16.mxu0 0
        %1255 = vmatmul.mubr.bf16.gmra.mrb[0].mxu0 %v1180
        %v1256 = vpop.f32.mrb[0].mxu0
        %v1257 = vadd.f32 0.0, %v1256
        %v1258 = vpop.f32.mrb[0].mxu0
        %v1259 = vpop.f32.mrb[0].mxu0
        %v1260 = vadd.f32 0.0, %v1259
        %v1261 = vpop.f32.mrb[0].mxu0
        %1262 = vmatprep.mubr.bf16.mxu0 0
        %1263 = vmatmul.mubr.bf16.gmra.mrb[0].mxu0 %v1183
        %v1264 = vpop.f32.mrb[0].mxu0
        %v1265 = vadd.f32 0.0, %v1264
        %v1266 = vpop.f32.mrb[0].mxu0
        %v1267 = vpop.f32.mrb[0].mxu0
        %v1268 = vadd.f32 0.0, %v1267
        %v1269 = vpop.f32.mrb[0].mxu0
        %1270 = vmatprep.mubr.bf16.mxu0 0
        %1271 = vmatmul.mubr.bf16.gmra.mrb[0].mxu0 %v1186
        %v1272 = vpop.f32.mrb[0].mxu0
        %v1273 = vadd.f32 0.0, %v1272
        %v1274 = vpop.f32.mrb[0].mxu0
        %v1275 = vpop.f32.mrb[0].mxu0
        %v1276 = vadd.f32 0.0, %v1275
        %v1277 = vpop.f32.mrb[0].mxu0
        %1278 = vmatprep.mubr.bf16.mxu0 0
        %1279 = vmatmul.mubr.bf16.gmra.mrb[0].mxu0 %v1189
        %v1280 = vpop.f32.mrb[0].mxu0
        %v1281 = vadd.f32 0.0, %v1280
        %v1282 = vpop.f32.mrb[0].mxu0
        %v1283 = vpop.f32.mrb[0].mxu0
        %v1284 = vadd.f32 0.0, %v1283
        %v1285 = vpop.f32.mrb[0].mxu0
        %1286 = vmatprep.mubr.bf16.mxu0 0
        %1287 = vmatmul.mubr.bf16.gmra.mrb[0].mxu0 %v1192
        %v1288 = vpop.f32.mrb[0].mxu0
        %v1289 = vadd.f32 0.0, %v1288
        %v1290 = vpop.f32.mrb[0].mxu0
        %v1291 = vpop.f32.mrb[0].mxu0
        %v1292 = vadd.f32 0.0, %v1291
        %v1293 = vpop.f32.mrb[0].mxu0
        %1294 = vdwg.mxu0
        %v1311 = vunpack.c.l.b16 %v923
        %v1312 = vunpack.c.l.b16 %v924
        %v1313 = vunpack.c.l.b16 %v925
        %v1314 = vunpack.c.l.b16 %v926
        %v1315 = vunpack.c.l.b16 %v927
        %v1316 = vunpack.c.l.b16 %v928
        %v1317 = vunpack.c.l.b16 %v929
        %v1318 = vunpack.c.l.b16 %v930
        %v1319 = vunpack.c.l.b16 %v931
        %v1320 = vunpack.c.l.b16 %v932
        %v1321 = vunpack.c.l.b16 %v933
        %v1322 = vunpack.c.l.b16 %v934
        %v1323 = vunpack.c.l.b16 %v935
        %v1324 = vunpack.c.l.b16 %v936
        %v1325 = vunpack.c.l.b16 %v937
        %v1326 = vunpack.c.l.b16 %v938
        %v1327 = vpack.c.b16 %v1312, %v1311
        %v1328 = vpack.c.b16 %v1314, %v1313
        %v1329 = vpack.c.b16 %v1316, %v1315
        %v1330 = vpack.c.b16 %v1318, %v1317
        %v1331 = vpack.c.b16 %v1320, %v1319
        %v1332 = vpack.c.b16 %v1322, %v1321
        %v1333 = vpack.c.b16 %v1324, %v1323
        %v1334 = vpack.c.b16 %v1326, %v1325
        %v1336 = vsel %vm1169, %v1327, 0
        %v1339 = vsel %vm1169, %v1328, 0
        %v1342 = vsel %vm1169, %v1329, 0
        %v1345 = vsel %vm1169, %v1330, 0
        %v1348 = vsel %vm1169, %v1331, 0
        %v1351 = vsel %vm1169, %v1332, 0
        %v1354 = vsel %vm1169, %v1333, 0
        %v1357 = vsel %vm1169, %v1334, 0
        %v1360 = vsel %vm1194, %v939, 0
        %1362 = vmatprep.subr.bf16.mxu0 0
        %1363 = vmatpush1.bf16.msra.mxu0 %v1360
        %1364 = vmatprep.subr.bf16.mxu0 0
        %1365 = vmatpush1.bf16.msra.mxu0 0
        %1366 = vmatprep.subr.bf16.mxu0 0
        %1367 = vmatpush1.bf16.msra.mxu0 0
        %1368 = vmatprep.subr.bf16.mxu0 0
        %1369 = vmatpush1.bf16.msra.mxu0 0
        %1370 = vmatprep.subr.bf16.mxu0 0
        %1371 = vmatpush1.bf16.msra.mxu0 0
        %1372 = vmatprep.subr.bf16.mxu0 0
        %1373 = vmatpush1.bf16.msra.mxu0 0
        %1374 = vmatprep.subr.bf16.mxu0 0
        %1375 = vmatpush1.bf16.msra.mxu0 0
        %1376 = vmatprep.subr.bf16.mxu0 0
        %1377 = vmatpush1.bf16.msra.mxu0 0
        %1378 = vmatprep.subr.bf16.mxu0 0
        %1379 = vmatpush1.bf16.msra.mxu0 0
        %1380 = vmatprep.subr.bf16.mxu0 0
        %1381 = vmatpush1.bf16.msra.mxu0 0
        %1382 = vmatprep.subr.bf16.mxu0 0
        %1383 = vmatpush1.bf16.msra.mxu0 0
        %1384 = vmatprep.subr.bf16.mxu0 0
        %1385 = vmatpush1.bf16.msra.mxu0 0
        %1386 = vmatprep.subr.bf16.mxu0 0
        %1387 = vmatpush1.bf16.msra.mxu0 0
        %1388 = vmatprep.subr.bf16.mxu0 0
        %1389 = vmatpush1.bf16.msra.mxu0 0
        %1390 = vmatprep.subr.bf16.mxu0 0
        %1391 = vmatpush1.bf16.msra.mxu0 0
        %1392 = vmatprep.subr.bf16.mxu0 0
        %1393 = vmatpush1.bf16.msra.mxu0 0
        %1394 = vmatprep.mubr.bf16.mxu0 0
        %1395 = vmatmul.mubr.bf16.gmra.mrb[0].mxu0 %v1336
        %v1396 = vpop.f32.mrb[0].mxu0
        %v1397 = vadd.f32 %v1233, %v1396
        %v1398 = vpop.f32.mrb[0].mxu0
        %v1399 = vpop.f32.mrb[0].mxu0
        %v1400 = vadd.f32 %v1236, %v1399
        %v1401 = vpop.f32.mrb[0].mxu0
        %1402 = vmatprep.mubr.bf16.mxu0 0
        %1403 = vmatmul.mubr.bf16.gmra.mrb[0].mxu0 %v1339
        %v1404 = vpop.f32.mrb[0].mxu0
        %v1405 = vadd.f32 %v1241, %v1404
        %v1406 = vpop.f32.mrb[0].mxu0
        %v1407 = vpop.f32.mrb[0].mxu0
        %v1408 = vadd.f32 %v1244, %v1407
        %v1409 = vpop.f32.mrb[0].mxu0
        %1410 = vmatprep.mubr.bf16.mxu0 0
        %1411 = vmatmul.mubr.bf16.gmra.mrb[0].mxu0 %v1342
        %v1412 = vpop.f32.mrb[0].mxu0
        %v1413 = vadd.f32 %v1249, %v1412
        %v1414 = vpop.f32.mrb[0].mxu0
        %v1415 = vpop.f32.mrb[0].mxu0
        %v1416 = vadd.f32 %v1252, %v1415
        %v1417 = vpop.f32.mrb[0].mxu0
        %1418 = vmatprep.mubr.bf16.mxu0 0
        %1419 = vmatmul.mubr.bf16.gmra.mrb[0].mxu0 %v1345
        %v1420 = vpop.f32.mrb[0].mxu0
        %v1421 = vadd.f32 %v1257, %v1420
        %v1422 = vpop.f32.mrb[0].mxu0
        %v1423 = vpop.f32.mrb[0].mxu0
        %v1424 = vadd.f32 %v1260, %v1423
        %v1425 = vpop.f32.mrb[0].mxu0
        %1426 = vmatprep.mubr.bf16.mxu0 0
        %1427 = vmatmul.mubr.bf16.gmra.mrb[0].mxu0 %v1348
        %v1428 = vpop.f32.mrb[0].mxu0
        %v1429 = vadd.f32 %v1265, %v1428
        %v1430 = vpop.f32.mrb[0].mxu0
        %v1431 = vpop.f32.mrb[0].mxu0
        %v1432 = vadd.f32 %v1268, %v1431
        %v1433 = vpop.f32.mrb[0].mxu0
        %1434 = vmatprep.mubr.bf16.mxu0 0
        %1435 = vmatmul.mubr.bf16.gmra.mrb[0].mxu0 %v1351
        %v1436 = vpop.f32.mrb[0].mxu0
        %v1437 = vadd.f32 %v1273, %v1436
        %v1438 = vpop.f32.mrb[0].mxu0
        %v1439 = vpop.f32.mrb[0].mxu0
        %v1440 = vadd.f32 %v1276, %v1439
        %v1441 = vpop.f32.mrb[0].mxu0
        %1442 = vmatprep.mubr.bf16.mxu0 0
        %1443 = vmatmul.mubr.bf16.gmra.mrb[0].mxu0 %v1354
        %v1444 = vpop.f32.mrb[0].mxu0
        %v1445 = vadd.f32 %v1281, %v1444
        %v1446 = vpop.f32.mrb[0].mxu0
        %v1447 = vpop.f32.mrb[0].mxu0
        %v1448 = vadd.f32 %v1284, %v1447
        %v1449 = vpop.f32.mrb[0].mxu0
        %1450 = vmatprep.mubr.bf16.mxu0 0
        %1451 = vmatmul.mubr.bf16.gmra.mrb[0].mxu0 %v1357
        %v1452 = vpop.f32.mrb[0].mxu0
        %v1453 = vadd.f32 %v1289, %v1452
        %v1454 = vpop.f32.mrb[0].mxu0
        %v1455 = vpop.f32.mrb[0].mxu0
        %v1456 = vadd.f32 %v1292, %v1455
        %v1457 = vpop.f32.mrb[0].mxu0
        %1458 = vdwg.mxu0
        %v1459 = vld [vmem:[#allocation2] sm:$0xe]
        %v1460 = vld [vmem:[#allocation2 + $0xc] sm:$0xe]
        %v1461 = vld [vmem:[#allocation2 + $0x18] sm:$0xe]
        %v1462 = vld [vmem:[#allocation2 + $0x24] sm:$0xe]
        %v1463 = vld [vmem:[#allocation2 + $0x30] sm:$0xe]
        %v1464 = vld [vmem:[#allocation2 + $0x3c] sm:$0xe]
        %v1465 = vld [vmem:[#allocation2 + $0x48] sm:$0xe]
        %v1466 = vld [vmem:[#allocation2 + $0x54] sm:$0xe]
        %vm1483 = vcmask 1042432
        %vm1484 = vcmask 1046532
        %vm1485 = vmor %vm1483, %vm1484
        %v1486 = vrot.slane %v1459, 5
        %v1487 = vrot.slane %v1486, 4
        %v1488 = vrot.slane %v924, 5
        %v1489 = vsel %vm1485, %v1487, %v1488
        %v1490 = vrot.slane %v1488, 4
        %v1491 = vrot.slane %v940, 5
        %v1492 = vsel %vm1485, %v1490, %v1491
        %v1493 = vrot.slane %v1460, 5
        %v1494 = vrot.slane %v1493, 4
        %v1495 = vrot.slane %v926, 5
        %v1496 = vsel %vm1485, %v1494, %v1495
        %v1497 = vrot.slane %v1495, 4
        %v1498 = vrot.slane %v941, 5
        %v1499 = vsel %vm1485, %v1497, %v1498
        %v1500 = vrot.slane %v1461, 5
        %v1501 = vrot.slane %v1500, 4
        %v1502 = vrot.slane %v928, 5
        %v1503 = vsel %vm1485, %v1501, %v1502
        %v1504 = vrot.slane %v1502, 4
        %v1505 = vrot.slane %v942, 5
        %v1506 = vsel %vm1485, %v1504, %v1505
        %v1507 = vrot.slane %v1462, 5
        %v1508 = vrot.slane %v1507, 4
        %v1509 = vrot.slane %v930, 5
        %v1510 = vsel %vm1485, %v1508, %v1509
        %v1511 = vrot.slane %v1509, 4
        %v1512 = vrot.slane %v943, 5
        %v1513 = vsel %vm1485, %v1511, %v1512
        %v1514 = vrot.slane %v1463, 5
        %v1515 = vrot.slane %v1514, 4
        %v1516 = vrot.slane %v932, 5
        %v1517 = vsel %vm1485, %v1515, %v1516
        %v1518 = vrot.slane %v1516, 4
        %v1519 = vrot.slane %v944, 5
        %v1520 = vsel %vm1485, %v1518, %v1519
        %v1521 = vrot.slane %v1464, 5
        %v1522 = vrot.slane %v1521, 4
        %v1523 = vrot.slane %v934, 5
        %v1524 = vsel %vm1485, %v1522, %v1523
        %v1525 = vrot.slane %v1523, 4
        %v1526 = vrot.slane %v945, 5
        %v1527 = vsel %vm1485, %v1525, %v1526
        %v1528 = vrot.slane %v1465, 5
        %v1529 = vrot.slane %v1528, 4
        %v1530 = vrot.slane %v936, 5
        %v1531 = vsel %vm1485, %v1529, %v1530
        %v1532 = vrot.slane %v1530, 4
        %v1533 = vrot.slane %v946, 5
        %v1534 = vsel %vm1485, %v1532, %v1533
        %v1535 = vrot.slane %v1466, 5
        %v1536 = vrot.slane %v1535, 4
        %v1537 = vrot.slane %v938, 5
        %v1538 = vsel %vm1485, %v1536, %v1537
        %v1539 = vrot.slane %v1537, 4
        %v1540 = vrot.slane %v947, 5
        %v1541 = vsel %vm1485, %v1539, %v1540
        %s1542 = scalar_lea.vmem [#allocation9], 8
        %v1543 = vld [vmem:[%s1542] sm:$0xf]
        %v1544 = vunpack.c.l.b16 %v1489
        %v1545 = vunpack.c.l.b16 %v1492
        %v1546 = vunpack.c.l.b16 %v1496
        %v1547 = vunpack.c.l.b16 %v1499
        %v1548 = vunpack.c.l.b16 %v1503
        %v1549 = vunpack.c.l.b16 %v1506
        %v1550 = vunpack.c.l.b16 %v1510
        %v1551 = vunpack.c.l.b16 %v1513
        %v1552 = vunpack.c.l.b16 %v1517
        %v1553 = vunpack.c.l.b16 %v1520
        %v1554 = vunpack.c.l.b16 %v1524
        %v1555 = vunpack.c.l.b16 %v1527
        %v1556 = vunpack.c.l.b16 %v1531
        %v1557 = vunpack.c.l.b16 %v1534
        %v1558 = vunpack.c.l.b16 %v1538
        %v1559 = vunpack.c.l.b16 %v1541
        %v1560 = vpack.c.b16 %v1545, %v1544
        %v1561 = vpack.c.b16 %v1547, %v1546
        %v1562 = vpack.c.b16 %v1549, %v1548
        %v1563 = vpack.c.b16 %v1551, %v1550
        %v1564 = vpack.c.b16 %v1553, %v1552
        %v1565 = vpack.c.b16 %v1555, %v1554
        %v1566 = vpack.c.b16 %v1557, %v1556
        %v1567 = vpack.c.b16 %v1559, %v1558
        %v1569 = vsel %vm1169, %v1560, 0
        %v1572 = vsel %vm1169, %v1561, 0
        %v1575 = vsel %vm1169, %v1562, 0
        %v1578 = vsel %vm1169, %v1563, 0
        %v1581 = vsel %vm1169, %v1564, 0
        %v1584 = vsel %vm1169, %v1565, 0
        %v1587 = vsel %vm1169, %v1566, 0
        %v1590 = vsel %vm1169, %v1567, 0
        %v1593 = vsel %vm1194, %v1543, 0
        %1595 = vmatprep.subr.bf16.mxu0 0
        %1596 = vmatpush1.bf16.msra.mxu0 %v1593
        %1597 = vmatprep.subr.bf16.mxu0 0
        %1598 = vmatpush1.bf16.msra.mxu0 0
        %1599 = vmatprep.subr.bf16.mxu0 0
        %1600 = vmatpush1.bf16.msra.mxu0 0
        %1601 = vmatprep.subr.bf16.mxu0 0
        %1602 = vmatpush1.bf16.msra.mxu0 0
        %1603 = vmatprep.subr.bf16.mxu0 0
        %1604 = vmatpush1.bf16.msra.mxu0 0
        %1605 = vmatprep.subr.bf16.mxu0 0
        %1606 = vmatpush1.bf16.msra.mxu0 0
        %1607 = vmatprep.subr.bf16.mxu0 0
        %1608 = vmatpush1.bf16.msra.mxu0 0
        %1609 = vmatprep.subr.bf16.mxu0 0
        %1610 = vmatpush1.bf16.msra.mxu0 0
        %1611 = vmatprep.subr.bf16.mxu0 0
        %1612 = vmatpush1.bf16.msra.mxu0 0
        %1613 = vmatprep.subr.bf16.mxu0 0
        %1614 = vmatpush1.bf16.msra.mxu0 0
        %1615 = vmatprep.subr.bf16.mxu0 0
        %1616 = vmatpush1.bf16.msra.mxu0 0
        %1617 = vmatprep.subr.bf16.mxu0 0
        %1618 = vmatpush1.bf16.msra.mxu0 0
        %1619 = vmatprep.subr.bf16.mxu0 0
        %1620 = vmatpush1.bf16.msra.mxu0 0
        %1621 = vmatprep.subr.bf16.mxu0 0
        %1622 = vmatpush1.bf16.msra.mxu0 0
        %1623 = vmatprep.subr.bf16.mxu0 0
        %1624 = vmatpush1.bf16.msra.mxu0 0
        %1625 = vmatprep.subr.bf16.mxu0 0
        %1626 = vmatpush1.bf16.msra.mxu0 0
        %1627 = vmatprep.mubr.bf16.mxu0 0
        %1628 = vmatmul.mubr.bf16.gmra.mrb[0].mxu0 %v1569
        %v1629 = vpop.f32.mrb[0].mxu0
        %v1630 = vadd.f32 0.0, %v1629
        %v1631 = vpop.f32.mrb[0].mxu0
        %v1632 = vpop.f32.mrb[0].mxu0
        %v1633 = vadd.f32 0.0, %v1632
        %v1634 = vpop.f32.mrb[0].mxu0
        %1635 = vmatprep.mubr.bf16.mxu0 0
        %1636 = vmatmul.mubr.bf16.gmra.mrb[0].mxu0 %v1572
        %v1637 = vpop.f32.mrb[0].mxu0
        %v1638 = vadd.f32 0.0, %v1637
        %v1639 = vpop.f32.mrb[0].mxu0
        %v1640 = vpop.f32.mrb[0].mxu0
        %v1641 = vadd.f32 0.0, %v1640
        %v1642 = vpop.f32.mrb[0].mxu0
        %1643 = vmatprep.mubr.bf16.mxu0 0
        %1644 = vmatmul.mubr.bf16.gmra.mrb[0].mxu0 %v1575
        %v1645 = vpop.f32.mrb[0].mxu0
        %v1646 = vadd.f32 0.0, %v1645
        %v1647 = vpop.f32.mrb[0].mxu0
        %v1648 = vpop.f32.mrb[0].mxu0
        %v1649 = vadd.f32 0.0, %v1648
        %v1650 = vpop.f32.mrb[0].mxu0
        %1651 = vmatprep.mubr.bf16.mxu0 0
        %1652 = vmatmul.mubr.bf16.gmra.mrb[0].mxu0 %v1578
        %v1653 = vpop.f32.mrb[0].mxu0
        %v1654 = vadd.f32 0.0, %v1653
        %v1655 = vpop.f32.mrb[0].mxu0
        %v1656 = vpop.f32.mrb[0].mxu0
        %v1657 = vadd.f32 0.0, %v1656
        %v1658 = vpop.f32.mrb[0].mxu0
        %1659 = vmatprep.mubr.bf16.mxu0 0
        %1660 = vmatmul.mubr.bf16.gmra.mrb[0].mxu0 %v1581
        %v1661 = vpop.f32.mrb[0].mxu0
        %v1662 = vadd.f32 0.0, %v1661
        %v1663 = vpop.f32.mrb[0].mxu0
        %v1664 = vpop.f32.mrb[0].mxu0
        %v1665 = vadd.f32 0.0, %v1664
        %v1666 = vpop.f32.mrb[0].mxu0
        %1667 = vmatprep.mubr.bf16.mxu0 0
        %1668 = vmatmul.mubr.bf16.gmra.mrb[0].mxu0 %v1584
        %v1669 = vpop.f32.mrb[0].mxu0
        %v1670 = vadd.f32 0.0, %v1669
        %v1671 = vpop.f32.mrb[0].mxu0
        %v1672 = vpop.f32.mrb[0].mxu0
        %v1673 = vadd.f32 0.0, %v1672
        %v1674 = vpop.f32.mrb[0].mxu0
        %1675 = vmatprep.mubr.bf16.mxu0 0
        %1676 = vmatmul.mubr.bf16.gmra.mrb[0].mxu0 %v1587
        %v1677 = vpop.f32.mrb[0].mxu0
        %v1678 = vadd.f32 0.0, %v1677
        %v1679 = vpop.f32.mrb[0].mxu0
        %v1680 = vpop.f32.mrb[0].mxu0
        %v1681 = vadd.f32 0.0, %v1680
        %v1682 = vpop.f32.mrb[0].mxu0
        %1683 = vmatprep.mubr.bf16.mxu0 0
        %1684 = vmatmul.mubr.bf16.gmra.mrb[0].mxu0 %v1590
        %v1685 = vpop.f32.mrb[0].mxu0
        %v1686 = vadd.f32 0.0, %v1685
        %v1687 = vpop.f32.mrb[0].mxu0
        %v1688 = vpop.f32.mrb[0].mxu0
        %v1689 = vadd.f32 0.0, %v1688
        %v1690 = vpop.f32.mrb[0].mxu0
        %1691 = vdwg.mxu0
        %v1692 = vadd.f32 %v1397, %v1630
        %v1693 = vadd.f32 %v1400, %v1633
        %v1694 = vadd.f32 %v1405, %v1638
        %v1695 = vadd.f32 %v1408, %v1641
        %v1696 = vadd.f32 %v1413, %v1646
        %v1697 = vadd.f32 %v1416, %v1649
        %v1698 = vadd.f32 %v1421, %v1654
        %v1699 = vadd.f32 %v1424, %v1657
        %v1700 = vadd.f32 %v1429, %v1662
        %v1701 = vadd.f32 %v1432, %v1665
        %v1702 = vadd.f32 %v1437, %v1670
        %v1703 = vadd.f32 %v1440, %v1673
        %v1704 = vadd.f32 %v1445, %v1678
        %v1705 = vadd.f32 %v1448, %v1681
        %v1706 = vadd.f32 %v1453, %v1686
        %v1707 = vadd.f32 %v1456, %v1689
        %v1708 = vld [vmem:[%s866] sm:$0xf]
        %v1709 = vld [vmem:[%s866 + $0x4] sm:$0xf]
        %v1710 = vld [vmem:[%s866 + $0xc] sm:$0xf]
        %v1711 = vld [vmem:[%s866 + $0x10] sm:$0xf]
        %v1712 = vld [vmem:[%s866 + $0x18] sm:$0xf]
        %v1713 = vld [vmem:[%s866 + $0x1c] sm:$0xf]
        %v1714 = vld [vmem:[%s866 + $0x24] sm:$0xf]
        %v1715 = vld [vmem:[%s866 + $0x28] sm:$0xf]
        %v1716 = vld [vmem:[%s866 + $0x30] sm:$0xf]
        %v1717 = vld [vmem:[%s866 + $0x34] sm:$0xf]
        %v1718 = vld [vmem:[%s866 + $0x3c] sm:$0xf]
        %v1719 = vld [vmem:[%s866 + $0x40] sm:$0xf]
        %v1720 = vld [vmem:[%s866 + $0x48] sm:$0xf]
        %v1721 = vld [vmem:[%s866 + $0x4c] sm:$0xf]
        %v1722 = vld [vmem:[%s866 + $0x54] sm:$0xf]
        %v1723 = vld [vmem:[%s866 + $0x58] sm:$0xf]
        %s1724 = scalar_lea.vmem [#allocation9], 12
        %v1725 = vld [vmem:[%s1724] sm:$0xf]
        %v1742 = vunpack.c.l.b16 %v1708
        %v1743 = vunpack.c.l.b16 %v1709
        %v1744 = vunpack.c.l.b16 %v1710
        %v1745 = vunpack.c.l.b16 %v1711
        %v1746 = vunpack.c.l.b16 %v1712
        %v1747 = vunpack.c.l.b16 %v1713
        %v1748 = vunpack.c.l.b16 %v1714
        %v1749 = vunpack.c.l.b16 %v1715
        %v1750 = vunpack.c.l.b16 %v1716
        %v1751 = vunpack.c.l.b16 %v1717
        %v1752 = vunpack.c.l.b16 %v1718
        %v1753 = vunpack.c.l.b16 %v1719
        %v1754 = vunpack.c.l.b16 %v1720
        %v1755 = vunpack.c.l.b16 %v1721
        %v1756 = vunpack.c.l.b16 %v1722
        %v1757 = vunpack.c.l.b16 %v1723
        %v1758 = vpack.c.b16 %v1743, %v1742
        %v1759 = vpack.c.b16 %v1745, %v1744
        %v1760 = vpack.c.b16 %v1747, %v1746
        %v1761 = vpack.c.b16 %v1749, %v1748
        %v1762 = vpack.c.b16 %v1751, %v1750
        %v1763 = vpack.c.b16 %v1753, %v1752
        %v1764 = vpack.c.b16 %v1755, %v1754
        %v1765 = vpack.c.b16 %v1757, %v1756
        %v1767 = vsel %vm1169, %v1758, 0
        %v1770 = vsel %vm1169, %v1759, 0
        %v1773 = vsel %vm1169, %v1760, 0
        %v1776 = vsel %vm1169, %v1761, 0
        %v1779 = vsel %vm1169, %v1762, 0
        %v1782 = vsel %vm1169, %v1763, 0
        %v1785 = vsel %vm1169, %v1764, 0
        %v1788 = vsel %vm1169, %v1765, 0
        %v1791 = vsel %vm1194, %v1725, 0
        %1793 = vmatprep.subr.bf16.mxu0 0
        %1794 = vmatpush1.bf16.msra.mxu0 %v1791
        %1795 = vmatprep.subr.bf16.mxu0 0
        %1796 = vmatpush1.bf16.msra.mxu0 0
        %1797 = vmatprep.subr.bf16.mxu0 0
        %1798 = vmatpush1.bf16.msra.mxu0 0
        %1799 = vmatprep.subr.bf16.mxu0 0
        %1800 = vmatpush1.bf16.msra.mxu0 0
        %1801 = vmatprep.subr.bf16.mxu0 0
        %1802 = vmatpush1.bf16.msra.mxu0 0
        %1803 = vmatprep.subr.bf16.mxu0 0
        %1804 = vmatpush1.bf16.msra.mxu0 0
        %1805 = vmatprep.subr.bf16.mxu0 0
        %1806 = vmatpush1.bf16.msra.mxu0 0
        %1807 = vmatprep.subr.bf16.mxu0 0
        %1808 = vmatpush1.bf16.msra.mxu0 0
        %1809 = vmatprep.subr.bf16.mxu0 0
        %1810 = vmatpush1.bf16.msra.mxu0 0
        %1811 = vmatprep.subr.bf16.mxu0 0
        %1812 = vmatpush1.bf16.msra.mxu0 0
        %1813 = vmatprep.subr.bf16.mxu0 0
        %1814 = vmatpush1.bf16.msra.mxu0 0
        %1815 = vmatprep.subr.bf16.mxu0 0
        %1816 = vmatpush1.bf16.msra.mxu0 0
        %1817 = vmatprep.subr.bf16.mxu0 0
        %1818 = vmatpush1.bf16.msra.mxu0 0
        %1819 = vmatprep.subr.bf16.mxu0 0
        %1820 = vmatpush1.bf16.msra.mxu0 0
        %1821 = vmatprep.subr.bf16.mxu0 0
        %1822 = vmatpush1.bf16.msra.mxu0 0
        %1823 = vmatprep.subr.bf16.mxu0 0
        %1824 = vmatpush1.bf16.msra.mxu0 0
        %1825 = vmatprep.mubr.bf16.mxu0 0
        %1826 = vmatmul.mubr.bf16.gmra.mrb[0].mxu0 %v1767
        %v1827 = vpop.f32.mrb[0].mxu0
        %v1828 = vadd.f32 0.0, %v1827
        %v1829 = vpop.f32.mrb[0].mxu0
        %v1830 = vpop.f32.mrb[0].mxu0
        %v1831 = vadd.f32 0.0, %v1830
        %v1832 = vpop.f32.mrb[0].mxu0
        %1833 = vmatprep.mubr.bf16.mxu0 0
        %1834 = vmatmul.mubr.bf16.gmra.mrb[0].mxu0 %v1770
        %v1835 = vpop.f32.mrb[0].mxu0
        %v1836 = vadd.f32 0.0, %v1835
        %v1837 = vpop.f32.mrb[0].mxu0
        %v1838 = vpop.f32.mrb[0].mxu0
        %v1839 = vadd.f32 0.0, %v1838
        %v1840 = vpop.f32.mrb[0].mxu0
        %1841 = vmatprep.mubr.bf16.mxu0 0
        %1842 = vmatmul.mubr.bf16.gmra.mrb[0].mxu0 %v1773
        %v1843 = vpop.f32.mrb[0].mxu0
        %v1844 = vadd.f32 0.0, %v1843
        %v1845 = vpop.f32.mrb[0].mxu0
        %v1846 = vpop.f32.mrb[0].mxu0
        %v1847 = vadd.f32 0.0, %v1846
        %v1848 = vpop.f32.mrb[0].mxu0
        %1849 = vmatprep.mubr.bf16.mxu0 0
        %1850 = vmatmul.mubr.bf16.gmra.mrb[0].mxu0 %v1776
        %v1851 = vpop.f32.mrb[0].mxu0
        %v1852 = vadd.f32 0.0, %v1851
        %v1853 = vpop.f32.mrb[0].mxu0
        %v1854 = vpop.f32.mrb[0].mxu0
        %v1855 = vadd.f32 0.0, %v1854
        %v1856 = vpop.f32.mrb[0].mxu0
        %1857 = vmatprep.mubr.bf16.mxu0 0
        %1858 = vmatmul.mubr.bf16.gmra.mrb[0].mxu0 %v1779
        %v1859 = vpop.f32.mrb[0].mxu0
        %v1860 = vadd.f32 0.0, %v1859
        %v1861 = vpop.f32.mrb[0].mxu0
        %v1862 = vpop.f32.mrb[0].mxu0
        %v1863 = vadd.f32 0.0, %v1862
        %v1864 = vpop.f32.mrb[0].mxu0
        %1865 = vmatprep.mubr.bf16.mxu0 0
        %1866 = vmatmul.mubr.bf16.gmra.mrb[0].mxu0 %v1782
        %v1867 = vpop.f32.mrb[0].mxu0
        %v1868 = vadd.f32 0.0, %v1867
        %v1869 = vpop.f32.mrb[0].mxu0
        %v1870 = vpop.f32.mrb[0].mxu0
        %v1871 = vadd.f32 0.0, %v1870
        %v1872 = vpop.f32.mrb[0].mxu0
        %1873 = vmatprep.mubr.bf16.mxu0 0
        %1874 = vmatmul.mubr.bf16.gmra.mrb[0].mxu0 %v1785
        %v1875 = vpop.f32.mrb[0].mxu0
        %v1876 = vadd.f32 0.0, %v1875
        %v1877 = vpop.f32.mrb[0].mxu0
        %v1878 = vpop.f32.mrb[0].mxu0
        %v1879 = vadd.f32 0.0, %v1878
        %v1880 = vpop.f32.mrb[0].mxu0
        %1881 = vmatprep.mubr.bf16.mxu0 0
        %1882 = vmatmul.mubr.bf16.gmra.mrb[0].mxu0 %v1788
        %v1883 = vpop.f32.mrb[0].mxu0
        %v1884 = vadd.f32 0.0, %v1883
        %v1885 = vpop.f32.mrb[0].mxu0
        %v1886 = vpop.f32.mrb[0].mxu0
        %v1887 = vadd.f32 0.0, %v1886
        %v1888 = vpop.f32.mrb[0].mxu0
        %1889 = vdwg.mxu0
        %v1890 = vadd.f32 %v1692, %v1828
        %v1891 = vadd.f32 %v1693, %v1831
        %v1892 = vadd.f32 %v1694, %v1836
        %v1893 = vadd.f32 %v1695, %v1839
        %v1894 = vadd.f32 %v1696, %v1844
        %v1895 = vadd.f32 %v1697, %v1847
        %v1896 = vadd.f32 %v1698, %v1852
        %v1897 = vadd.f32 %v1699, %v1855
        %v1898 = vadd.f32 %v1700, %v1860
        %v1899 = vadd.f32 %v1701, %v1863
        %v1900 = vadd.f32 %v1702, %v1868
        %v1901 = vadd.f32 %v1703, %v1871
        %v1902 = vadd.f32 %v1704, %v1876
        %v1903 = vadd.f32 %v1705, %v1879
        %v1904 = vadd.f32 %v1706, %v1884
        %v1905 = vadd.f32 %v1707, %v1887
        %v1906 = vld [vmem:[%s866] sm:$0xf]
        %v1907 = vld [vmem:[%s866 + $0x4] sm:$0xf]
        %v1908 = vld [vmem:[%s866 + $0x8] sm:$0x1]
        %v1909 = vld [vmem:[%s866 + $0xc] sm:$0xf]
        %v1910 = vld [vmem:[%s866 + $0x10] sm:$0xf]
        %v1911 = vld [vmem:[%s866 + $0x14] sm:$0x1]
        %v1912 = vld [vmem:[%s866 + $0x18] sm:$0xf]
        %v1913 = vld [vmem:[%s866 + $0x1c] sm:$0xf]
        %v1914 = vld [vmem:[%s866 + $0x20] sm:$0x1]
        %v1915 = vld [vmem:[%s866 + $0x24] sm:$0xf]
        %v1916 = vld [vmem:[%s866 + $0x28] sm:$0xf]
        %v1917 = vld [vmem:[%s866 + $0x2c] sm:$0x1]
        %v1918 = vld [vmem:[%s866 + $0x30] sm:$0xf]
        %v1919 = vld [vmem:[%s866 + $0x34] sm:$0xf]
        %v1920 = vld [vmem:[%s866 + $0x38] sm:$0x1]
        %v1921 = vld [vmem:[%s866 + $0x3c] sm:$0xf]
        %v1922 = vld [vmem:[%s866 + $0x40] sm:$0xf]
        %v1923 = vld [vmem:[%s866 + $0x44] sm:$0x1]
        %v1924 = vld [vmem:[%s866 + $0x48] sm:$0xf]
        %v1925 = vld [vmem:[%s866 + $0x4c] sm:$0xf]
        %v1926 = vld [vmem:[%s866 + $0x50] sm:$0x1]
        %v1927 = vld [vmem:[%s866 + $0x54] sm:$0xf]
        %v1928 = vld [vmem:[%s866 + $0x58] sm:$0xf]
        %v1929 = vld [vmem:[%s866 + $0x5c] sm:$0x1]
        %v1931 = vshrl.u32 %v1906, 16
        %v1933 = vrot.slane %v1931, 4
        %v1934 = vshll.u32 %v1906, 16
        %v1936 = vrot.slane %v1934, 5
        %v1937 = vor.u32 %v1933, %v1936
        %v1938 = vrot.slane %v1937, 4
        %v1940 = vshll.u32 %v1907, 16
        %v1942 = vrot.slane %v1940, 5
        %v1943 = vsel %vm950, %v1938, %v1942
        %v1944 = vshrl.u32 %v1907, 16
        %v1946 = vrot.slane %v1944, 4
        %v1947 = vor.u32 %v1946, %v1942
        %v1948 = vrot.slane %v1947, 4
        %v1950 = vshll.u32 %v1908, 16
        %v1952 = vrot.slane %v1950, 5
        %v1953 = vsel %vm950, %v1948, %v1952
        %v1955 = vshrl.u32 %v1909, 16
        %v1957 = vrot.slane %v1955, 4
        %v1958 = vshll.u32 %v1909, 16
        %v1960 = vrot.slane %v1958, 5
        %v1961 = vor.u32 %v1957, %v1960
        %v1962 = vrot.slane %v1961, 4
        %v1964 = vshll.u32 %v1910, 16
        %v1966 = vrot.slane %v1964, 5
        %v1967 = vsel %vm950, %v1962, %v1966
        %v1968 = vshrl.u32 %v1910, 16
        %v1970 = vrot.slane %v1968, 4
        %v1971 = vor.u32 %v1970, %v1966
        %v1972 = vrot.slane %v1971, 4
        %v1974 = vshll.u32 %v1911, 16
        %v1976 = vrot.slane %v1974, 5
        %v1977 = vsel %vm950, %v1972, %v1976
        %v1979 = vshrl.u32 %v1912, 16
        %v1981 = vrot.slane %v1979, 4
        %v1982 = vshll.u32 %v1912, 16
        %v1984 = vrot.slane %v1982, 5
        %v1985 = vor.u32 %v1981, %v1984
        %v1986 = vrot.slane %v1985, 4
        %v1988 = vshll.u32 %v1913, 16
        %v1990 = vrot.slane %v1988, 5
        %v1991 = vsel %vm950, %v1986, %v1990
        %v1992 = vshrl.u32 %v1913, 16
        %v1994 = vrot.slane %v1992, 4
        %v1995 = vor.u32 %v1994, %v1990
        %v1996 = vrot.slane %v1995, 4
        %v1998 = vshll.u32 %v1914, 16
        %v2000 = vrot.slane %v1998, 5
        %v2001 = vsel %vm950, %v1996, %v2000
        %v2003 = vshrl.u32 %v1915, 16
        %v2005 = vrot.slane %v2003, 4
        %v2006 = vshll.u32 %v1915, 16
        %v2008 = vrot.slane %v2006, 5
        %v2009 = vor.u32 %v2005, %v2008
        %v2010 = vrot.slane %v2009, 4
        %v2012 = vshll.u32 %v1916, 16
        %v2014 = vrot.slane %v2012, 5
        %v2015 = vsel %vm950, %v2010, %v2014
        %v2016 = vshrl.u32 %v1916, 16
        %v2018 = vrot.slane %v2016, 4
        %v2019 = vor.u32 %v2018, %v2014
        %v2020 = vrot.slane %v2019, 4
        %v2022 = vshll.u32 %v1917, 16
        %v2024 = vrot.slane %v2022, 5
        %v2025 = vsel %vm950, %v2020, %v2024
        %v2027 = vshrl.u32 %v1918, 16
        %v2029 = vrot.slane %v2027, 4
        %v2030 = vshll.u32 %v1918, 16
        %v2032 = vrot.slane %v2030, 5
        %v2033 = vor.u32 %v2029, %v2032
        %v2034 = vrot.slane %v2033, 4
        %v2036 = vshll.u32 %v1919, 16
        %v2038 = vrot.slane %v2036, 5
        %v2039 = vsel %vm950, %v2034, %v2038
        %v2040 = vshrl.u32 %v1919, 16
        %v2042 = vrot.slane %v2040, 4
        %v2043 = vor.u32 %v2042, %v2038
        %v2044 = vrot.slane %v2043, 4
        %v2046 = vshll.u32 %v1920, 16
        %v2048 = vrot.slane %v2046, 5
        %v2049 = vsel %vm950, %v2044, %v2048
        %v2051 = vshrl.u32 %v1921, 16
        %v2053 = vrot.slane %v2051, 4
        %v2054 = vshll.u32 %v1921, 16
        %v2056 = vrot.slane %v2054, 5
        %v2057 = vor.u32 %v2053, %v2056
        %v2058 = vrot.slane %v2057, 4
        %v2060 = vshll.u32 %v1922, 16
        %v2062 = vrot.slane %v2060, 5
        %v2063 = vsel %vm950, %v2058, %v2062
        %v2064 = vshrl.u32 %v1922, 16
        %v2066 = vrot.slane %v2064, 4
        %v2067 = vor.u32 %v2066, %v2062
        %v2068 = vrot.slane %v2067, 4
        %v2070 = vshll.u32 %v1923, 16
        %v2072 = vrot.slane %v2070, 5
        %v2073 = vsel %vm950, %v2068, %v2072
        %v2075 = vshrl.u32 %v1924, 16
        %v2077 = vrot.slane %v2075, 4
        %v2078 = vshll.u32 %v1924, 16
        %v2080 = vrot.slane %v2078, 5
        %v2081 = vor.u32 %v2077, %v2080
        %v2082 = vrot.slane %v2081, 4
        %v2084 = vshll.u32 %v1925, 16
        %v2086 = vrot.slane %v2084, 5
        %v2087 = vsel %vm950, %v2082, %v2086
        %v2088 = vshrl.u32 %v1925, 16
        %v2090 = vrot.slane %v2088, 4
        %v2091 = vor.u32 %v2090, %v2086
        %v2092 = vrot.slane %v2091, 4
        %v2094 = vshll.u32 %v1926, 16
        %v2096 = vrot.slane %v2094, 5
        %v2097 = vsel %vm950, %v2092, %v2096
        %v2099 = vshrl.u32 %v1927, 16
        %v2101 = vrot.slane %v2099, 4
        %v2102 = vshll.u32 %v1927, 16
        %v2104 = vrot.slane %v2102, 5
        %v2105 = vor.u32 %v2101, %v2104
        %v2106 = vrot.slane %v2105, 4
        %v2108 = vshll.u32 %v1928, 16
        %v2110 = vrot.slane %v2108, 5
        %v2111 = vsel %vm950, %v2106, %v2110
        %v2112 = vshrl.u32 %v1928, 16
        %v2114 = vrot.slane %v2112, 4
        %v2115 = vor.u32 %v2114, %v2110
        %v2116 = vrot.slane %v2115, 4
        %v2118 = vshll.u32 %v1929, 16
        %v2120 = vrot.slane %v2118, 5
        %v2121 = vsel %vm950, %v2116, %v2120
        %s2122 = scalar_lea.vmem [#allocation9], 16
        %v2123 = vld [vmem:[%s2122] sm:$0xf]
        %v2124 = vunpack.c.l.b16 %v1943
        %v2125 = vunpack.c.l.b16 %v1953
        %v2126 = vunpack.c.l.b16 %v1967
        %v2127 = vunpack.c.l.b16 %v1977
        %v2128 = vunpack.c.l.b16 %v1991
        %v2129 = vunpack.c.l.b16 %v2001
        %v2130 = vunpack.c.l.b16 %v2015
        %v2131 = vunpack.c.l.b16 %v2025
        %v2132 = vunpack.c.l.b16 %v2039
        %v2133 = vunpack.c.l.b16 %v2049
        %v2134 = vunpack.c.l.b16 %v2063
        %v2135 = vunpack.c.l.b16 %v2073
        %v2136 = vunpack.c.l.b16 %v2087
        %v2137 = vunpack.c.l.b16 %v2097
        %v2138 = vunpack.c.l.b16 %v2111
        %v2139 = vunpack.c.l.b16 %v2121
        %v2140 = vpack.c.b16 %v2125, %v2124
        %v2141 = vpack.c.b16 %v2127, %v2126
        %v2142 = vpack.c.b16 %v2129, %v2128
        %v2143 = vpack.c.b16 %v2131, %v2130
        %v2144 = vpack.c.b16 %v2133, %v2132
        %v2145 = vpack.c.b16 %v2135, %v2134
        %v2146 = vpack.c.b16 %v2137, %v2136
        %v2147 = vpack.c.b16 %v2139, %v2138
        %v2149 = vsel %vm1169, %v2140, 0
        %v2152 = vsel %vm1169, %v2141, 0
        %v2155 = vsel %vm1169, %v2142, 0
        %v2158 = vsel %vm1169, %v2143, 0
        %v2161 = vsel %vm1169, %v2144, 0
        %v2164 = vsel %vm1169, %v2145, 0
        %v2167 = vsel %vm1169, %v2146, 0
        %v2170 = vsel %vm1169, %v2147, 0
        %v2173 = vsel %vm1194, %v2123, 0
        %2175 = vmatprep.subr.bf16.mxu0 0
        %2176 = vmatpush1.bf16.msra.mxu0 %v2173
        %2177 = vmatprep.subr.bf16.mxu0 0
        %2178 = vmatpush1.bf16.msra.mxu0 0
        %2179 = vmatprep.subr.bf16.mxu0 0
        %2180 = vmatpush1.bf16.msra.mxu0 0
        %2181 = vmatprep.subr.bf16.mxu0 0
        %2182 = vmatpush1.bf16.msra.mxu0 0
        %2183 = vmatprep.subr.bf16.mxu0 0
        %2184 = vmatpush1.bf16.msra.mxu0 0
        %2185 = vmatprep.subr.bf16.mxu0 0
        %2186 = vmatpush1.bf16.msra.mxu0 0
        %2187 = vmatprep.subr.bf16.mxu0 0
        %2188 = vmatpush1.bf16.msra.mxu0 0
        %2189 = vmatprep.subr.bf16.mxu0 0
        %2190 = vmatpush1.bf16.msra.mxu0 0
        %2191 = vmatprep.subr.bf16.mxu0 0
        %2192 = vmatpush1.bf16.msra.mxu0 0
        %2193 = vmatprep.subr.bf16.mxu0 0
        %2194 = vmatpush1.bf16.msra.mxu0 0
        %2195 = vmatprep.subr.bf16.mxu0 0
        %2196 = vmatpush1.bf16.msra.mxu0 0
        %2197 = vmatprep.subr.bf16.mxu0 0
        %2198 = vmatpush1.bf16.msra.mxu0 0
        %2199 = vmatprep.subr.bf16.mxu0 0
        %2200 = vmatpush1.bf16.msra.mxu0 0
        %2201 = vmatprep.subr.bf16.mxu0 0
        %2202 = vmatpush1.bf16.msra.mxu0 0
        %2203 = vmatprep.subr.bf16.mxu0 0
        %2204 = vmatpush1.bf16.msra.mxu0 0
        %2205 = vmatprep.subr.bf16.mxu0 0
        %2206 = vmatpush1.bf16.msra.mxu0 0
        %2207 = vmatprep.mubr.bf16.mxu0 0
        %2208 = vmatmul.mubr.bf16.gmra.mrb[0].mxu0 %v2149
        %v2209 = vpop.f32.mrb[0].mxu0
        %v2210 = vadd.f32 0.0, %v2209
        %v2211 = vpop.f32.mrb[0].mxu0
        %v2212 = vpop.f32.mrb[0].mxu0
        %v2213 = vadd.f32 0.0, %v2212
        %v2214 = vpop.f32.mrb[0].mxu0
        %2215 = vmatprep.mubr.bf16.mxu0 0
        %2216 = vmatmul.mubr.bf16.gmra.mrb[0].mxu0 %v2152
        %v2217 = vpop.f32.mrb[0].mxu0
        %v2218 = vadd.f32 0.0, %v2217
        %v2219 = vpop.f32.mrb[0].mxu0
        %v2220 = vpop.f32.mrb[0].mxu0
        %v2221 = vadd.f32 0.0, %v2220
        %v2222 = vpop.f32.mrb[0].mxu0
        %2223 = vmatprep.mubr.bf16.mxu0 0
        %2224 = vmatmul.mubr.bf16.gmra.mrb[0].mxu0 %v2155
        %v2225 = vpop.f32.mrb[0].mxu0
        %v2226 = vadd.f32 0.0, %v2225
        %v2227 = vpop.f32.mrb[0].mxu0
        %v2228 = vpop.f32.mrb[0].mxu0
        %v2229 = vadd.f32 0.0, %v2228
        %v2230 = vpop.f32.mrb[0].mxu0
        %2231 = vmatprep.mubr.bf16.mxu0 0
        %2232 = vmatmul.mubr.bf16.gmra.mrb[0].mxu0 %v2158
        %v2233 = vpop.f32.mrb[0].mxu0
        %v2234 = vadd.f32 0.0, %v2233
        %v2235 = vpop.f32.mrb[0].mxu0
        %v2236 = vpop.f32.mrb[0].mxu0
        %v2237 = vadd.f32 0.0, %v2236
        %v2238 = vpop.f32.mrb[0].mxu0
        %2239 = vmatprep.mubr.bf16.mxu0 0
        %2240 = vmatmul.mubr.bf16.gmra.mrb[0].mxu0 %v2161
        %v2241 = vpop.f32.mrb[0].mxu0
        %v2242 = vadd.f32 0.0, %v2241
        %v2243 = vpop.f32.mrb[0].mxu0
        %v2244 = vpop.f32.mrb[0].mxu0
        %v2245 = vadd.f32 0.0, %v2244
        %v2246 = vpop.f32.mrb[0].mxu0
        %2247 = vmatprep.mubr.bf16.mxu0 0
        %2248 = vmatmul.mubr.bf16.gmra.mrb[0].mxu0 %v2164
        %v2249 = vpop.f32.mrb[0].mxu0
        %v2250 = vadd.f32 0.0, %v2249
        %v2251 = vpop.f32.mrb[0].mxu0
        %v2252 = vpop.f32.mrb[0].mxu0
        %v2253 = vadd.f32 0.0, %v2252
        %v2254 = vpop.f32.mrb[0].mxu0
        %2255 = vmatprep.mubr.bf16.mxu0 0
        %2256 = vmatmul.mubr.bf16.gmra.mrb[0].mxu0 %v2167
        %v2257 = vpop.f32.mrb[0].mxu0
        %v2258 = vadd.f32 0.0, %v2257
        %v2259 = vpop.f32.mrb[0].mxu0
        %v2260 = vpop.f32.mrb[0].mxu0
        %v2261 = vadd.f32 0.0, %v2260
        %v2262 = vpop.f32.mrb[0].mxu0
        %2263 = vmatprep.mubr.bf16.mxu0 0
        %2264 = vmatmul.mubr.bf16.gmra.mrb[0].mxu0 %v2170
        %v2265 = vpop.f32.mrb[0].mxu0
        %v2266 = vadd.f32 0.0, %v2265
        %v2267 = vpop.f32.mrb[0].mxu0
        %v2268 = vpop.f32.mrb[0].mxu0
        %v2269 = vadd.f32 0.0, %v2268
        %v2270 = vpop.f32.mrb[0].mxu0
        %2271 = vdwg.mxu0
        %v2272 = vadd.f32 %v1890, %v2210
        %v2273 = vadd.f32 %v1891, %v2213
        %v2274 = vadd.f32 %v1892, %v2218
        %v2275 = vadd.f32 %v1893, %v2221
        %v2276 = vadd.f32 %v1894, %v2226
        %v2277 = vadd.f32 %v1895, %v2229
        %v2278 = vadd.f32 %v1896, %v2234
        %v2279 = vadd.f32 %v1897, %v2237
        %v2280 = vadd.f32 %v1898, %v2242
        %v2281 = vadd.f32 %v1899, %v2245
        %v2282 = vadd.f32 %v1900, %v2250
        %v2283 = vadd.f32 %v1901, %v2253
        %v2284 = vadd.f32 %v1902, %v2258
        %v2285 = vadd.f32 %v1903, %v2261
        %v2286 = vadd.f32 %v1904, %v2266
        %v2287 = vadd.f32 %v1905, %v2269
        %v2288 = vld [vmem:[%s866] sm:$0xe]
        %v2289 = vld [vmem:[%s866 + $0xc] sm:$0xe]
        %v2290 = vld [vmem:[%s866 + $0x18] sm:$0xe]
        %v2291 = vld [vmem:[%s866 + $0x24] sm:$0xe]
        %v2292 = vld [vmem:[%s866 + $0x30] sm:$0xe]
        %v2293 = vld [vmem:[%s866 + $0x3c] sm:$0xe]
        %v2294 = vld [vmem:[%s866 + $0x48] sm:$0xe]
        %v2295 = vld [vmem:[%s866 + $0x54] sm:$0xe]
        %v2320 = vrot.slane %v2288, 5
        %v2321 = vrot.slane %v2320, 4
        %v2322 = vrot.slane %v1907, 5
        %v2323 = vsel %vm1485, %v2321, %v2322
        %v2324 = vrot.slane %v2322, 4
        %v2325 = vrot.slane %v1908, 5
        %v2326 = vsel %vm1485, %v2324, %v2325
        %v2327 = vrot.slane %v2289, 5
        %v2328 = vrot.slane %v2327, 4
        %v2329 = vrot.slane %v1910, 5
        %v2330 = vsel %vm1485, %v2328, %v2329
        %v2331 = vrot.slane %v2329, 4
        %v2332 = vrot.slane %v1911, 5
        %v2333 = vsel %vm1485, %v2331, %v2332
        %v2334 = vrot.slane %v2290, 5
        %v2335 = vrot.slane %v2334, 4
        %v2336 = vrot.slane %v1913, 5
        %v2337 = vsel %vm1485, %v2335, %v2336
        %v2338 = vrot.slane %v2336, 4
        %v2339 = vrot.slane %v1914, 5
        %v2340 = vsel %vm1485, %v2338, %v2339
        %v2341 = vrot.slane %v2291, 5
        %v2342 = vrot.slane %v2341, 4
        %v2343 = vrot.slane %v1916, 5
        %v2344 = vsel %vm1485, %v2342, %v2343
        %v2345 = vrot.slane %v2343, 4
        %v2346 = vrot.slane %v1917, 5
        %v2347 = vsel %vm1485, %v2345, %v2346
        %v2348 = vrot.slane %v2292, 5
        %v2349 = vrot.slane %v2348, 4
        %v2350 = vrot.slane %v1919, 5
        %v2351 = vsel %vm1485, %v2349, %v2350
        %v2352 = vrot.slane %v2350, 4
        %v2353 = vrot.slane %v1920, 5
        %v2354 = vsel %vm1485, %v2352, %v2353
        %v2355 = vrot.slane %v2293, 5
        %v2356 = vrot.slane %v2355, 4
        %v2357 = vrot.slane %v1922, 5
        %v2358 = vsel %vm1485, %v2356, %v2357
        %v2359 = vrot.slane %v2357, 4
        %v2360 = vrot.slane %v1923, 5
        %v2361 = vsel %vm1485, %v2359, %v2360
        %v2362 = vrot.slane %v2294, 5
        %v2363 = vrot.slane %v2362, 4
        %v2364 = vrot.slane %v1925, 5
        %v2365 = vsel %vm1485, %v2363, %v2364
        %v2366 = vrot.slane %v2364, 4
        %v2367 = vrot.slane %v1926, 5
        %v2368 = vsel %vm1485, %v2366, %v2367
        %v2369 = vrot.slane %v2295, 5
        %v2370 = vrot.slane %v2369, 4
        %v2371 = vrot.slane %v1928, 5
        %v2372 = vsel %vm1485, %v2370, %v2371
        %v2373 = vrot.slane %v2371, 4
        %v2374 = vrot.slane %v1929, 5
        %v2375 = vsel %vm1485, %v2373, %v2374
        %s2376 = scalar_lea.vmem [#allocation9], 20
        %v2377 = vld [vmem:[%s2376] sm:$0xf]
        %v2378 = vunpack.c.l.b16 %v2323
        %v2379 = vunpack.c.l.b16 %v2326
        %v2380 = vunpack.c.l.b16 %v2330
        %v2381 = vunpack.c.l.b16 %v2333
        %v2382 = vunpack.c.l.b16 %v2337
        %v2383 = vunpack.c.l.b16 %v2340
        %v2384 = vunpack.c.l.b16 %v2344
        %v2385 = vunpack.c.l.b16 %v2347
        %v2386 = vunpack.c.l.b16 %v2351
        %v2387 = vunpack.c.l.b16 %v2354
        %v2388 = vunpack.c.l.b16 %v2358
        %v2389 = vunpack.c.l.b16 %v2361
        %v2390 = vunpack.c.l.b16 %v2365
        %v2391 = vunpack.c.l.b16 %v2368
        %v2392 = vunpack.c.l.b16 %v2372
        %v2393 = vunpack.c.l.b16 %v2375
        %v2394 = vpack.c.b16 %v2379, %v2378
        %v2395 = vpack.c.b16 %v2381, %v2380
        %v2396 = vpack.c.b16 %v2383, %v2382
        %v2397 = vpack.c.b16 %v2385, %v2384
        %v2398 = vpack.c.b16 %v2387, %v2386
        %v2399 = vpack.c.b16 %v2389, %v2388
        %v2400 = vpack.c.b16 %v2391, %v2390
        %v2401 = vpack.c.b16 %v2393, %v2392
        %v2403 = vsel %vm1169, %v2394, 0
        %v2406 = vsel %vm1169, %v2395, 0
        %v2409 = vsel %vm1169, %v2396, 0
        %v2412 = vsel %vm1169, %v2397, 0
        %v2415 = vsel %vm1169, %v2398, 0
        %v2418 = vsel %vm1169, %v2399, 0
        %v2421 = vsel %vm1169, %v2400, 0
        %v2424 = vsel %vm1169, %v2401, 0
        %v2427 = vsel %vm1194, %v2377, 0
        %2429 = vmatprep.subr.bf16.mxu0 0
        %2430 = vmatpush1.bf16.msra.mxu0 %v2427
        %2431 = vmatprep.subr.bf16.mxu0 0
        %2432 = vmatpush1.bf16.msra.mxu0 0
        %2433 = vmatprep.subr.bf16.mxu0 0
        %2434 = vmatpush1.bf16.msra.mxu0 0
        %2435 = vmatprep.subr.bf16.mxu0 0
        %2436 = vmatpush1.bf16.msra.mxu0 0
        %2437 = vmatprep.subr.bf16.mxu0 0
        %2438 = vmatpush1.bf16.msra.mxu0 0
        %2439 = vmatprep.subr.bf16.mxu0 0
        %2440 = vmatpush1.bf16.msra.mxu0 0
        %2441 = vmatprep.subr.bf16.mxu0 0
        %2442 = vmatpush1.bf16.msra.mxu0 0
        %2443 = vmatprep.subr.bf16.mxu0 0
        %2444 = vmatpush1.bf16.msra.mxu0 0
        %2445 = vmatprep.subr.bf16.mxu0 0
        %2446 = vmatpush1.bf16.msra.mxu0 0
        %2447 = vmatprep.subr.bf16.mxu0 0
        %2448 = vmatpush1.bf16.msra.mxu0 0
        %2449 = vmatprep.subr.bf16.mxu0 0
        %2450 = vmatpush1.bf16.msra.mxu0 0
        %2451 = vmatprep.subr.bf16.mxu0 0
        %2452 = vmatpush1.bf16.msra.mxu0 0
        %2453 = vmatprep.subr.bf16.mxu0 0
        %2454 = vmatpush1.bf16.msra.mxu0 0
        %2455 = vmatprep.subr.bf16.mxu0 0
        %2456 = vmatpush1.bf16.msra.mxu0 0
        %2457 = vmatprep.subr.bf16.mxu0 0
        %2458 = vmatpush1.bf16.msra.mxu0 0
        %2459 = vmatprep.subr.bf16.mxu0 0
        %2460 = vmatpush1.bf16.msra.mxu0 0
        %2461 = vmatprep.mubr.bf16.mxu0 0
        %2462 = vmatmul.mubr.bf16.gmra.mrb[0].mxu0 %v2403
        %v2463 = vpop.f32.mrb[0].mxu0
        %v2464 = vadd.f32 0.0, %v2463
        %v2465 = vpop.f32.mrb[0].mxu0
        %v2466 = vpop.f32.mrb[0].mxu0
        %v2467 = vadd.f32 0.0, %v2466
        %v2468 = vpop.f32.mrb[0].mxu0
        %2469 = vmatprep.mubr.bf16.mxu0 0
        %2470 = vmatmul.mubr.bf16.gmra.mrb[0].mxu0 %v2406
        %v2471 = vpop.f32.mrb[0].mxu0
        %v2472 = vadd.f32 0.0, %v2471
        %v2473 = vpop.f32.mrb[0].mxu0
        %v2474 = vpop.f32.mrb[0].mxu0
        %v2475 = vadd.f32 0.0, %v2474
        %v2476 = vpop.f32.mrb[0].mxu0
        %2477 = vmatprep.mubr.bf16.mxu0 0
        %2478 = vmatmul.mubr.bf16.gmra.mrb[0].mxu0 %v2409
        %v2479 = vpop.f32.mrb[0].mxu0
        %v2480 = vadd.f32 0.0, %v2479
        %v2481 = vpop.f32.mrb[0].mxu0
        %v2482 = vpop.f32.mrb[0].mxu0
        %v2483 = vadd.f32 0.0, %v2482
        %v2484 = vpop.f32.mrb[0].mxu0
        %2485 = vmatprep.mubr.bf16.mxu0 0
        %2486 = vmatmul.mubr.bf16.gmra.mrb[0].mxu0 %v2412
        %v2487 = vpop.f32.mrb[0].mxu0
        %v2488 = vadd.f32 0.0, %v2487
        %v2489 = vpop.f32.mrb[0].mxu0
        %v2490 = vpop.f32.mrb[0].mxu0
        %v2491 = vadd.f32 0.0, %v2490
        %v2492 = vpop.f32.mrb[0].mxu0
        %2493 = vmatprep.mubr.bf16.mxu0 0
        %2494 = vmatmul.mubr.bf16.gmra.mrb[0].mxu0 %v2415
        %v2495 = vpop.f32.mrb[0].mxu0
        %v2496 = vadd.f32 0.0, %v2495
        %v2497 = vpop.f32.mrb[0].mxu0
        %v2498 = vpop.f32.mrb[0].mxu0
        %v2499 = vadd.f32 0.0, %v2498
        %v2500 = vpop.f32.mrb[0].mxu0
        %2501 = vmatprep.mubr.bf16.mxu0 0
        %2502 = vmatmul.mubr.bf16.gmra.mrb[0].mxu0 %v2418
        %v2503 = vpop.f32.mrb[0].mxu0
        %v2504 = vadd.f32 0.0, %v2503
        %v2505 = vpop.f32.mrb[0].mxu0
        %v2506 = vpop.f32.mrb[0].mxu0
        %v2507 = vadd.f32 0.0, %v2506
        %v2508 = vpop.f32.mrb[0].mxu0
        %2509 = vmatprep.mubr.bf16.mxu0 0
        %2510 = vmatmul.mubr.bf16.gmra.mrb[0].mxu0 %v2421
        %v2511 = vpop.f32.mrb[0].mxu0
        %v2512 = vadd.f32 0.0, %v2511
        %v2513 = vpop.f32.mrb[0].mxu0
        %v2514 = vpop.f32.mrb[0].mxu0
        %v2515 = vadd.f32 0.0, %v2514
        %v2516 = vpop.f32.mrb[0].mxu0
        %2517 = vmatprep.mubr.bf16.mxu0 0
        %2518 = vmatmul.mubr.bf16.gmra.mrb[0].mxu0 %v2424
        %v2519 = vpop.f32.mrb[0].mxu0
        %v2520 = vadd.f32 0.0, %v2519
        %v2521 = vpop.f32.mrb[0].mxu0
        %v2522 = vpop.f32.mrb[0].mxu0
        %v2523 = vadd.f32 0.0, %v2522
        %v2524 = vpop.f32.mrb[0].mxu0
        %2525 = vdwg.mxu0
        %v2526 = vadd.f32 %v2272, %v2464
        %v2527 = vadd.f32 %v2273, %v2467
        %v2528 = vadd.f32 %v2274, %v2472
        %v2529 = vadd.f32 %v2275, %v2475
        %v2530 = vadd.f32 %v2276, %v2480
        %v2531 = vadd.f32 %v2277, %v2483
        %v2532 = vadd.f32 %v2278, %v2488
        %v2533 = vadd.f32 %v2279, %v2491
        %v2534 = vadd.f32 %v2280, %v2496
        %v2535 = vadd.f32 %v2281, %v2499
        %v2536 = vadd.f32 %v2282, %v2504
        %v2537 = vadd.f32 %v2283, %v2507
        %v2538 = vadd.f32 %v2284, %v2512
        %v2539 = vadd.f32 %v2285, %v2515
        %v2540 = vadd.f32 %v2286, %v2520
        %v2541 = vadd.f32 %v2287, %v2523
        %s2542 = scalar_lea.vmem [#allocation2], 24
        %v2543 = vld [vmem:[%s2542] sm:$0xf]
        %v2544 = vld [vmem:[%s2542 + $0x4] sm:$0xf]
        %v2545 = vld [vmem:[%s2542 + $0xc] sm:$0xf]
        %v2546 = vld [vmem:[%s2542 + $0x10] sm:$0xf]
        %v2547 = vld [vmem:[%s2542 + $0x18] sm:$0xf]
        %v2548 = vld [vmem:[%s2542 + $0x1c] sm:$0xf]
        %v2549 = vld [vmem:[%s2542 + $0x24] sm:$0xf]
        %v2550 = vld [vmem:[%s2542 + $0x28] sm:$0xf]
        %v2551 = vld [vmem:[%s2542 + $0x30] sm:$0xf]
        %v2552 = vld [vmem:[%s2542 + $0x34] sm:$0xf]
        %v2553 = vld [vmem:[%s2542 + $0x3c] sm:$0xf]
        %v2554 = vld [vmem:[%s2542 + $0x40] sm:$0xf]
        %v2555 = vld [vmem:[%s2542 + $0x48] sm:$0xf]
        %v2556 = vld [vmem:[%s2542 + $0x4c] sm:$0xf]
        %v2557 = vld [vmem:[%s2542 + $0x54] sm:$0xf]
        %v2558 = vld [vmem:[%s2542 + $0x58] sm:$0xf]
        %s2559 = scalar_lea.vmem [#allocation9], 24
        %v2560 = vld [vmem:[%s2559] sm:$0xf]
        %v2577 = vunpack.c.l.b16 %v2543
        %v2578 = vunpack.c.l.b16 %v2544
        %v2579 = vunpack.c.l.b16 %v2545
        %v2580 = vunpack.c.l.b16 %v2546
        %v2581 = vunpack.c.l.b16 %v2547
        %v2582 = vunpack.c.l.b16 %v2548
        %v2583 = vunpack.c.l.b16 %v2549
        %v2584 = vunpack.c.l.b16 %v2550
        %v2585 = vunpack.c.l.b16 %v2551
        %v2586 = vunpack.c.l.b16 %v2552
        %v2587 = vunpack.c.l.b16 %v2553
        %v2588 = vunpack.c.l.b16 %v2554
        %v2589 = vunpack.c.l.b16 %v2555
        %v2590 = vunpack.c.l.b16 %v2556
        %v2591 = vunpack.c.l.b16 %v2557
        %v2592 = vunpack.c.l.b16 %v2558
        %v2593 = vpack.c.b16 %v2578, %v2577
        %v2594 = vpack.c.b16 %v2580, %v2579
        %v2595 = vpack.c.b16 %v2582, %v2581
        %v2596 = vpack.c.b16 %v2584, %v2583
        %v2597 = vpack.c.b16 %v2586, %v2585
        %v2598 = vpack.c.b16 %v2588, %v2587
        %v2599 = vpack.c.b16 %v2590, %v2589
        %v2600 = vpack.c.b16 %v2592, %v2591
        %v2602 = vsel %vm1169, %v2593, 0
        %v2605 = vsel %vm1169, %v2594, 0
        %v2608 = vsel %vm1169, %v2595, 0
        %v2611 = vsel %vm1169, %v2596, 0
        %v2614 = vsel %vm1169, %v2597, 0
        %v2617 = vsel %vm1169, %v2598, 0
        %v2620 = vsel %vm1169, %v2599, 0
        %v2623 = vsel %vm1169, %v2600, 0
        %v2626 = vsel %vm1194, %v2560, 0
        %2628 = vmatprep.subr.bf16.mxu0 0
        %2629 = vmatpush1.bf16.msra.mxu0 %v2626
        %2630 = vmatprep.subr.bf16.mxu0 0
        %2631 = vmatpush1.bf16.msra.mxu0 0
        %2632 = vmatprep.subr.bf16.mxu0 0
        %2633 = vmatpush1.bf16.msra.mxu0 0
        %2634 = vmatprep.subr.bf16.mxu0 0
        %2635 = vmatpush1.bf16.msra.mxu0 0
        %2636 = vmatprep.subr.bf16.mxu0 0
        %2637 = vmatpush1.bf16.msra.mxu0 0
        %2638 = vmatprep.subr.bf16.mxu0 0
        %2639 = vmatpush1.bf16.msra.mxu0 0
        %2640 = vmatprep.subr.bf16.mxu0 0
        %2641 = vmatpush1.bf16.msra.mxu0 0
        %2642 = vmatprep.subr.bf16.mxu0 0
        %2643 = vmatpush1.bf16.msra.mxu0 0
        %2644 = vmatprep.subr.bf16.mxu0 0
        %2645 = vmatpush1.bf16.msra.mxu0 0
        %2646 = vmatprep.subr.bf16.mxu0 0
        %2647 = vmatpush1.bf16.msra.mxu0 0
        %2648 = vmatprep.subr.bf16.mxu0 0
        %2649 = vmatpush1.bf16.msra.mxu0 0
        %2650 = vmatprep.subr.bf16.mxu0 0
        %2651 = vmatpush1.bf16.msra.mxu0 0
        %2652 = vmatprep.subr.bf16.mxu0 0
        %2653 = vmatpush1.bf16.msra.mxu0 0
        %2654 = vmatprep.subr.bf16.mxu0 0
        %2655 = vmatpush1.bf16.msra.mxu0 0
        %2656 = vmatprep.subr.bf16.mxu0 0
        %2657 = vmatpush1.bf16.msra.mxu0 0
        %2658 = vmatprep.subr.bf16.mxu0 0
        %2659 = vmatpush1.bf16.msra.mxu0 0
        %2660 = vmatprep.mubr.bf16.mxu0 0
        %2661 = vmatmul.mubr.bf16.gmra.mrb[0].mxu0 %v2602
        %v2662 = vpop.f32.mrb[0].mxu0
        %v2663 = vadd.f32 0.0, %v2662
        %v2664 = vpop.f32.mrb[0].mxu0
        %v2665 = vpop.f32.mrb[0].mxu0
        %v2666 = vadd.f32 0.0, %v2665
        %v2667 = vpop.f32.mrb[0].mxu0
        %2668 = vmatprep.mubr.bf16.mxu0 0
        %2669 = vmatmul.mubr.bf16.gmra.mrb[0].mxu0 %v2605
        %v2670 = vpop.f32.mrb[0].mxu0
        %v2671 = vadd.f32 0.0, %v2670
        %v2672 = vpop.f32.mrb[0].mxu0
        %v2673 = vpop.f32.mrb[0].mxu0
        %v2674 = vadd.f32 0.0, %v2673
        %v2675 = vpop.f32.mrb[0].mxu0
        %2676 = vmatprep.mubr.bf16.mxu0 0
        %2677 = vmatmul.mubr.bf16.gmra.mrb[0].mxu0 %v2608
        %v2678 = vpop.f32.mrb[0].mxu0
        %v2679 = vadd.f32 0.0, %v2678
        %v2680 = vpop.f32.mrb[0].mxu0
        %v2681 = vpop.f32.mrb[0].mxu0
        %v2682 = vadd.f32 0.0, %v2681
        %v2683 = vpop.f32.mrb[0].mxu0
        %2684 = vmatprep.mubr.bf16.mxu0 0
        %2685 = vmatmul.mubr.bf16.gmra.mrb[0].mxu0 %v2611
        %v2686 = vpop.f32.mrb[0].mxu0
        %v2687 = vadd.f32 0.0, %v2686
        %v2688 = vpop.f32.mrb[0].mxu0
        %v2689 = vpop.f32.mrb[0].mxu0
        %v2690 = vadd.f32 0.0, %v2689
        %v2691 = vpop.f32.mrb[0].mxu0
        %2692 = vmatprep.mubr.bf16.mxu0 0
        %2693 = vmatmul.mubr.bf16.gmra.mrb[0].mxu0 %v2614
        %v2694 = vpop.f32.mrb[0].mxu0
        %v2695 = vadd.f32 0.0, %v2694
        %v2696 = vpop.f32.mrb[0].mxu0
        %v2697 = vpop.f32.mrb[0].mxu0
        %v2698 = vadd.f32 0.0, %v2697
        %v2699 = vpop.f32.mrb[0].mxu0
        %2700 = vmatprep.mubr.bf16.mxu0 0
        %2701 = vmatmul.mubr.bf16.gmra.mrb[0].mxu0 %v2617
        %v2702 = vpop.f32.mrb[0].mxu0
        %v2703 = vadd.f32 0.0, %v2702
        %v2704 = vpop.f32.mrb[0].mxu0
        %v2705 = vpop.f32.mrb[0].mxu0
        %v2706 = vadd.f32 0.0, %v2705
        %v2707 = vpop.f32.mrb[0].mxu0
        %2708 = vmatprep.mubr.bf16.mxu0 0
        %2709 = vmatmul.mubr.bf16.gmra.mrb[0].mxu0 %v2620
        %v2710 = vpop.f32.mrb[0].mxu0
        %v2711 = vadd.f32 0.0, %v2710
        %v2712 = vpop.f32.mrb[0].mxu0
        %v2713 = vpop.f32.mrb[0].mxu0
        %v2714 = vadd.f32 0.0, %v2713
        %v2715 = vpop.f32.mrb[0].mxu0
        %2716 = vmatprep.mubr.bf16.mxu0 0
        %2717 = vmatmul.mubr.bf16.gmra.mrb[0].mxu0 %v2623
        %v2718 = vpop.f32.mrb[0].mxu0
        %v2719 = vadd.f32 0.0, %v2718
        %v2720 = vpop.f32.mrb[0].mxu0
        %v2721 = vpop.f32.mrb[0].mxu0
        %v2722 = vadd.f32 0.0, %v2721
        %v2723 = vpop.f32.mrb[0].mxu0
        %2724 = vdwg.mxu0
        %v2725 = vadd.f32 %v2526, %v2663
        %v2726 = vadd.f32 %v2527, %v2666
        %v2727 = vadd.f32 %v2528, %v2671
        %v2728 = vadd.f32 %v2529, %v2674
        %v2729 = vadd.f32 %v2530, %v2679
        %v2730 = vadd.f32 %v2531, %v2682
        %v2731 = vadd.f32 %v2532, %v2687
        %v2732 = vadd.f32 %v2533, %v2690
        %v2733 = vadd.f32 %v2534, %v2695
        %v2734 = vadd.f32 %v2535, %v2698
        %v2735 = vadd.f32 %v2536, %v2703
        %v2736 = vadd.f32 %v2537, %v2706
        %v2737 = vadd.f32 %v2538, %v2711
        %v2738 = vadd.f32 %v2539, %v2714
        %v2739 = vadd.f32 %v2540, %v2719
        %v2740 = vadd.f32 %v2541, %v2722
        %v2741 = vld [vmem:[%s2542] sm:$0xf]
        %v2742 = vld [vmem:[%s2542 + $0x4] sm:$0xf]
        %v2743 = vld [vmem:[%s2542 + $0x8] sm:$0x1]
        %v2744 = vld [vmem:[%s2542 + $0xc] sm:$0xf]
        %v2745 = vld [vmem:[%s2542 + $0x10] sm:$0xf]
        %v2746 = vld [vmem:[%s2542 + $0x14] sm:$0x1]
        %v2747 = vld [vmem:[%s2542 + $0x18] sm:$0xf]
        %v2748 = vld [vmem:[%s2542 + $0x1c] sm:$0xf]
        %v2749 = vld [vmem:[%s2542 + $0x20] sm:$0x1]
        %v2750 = vld [vmem:[%s2542 + $0x24] sm:$0xf]
        %v2751 = vld [vmem:[%s2542 + $0x28] sm:$0xf]
        %v2752 = vld [vmem:[%s2542 + $0x2c] sm:$0x1]
        %v2753 = vld [vmem:[%s2542 + $0x30] sm:$0xf]
        %v2754 = vld [vmem:[%s2542 + $0x34] sm:$0xf]
        %v2755 = vld [vmem:[%s2542 + $0x38] sm:$0x1]
        %v2756 = vld [vmem:[%s2542 + $0x3c] sm:$0xf]
        %v2757 = vld [vmem:[%s2542 + $0x40] sm:$0xf]
        %v2758 = vld [vmem:[%s2542 + $0x44] sm:$0x1]
        %v2759 = vld [vmem:[%s2542 + $0x48] sm:$0xf]
        %v2760 = vld [vmem:[%s2542 + $0x4c] sm:$0xf]
        %v2761 = vld [vmem:[%s2542 + $0x50] sm:$0x1]
        %v2762 = vld [vmem:[%s2542 + $0x54] sm:$0xf]
        %v2763 = vld [vmem:[%s2542 + $0x58] sm:$0xf]
        %v2764 = vld [vmem:[%s2542 + $0x5c] sm:$0x1]
        %v2766 = vshrl.u32 %v2741, 16
        %v2768 = vrot.slane %v2766, 4
        %v2769 = vshll.u32 %v2741, 16
        %v2771 = vrot.slane %v2769, 5
        %v2772 = vor.u32 %v2768, %v2771
        %v2773 = vrot.slane %v2772, 4
        %v2775 = vshll.u32 %v2742, 16
        %v2777 = vrot.slane %v2775, 5
        %v2778 = vsel %vm950, %v2773, %v2777
        %v2779 = vshrl.u32 %v2742, 16
        %v2781 = vrot.slane %v2779, 4
        %v2782 = vor.u32 %v2781, %v2777
        %v2783 = vrot.slane %v2782, 4
        %v2785 = vshll.u32 %v2743, 16
        %v2787 = vrot.slane %v2785, 5
        %v2788 = vsel %vm950, %v2783, %v2787
        %v2790 = vshrl.u32 %v2744, 16
        %v2792 = vrot.slane %v2790, 4
        %v2793 = vshll.u32 %v2744, 16
        %v2795 = vrot.slane %v2793, 5
        %v2796 = vor.u32 %v2792, %v2795
        %v2797 = vrot.slane %v2796, 4
        %v2799 = vshll.u32 %v2745, 16
        %v2801 = vrot.slane %v2799, 5
        %v2802 = vsel %vm950, %v2797, %v2801
        %v2803 = vshrl.u32 %v2745, 16
        %v2805 = vrot.slane %v2803, 4
        %v2806 = vor.u32 %v2805, %v2801
        %v2807 = vrot.slane %v2806, 4
        %v2809 = vshll.u32 %v2746, 16
        %v2811 = vrot.slane %v2809, 5
        %v2812 = vsel %vm950, %v2807, %v2811
        %v2814 = vshrl.u32 %v2747, 16
        %v2816 = vrot.slane %v2814, 4
        %v2817 = vshll.u32 %v2747, 16
        %v2819 = vrot.slane %v2817, 5
        %v2820 = vor.u32 %v2816, %v2819
        %v2821 = vrot.slane %v2820, 4
        %v2823 = vshll.u32 %v2748, 16
        %v2825 = vrot.slane %v2823, 5
        %v2826 = vsel %vm950, %v2821, %v2825
        %v2827 = vshrl.u32 %v2748, 16
        %v2829 = vrot.slane %v2827, 4
        %v2830 = vor.u32 %v2829, %v2825
        %v2831 = vrot.slane %v2830, 4
        %v2833 = vshll.u32 %v2749, 16
        %v2835 = vrot.slane %v2833, 5
        %v2836 = vsel %vm950, %v2831, %v2835
        %v2838 = vshrl.u32 %v2750, 16
        %v2840 = vrot.slane %v2838, 4
        %v2841 = vshll.u32 %v2750, 16
        %v2843 = vrot.slane %v2841, 5
        %v2844 = vor.u32 %v2840, %v2843
        %v2845 = vrot.slane %v2844, 4
        %v2847 = vshll.u32 %v2751, 16
        %v2849 = vrot.slane %v2847, 5
        %v2850 = vsel %vm950, %v2845, %v2849
        %v2851 = vshrl.u32 %v2751, 16
        %v2853 = vrot.slane %v2851, 4
        %v2854 = vor.u32 %v2853, %v2849
        %v2855 = vrot.slane %v2854, 4
        %v2857 = vshll.u32 %v2752, 16
        %v2859 = vrot.slane %v2857, 5
        %v2860 = vsel %vm950, %v2855, %v2859
        %v2862 = vshrl.u32 %v2753, 16
        %v2864 = vrot.slane %v2862, 4
        %v2865 = vshll.u32 %v2753, 16
        %v2867 = vrot.slane %v2865, 5
        %v2868 = vor.u32 %v2864, %v2867
        %v2869 = vrot.slane %v2868, 4
        %v2871 = vshll.u32 %v2754, 16
        %v2873 = vrot.slane %v2871, 5
        %v2874 = vsel %vm950, %v2869, %v2873
        %v2875 = vshrl.u32 %v2754, 16
        %v2877 = vrot.slane %v2875, 4
        %v2878 = vor.u32 %v2877, %v2873
        %v2879 = vrot.slane %v2878, 4
        %v2881 = vshll.u32 %v2755, 16
        %v2883 = vrot.slane %v2881, 5
        %v2884 = vsel %vm950, %v2879, %v2883
        %v2886 = vshrl.u32 %v2756, 16
        %v2888 = vrot.slane %v2886, 4
        %v2889 = vshll.u32 %v2756, 16
        %v2891 = vrot.slane %v2889, 5
        %v2892 = vor.u32 %v2888, %v2891
        %v2893 = vrot.slane %v2892, 4
        %v2895 = vshll.u32 %v2757, 16
        %v2897 = vrot.slane %v2895, 5
        %v2898 = vsel %vm950, %v2893, %v2897
        %v2899 = vshrl.u32 %v2757, 16
        %v2901 = vrot.slane %v2899, 4
        %v2902 = vor.u32 %v2901, %v2897
        %v2903 = vrot.slane %v2902, 4
        %v2905 = vshll.u32 %v2758, 16
        %v2907 = vrot.slane %v2905, 5
        %v2908 = vsel %vm950, %v2903, %v2907
        %v2910 = vshrl.u32 %v2759, 16
        %v2912 = vrot.slane %v2910, 4
        %v2913 = vshll.u32 %v2759, 16
        %v2915 = vrot.slane %v2913, 5
        %v2916 = vor.u32 %v2912, %v2915
        %v2917 = vrot.slane %v2916, 4
        %v2919 = vshll.u32 %v2760, 16
        %v2921 = vrot.slane %v2919, 5
        %v2922 = vsel %vm950, %v2917, %v2921
        %v2923 = vshrl.u32 %v2760, 16
        %v2925 = vrot.slane %v2923, 4
        %v2926 = vor.u32 %v2925, %v2921
        %v2927 = vrot.slane %v2926, 4
        %v2929 = vshll.u32 %v2761, 16
        %v2931 = vrot.slane %v2929, 5
        %v2932 = vsel %vm950, %v2927, %v2931
        %v2934 = vshrl.u32 %v2762, 16
        %v2936 = vrot.slane %v2934, 4
        %v2937 = vshll.u32 %v2762, 16
        %v2939 = vrot.slane %v2937, 5
        %v2940 = vor.u32 %v2936, %v2939
        %v2941 = vrot.slane %v2940, 4
        %v2943 = vshll.u32 %v2763, 16
        %v2945 = vrot.slane %v2943, 5
        %v2946 = vsel %vm950, %v2941, %v2945
        %v2947 = vshrl.u32 %v2763, 16
        %v2949 = vrot.slane %v2947, 4
        %v2950 = vor.u32 %v2949, %v2945
        %v2951 = vrot.slane %v2950, 4
        %v2953 = vshll.u32 %v2764, 16
        %v2955 = vrot.slane %v2953, 5
        %v2956 = vsel %vm950, %v2951, %v2955
        %s2957 = scalar_lea.vmem [#allocation9], 28
        %v2958 = vld [vmem:[%s2957] sm:$0xf]
        %v2959 = vunpack.c.l.b16 %v2778
        %v2960 = vunpack.c.l.b16 %v2788
        %v2961 = vunpack.c.l.b16 %v2802
        %v2962 = vunpack.c.l.b16 %v2812
        %v2963 = vunpack.c.l.b16 %v2826
        %v2964 = vunpack.c.l.b16 %v2836
        %v2965 = vunpack.c.l.b16 %v2850
        %v2966 = vunpack.c.l.b16 %v2860
        %v2967 = vunpack.c.l.b16 %v2874
        %v2968 = vunpack.c.l.b16 %v2884
        %v2969 = vunpack.c.l.b16 %v2898
        %v2970 = vunpack.c.l.b16 %v2908
        %v2971 = vunpack.c.l.b16 %v2922
        %v2972 = vunpack.c.l.b16 %v2932
        %v2973 = vunpack.c.l.b16 %v2946
        %v2974 = vunpack.c.l.b16 %v2956
        %v2975 = vpack.c.b16 %v2960, %v2959
        %v2976 = vpack.c.b16 %v2962, %v2961
        %v2977 = vpack.c.b16 %v2964, %v2963
        %v2978 = vpack.c.b16 %v2966, %v2965
        %v2979 = vpack.c.b16 %v2968, %v2967
        %v2980 = vpack.c.b16 %v2970, %v2969
        %v2981 = vpack.c.b16 %v2972, %v2971
        %v2982 = vpack.c.b16 %v2974, %v2973
        %v2984 = vsel %vm1169, %v2975, 0
        %v2987 = vsel %vm1169, %v2976, 0
        %v2990 = vsel %vm1169, %v2977, 0
        %v2993 = vsel %vm1169, %v2978, 0
        %v2996 = vsel %vm1169, %v2979, 0
        %v2999 = vsel %vm1169, %v2980, 0
        %v3002 = vsel %vm1169, %v2981, 0
        %v3005 = vsel %vm1169, %v2982, 0
        %v3008 = vsel %vm1194, %v2958, 0
        %3010 = vmatprep.subr.bf16.mxu0 0
        %3011 = vmatpush1.bf16.msra.mxu0 %v3008
        %3012 = vmatprep.subr.bf16.mxu0 0
        %3013 = vmatpush1.bf16.msra.mxu0 0
        %3014 = vmatprep.subr.bf16.mxu0 0
        %3015 = vmatpush1.bf16.msra.mxu0 0
        %3016 = vmatprep.subr.bf16.mxu0 0
        %3017 = vmatpush1.bf16.msra.mxu0 0
        %3018 = vmatprep.subr.bf16.mxu0 0
        %3019 = vmatpush1.bf16.msra.mxu0 0
        %3020 = vmatprep.subr.bf16.mxu0 0
        %3021 = vmatpush1.bf16.msra.mxu0 0
        %3022 = vmatprep.subr.bf16.mxu0 0
        %3023 = vmatpush1.bf16.msra.mxu0 0
        %3024 = vmatprep.subr.bf16.mxu0 0
        %3025 = vmatpush1.bf16.msra.mxu0 0
        %3026 = vmatprep.subr.bf16.mxu0 0
        %3027 = vmatpush1.bf16.msra.mxu0 0
        %3028 = vmatprep.subr.bf16.mxu0 0
        %3029 = vmatpush1.bf16.msra.mxu0 0
        %3030 = vmatprep.subr.bf16.mxu0 0
        %3031 = vmatpush1.bf16.msra.mxu0 0
        %3032 = vmatprep.subr.bf16.mxu0 0
        %3033 = vmatpush1.bf16.msra.mxu0 0
        %3034 = vmatprep.subr.bf16.mxu0 0
        %3035 = vmatpush1.bf16.msra.mxu0 0
        %3036 = vmatprep.subr.bf16.mxu0 0
        %3037 = vmatpush1.bf16.msra.mxu0 0
        %3038 = vmatprep.subr.bf16.mxu0 0
        %3039 = vmatpush1.bf16.msra.mxu0 0
        %3040 = vmatprep.subr.bf16.mxu0 0
        %3041 = vmatpush1.bf16.msra.mxu0 0
        %3042 = vmatprep.mubr.bf16.mxu0 0
        %3043 = vmatmul.mubr.bf16.gmra.mrb[0].mxu0 %v2984
        %v3044 = vpop.f32.mrb[0].mxu0
        %v3045 = vadd.f32 0.0, %v3044
        %v3046 = vpop.f32.mrb[0].mxu0
        %v3047 = vpop.f32.mrb[0].mxu0
        %v3048 = vadd.f32 0.0, %v3047
        %v3049 = vpop.f32.mrb[0].mxu0
        %3050 = vmatprep.mubr.bf16.mxu0 0
        %3051 = vmatmul.mubr.bf16.gmra.mrb[0].mxu0 %v2987
        %v3052 = vpop.f32.mrb[0].mxu0
        %v3053 = vadd.f32 0.0, %v3052
        %v3054 = vpop.f32.mrb[0].mxu0
        %v3055 = vpop.f32.mrb[0].mxu0
        %v3056 = vadd.f32 0.0, %v3055
        %v3057 = vpop.f32.mrb[0].mxu0
        %3058 = vmatprep.mubr.bf16.mxu0 0
        %3059 = vmatmul.mubr.bf16.gmra.mrb[0].mxu0 %v2990
        %v3060 = vpop.f32.mrb[0].mxu0
        %v3061 = vadd.f32 0.0, %v3060
        %v3062 = vpop.f32.mrb[0].mxu0
        %v3063 = vpop.f32.mrb[0].mxu0
        %v3064 = vadd.f32 0.0, %v3063
        %v3065 = vpop.f32.mrb[0].mxu0
        %3066 = vmatprep.mubr.bf16.mxu0 0
        %3067 = vmatmul.mubr.bf16.gmra.mrb[0].mxu0 %v2993
        %v3068 = vpop.f32.mrb[0].mxu0
        %v3069 = vadd.f32 0.0, %v3068
        %v3070 = vpop.f32.mrb[0].mxu0
        %v3071 = vpop.f32.mrb[0].mxu0
        %v3072 = vadd.f32 0.0, %v3071
        %v3073 = vpop.f32.mrb[0].mxu0
        %3074 = vmatprep.mubr.bf16.mxu0 0
        %3075 = vmatmul.mubr.bf16.gmra.mrb[0].mxu0 %v2996
        %v3076 = vpop.f32.mrb[0].mxu0
        %v3077 = vadd.f32 0.0, %v3076
        %v3078 = vpop.f32.mrb[0].mxu0
        %v3079 = vpop.f32.mrb[0].mxu0
        %v3080 = vadd.f32 0.0, %v3079
        %v3081 = vpop.f32.mrb[0].mxu0
        %3082 = vmatprep.mubr.bf16.mxu0 0
        %3083 = vmatmul.mubr.bf16.gmra.mrb[0].mxu0 %v2999
        %v3084 = vpop.f32.mrb[0].mxu0
        %v3085 = vadd.f32 0.0, %v3084
        %v3086 = vpop.f32.mrb[0].mxu0
        %v3087 = vpop.f32.mrb[0].mxu0
        %v3088 = vadd.f32 0.0, %v3087
        %v3089 = vpop.f32.mrb[0].mxu0
        %3090 = vmatprep.mubr.bf16.mxu0 0
        %3091 = vmatmul.mubr.bf16.gmra.mrb[0].mxu0 %v3002
        %v3092 = vpop.f32.mrb[0].mxu0
        %v3093 = vadd.f32 0.0, %v3092
        %v3094 = vpop.f32.mrb[0].mxu0
        %v3095 = vpop.f32.mrb[0].mxu0
        %v3096 = vadd.f32 0.0, %v3095
        %v3097 = vpop.f32.mrb[0].mxu0
        %3098 = vmatprep.mubr.bf16.mxu0 0
        %3099 = vmatmul.mubr.bf16.gmra.mrb[0].mxu0 %v3005
        %v3100 = vpop.f32.mrb[0].mxu0
        %v3101 = vadd.f32 0.0, %v3100
        %v3102 = vpop.f32.mrb[0].mxu0
        %v3103 = vpop.f32.mrb[0].mxu0
        %v3104 = vadd.f32 0.0, %v3103
        %v3105 = vpop.f32.mrb[0].mxu0
        %3106 = vdwg.mxu0
        %v3107 = vadd.f32 %v2725, %v3045
        %v3108 = vadd.f32 %v2726, %v3048
        %v3109 = vadd.f32 %v2727, %v3053
        %v3110 = vadd.f32 %v2728, %v3056
        %v3111 = vadd.f32 %v2729, %v3061
        %v3112 = vadd.f32 %v2730, %v3064
        %v3113 = vadd.f32 %v2731, %v3069
        %v3114 = vadd.f32 %v2732, %v3072
        %v3115 = vadd.f32 %v2733, %v3077
        %v3116 = vadd.f32 %v2734, %v3080
        %v3117 = vadd.f32 %v2735, %v3085
        %v3118 = vadd.f32 %v2736, %v3088
        %v3119 = vadd.f32 %v2737, %v3093
        %v3120 = vadd.f32 %v2738, %v3096
        %v3121 = vadd.f32 %v2739, %v3101
        %v3122 = vadd.f32 %v2740, %v3104
        %v3123 = vld [vmem:[%s2542] sm:$0xe]
        %v3124 = vld [vmem:[%s2542 + $0xc] sm:$0xe]
        %v3125 = vld [vmem:[%s2542 + $0x18] sm:$0xe]
        %v3126 = vld [vmem:[%s2542 + $0x24] sm:$0xe]
        %v3127 = vld [vmem:[%s2542 + $0x30] sm:$0xe]
        %v3128 = vld [vmem:[%s2542 + $0x3c] sm:$0xe]
        %v3129 = vld [vmem:[%s2542 + $0x48] sm:$0xe]
        %v3130 = vld [vmem:[%s2542 + $0x54] sm:$0xe]
        %v3155 = vrot.slane %v3123, 5
        %v3156 = vrot.slane %v3155, 4
        %v3157 = vrot.slane %v2742, 5
        %v3158 = vsel %vm1485, %v3156, %v3157
        %v3159 = vrot.slane %v3157, 4
        %v3160 = vrot.slane %v2743, 5
        %v3161 = vsel %vm1485, %v3159, %v3160
        %v3162 = vrot.slane %v3124, 5
        %v3163 = vrot.slane %v3162, 4
        %v3164 = vrot.slane %v2745, 5
        %v3165 = vsel %vm1485, %v3163, %v3164
        %v3166 = vrot.slane %v3164, 4
        %v3167 = vrot.slane %v2746, 5
        %v3168 = vsel %vm1485, %v3166, %v3167
        %v3169 = vrot.slane %v3125, 5
        %v3170 = vrot.slane %v3169, 4
        %v3171 = vrot.slane %v2748, 5
        %v3172 = vsel %vm1485, %v3170, %v3171
        %v3173 = vrot.slane %v3171, 4
        %v3174 = vrot.slane %v2749, 5
        %v3175 = vsel %vm1485, %v3173, %v3174
        %v3176 = vrot.slane %v3126, 5
        %v3177 = vrot.slane %v3176, 4
        %v3178 = vrot.slane %v2751, 5
        %v3179 = vsel %vm1485, %v3177, %v3178
        %v3180 = vrot.slane %v3178, 4
        %v3181 = vrot.slane %v2752, 5
        %v3182 = vsel %vm1485, %v3180, %v3181
        %v3183 = vrot.slane %v3127, 5
        %v3184 = vrot.slane %v3183, 4
        %v3185 = vrot.slane %v2754, 5
        %v3186 = vsel %vm1485, %v3184, %v3185
        %v3187 = vrot.slane %v3185, 4
        %v3188 = vrot.slane %v2755, 5
        %v3189 = vsel %vm1485, %v3187, %v3188
        %v3190 = vrot.slane %v3128, 5
        %v3191 = vrot.slane %v3190, 4
        %v3192 = vrot.slane %v2757, 5
        %v3193 = vsel %vm1485, %v3191, %v3192
        %v3194 = vrot.slane %v3192, 4
        %v3195 = vrot.slane %v2758, 5
        %v3196 = vsel %vm1485, %v3194, %v3195
        %v3197 = vrot.slane %v3129, 5
        %v3198 = vrot.slane %v3197, 4
        %v3199 = vrot.slane %v2760, 5
        %v3200 = vsel %vm1485, %v3198, %v3199
        %v3201 = vrot.slane %v3199, 4
        %v3202 = vrot.slane %v2761, 5
        %v3203 = vsel %vm1485, %v3201, %v3202
        %v3204 = vrot.slane %v3130, 5
        %v3205 = vrot.slane %v3204, 4
        %v3206 = vrot.slane %v2763, 5
        %v3207 = vsel %vm1485, %v3205, %v3206
        %v3208 = vrot.slane %v3206, 4
        %v3209 = vrot.slane %v2764, 5
        %v3210 = vsel %vm1485, %v3208, %v3209
        %s3211 = scalar_lea.vmem [#allocation9], 32
        %v3212 = vld [vmem:[%s3211] sm:$0xf]
        %v3213 = vunpack.c.l.b16 %v3158
        %v3214 = vunpack.c.l.b16 %v3161
        %v3215 = vunpack.c.l.b16 %v3165
        %v3216 = vunpack.c.l.b16 %v3168
        %v3217 = vunpack.c.l.b16 %v3172
        %v3218 = vunpack.c.l.b16 %v3175
        %v3219 = vunpack.c.l.b16 %v3179
        %v3220 = vunpack.c.l.b16 %v3182
        %v3221 = vunpack.c.l.b16 %v3186
        %v3222 = vunpack.c.l.b16 %v3189
        %v3223 = vunpack.c.l.b16 %v3193
        %v3224 = vunpack.c.l.b16 %v3196
        %v3225 = vunpack.c.l.b16 %v3200
        %v3226 = vunpack.c.l.b16 %v3203
        %v3227 = vunpack.c.l.b16 %v3207
        %v3228 = vunpack.c.l.b16 %v3210
        %v3229 = vpack.c.b16 %v3214, %v3213
        %v3230 = vpack.c.b16 %v3216, %v3215
        %v3231 = vpack.c.b16 %v3218, %v3217
        %v3232 = vpack.c.b16 %v3220, %v3219
        %v3233 = vpack.c.b16 %v3222, %v3221
        %v3234 = vpack.c.b16 %v3224, %v3223
        %v3235 = vpack.c.b16 %v3226, %v3225
        %v3236 = vpack.c.b16 %v3228, %v3227
        %v3238 = vsel %vm1169, %v3229, 0
        %v3241 = vsel %vm1169, %v3230, 0
        %v3244 = vsel %vm1169, %v3231, 0
        %v3247 = vsel %vm1169, %v3232, 0
        %v3250 = vsel %vm1169, %v3233, 0
        %v3253 = vsel %vm1169, %v3234, 0
        %v3256 = vsel %vm1169, %v3235, 0
        %v3259 = vsel %vm1169, %v3236, 0
        %v3262 = vsel %vm1194, %v3212, 0
        %3264 = vmatprep.subr.bf16.mxu0 0
        %3265 = vmatpush1.bf16.msra.mxu0 %v3262
        %3266 = vmatprep.subr.bf16.mxu0 0
        %3267 = vmatpush1.bf16.msra.mxu0 0
        %3268 = vmatprep.subr.bf16.mxu0 0
        %3269 = vmatpush1.bf16.msra.mxu0 0
        %3270 = vmatprep.subr.bf16.mxu0 0
        %3271 = vmatpush1.bf16.msra.mxu0 0
        %3272 = vmatprep.subr.bf16.mxu0 0
        %3273 = vmatpush1.bf16.msra.mxu0 0
        %3274 = vmatprep.subr.bf16.mxu0 0
        %3275 = vmatpush1.bf16.msra.mxu0 0
        %3276 = vmatprep.subr.bf16.mxu0 0
        %3277 = vmatpush1.bf16.msra.mxu0 0
        %3278 = vmatprep.subr.bf16.mxu0 0
        %3279 = vmatpush1.bf16.msra.mxu0 0
        %3280 = vmatprep.subr.bf16.mxu0 0
        %3281 = vmatpush1.bf16.msra.mxu0 0
        %3282 = vmatprep.subr.bf16.mxu0 0
        %3283 = vmatpush1.bf16.msra.mxu0 0
        %3284 = vmatprep.subr.bf16.mxu0 0
        %3285 = vmatpush1.bf16.msra.mxu0 0
        %3286 = vmatprep.subr.bf16.mxu0 0
        %3287 = vmatpush1.bf16.msra.mxu0 0
        %3288 = vmatprep.subr.bf16.mxu0 0
        %3289 = vmatpush1.bf16.msra.mxu0 0
        %3290 = vmatprep.subr.bf16.mxu0 0
        %3291 = vmatpush1.bf16.msra.mxu0 0
        %3292 = vmatprep.subr.bf16.mxu0 0
        %3293 = vmatpush1.bf16.msra.mxu0 0
        %3294 = vmatprep.subr.bf16.mxu0 0
        %3295 = vmatpush1.bf16.msra.mxu0 0
        %3296 = vmatprep.mubr.bf16.mxu0 0
        %3297 = vmatmul.mubr.bf16.gmra.mrb[0].mxu0 %v3238
        %v3298 = vpop.f32.mrb[0].mxu0
        %v3299 = vadd.f32 0.0, %v3298
        %v3300 = vpop.f32.mrb[0].mxu0
        %v3301 = vpop.f32.mrb[0].mxu0
        %v3302 = vadd.f32 0.0, %v3301
        %v3303 = vpop.f32.mrb[0].mxu0
        %3304 = vmatprep.mubr.bf16.mxu0 0
        %3305 = vmatmul.mubr.bf16.gmra.mrb[0].mxu0 %v3241
        %v3306 = vpop.f32.mrb[0].mxu0
        %v3307 = vadd.f32 0.0, %v3306
        %v3308 = vpop.f32.mrb[0].mxu0
        %v3309 = vpop.f32.mrb[0].mxu0
        %v3310 = vadd.f32 0.0, %v3309
        %v3311 = vpop.f32.mrb[0].mxu0
        %3312 = vmatprep.mubr.bf16.mxu0 0
        %3313 = vmatmul.mubr.bf16.gmra.mrb[0].mxu0 %v3244
        %v3314 = vpop.f32.mrb[0].mxu0
        %v3315 = vadd.f32 0.0, %v3314
        %v3316 = vpop.f32.mrb[0].mxu0
        %v3317 = vpop.f32.mrb[0].mxu0
        %v3318 = vadd.f32 0.0, %v3317
        %v3319 = vpop.f32.mrb[0].mxu0
        %3320 = vmatprep.mubr.bf16.mxu0 0
        %3321 = vmatmul.mubr.bf16.gmra.mrb[0].mxu0 %v3247
        %v3322 = vpop.f32.mrb[0].mxu0
        %v3323 = vadd.f32 0.0, %v3322
        %v3324 = vpop.f32.mrb[0].mxu0
        %v3325 = vpop.f32.mrb[0].mxu0
        %v3326 = vadd.f32 0.0, %v3325
        %v3327 = vpop.f32.mrb[0].mxu0
        %3328 = vmatprep.mubr.bf16.mxu0 0
        %3329 = vmatmul.mubr.bf16.gmra.mrb[0].mxu0 %v3250
        %v3330 = vpop.f32.mrb[0].mxu0
        %v3331 = vadd.f32 0.0, %v3330
        %v3332 = vpop.f32.mrb[0].mxu0
        %v3333 = vpop.f32.mrb[0].mxu0
        %v3334 = vadd.f32 0.0, %v3333
        %v3335 = vpop.f32.mrb[0].mxu0
        %3336 = vmatprep.mubr.bf16.mxu0 0
        %3337 = vmatmul.mubr.bf16.gmra.mrb[0].mxu0 %v3253
        %v3338 = vpop.f32.mrb[0].mxu0
        %v3339 = vadd.f32 0.0, %v3338
        %v3340 = vpop.f32.mrb[0].mxu0
        %v3341 = vpop.f32.mrb[0].mxu0
        %v3342 = vadd.f32 0.0, %v3341
        %v3343 = vpop.f32.mrb[0].mxu0
        %3344 = vmatprep.mubr.bf16.mxu0 0
        %3345 = vmatmul.mubr.bf16.gmra.mrb[0].mxu0 %v3256
        %v3346 = vpop.f32.mrb[0].mxu0
        %v3347 = vadd.f32 0.0, %v3346
        %v3348 = vpop.f32.mrb[0].mxu0
        %v3349 = vpop.f32.mrb[0].mxu0
        %v3350 = vadd.f32 0.0, %v3349
        %v3351 = vpop.f32.mrb[0].mxu0
        %3352 = vmatprep.mubr.bf16.mxu0 0
        %3353 = vmatmul.mubr.bf16.gmra.mrb[0].mxu0 %v3259
        %v3354 = vpop.f32.mrb[0].mxu0
        %v3355 = vadd.f32 0.0, %v3354
        %v3356 = vpop.f32.mrb[0].mxu0
        %v3357 = vpop.f32.mrb[0].mxu0
        %v3358 = vadd.f32 0.0, %v3357
        %v3359 = vpop.f32.mrb[0].mxu0
        %3360 = vdwg.mxu0
        %v3361 = vadd.f32 %v3107, %v3299
        %v3362 = vadd.f32 %v3108, %v3302
        %v3363 = vadd.f32 %v3109, %v3307
        %v3364 = vadd.f32 %v3110, %v3310
        %v3365 = vadd.f32 %v3111, %v3315
        %v3366 = vadd.f32 %v3112, %v3318
        %v3367 = vadd.f32 %v3113, %v3323
        %v3368 = vadd.f32 %v3114, %v3326
        %v3369 = vadd.f32 %v3115, %v3331
        %v3370 = vadd.f32 %v3116, %v3334
        %v3371 = vadd.f32 %v3117, %v3339
        %v3372 = vadd.f32 %v3118, %v3342
        %v3373 = vadd.f32 %v3119, %v3347
        %v3374 = vadd.f32 %v3120, %v3350
        %v3375 = vadd.f32 %v3121, %v3355
        %v3376 = vadd.f32 %v3122, %v3358
        %v3377 = vpack.c.bf16 %v3362, %v3361
        %v3378 = vpack.c.bf16 %v3364, %v3363
        %v3379 = vpack.c.bf16 %v3366, %v3365
        %v3380 = vpack.c.bf16 %v3368, %v3367
        %v3381 = vpack.c.bf16 %v3370, %v3369
        %v3382 = vpack.c.bf16 %v3372, %v3371
        %v3383 = vpack.c.bf16 %v3374, %v3373
        %v3384 = vpack.c.bf16 %v3376, %v3375
        %v3393 = vunpack.c.l.b16 %v3377
        %v3394 = vunpack.c.h.b16 %v3377
        %v3395 = vunpack.c.l.b16 %v3378
        %v3396 = vunpack.c.h.b16 %v3378
        %v3397 = vunpack.c.l.b16 %v3379
        %v3398 = vunpack.c.h.b16 %v3379
        %v3399 = vunpack.c.l.b16 %v3380
        %v3400 = vunpack.c.h.b16 %v3380
        %v3401 = vunpack.c.l.b16 %v3381
        %v3402 = vunpack.c.h.b16 %v3381
        %v3403 = vunpack.c.l.b16 %v3382
        %v3404 = vunpack.c.h.b16 %v3382
        %v3405 = vunpack.c.l.b16 %v3383
        %v3406 = vunpack.c.h.b16 %v3383
        %v3407 = vunpack.c.l.b16 %v3384
        %v3408 = vunpack.c.h.b16 %v3384
        %v3409 = vpack.c.b16 %v3393, %v3393
        %v3410 = vpack.c.b16 %v3394, %v3394
        %v3411 = vpack.c.b16 %v3395, %v3395
        %v3412 = vpack.c.b16 %v3396, %v3396
        %v3413 = vpack.c.b16 %v3397, %v3397
        %v3414 = vpack.c.b16 %v3398, %v3398
        %v3415 = vpack.c.b16 %v3399, %v3399
        %v3416 = vpack.c.b16 %v3400, %v3400
        %v3417 = vpack.c.b16 %v3401, %v3401
        %v3418 = vpack.c.b16 %v3402, %v3402
        %v3419 = vpack.c.b16 %v3403, %v3403
        %v3420 = vpack.c.b16 %v3404, %v3404
        %v3421 = vpack.c.b16 %v3405, %v3405
        %v3422 = vpack.c.b16 %v3406, %v3406
        %v3423 = vpack.c.b16 %v3407, %v3407
        %v3424 = vpack.c.b16 %v3408, %v3408
        %3441 = vst.msk [vmem:[%s499] sm:$0xf] %vm673, %v3409
        %3442 = vst.msk [vmem:[%s499 + $0x4] sm:$0xf] %vm673, %v3410
        %3443 = vst.msk [vmem:[%s499 + $0x8] sm:$0xf] %vm673, %v3411
        %3444 = vst.msk [vmem:[%s499 + $0xc] sm:$0xf] %vm673, %v3412
        %3445 = vst.msk [vmem:[%s499 + $0x10] sm:$0xf] %vm673, %v3413
        %3446 = vst.msk [vmem:[%s499 + $0x14] sm:$0xf] %vm673, %v3414
        %3447 = vst.msk [vmem:[%s499 + $0x18] sm:$0xf] %vm673, %v3415
        %3448 = vst.msk [vmem:[%s499 + $0x1c] sm:$0xf] %vm673, %v3416
        %3449 = vst.msk [vmem:[%s499 + $0x20] sm:$0xf] %vm673, %v3417
        %3450 = vst.msk [vmem:[%s499 + $0x24] sm:$0xf] %vm673, %v3418
        %3451 = vst.msk [vmem:[%s499 + $0x28] sm:$0xf] %vm673, %v3419
        %3452 = vst.msk [vmem:[%s499 + $0x2c] sm:$0xf] %vm673, %v3420
        %3453 = vst.msk [vmem:[%s499 + $0x30] sm:$0xf] %vm673, %v3421
        %3454 = vst.msk [vmem:[%s499 + $0x34] sm:$0xf] %vm673, %v3422
        %3455 = vst.msk [vmem:[%s499 + $0x38] sm:$0xf] %vm673, %v3423
        %3456 = vst.msk [vmem:[%s499 + $0x3c] sm:$0xf] %vm673, %v3424
        %v3457 = vsel %vm1169, %v3361, 0.0
        %v3458 = vsel %vm1169, %v3362, 0.0
        %v3459 = vadd.f32 %v3457, %v3458
        %v3460 = vsel %vm1169, %v3363, 0.0
        %v3461 = vadd.f32 %v3459, %v3460
        %v3462 = vsel %vm1169, %v3364, 0.0
        %v3463 = vadd.f32 %v3461, %v3462
        %v3464 = vsel %vm1169, %v3365, 0.0
        %v3465 = vadd.f32 %v3463, %v3464
        %v3466 = vsel %vm1169, %v3366, 0.0
        %v3467 = vadd.f32 %v3465, %v3466
        %v3468 = vsel %vm1169, %v3367, 0.0
        %v3469 = vadd.f32 %v3467, %v3468
        %v3470 = vsel %vm1169, %v3368, 0.0
        %v3471 = vadd.f32 %v3469, %v3470
        %v3472 = vsel %vm1169, %v3369, 0.0
        %v3473 = vadd.f32 %v3471, %v3472
        %v3474 = vsel %vm1169, %v3370, 0.0
        %v3475 = vadd.f32 %v3473, %v3474
        %v3476 = vsel %vm1169, %v3371, 0.0
        %v3477 = vadd.f32 %v3475, %v3476
        %v3478 = vsel %vm1169, %v3372, 0.0
        %v3479 = vadd.f32 %v3477, %v3478
        %v3480 = vsel %vm1169, %v3373, 0.0
        %v3481 = vadd.f32 %v3479, %v3480
        %v3482 = vsel %vm1169, %v3374, 0.0
        %v3483 = vadd.f32 %v3481, %v3482
        %v3484 = vsel %vm1169, %v3375, 0.0
        %v3485 = vadd.f32 %v3483, %v3484
        %v3486 = vsel %vm1169, %v3376, 0.0
        %v3487 = vadd.f32 %v3485, %v3486
        %v3488 = vrot.slane %v3487, 4
        %v3489 = vadd.f32 %v3487, %v3488
        %v3490 = vrot.slane %v3489, 2
        %v3491 = vadd.f32 %v3489, %v3490
        %v3492 = vrot.slane %v3491, 1
        %v3493 = vadd.f32 %v3491, %v3492
        %vm3494 = vcmask 57344
        %3495 = vst.msk [vmem:[%s505] sm:$0x1] %vm3494, %v3493
        %v3496 = vmul.f32 %v3361, %v3361
        %v3497 = vmul.f32 %v3362, %v3362
        %v3498 = vmul.f32 %v3363, %v3363
        %v3499 = vmul.f32 %v3364, %v3364
        %v3500 = vmul.f32 %v3365, %v3365
        %v3501 = vmul.f32 %v3366, %v3366
        %v3502 = vmul.f32 %v3367, %v3367
        %v3503 = vmul.f32 %v3368, %v3368
        %v3504 = vmul.f32 %v3369, %v3369
        %v3505 = vmul.f32 %v3370, %v3370
        %v3506 = vmul.f32 %v3371, %v3371
        %v3507 = vmul.f32 %v3372, %v3372
        %v3508 = vmul.f32 %v3373, %v3373
        %v3509 = vmul.f32 %v3374, %v3374
        %v3510 = vmul.f32 %v3375, %v3375
        %v3511 = vmul.f32 %v3376, %v3376
        %v3512 = vsel %vm1169, %v3496, 0.0
        %v3513 = vsel %vm1169, %v3497, 0.0
        %v3514 = vadd.f32 %v3512, %v3513
        %v3515 = vsel %vm1169, %v3498, 0.0
        %v3516 = vadd.f32 %v3514, %v3515
        %v3517 = vsel %vm1169, %v3499, 0.0
        %v3518 = vadd.f32 %v3516, %v3517
        %v3519 = vsel %vm1169, %v3500, 0.0
        %v3520 = vadd.f32 %v3518, %v3519
        %v3521 = vsel %vm1169, %v3501, 0.0
        %v3522 = vadd.f32 %v3520, %v3521
        %v3523 = vsel %vm1169, %v3502, 0.0
        %v3524 = vadd.f32 %v3522, %v3523
        %v3525 = vsel %vm1169, %v3503, 0.0
        %v3526 = vadd.f32 %v3524, %v3525
        %v3527 = vsel %vm1169, %v3504, 0.0
        %v3528 = vadd.f32 %v3526, %v3527
        %v3529 = vsel %vm1169, %v3505, 0.0
        %v3530 = vadd.f32 %v3528, %v3529
        %v3531 = vsel %vm1169, %v3506, 0.0
        %v3532 = vadd.f32 %v3530, %v3531
        %v3533 = vsel %vm1169, %v3507, 0.0
        %v3534 = vadd.f32 %v3532, %v3533
        %v3535 = vsel %vm1169, %v3508, 0.0
        %v3536 = vadd.f32 %v3534, %v3535
        %v3537 = vsel %vm1169, %v3509, 0.0
        %v3538 = vadd.f32 %v3536, %v3537
        %v3539 = vsel %vm1169, %v3510, 0.0
        %v3540 = vadd.f32 %v3538, %v3539
        %v3541 = vsel %vm1169, %v3511, 0.0
        %v3542 = vadd.f32 %v3540, %v3541
        %v3543 = vrot.slane %v3542, 4
        %v3544 = vadd.f32 %v3542, %v3543
        %v3545 = vrot.slane %v3544, 2
        %v3546 = vadd.f32 %v3544, %v3545
        %v3547 = vrot.slane %v3546, 1
        %v3548 = vadd.f32 %v3546, %v3547
        %3549 = vst.msk [vmem:[%s511] sm:$0x1] %vm3494, %v3548
        %s3550 = sand.u32 %s219, 1
        %s3551 = scalar_lea.sflag [#allocation5], %s3550
        %s3552 = sand.u32 %s219, 1
        %s3553 = smul.addr %s3552, 64
        %s3554 = scalar_lea.vmem [#allocation14], %s3553
        %s3555 = sand.u32 %s34, 1
        %s3556 = scalar_lea.sflag [#allocation16], %s3555
        %s3557 = sand.u32 %s247, 1
        %s3558 = scalar_lea.vmem [#allocation15], %s3557
        %s3559 = sand.u32 %s34, 1
        %s3560 = scalar_lea.sflag [#allocation16], %s3559
        %s3561 = sand.u32 %s275, 1
        %s3562 = scalar_lea.vmem [#allocation17], %s3561
        // Predicated region
        $region69: #{a_call__.3} parent=43 // pred_check
          %p3563 = pneg %p229
        $region70: #{a_call__.3} parent=43 // pred_check_branch
          %3565 = sbr.rel (%p3563) target = $region72
        $region71: #{a_call__.3} parent=43 // pred_region
          %s3566 = smul.u32 8, %s39
          %s3568 = ssub.s32 1024, 1024
          %3569 = vsyncadd %s3551, %s3568
          %s3570 = smul.addr %s3566, 2
          %s3571 = smul.addr %s38, 32
          %s3572 = sadd.s32 %s3570, %s3571
          %s3573 = smul.addr %s3572, 64
          %s3574 = scalar_lea.hbm %s6, %s3573
          %s3575 = sshll.u32 %s3554, 4
          %s3576 = int_to_ptr.vmem [resolvable:$true] %s3575
          %3581 = dma.vmem_to_hbm [thread:$0]  %s3576, 1024, %s3574, %s3551, 64, 64, 4
        $region72: #{a_call__.3} parent=43 // pred_fallthru
          _
        // Predicated region
        $region73: #{a_call__.3} parent=43 // pred_check
          %p3582 = pneg %p257
        $region74: #{a_call__.3} parent=43 // pred_check_branch
          %3584 = sbr.rel (%p3582) target = $region76
        $region75: #{a_call__.3} parent=43 // pred_region
          %s3586 = ssub.s32 16, 16
          %3587 = vsyncadd %s3556, %s3586
          %s3588 = smul.addr %s38, 2
          %s3589 = sadd.s32 %s39, %s3588
          %s3590 = smul.addr %s3589, 16
          %s3591 = scalar_lea.hbm %s7, %s3590
          %s3593 = sshll.u32 %s3558, 4
          %s3594 = int_to_ptr.vmem [resolvable:$true] %s3593
          %3596 = dma.vmem_to_hbm [thread:$0]  %s3594, 16, %s3591, %s3556
        $region76: #{a_call__.3} parent=43 // pred_fallthru
          _
        // Predicated region
        $region77: #{a_call__.3} parent=43 // pred_check
          %p3597 = pneg %p285
        $region78: #{a_call__.3} parent=43 // pred_check_branch
          %3599 = sbr.rel (%p3597) target = $region80
        $region79: #{a_call__.3} parent=43 // pred_region
          %s3601 = ssub.s32 16, 16
          %3602 = vsyncadd %s3560, %s3601
          %s3603 = smul.addr %s38, 2
          %s3604 = sadd.s32 %s39, %s3603
          %s3605 = smul.addr %s3604, 16
          %s3606 = scalar_lea.hbm %s8, %s3605
          %s3608 = sshll.u32 %s3562, 4
          %s3609 = int_to_ptr.vmem [resolvable:$true] %s3608
          %3611 = dma.vmem_to_hbm [thread:$0]  %s3609, 16, %s3606, %s3560
        $region80: #{a_call__.3} parent=43 // pred_fallthru
          _
      $region44: #{a_call__.3} parent=5 // pred_fallthru
        _
      %p3612 = scmp.le.s32.totalorder 2, %s29
      // Predicated region
      $region81: #{a_call__.3} parent=5 // pred_check
        %p3613 = pneg %p3612
      $region82: #{a_call__.3} parent=5 // pred_check_branch
        %3615 = sbr.rel (%p3613) target = $region84
      $region83: #{a_call__.3} parent=5 // pred_region
        %s3616 = ssub.s32 %s29, 2
        // Predicated region
        $region85: #{a_call__.3} parent=83 // pred_check
          %p3617 = pneg %p235
        $region86: #{a_call__.3} parent=83 // pred_check_branch
          %3619 = sbr.rel (%p3617) target = $region88
        $region87: #{a_call__.3} parent=83 // pred_region
          %s3620 = sand.u32 %s220, 1
          %s3621 = scalar_lea.sflag [#allocation5], %s3620
          %s3622 = sand.u32 %s220, 1
          %s3623 = smul.addr %s3622, 64
          %s3624 = scalar_lea.vmem [#allocation14], %s3623
          %3625 = dma.done %s3621, 1024
        $region88: #{a_call__.3} parent=83 // pred_fallthru
          _
        // Predicated region
        $region89: #{a_call__.3} parent=83 // pred_check
          %p3626 = pneg %p263
        $region90: #{a_call__.3} parent=83 // pred_check_branch
          %3628 = sbr.rel (%p3626) target = $region92
        $region91: #{a_call__.3} parent=83 // pred_region
          %s3629 = sand.u32 %s35, 1
          %s3630 = scalar_lea.sflag [#allocation16], %s3629
          %s3631 = sand.u32 %s248, 1
          %s3632 = scalar_lea.vmem [#allocation15], %s3631
          %3633 = dma.done %s3630, 16
        $region92: #{a_call__.3} parent=83 // pred_fallthru
          _
        // Predicated region
        $region93: #{a_call__.3} parent=83 // pred_check
          %p3634 = pneg %p291
        $region94: #{a_call__.3} parent=83 // pred_check_branch
          %3636 = sbr.rel (%p3634) target = $region96
        $region95: #{a_call__.3} parent=83 // pred_region
          %s3637 = sand.u32 %s35, 1
          %s3638 = scalar_lea.sflag [#allocation16], %s3637
          %s3639 = sand.u32 %s276, 1
          %s3640 = scalar_lea.vmem [#allocation17], %s3639
          %3641 = dma.done %s3638, 16
        $region96: #{a_call__.3} parent=83 // pred_fallthru
          _
      $region84: #{a_call__.3} parent=5 // pred_fallthru
        _
    $region6: #{a_call__.3} parent=1 // loop_footer
      %s33 = sadd.s32 1, %s29
    $region7: #{a_call__.3} parent=1 // loop_footer_branch
      %28 = sbr.rel target = $region3
    $region8: #{a_call__.3} parent=1 // loop_exit
      _
    %3642 = vsyncpa [#allocation4], 1
    %s3643 = scalar_lea.sflag [#allocation4], 1
    %3644 = vsyncpa %s3643, 1
    %3645 = vsyncpa [#allocation7], 1
    %s3646 = scalar_lea.sflag [#allocation7], 1
    %3647 = vsyncpa %s3646, 1
    %3648 = vsyncpa [#allocation10], 1
    %3649 = vsyncpa [#allocation13], 1
    %3650 = vsyncpa [#allocation5], 1
    %s3651 = scalar_lea.sflag [#allocation5], 1
    %3652 = vsyncpa %s3651, 1
    %3653 = vsyncpa [#allocation16], 1
    %s3654 = scalar_lea.sflag [#allocation16], 1
    %3655 = vsyncpa %s3654, 1

// kernel: a_call__.4
$region0: #{a_call__.4}
  #allocation0 [shape = 'u32[]', space=smem, size = 0x4, offset = 0x4, fixed_abs, tag = 'smem constant byte address 0x4 - core index']
  #allocation1 [shape = 'u32[144,128]{1,0:T(1,128)}', space=vmem, size = 0x12000, scoped, tag = 'internal scratch']
  #allocation2 [shape = 'bf16[10,18,8]{2,1,0:T(8,128)(2,1)}', space=vmem, size = 0xf000, scoped, tag = 'scratch operand']
  %s0 = inlined_call_operand.hbm [shape: bf16[2,16,16,8], index: 0, kind: input, shape index: {}, may-alias: {0,1,2}]
  %s1 = inlined_call_operand.hbm [shape: bf16[2,16,16,8], index: 1, kind: input, shape index: {}, may-alias: {0,1,2}]
  %s2 = inlined_call_operand.hbm [shape: bf16[2,16,16,8], index: 2, kind: input, shape index: {}, may-alias: {0,1,2}]
  %s3 = inlined_call_operand.hbm [shape: bf16[9,8,8], index: 3, kind: input, shape index: {}]
  %s4 = inlined_call_operand.hbm [shape: f32[1,8], index: 4, kind: input, shape index: {}]
  %s5 = inlined_call_operand.hbm [shape: f32[1,8], index: 5, kind: input, shape index: {}]
  %s6 = inlined_call_operand.hbm [shape: bf16[2,16,16,8], index: 6, kind: output, shape index: {0}]
  %s7 = inlined_call_operand.hbm [shape: f32[2,2,1,8], index: 7, kind: output, shape index: {1}]
  %s8 = inlined_call_operand.hbm [shape: f32[2,2,1,8], index: 8, kind: output, shape index: {2}]
  %9 = xla_tuple %s6, %s7, %s8
  %s10 = sld [smem:[#allocation0]]
  $region97: #{a_call__.4} parent=0
    _
  %s12 = ssub.s32 1, %s10
  %s13 = scalar_select 0, %s12, %s10
  $region1: #{a_call__.4} parent=0
    #allocation3 [shape = 'u8[65536]{0}', space=vmem, size = 0x10000, scoped, tag = 'input window, operand 0']
    #allocation4 [shape = 's32[2]{0}', space=sflag, size = 0x8, scoped, tag = 'scoped memory for a_call__.4']
    #allocation5 [shape = 's32[2]{0}', space=sflag, size = 0x8, scoped, tag = 'scoped memory for a_call__.4']
    #allocation6 [shape = 'u8[8192]{0}', space=vmem, size = 0x2000, scoped, tag = 'input window, operand 1']
    #allocation7 [shape = 's32[2]{0}', space=sflag, size = 0x8, scoped, tag = 'scoped memory for a_call__.4']
    #allocation8 [shape = 'u8[8192]{0}', space=vmem, size = 0x2000, scoped, tag = 'input window, operand 2']
    #allocation9 [shape = 'u8[18432]{0}', space=vmem, size = 0x4800, scoped, tag = 'input window, operand 3, single buffered']
    #allocation10 [shape = 's32[1]{0}', space=sflag, size = 0x4, scoped, tag = 'scoped memory for a_call__.4']
    #allocation11 [shape = 'u8[512]{0}', space=vmem, size = 0x400, scoped, tag = 'input window, operand 4, single buffered']
    #allocation12 [shape = 'u8[512]{0}', space=vmem, size = 0x400, scoped, tag = 'input window, operand 5, single buffered']
    #allocation13 [shape = 's32[1]{0}', space=sflag, size = 0x4, scoped, tag = 'scoped memory for a_call__.4']
    #allocation14 [shape = 'u8[65536]{0}', space=vmem, size = 0x10000, scoped, tag = 'output window, operand 0']
    #allocation15 [shape = 'u8[1024]{0}', space=vmem, size = 0x400, scoped, tag = 'output window, operand 1']
    #allocation16 [shape = 's32[2]{0}', space=sflag, size = 0x8, scoped, tag = 'scoped memory for a_call__.4']
    #allocation17 [shape = 'u8[1024]{0}', space=vmem, size = 0x400, scoped, tag = 'output window, operand 2']
    %14 = vsyncpa [#allocation4], 0
    %s15 = scalar_lea.sflag [#allocation4], 1
    %16 = vsyncpa %s15, 0
    %17 = vsyncpa [#allocation7], 0
    %s18 = scalar_lea.sflag [#allocation7], 1
    %19 = vsyncpa %s18, 0
    %20 = vsyncpa [#allocation10], 0
    %21 = vsyncpa [#allocation13], 0
    %22 = vsyncpa [#allocation5], 0
    %s23 = scalar_lea.sflag [#allocation5], 1
    %24 = vsyncpa %s23, 0
    %25 = vsyncpa [#allocation16], 0
    %s26 = scalar_lea.sflag [#allocation16], 1
    %27 = vsyncpa %s26, 0
    loop: start=0, step=1, limit=6
    $region2: #{a_call__.4} parent=1 // loop_pre_header
      _
    $region3: #{a_call__.4} parent=1 // loop_header
      %s29 = sphi 0, %s33
      %p30 = scmp.ge.s32.totalorder %s29, 6
      %s36 = sphi 0, %s48
      %s37 = sphi 0, %s44
      %s38 = sphi 0, %s36
      %s39 = sphi 0, %s37
      %s40 = sphi 0, %s38
      %s41 = sphi 0, %s39
      %s53 = sphi 0, %s55
      %s56 = sphi 0, %s53
      %s57 = sphi 0, %s56
      %s73 = sphi 0, %s57
      %s89 = sphi 0, %s91
      %s92 = sphi 0, %s89
      %s93 = sphi 0, %s92
      %s109 = sphi 0, %s93
      %s125 = sphi 0, %s127
      %s128 = sphi 0, %s125
      %s129 = sphi 0, %s128
      %s145 = sphi 0, %s129
      %s149 = sphi 0, %s149
      %s151 = sphi 0, %s149
      %s152 = sphi 0, %s151
      %s166 = sphi 0, %s152
      %s170 = sphi 0, %s170
      %s172 = sphi 0, %s170
      %s173 = sphi 0, %s172
      %s187 = sphi 0, %s173
      %s191 = sphi 0, %s191
      %s193 = sphi 0, %s191
      %s194 = sphi 0, %s193
      %s208 = sphi 0, %s194
      %s216 = sphi 0, %s218
      %s219 = sphi 0, %s216
      %s220 = sphi 0, %s219
      %s236 = sphi 0, %s220
      %s244 = sphi 0, %s246
      %s247 = sphi 0, %s244
      %s248 = sphi 0, %s247
      %s264 = sphi 0, %s248
      %s272 = sphi 0, %s274
      %s275 = sphi 0, %s272
      %s276 = sphi 0, %s275
      %s292 = sphi 0, %s276
    $region4: #{a_call__.4} parent=1 // loop_header_branch
      %32 = sbr.rel (%p30) target = $region8
    $region5: #{a_call__.4} parent=1 // loop_body
      %s34 = ssub.s32 %s29, 1
      %s35 = ssub.s32 %s29, 2
      %s42 = sadd.s32 1, %s37
      %p43 = scmp.ge.s32.totalorder %s42, 2
      %s44 = scalar_select %p43, 0, %s42
      %s45 = sadd.s32 1, %s36
      %s46 = scalar_select %p43, %s45, %s36
      %p47 = scmp.ge.s32.totalorder %s46, 2
      %s48 = scalar_select %p47, 0, %s46
      %s49 = ssub.s32 %s36, %s48
      %s50 = ssub.s32 %s37, %s44
      %s51 = sor.u32 %s49, %s50
      %p52 = scmp.eq.s32.totalorder %s51, 0
      %s54 = sadd.s32 %s53, 1
      %s55 = scalar_select %p52, %s53, %s54
      %p58 = pneg %p52
      %p59 = scmp.eq.s32.totalorder %s29, 3
      %p60 = por %p58, %p59
      %p61 = scmp.ne.s32.totalorder %s53, %s56
      %p62 = scmp.eq.s32.totalorder %s29, 0
      %p63 = por %p61, %p62
      %p64 = scmp.ne.s32.totalorder %s53, %s56
      %p65 = scmp.eq.s32.totalorder %s34, 3
      %p66 = por %p64, %p65
      %p67 = scmp.ne.s32.totalorder %s56, %s57
      %p68 = scmp.eq.s32.totalorder %s34, 0
      %p69 = por %p67, %p68
      %p70 = scmp.ne.s32.totalorder %s56, %s57
      %p71 = scmp.eq.s32.totalorder %s35, 3
      %p72 = por %p70, %p71
      %p74 = scmp.ne.s32.totalorder %s57, %s73
      %p75 = scmp.eq.s32.totalorder %s35, 0
      %p76 = por %p74, %p75
      %s77 = smul.u32 %s37, 8
      %s78 = ssub.s32 %s77, 1
      %p79 = scmp.gt.s32.totalorder %s78, 0
      %s80 = scalar_select %p79, %s78, 0
      %s81 = smul.u32 %s44, 8
      %s82 = ssub.s32 %s81, 1
      %p83 = scmp.gt.s32.totalorder %s82, 0
      %s84 = scalar_select %p83, %s82, 0
      %s85 = ssub.s32 %s36, %s48
      %s86 = ssub.s32 %s80, %s84
      %s87 = sor.u32 %s85, %s86
      %p88 = scmp.eq.s32.totalorder %s87, 0
      %s90 = sadd.s32 %s89, 1
      %s91 = scalar_select %p88, %s89, %s90
      %p94 = pneg %p88
      %p95 = scmp.eq.s32.totalorder %s29, 3
      %p96 = por %p94, %p95
      %p97 = scmp.ne.s32.totalorder %s89, %s92
      %p98 = scmp.eq.s32.totalorder %s29, 0
      %p99 = por %p97, %p98
      %p100 = scmp.ne.s32.totalorder %s89, %s92
      %p101 = scmp.eq.s32.totalorder %s34, 3
      %p102 = por %p100, %p101
      %p103 = scmp.ne.s32.totalorder %s92, %s93
      %p104 = scmp.eq.s32.totalorder %s34, 0
      %p105 = por %p103, %p104
      %p106 = scmp.ne.s32.totalorder %s92, %s93
      %p107 = scmp.eq.s32.totalorder %s35, 3
      %p108 = por %p106, %p107
      %p110 = scmp.ne.s32.totalorder %s93, %s109
      %p111 = scmp.eq.s32.totalorder %s35, 0
      %p112 = por %p110, %p111
      %s113 = smul.u32 %s37, 8
      %s114 = sadd.s32 %s113, 8
      %p115 = scmp.lt.s32.totalorder %s114, 15
      %s116 = scalar_select %p115, %s114, 15
      %s117 = smul.u32 %s44, 8
      %s118 = sadd.s32 %s117, 8
      %p119 = scmp.lt.s32.totalorder %s118, 15
      %s120 = scalar_select %p119, %s118, 15
      %s121 = ssub.s32 %s36, %s48
      %s122 = ssub.s32 %s116, %s120
      %s123 = sor.u32 %s121, %s122
      %p124 = scmp.eq.s32.totalorder %s123, 0
      %s126 = sadd.s32 %s125, 1
      %s127 = scalar_select %p124, %s125, %s126
      %p130 = pneg %p124
      %p131 = scmp.eq.s32.totalorder %s29, 3
      %p132 = por %p130, %p131
      %p133 = scmp.ne.s32.totalorder %s125, %s128
      %p134 = scmp.eq.s32.totalorder %s29, 0
      %p135 = por %p133, %p134
      %p136 = scmp.ne.s32.totalorder %s125, %s128
      %p137 = scmp.eq.s32.totalorder %s34, 3
      %p138 = por %p136, %p137
      %p139 = scmp.ne.s32.totalorder %s128, %s129
      %p140 = scmp.eq.s32.totalorder %s34, 0
      %p141 = por %p139, %p140
      %p142 = scmp.ne.s32.totalorder %s128, %s129
      %p143 = scmp.eq.s32.totalorder %s35, 3
      %p144 = por %p142, %p143
      %p146 = scmp.ne.s32.totalorder %s129, %s145
      %p147 = scmp.eq.s32.totalorder %s35, 0
      %p148 = por %p146, %p147
      %s150 = sadd.s32 %s149, 1
      %p153 = scmp.eq.s32.totalorder %s29, 3
      %p154 = scmp.ne.s32.totalorder %s149, %s151
      %p155 = scmp.eq.s32.totalorder %s29, 0
      %p156 = por %p154, %p155
      %p157 = scmp.ne.s32.totalorder %s149, %s151
      %p158 = scmp.eq.s32.totalorder %s34, 3
      %p159 = por %p157, %p158
      %p160 = scmp.ne.s32.totalorder %s151, %s152
      %p161 = scmp.eq.s32.totalorder %s34, 0
      %p162 = por %p160, %p161
      %p163 = scmp.ne.s32.totalorder %s151, %s152
      %p164 = scmp.eq.s32.totalorder %s35, 3
      %p165 = por %p163, %p164
      %p167 = scmp.ne.s32.totalorder %s152, %s166
      %p168 = scmp.eq.s32.totalorder %s35, 0
      %p169 = por %p167, %p168
      %s171 = sadd.s32 %s170, 1
      %p174 = scmp.eq.s32.totalorder %s29, 3
      %p175 = scmp.ne.s32.totalorder %s170, %s172
      %p176 = scmp.eq.s32.totalorder %s29, 0
      %p177 = por %p175, %p176
      %p178 = scmp.ne.s32.totalorder %s170, %s172
      %p179 = scmp.eq.s32.totalorder %s34, 3
      %p180 = por %p178, %p179
      %p181 = scmp.ne.s32.totalorder %s172, %s173
      %p182 = scmp.eq.s32.totalorder %s34, 0
      %p183 = por %p181, %p182
      %p184 = scmp.ne.s32.totalorder %s172, %s173
      %p185 = scmp.eq.s32.totalorder %s35, 3
      %p186 = por %p184, %p185
      %p188 = scmp.ne.s32.totalorder %s173, %s187
      %p189 = scmp.eq.s32.totalorder %s35, 0
      %p190 = por %p188, %p189
      %s192 = sadd.s32 %s191, 1
      %p195 = scmp.eq.s32.totalorder %s29, 3
      %p196 = scmp.ne.s32.totalorder %s191, %s193
      %p197 = scmp.eq.s32.totalorder %s29, 0
      %p198 = por %p196, %p197
      %p199 = scmp.ne.s32.totalorder %s191, %s193
      %p200 = scmp.eq.s32.totalorder %s34, 3
      %p201 = por %p199, %p200
      %p202 = scmp.ne.s32.totalorder %s193, %s194
      %p203 = scmp.eq.s32.totalorder %s34, 0
      %p204 = por %p202, %p203
      %p205 = scmp.ne.s32.totalorder %s193, %s194
      %p206 = scmp.eq.s32.totalorder %s35, 3
      %p207 = por %p205, %p206
      %p209 = scmp.ne.s32.totalorder %s194, %s208
      %p210 = scmp.eq.s32.totalorder %s35, 0
      %p211 = por %p209, %p210
      %s212 = ssub.s32 %s36, %s48
      %s213 = ssub.s32 %s37, %s44
      %s214 = sor.u32 %s212, %s213
      %p215 = scmp.eq.s32.totalorder %s214, 0
      %s217 = sadd.s32 %s216, 1
      %s218 = scalar_select %p215, %s216, %s217
      %p221 = pneg %p215
      %p222 = scmp.eq.s32.totalorder %s29, 3
      %p223 = por %p221, %p222
      %p224 = scmp.ne.s32.totalorder %s216, %s219
      %p225 = scmp.eq.s32.totalorder %s29, 0
      %p226 = por %p224, %p225
      %p227 = scmp.ne.s32.totalorder %s216, %s219
      %p228 = scmp.eq.s32.totalorder %s34, 3
      %p229 = por %p227, %p228
      %p230 = scmp.ne.s32.totalorder %s219, %s220
      %p231 = scmp.eq.s32.totalorder %s34, 0
      %p232 = por %p230, %p231
      %p233 = scmp.ne.s32.totalorder %s219, %s220
      %p234 = scmp.eq.s32.totalorder %s35, 3
      %p235 = por %p233, %p234
      %p237 = scmp.ne.s32.totalorder %s220, %s236
      %p238 = scmp.eq.s32.totalorder %s35, 0
      %p239 = por %p237, %p238
      %s240 = ssub.s32 %s36, %s48
      %s241 = ssub.s32 %s37, %s44
      %s242 = sor.u32 %s240, %s241
      %p243 = scmp.eq.s32.totalorder %s242, 0
      %s245 = sadd.s32 %s244, 1
      %s246 = scalar_select %p243, %s244, %s245
      %p249 = pneg %p243
      %p250 = scmp.eq.s32.totalorder %s29, 3
      %p251 = por %p249, %p250
      %p252 = scmp.ne.s32.totalorder %s244, %s247
      %p253 = scmp.eq.s32.totalorder %s29, 0
      %p254 = por %p252, %p253
      %p255 = scmp.ne.s32.totalorder %s244, %s247
      %p256 = scmp.eq.s32.totalorder %s34, 3
      %p257 = por %p255, %p256
      %p258 = scmp.ne.s32.totalorder %s247, %s248
      %p259 = scmp.eq.s32.totalorder %s34, 0
      %p260 = por %p258, %p259
      %p261 = scmp.ne.s32.totalorder %s247, %s248
      %p262 = scmp.eq.s32.totalorder %s35, 3
      %p263 = por %p261, %p262
      %p265 = scmp.ne.s32.totalorder %s248, %s264
      %p266 = scmp.eq.s32.totalorder %s35, 0
      %p267 = por %p265, %p266
      %s268 = ssub.s32 %s36, %s48
      %s269 = ssub.s32 %s37, %s44
      %s270 = sor.u32 %s268, %s269
      %p271 = scmp.eq.s32.totalorder %s270, 0
      %s273 = sadd.s32 %s272, 1
      %s274 = scalar_select %p271, %s272, %s273
      %p277 = pneg %p271
      %p278 = scmp.eq.s32.totalorder %s29, 3
      %p279 = por %p277, %p278
      %p280 = scmp.ne.s32.totalorder %s272, %s275
      %p281 = scmp.eq.s32.totalorder %s29, 0
      %p282 = por %p280, %p281
      %p283 = scmp.ne.s32.totalorder %s272, %s275
      %p284 = scmp.eq.s32.totalorder %s34, 3
      %p285 = por %p283, %p284
      %p286 = scmp.ne.s32.totalorder %s275, %s276
      %p287 = scmp.eq.s32.totalorder %s34, 0
      %p288 = por %p286, %p287
      %p289 = scmp.ne.s32.totalorder %s275, %s276
      %p290 = scmp.eq.s32.totalorder %s35, 3
      %p291 = por %p289, %p290
      %p293 = scmp.ne.s32.totalorder %s276, %s292
      %p294 = scmp.eq.s32.totalorder %s35, 0
      %p295 = por %p293, %p294
      %p296 = scmp.le.s32.totalorder 1, %s29
      %p297 = scmp.lt.s32.totalorder %s29, 5
      %p298 = pnand %p296, %p297
      %p299 = pneg %p298
      // Predicated region
      $region9: #{a_call__.4} parent=5 // pred_check
        _
      $region10: #{a_call__.4} parent=5 // pred_check_branch
        %301 = sbr.rel (%p298) target = $region12
      $region11: #{a_call__.4} parent=5 // pred_region
        %s302 = ssub.s32 %s29, 1
        // Predicated region
        $region13: #{a_call__.4} parent=11 // pred_check
          %p303 = pneg %p162
        $region14: #{a_call__.4} parent=11 // pred_check_branch
          %305 = sbr.rel (%p303) target = $region16
        $region15: #{a_call__.4} parent=11 // pred_region
          %s307 = ssub.s32 576, 576
          %308 = vsyncadd [#allocation10], %s307
          %s309 = sshll.u32 [#allocation9], 4
          %s310 = int_to_ptr.vmem [resolvable:$true] %s309
          %315 = dma.hbm_to_vmem [thread:$0]  %s3, 576, %s310, [#allocation10], 64, 64, 4
        $region16: #{a_call__.4} parent=11 // pred_fallthru
          _
        // Predicated region
        $region17: #{a_call__.4} parent=11 // pred_check
          %p316 = pneg %p183
        $region18: #{a_call__.4} parent=11 // pred_check_branch
          %318 = sbr.rel (%p316) target = $region20
        $region19: #{a_call__.4} parent=11 // pred_region
          %s320 = ssub.s32 16, 16
          %321 = vsyncadd [#allocation10], %s320
          %s323 = sshll.u32 [#allocation11], 4
          %s324 = int_to_ptr.vmem [resolvable:$true] %s323
          %326 = dma.hbm_to_vmem [thread:$0]  %s4, 16, %s324, [#allocation10]
        $region20: #{a_call__.4} parent=11 // pred_fallthru
          _
        // Predicated region
        $region21: #{a_call__.4} parent=11 // pred_check
          %p327 = pneg %p204
        $region22: #{a_call__.4} parent=11 // pred_check_branch
          %329 = sbr.rel (%p327) target = $region24
        $region23: #{a_call__.4} parent=11 // pred_region
          %s331 = ssub.s32 16, 16
          %332 = vsyncadd [#allocation13], %s331
          %s334 = sshll.u32 [#allocation12], 4
          %s335 = int_to_ptr.vmem [resolvable:$true] %s334
          %337 = dma.hbm_to_vmem [thread:$0]  %s5, 16, %s335, [#allocation13]
        $region24: #{a_call__.4} parent=11 // pred_fallthru
          _
      $region12: #{a_call__.4} parent=5 // pred_fallthru
        _
      %p338 = scmp.lt.s32.totalorder %s29, 4
      // Predicated region
      $region25: #{a_call__.4} parent=5 // pred_check
        %p339 = pneg %p338
      $region26: #{a_call__.4} parent=5 // pred_check_branch
        %341 = sbr.rel (%p339) target = $region28
      $region27: #{a_call__.4} parent=5 // pred_region
        // Predicated region
        $region29: #{a_call__.4} parent=27 // pred_check
          %p342 = pneg %p63
        $region30: #{a_call__.4} parent=27 // pred_check_branch
          %344 = sbr.rel (%p342) target = $region32
        $region31: #{a_call__.4} parent=27 // pred_region
          %s345 = sand.u32 %s53, 1
          %s346 = scalar_lea.sflag [#allocation4], %s345
          %s347 = sand.u32 %s53, 1
          %s348 = smul.addr %s347, 64
          %s349 = scalar_lea.vmem [#allocation3], %s348
          %s350 = smul.u32 8, %s37
          %s352 = ssub.s32 1024, 1024
          %353 = vsyncadd %s346, %s352
          %s354 = smul.addr %s350, 2
          %s355 = smul.addr %s36, 32
          %s356 = sadd.s32 %s354, %s355
          %s357 = smul.addr %s356, 64
          %s358 = scalar_lea.hbm %s0, %s357
          %s359 = sshll.u32 %s349, 4
          %s360 = int_to_ptr.vmem [resolvable:$true] %s359
          %365 = dma.hbm_to_vmem [thread:$0]  %s358, 1024, %s360, %s346, 64, 64, 4
        $region32: #{a_call__.4} parent=27 // pred_fallthru
          _
        // Predicated region
        $region33: #{a_call__.4} parent=27 // pred_check
          %p366 = pneg %p99
        $region34: #{a_call__.4} parent=27 // pred_check_branch
          %368 = sbr.rel (%p366) target = $region36
        $region35: #{a_call__.4} parent=27 // pred_region
          %s369 = sand.u32 %s29, 1
          %s370 = scalar_lea.sflag [#allocation7], %s369
          %s371 = sand.u32 %s89, 1
          %s372 = smul.addr %s371, 8
          %s373 = scalar_lea.vmem [#allocation6], %s372
          %s374 = smul.u32 %s37, 8
          %s375 = ssub.s32 %s374, 1
          %p376 = scmp.gt.s32.totalorder %s375, 0
          %s377 = scalar_select %p376, %s375, 0
          %s379 = ssub.s32 128, 128
          %380 = vsyncadd %s370, %s379
          %s381 = smul.addr %s377, 2
          %s382 = smul.addr %s36, 32
          %s383 = sadd.s32 %s381, %s382
          %s384 = smul.addr %s383, 64
          %s385 = scalar_lea.hbm %s1, %s384
          %s386 = sshll.u32 %s373, 4
          %s387 = int_to_ptr.vmem [resolvable:$true] %s386
          %392 = dma.hbm_to_vmem [thread:$0]  %s385, 128, %s387, %s370, 64, 64, 4
        $region36: #{a_call__.4} parent=27 // pred_fallthru
          _
        // Predicated region
        $region37: #{a_call__.4} parent=27 // pred_check
          %p393 = pneg %p135
        $region38: #{a_call__.4} parent=27 // pred_check_branch
          %395 = sbr.rel (%p393) target = $region40
        $region39: #{a_call__.4} parent=27 // pred_region
          %s396 = sand.u32 %s29, 1
          %s397 = scalar_lea.sflag [#allocation7], %s396
          %s398 = sand.u32 %s125, 1
          %s399 = smul.addr %s398, 8
          %s400 = scalar_lea.vmem [#allocation8], %s399
          %s401 = smul.u32 %s37, 8
          %s402 = sadd.s32 %s401, 8
          %p403 = scmp.lt.s32.totalorder %s402, 15
          %s404 = scalar_select %p403, %s402, 15
          %s406 = ssub.s32 128, 128
          %407 = vsyncadd %s397, %s406
          %s408 = smul.addr %s404, 2
          %s409 = smul.addr %s36, 32
          %s410 = sadd.s32 %s408, %s409
          %s411 = smul.addr %s410, 64
          %s412 = scalar_lea.hbm %s2, %s411
          %s413 = sshll.u32 %s400, 4
          %s414 = int_to_ptr.vmem [resolvable:$true] %s413
          %419 = dma.hbm_to_vmem [thread:$0]  %s412, 128, %s414, %s397, 64, 64, 4
        $region40: #{a_call__.4} parent=27 // pred_fallthru
          _
      $region28: #{a_call__.4} parent=5 // pred_fallthru
        _
      %p420 = scmp.le.s32.totalorder 1, %s29
      %p421 = scmp.lt.s32.totalorder %s29, 5
      %p422 = pnand %p420, %p421
      %p423 = pneg %p422
      // Predicated region
      $region41: #{a_call__.4} parent=5 // pred_check
        _
      $region42: #{a_call__.4} parent=5 // pred_check_branch
        %425 = sbr.rel (%p422) target = $region44
      $region43: #{a_call__.4} parent=5 // pred_region
        %s426 = ssub.s32 %s29, 1
        %s427 = sand.u32 %s56, 1
        %s428 = scalar_lea.sflag [#allocation4], %s427
        %s429 = sand.u32 %s56, 1
        %s430 = smul.addr %s429, 64
        %s431 = scalar_lea.vmem [#allocation3], %s430
        // Predicated region
        $region45: #{a_call__.4} parent=43 // pred_check
          %p432 = pneg %p69
        $region46: #{a_call__.4} parent=43 // pred_check_branch
          %434 = sbr.rel (%p432) target = $region48
        $region47: #{a_call__.4} parent=43 // pred_region
          %435 = dma.done %s428, 1024
        $region48: #{a_call__.4} parent=43 // pred_fallthru
          _
        %s436 = sand.u32 %s34, 1
        %s437 = scalar_lea.sflag [#allocation7], %s436
        %s438 = sand.u32 %s92, 1
        %s439 = smul.addr %s438, 8
        %s440 = scalar_lea.vmem [#allocation6], %s439
        // Predicated region
        $region49: #{a_call__.4} parent=43 // pred_check
          %p441 = pneg %p105
        $region50: #{a_call__.4} parent=43 // pred_check_branch
          %443 = sbr.rel (%p441) target = $region52
        $region51: #{a_call__.4} parent=43 // pred_region
          %444 = dma.done %s437, 128
        $region52: #{a_call__.4} parent=43 // pred_fallthru
          _
        %s445 = sand.u32 %s34, 1
        %s446 = scalar_lea.sflag [#allocation7], %s445
        %s447 = sand.u32 %s128, 1
        %s448 = smul.addr %s447, 8
        %s449 = scalar_lea.vmem [#allocation8], %s448
        // Predicated region
        $region53: #{a_call__.4} parent=43 // pred_check
          %p450 = pneg %p141
        $region54: #{a_call__.4} parent=43 // pred_check_branch
          %452 = sbr.rel (%p450) target = $region56
        $region55: #{a_call__.4} parent=43 // pred_region
          %453 = dma.done %s446, 128
        $region56: #{a_call__.4} parent=43 // pred_fallthru
          _
        // Predicated region
        $region57: #{a_call__.4} parent=43 // pred_check
          %p454 = pneg %p162
        $region58: #{a_call__.4} parent=43 // pred_check_branch
          %456 = sbr.rel (%p454) target = $region60
        $region59: #{a_call__.4} parent=43 // pred_region
          %457 = dma.done [#allocation10], 576
        $region60: #{a_call__.4} parent=43 // pred_fallthru
          _
        // Predicated region
        $region61: #{a_call__.4} parent=43 // pred_check
          %p458 = pneg %p183
        $region62: #{a_call__.4} parent=43 // pred_check_branch
          %460 = sbr.rel (%p458) target = $region64
        $region63: #{a_call__.4} parent=43 // pred_region
          %461 = dma.done [#allocation10], 16
        $region64: #{a_call__.4} parent=43 // pred_fallthru
          _
        // Predicated region
        $region65: #{a_call__.4} parent=43 // pred_check
          %p462 = pneg %p204
        $region66: #{a_call__.4} parent=43 // pred_check_branch
          %464 = sbr.rel (%p462) target = $region68
        $region67: #{a_call__.4} parent=43 // pred_region
          %465 = dma.done [#allocation13], 16
        $region68: #{a_call__.4} parent=43 // pred_fallthru
          _
        %s466 = sand.u32 %s56, 1
        %s467 = scalar_lea.sflag [#allocation4], %s466
        %s468 = sand.u32 %s56, 1
        %s469 = smul.addr %s468, 64
        %s470 = scalar_lea.vmem [#allocation3], %s469
        %p471 = pneg %p69
        %p472 = pneg %p66
        %s473 = sand.u32 %s34, 1
        %s474 = scalar_lea.sflag [#allocation7], %s473
        %s475 = sand.u32 %s92, 1
        %s476 = smul.addr %s475, 8
        %s477 = scalar_lea.vmem [#allocation6], %s476
        %p478 = pneg %p105
        %p479 = pneg %p102
        %s480 = sand.u32 %s34, 1
        %s481 = scalar_lea.sflag [#allocation7], %s480
        %s482 = sand.u32 %s128, 1
        %s483 = smul.addr %s482, 8
        %s484 = scalar_lea.vmem [#allocation8], %s483
        %p485 = pneg %p141
        %p486 = pneg %p138
        %p487 = pneg %p162
        %p488 = pneg %p159
        %p489 = pneg %p183
        %p490 = pneg %p180
        %p491 = pneg %p204
        %p492 = pneg %p201
        %p493 = pneg %p232
        %p494 = pneg %p229
        %s495 = sand.u32 %s219, 1
        %s496 = scalar_lea.sflag [#allocation5], %s495
        %s497 = sand.u32 %s219, 1
        %s498 = smul.addr %s497, 64
        %s499 = scalar_lea.vmem [#allocation14], %s498
        %p500 = pneg %p260
        %p501 = pneg %p257
        %s502 = sand.u32 %s34, 1
        %s503 = scalar_lea.sflag [#allocation16], %s502
        %s504 = sand.u32 %s247, 1
        %s505 = scalar_lea.vmem [#allocation15], %s504
        %p506 = pneg %p288
        %p507 = pneg %p285
        %s508 = sand.u32 %s34, 1
        %s509 = scalar_lea.sflag [#allocation16], %s508
        %s510 = sand.u32 %s275, 1
        %s511 = scalar_lea.vmem [#allocation17], %s510
        %s512 = smul.u32 8, %s39
        %s513 = smul.u32 %s39, 8
        %s514 = ssub.s32 %s513, 1
        %p515 = scmp.gt.s32.totalorder %s514, 0
        %s516 = scalar_select %p515, %s514, 0
        %s517 = smul.u32 %s39, 8
        %s518 = sadd.s32 %s517, 8
        %p519 = scmp.lt.s32.totalorder %s518, 15
        %s520 = scalar_select %p519, %s518, 15
        %s521 = smul.u32 8, %s39
        %v523 = vld [vmem:[%s431] sm:$0xf]
        %v524 = vld [vmem:[%s431 + $0x4] sm:$0xf]
        %v525 = vld [vmem:[%s431 + $0x8] sm:$0xf]
        %v526 = vld [vmem:[%s431 + $0xc] sm:$0xf]
        %v527 = vld [vmem:[%s431 + $0x10] sm:$0xf]
        %v528 = vld [vmem:[%s431 + $0x14] sm:$0xf]
        %v529 = vld [vmem:[%s431 + $0x18] sm:$0xf]
        %v530 = vld [vmem:[%s431 + $0x1c] sm:$0xf]
        %v531 = vld [vmem:[%s431 + $0x20] sm:$0xf]
        %v532 = vld [vmem:[%s431 + $0x24] sm:$0xf]
        %v533 = vld [vmem:[%s431 + $0x28] sm:$0xf]
        %v534 = vld [vmem:[%s431 + $0x2c] sm:$0xf]
        %v535 = vld [vmem:[%s431 + $0x30] sm:$0xf]
        %v536 = vld [vmem:[%s431 + $0x34] sm:$0xf]
        %v537 = vld [vmem:[%s431 + $0x38] sm:$0xf]
        %v538 = vld [vmem:[%s431 + $0x3c] sm:$0xf]
        %v539 = vunpack.c.l.bf16 %v523
        %v540 = vunpack.c.l.bf16 %v524
        %v541 = vunpack.c.l.bf16 %v525
        %v542 = vunpack.c.l.bf16 %v526
        %v543 = vunpack.c.l.bf16 %v527
        %v544 = vunpack.c.l.bf16 %v528
        %v545 = vunpack.c.l.bf16 %v529
        %v546 = vunpack.c.l.bf16 %v530
        %v547 = vunpack.c.l.bf16 %v531
        %v548 = vunpack.c.l.bf16 %v532
        %v549 = vunpack.c.l.bf16 %v533
        %v550 = vunpack.c.l.bf16 %v534
        %v551 = vunpack.c.l.bf16 %v535
        %v552 = vunpack.c.l.bf16 %v536
        %v553 = vunpack.c.l.bf16 %v537
        %v554 = vunpack.c.l.bf16 %v538
        %v555 = vld [vmem:[#allocation11] sm:$0x1]
        %v557 = vlaneseq
        %v558 = vshrl.u32 %v557, 7
        %v559 = vsub.s32 0, %v558
        %v560 = vrot.slane %v555, %v559
        %v562 = vmul.f32 %v539, %v560
        %v563 = vmul.f32 %v540, %v560
        %v564 = vmul.f32 %v541, %v560
        %v565 = vmul.f32 %v542, %v560
        %v566 = vmul.f32 %v543, %v560
        %v567 = vmul.f32 %v544, %v560
        %v568 = vmul.f32 %v545, %v560
        %v569 = vmul.f32 %v546, %v560
        %v570 = vmul.f32 %v547, %v560
        %v571 = vmul.f32 %v548, %v560
        %v572 = vmul.f32 %v549, %v560
        %v573 = vmul.f32 %v550, %v560
        %v574 = vmul.f32 %v551, %v560
        %v575 = vmul.f32 %v552, %v560
        %v576 = vmul.f32 %v553, %v560
        %v577 = vmul.f32 %v554, %v560
        %v578 = vld [vmem:[#allocation12] sm:$0x1]
        %v580 = vlaneseq
        %v581 = vshrl.u32 %v580, 7
        %v582 = vsub.s32 0, %v581
        %v583 = vrot.slane %v578, %v582
        %v585 = vadd.f32 %v562, %v583
        %v586 = vadd.f32 %v563, %v583
        %v587 = vadd.f32 %v564, %v583
        %v588 = vadd.f32 %v565, %v583
        %v589 = vadd.f32 %v566, %v583
        %v590 = vadd.f32 %v567, %v583
        %v591 = vadd.f32 %v568, %v583
        %v592 = vadd.f32 %v569, %v583
        %v593 = vadd.f32 %v570, %v583
        %v594 = vadd.f32 %v571, %v583
        %v595 = vadd.f32 %v572, %v583
        %v596 = vadd.f32 %v573, %v583
        %v597 = vadd.f32 %v574, %v583
        %v598 = vadd.f32 %v575, %v583
        %v599 = vadd.f32 %v576, %v583
        %v600 = vadd.f32 %v577, %v583
        %v601 = vmax.f32 %v585, 0.0
        %v602 = vmax.f32 %v586, 0.0
        %v603 = vmax.f32 %v587, 0.0
        %v604 = vmax.f32 %v588, 0.0
        %v605 = vmax.f32 %v589, 0.0
        %v606 = vmax.f32 %v590, 0.0
        %v607 = vmax.f32 %v591, 0.0
        %v608 = vmax.f32 %v592, 0.0
        %v609 = vmax.f32 %v593, 0.0
        %v610 = vmax.f32 %v594, 0.0
        %v611 = vmax.f32 %v595, 0.0
        %v612 = vmax.f32 %v596, 0.0
        %v613 = vmax.f32 %v597, 0.0
        %v614 = vmax.f32 %v598, 0.0
        %v615 = vmax.f32 %v599, 0.0
        %v616 = vmax.f32 %v600, 0.0
        %v617 = vpack.c.bf16 %v602, %v601
        %v618 = vpack.c.bf16 %v604, %v603
        %v619 = vpack.c.bf16 %v606, %v605
        %v620 = vpack.c.bf16 %v608, %v607
        %v621 = vpack.c.bf16 %v610, %v609
        %v622 = vpack.c.bf16 %v612, %v611
        %v623 = vpack.c.bf16 %v614, %v613
        %v624 = vpack.c.bf16 %v616, %v615
        %p625 = scmp.gt.s32.totalorder %s39, 0
        %s626 = scalar_select %p625, 1, 0
        %s627 = scvt.s32.f32 %s626
        %p629 = scmp.ne.f32.partialorder %s627, %s627
        %s630 = sshrl.u32 %s627, 16
        %s631 = sand.u32 %s630, 1
        %s632 = sadd.s32 32767, %s631
        %s633 = sadd.s32 %s627, %s632
        %s634 = sand.u32 %s633, 4294901760
        %s635 = scalar_select %p629, 2143289344, %s634
        %s637 = sshrl.u32 %s635, 16
        %p638 = scmp.lt.s32.totalorder %s39, 1
        %s639 = scalar_select %p638, 1, 0
        %s640 = scvt.s32.f32 %s639
        %p642 = scmp.ne.f32.partialorder %s640, %s640
        %s643 = sshrl.u32 %s640, 16
        %s644 = sand.u32 %s643, 1
        %s645 = sadd.s32 32767, %s644
        %s646 = sadd.s32 %s640, %s645
        %s647 = sand.u32 %s646, 4294901760
        %s648 = scalar_select %p642, 2143289344, %s647
        %s650 = sshrl.u32 %s648, 16
        %v651 = vld [vmem:[%s440] sm:$0xf]
        %v652 = vld [vmem:[%s440 + $0x4] sm:$0xf]
        %v653 = vunpack.c.l.bf16 %v651
        %v654 = vunpack.c.l.bf16 %v652
        %v655 = vmul.f32 %v653, %v560
        %v656 = vmul.f32 %v654, %v560
        %v657 = vadd.f32 %v655, %v583
        %v658 = vadd.f32 %v656, %v583
        %v659 = vmax.f32 %v657, 0.0
        %v660 = vmax.f32 %v658, 0.0
        %v661 = vpack.c.bf16 %v660, %v659
        %s662 = sshll.u32 %s637, 16
        %s663 = sor.u32 %s637, %s662
        %v664 = vstv %s663
        %v666 = vmul.bf16 %v661, %v664
        %v667 = vld [vmem:[%s449] sm:$0xf]
        %v668 = vld [vmem:[%s449 + $0x4] sm:$0xf]
        %v669 = vunpack.c.l.bf16 %v667
        %v670 = vunpack.c.l.bf16 %v668
        %v671 = vmul.f32 %v669, %v560
        %v672 = vmul.f32 %v670, %v560
        %v673 = vadd.f32 %v671, %v583
        %v674 = vadd.f32 %v672, %v583
        %v675 = vmax.f32 %v673, 0.0
        %v676 = vmax.f32 %v674, 0.0
        %v677 = vpack.c.bf16 %v676, %v675
        %s678 = sshll.u32 %s650, 16
        %s679 = sor.u32 %s650, %s678
        %v680 = vstv %s679
        %v682 = vmul.bf16 %v677, %v680
        %vm683 = vcmask 57344
        %vm684 = vsmask.f32 256
        %vm685 = vmand %vm683, %vm684
        %v686 = vld [vmem:[#allocation2] sm:$0x1]
        %v687 = vsel %vm685, 0, %v686
        %688 = vst [vmem:[#allocation2] sm:$0x1] %v687
        %v689 = vld [vmem:[#allocation2 + $0xc] sm:$0x1]
        %v690 = vsel %vm685, 0, %v689
        %691 = vst [vmem:[#allocation2 + $0xc] sm:$0x1] %v690
        %v692 = vld [vmem:[#allocation2 + $0x18] sm:$0x1]
        %v693 = vsel %vm685, 0, %v692
        %694 = vst [vmem:[#allocation2 + $0x18] sm:$0x1] %v693
        %v695 = vld [vmem:[#allocation2 + $0x24] sm:$0x1]
        %v696 = vsel %vm685, 0, %v695
        %697 = vst [vmem:[#allocation2 + $0x24] sm:$0x1] %v696
        %v698 = vld [vmem:[#allocation2 + $0x30] sm:$0x1]
        %v699 = vsel %vm685, 0, %v698
        %700 = vst [vmem:[#allocation2 + $0x30] sm:$0x1] %v699
        %v701 = vld [vmem:[#allocation2 + $0x3c] sm:$0x1]
        %v702 = vsel %vm685, 0, %v701
        %703 = vst [vmem:[#allocation2 + $0x3c] sm:$0x1] %v702
        %v704 = vld [vmem:[#allocation2 + $0x48] sm:$0x1]
        %v705 = vsel %vm685, 0, %v704
        %706 = vst [vmem:[#allocation2 + $0x48] sm:$0x1] %v705
        %v707 = vld [vmem:[#allocation2 + $0x54] sm:$0x1]
        %v708 = vsel %vm685, 0, %v707
        %709 = vst [vmem:[#allocation2 + $0x54] sm:$0x1] %v708
        %v710 = vld [vmem:[#allocation2 + $0x60] sm:$0x1]
        %v711 = vsel %vm685, 0, %v710
        %712 = vst [vmem:[#allocation2 + $0x60] sm:$0x1] %v711
        %v713 = vld [vmem:[#allocation2 + $0x6c] sm:$0x1]
        %v714 = vsel %vm685, 0, %v713
        %715 = vst [vmem:[#allocation2 + $0x6c] sm:$0x1] %v714
        %vm716 = vsmask.f32 7938
        %vm717 = vmand %vm683, %vm716
        %v718 = vld [vmem:[#allocation2 + $0x8] sm:$0x1]
        %v719 = vsel %vm717, 0, %v718
        %720 = vst [vmem:[#allocation2 + $0x8] sm:$0x1] %v719
        %v721 = vld [vmem:[#allocation2 + $0x14] sm:$0x1]
        %v722 = vsel %vm717, 0, %v721
        %723 = vst [vmem:[#allocation2 + $0x14] sm:$0x1] %v722
        %v724 = vld [vmem:[#allocation2 + $0x20] sm:$0x1]
        %v725 = vsel %vm717, 0, %v724
        %726 = vst [vmem:[#allocation2 + $0x20] sm:$0x1] %v725
        %v727 = vld [vmem:[#allocation2 + $0x2c] sm:$0x1]
        %v728 = vsel %vm717, 0, %v727
        %729 = vst [vmem:[#allocation2 + $0x2c] sm:$0x1] %v728
        %v730 = vld [vmem:[#allocation2 + $0x38] sm:$0x1]
        %v731 = vsel %vm717, 0, %v730
        %732 = vst [vmem:[#allocation2 + $0x38] sm:$0x1] %v731
        %v733 = vld [vmem:[#allocation2 + $0x44] sm:$0x1]
        %v734 = vsel %vm717, 0, %v733
        %735 = vst [vmem:[#allocation2 + $0x44] sm:$0x1] %v734
        %v736 = vld [vmem:[#allocation2 + $0x50] sm:$0x1]
        %v737 = vsel %vm717, 0, %v736
        %738 = vst [vmem:[#allocation2 + $0x50] sm:$0x1] %v737
        %v739 = vld [vmem:[#allocation2 + $0x5c] sm:$0x1]
        %v740 = vsel %vm717, 0, %v739
        %741 = vst [vmem:[#allocation2 + $0x5c] sm:$0x1] %v740
        %v742 = vld [vmem:[#allocation2 + $0x68] sm:$0x1]
        %v743 = vsel %vm717, 0, %v742
        %744 = vst [vmem:[#allocation2 + $0x68] sm:$0x1] %v743
        %v745 = vld [vmem:[#allocation2 + $0x74] sm:$0x1]
        %v746 = vsel %vm717, 0, %v745
        %747 = vst [vmem:[#allocation2 + $0x74] sm:$0x1] %v746
        %v749 = vunpack.c.l.b16 %v666
        %v750 = vunpack.c.h.b16 %v666
        %v751 = vpack.c.b16 %v749, %v749
        %v752 = vpack.c.b16 %v750, %v750
        %vm753 = vsmask.f32 4368
        %vm754 = vmor %vm684, %vm753
        %v756 = vshrl.u32 %v751, 16
        %v758 = vrot.slane %v756, 7
        %v759 = vshll.u32 %v751, 16
        %v761 = vor.u32 %v758, %v759
        %v762 = vrot.slane %v758, 4
        %v764 = vshrl.u32 %v752, 16
        %v766 = vrot.slane %v764, 7
        %v767 = vshll.u32 %v752, 16
        %v769 = vor.u32 %v766, %v767
        %v770 = vsel %vm754, %v762, %v769
        %v771 = vrot.slane %v766, 4
        %vm775 = vcmask 60416
        %vm776 = vmand %vm775, %vm716
        %v777 = vld [vmem:[#allocation2] sm:$0xf]
        %v778 = vsel %vm776, %v761, %v777
        %779 = vst [vmem:[#allocation2] sm:$0xf] %v778
        %vm780 = vcmask 60416
        %781 = vst.msk [vmem:[#allocation2 + $0x4] sm:$0xf] %vm780, %v770
        %v782 = vld [vmem:[#allocation2 + $0x8] sm:$0x1]
        %v783 = vsel %vm685, %v771, %v782
        %784 = vst [vmem:[#allocation2 + $0x8] sm:$0x1] %v783
        %v786 = vunpack.c.l.b16 %v682
        %v787 = vunpack.c.h.b16 %v682
        %v788 = vpack.c.b16 %v786, %v786
        %v789 = vpack.c.b16 %v787, %v787
        %v791 = vshrl.u32 %v788, 16
        %v793 = vrot.slane %v791, 7
        %v794 = vshll.u32 %v788, 16
        %v796 = vor.u32 %v793, %v794
        %v797 = vrot.slane %v793, 4
        %v799 = vshrl.u32 %v789, 16
        %v801 = vrot.slane %v799, 7
        %v802 = vshll.u32 %v789, 16
        %v804 = vor.u32 %v801, %v802
        %v805 = vsel %vm754, %v797, %v804
        %v806 = vrot.slane %v801, 4
        %s810 = scalar_lea.vmem [#allocation2], 108
        %v811 = vld [vmem:[%s810] sm:$0xf]
        %v812 = vsel %vm776, %v796, %v811
        %813 = vst [vmem:[%s810] sm:$0xf] %v812
        %814 = vst.msk [vmem:[%s810 + $0x4] sm:$0xf] %vm780, %v805
        %v815 = vld [vmem:[%s810 + $0x8] sm:$0x1]
        %v816 = vsel %vm685, %v806, %v815
        %817 = vst [vmem:[%s810 + $0x8] sm:$0x1] %v816
        %v826 = vunpack.c.l.b16 %v617
        %v827 = vunpack.c.h.b16 %v617
        %v828 = vunpack.c.l.b16 %v618
        %v829 = vunpack.c.h.b16 %v618
        %v830 = vunpack.c.l.b16 %v619
        %v831 = vunpack.c.h.b16 %v619
        %v832 = vunpack.c.l.b16 %v620
        %v833 = vunpack.c.h.b16 %v620
        %v834 = vunpack.c.l.b16 %v621
        %v835 = vunpack.c.h.b16 %v621
        %v836 = vunpack.c.l.b16 %v622
        %v837 = vunpack.c.h.b16 %v622
        %v838 = vunpack.c.l.b16 %v623
        %v839 = vunpack.c.h.b16 %v623
        %v840 = vunpack.c.l.b16 %v624
        %v841 = vunpack.c.h.b16 %v624
        %v842 = vpack.c.b16 %v826, %v826
        %v843 = vpack.c.b16 %v827, %v827
        %v844 = vpack.c.b16 %v828, %v828
        %v845 = vpack.c.b16 %v829, %v829
        %v846 = vpack.c.b16 %v830, %v830
        %v847 = vpack.c.b16 %v831, %v831
        %v848 = vpack.c.b16 %v832, %v832
        %v849 = vpack.c.b16 %v833, %v833
        %v850 = vpack.c.b16 %v834, %v834
        %v851 = vpack.c.b16 %v835, %v835
        %v852 = vpack.c.b16 %v836, %v836
        %v853 = vpack.c.b16 %v837, %v837
        %v854 = vpack.c.b16 %v838, %v838
        %v855 = vpack.c.b16 %v839, %v839
        %v856 = vpack.c.b16 %v840, %v840
        %v857 = vpack.c.b16 %v841, %v841
        %v859 = vshrl.u32 %v842, 16
        %v861 = vrot.slane %v859, 7
        %v862 = vshll.u32 %v842, 16
        %v864 = vor.u32 %v861, %v862
        %v865 = vrot.slane %v861, 4
        %v867 = vshrl.u32 %v843, 16
        %v869 = vrot.slane %v867, 7
        %v870 = vshll.u32 %v843, 16
        %v872 = vor.u32 %v869, %v870
        %v873 = vsel %vm754, %v865, %v872
        %v874 = vrot.slane %v869, 4
        %v876 = vshrl.u32 %v844, 16
        %v878 = vrot.slane %v876, 7
        %v879 = vshll.u32 %v844, 16
        %v881 = vor.u32 %v878, %v879
        %v882 = vrot.slane %v878, 4
        %v884 = vshrl.u32 %v845, 16
        %v886 = vrot.slane %v884, 7
        %v887 = vshll.u32 %v845, 16
        %v889 = vor.u32 %v886, %v887
        %v890 = vsel %vm754, %v882, %v889
        %v891 = vrot.slane %v886, 4
        %v893 = vshrl.u32 %v846, 16
        %v895 = vrot.slane %v893, 7
        %v896 = vshll.u32 %v846, 16
        %v898 = vor.u32 %v895, %v896
        %v899 = vrot.slane %v895, 4
        %v901 = vshrl.u32 %v847, 16
        %v903 = vrot.slane %v901, 7
        %v904 = vshll.u32 %v847, 16
        %v906 = vor.u32 %v903, %v904
        %v907 = vsel %vm754, %v899, %v906
        %v908 = vrot.slane %v903, 4
        %v910 = vshrl.u32 %v848, 16
        %v912 = vrot.slane %v910, 7
        %v913 = vshll.u32 %v848, 16
        %v915 = vor.u32 %v912, %v913
        %v916 = vrot.slane %v912, 4
        %v918 = vshrl.u32 %v849, 16
        %v920 = vrot.slane %v918, 7
        %v921 = vshll.u32 %v849, 16
        %v923 = vor.u32 %v920, %v921
        %v924 = vsel %vm754, %v916, %v923
        %v925 = vrot.slane %v920, 4
        %v927 = vshrl.u32 %v850, 16
        %v929 = vrot.slane %v927, 7
        %v930 = vshll.u32 %v850, 16
        %v932 = vor.u32 %v929, %v930
        %v933 = vrot.slane %v929, 4
        %v935 = vshrl.u32 %v851, 16
        %v937 = vrot.slane %v935, 7
        %v938 = vshll.u32 %v851, 16
        %v940 = vor.u32 %v937, %v938
        %v941 = vsel %vm754, %v933, %v940
        %v942 = vrot.slane %v937, 4
        %v944 = vshrl.u32 %v852, 16
        %v946 = vrot.slane %v944, 7
        %v947 = vshll.u32 %v852, 16
        %v949 = vor.u32 %v946, %v947
        %v950 = vrot.slane %v946, 4
        %v952 = vshrl.u32 %v853, 16
        %v954 = vrot.slane %v952, 7
        %v955 = vshll.u32 %v853, 16
        %v957 = vor.u32 %v954, %v955
        %v958 = vsel %vm754, %v950, %v957
        %v959 = vrot.slane %v954, 4
        %v961 = vshrl.u32 %v854, 16
        %v963 = vrot.slane %v961, 7
        %v964 = vshll.u32 %v854, 16
        %v966 = vor.u32 %v963, %v964
        %v967 = vrot.slane %v963, 4
        %v969 = vshrl.u32 %v855, 16
        %v971 = vrot.slane %v969, 7
        %v972 = vshll.u32 %v855, 16
        %v974 = vor.u32 %v971, %v972
        %v975 = vsel %vm754, %v967, %v974
        %v976 = vrot.slane %v971, 4
        %v978 = vshrl.u32 %v856, 16
        %v980 = vrot.slane %v978, 7
        %v981 = vshll.u32 %v856, 16
        %v983 = vor.u32 %v980, %v981
        %v984 = vrot.slane %v980, 4
        %v986 = vshrl.u32 %v857, 16
        %v988 = vrot.slane %v986, 7
        %v989 = vshll.u32 %v857, 16
        %v991 = vor.u32 %v988, %v989
        %v992 = vsel %vm754, %v984, %v991
        %v993 = vrot.slane %v988, 4
        %s1018 = scalar_lea.vmem [#allocation2], 12
        %v1019 = vld [vmem:[%s1018] sm:$0xf]
        %v1020 = vsel %vm776, %v864, %v1019
        %1021 = vst [vmem:[%s1018] sm:$0xf] %v1020
        %1022 = vst.msk [vmem:[%s1018 + $0x4] sm:$0xf] %vm780, %v873
        %v1023 = vld [vmem:[%s1018 + $0x8] sm:$0x1]
        %v1024 = vsel %vm685, %v874, %v1023
        %1025 = vst [vmem:[%s1018 + $0x8] sm:$0x1] %v1024
        %v1026 = vld [vmem:[%s1018 + $0xc] sm:$0xf]
        %v1027 = vsel %vm776, %v881, %v1026
        %1028 = vst [vmem:[%s1018 + $0xc] sm:$0xf] %v1027
        %1029 = vst.msk [vmem:[%s1018 + $0x10] sm:$0xf] %vm780, %v890
        %v1030 = vld [vmem:[%s1018 + $0x14] sm:$0x1]
        %v1031 = vsel %vm685, %v891, %v1030
        %1032 = vst [vmem:[%s1018 + $0x14] sm:$0x1] %v1031
        %v1033 = vld [vmem:[%s1018 + $0x18] sm:$0xf]
        %v1034 = vsel %vm776, %v898, %v1033
        %1035 = vst [vmem:[%s1018 + $0x18] sm:$0xf] %v1034
        %1036 = vst.msk [vmem:[%s1018 + $0x1c] sm:$0xf] %vm780, %v907
        %v1037 = vld [vmem:[%s1018 + $0x20] sm:$0x1]
        %v1038 = vsel %vm685, %v908, %v1037
        %1039 = vst [vmem:[%s1018 + $0x20] sm:$0x1] %v1038
        %v1040 = vld [vmem:[%s1018 + $0x24] sm:$0xf]
        %v1041 = vsel %vm776, %v915, %v1040
        %1042 = vst [vmem:[%s1018 + $0x24] sm:$0xf] %v1041
        %1043 = vst.msk [vmem:[%s1018 + $0x28] sm:$0xf] %vm780, %v924
        %v1044 = vld [vmem:[%s1018 + $0x2c] sm:$0x1]
        %v1045 = vsel %vm685, %v925, %v1044
        %1046 = vst [vmem:[%s1018 + $0x2c] sm:$0x1] %v1045
        %v1047 = vld [vmem:[%s1018 + $0x30] sm:$0xf]
        %v1048 = vsel %vm776, %v932, %v1047
        %1049 = vst [vmem:[%s1018 + $0x30] sm:$0xf] %v1048
        %1050 = vst.msk [vmem:[%s1018 + $0x34] sm:$0xf] %vm780, %v941
        %v1051 = vld [vmem:[%s1018 + $0x38] sm:$0x1]
        %v1052 = vsel %vm685, %v942, %v1051
        %1053 = vst [vmem:[%s1018 + $0x38] sm:$0x1] %v1052
        %v1054 = vld [vmem:[%s1018 + $0x3c] sm:$0xf]
        %v1055 = vsel %vm776, %v949, %v1054
        %1056 = vst [vmem:[%s1018 + $0x3c] sm:$0xf] %v1055
        %1057 = vst.msk [vmem:[%s1018 + $0x40] sm:$0xf] %vm780, %v958
        %v1058 = vld [vmem:[%s1018 + $0x44] sm:$0x1]
        %v1059 = vsel %vm685, %v959, %v1058
        %1060 = vst [vmem:[%s1018 + $0x44] sm:$0x1] %v1059
        %v1061 = vld [vmem:[%s1018 + $0x48] sm:$0xf]
        %v1062 = vsel %vm776, %v966, %v1061
        %1063 = vst [vmem:[%s1018 + $0x48] sm:$0xf] %v1062
        %1064 = vst.msk [vmem:[%s1018 + $0x4c] sm:$0xf] %vm780, %v975
        %v1065 = vld [vmem:[%s1018 + $0x50] sm:$0x1]
        %v1066 = vsel %vm685, %v976, %v1065
        %1067 = vst [vmem:[%s1018 + $0x50] sm:$0x1] %v1066
        %v1068 = vld [vmem:[%s1018 + $0x54] sm:$0xf]
        %v1069 = vsel %vm776, %v983, %v1068
        %1070 = vst [vmem:[%s1018 + $0x54] sm:$0xf] %v1069
        %1071 = vst.msk [vmem:[%s1018 + $0x58] sm:$0xf] %vm780, %v992
        %v1072 = vld [vmem:[%s1018 + $0x5c] sm:$0x1]
        %v1073 = vsel %vm685, %v993, %v1072
        %1074 = vst [vmem:[%s1018 + $0x5c] sm:$0x1] %v1073
        %v1075 = vld [vmem:[#allocation2] sm:$0xf]
        %v1076 = vld [vmem:[#allocation2 + $0x4] sm:$0xf]
        %v1077 = vld [vmem:[#allocation2 + $0xc] sm:$0xf]
        %v1078 = vld [vmem:[#allocation2 + $0x10] sm:$0xf]
        %v1079 = vld [vmem:[#allocation2 + $0x18] sm:$0xf]
        %v1080 = vld [vmem:[#allocation2 + $0x1c] sm:$0xf]
        %v1081 = vld [vmem:[#allocation2 + $0x24] sm:$0xf]
        %v1082 = vld [vmem:[#allocation2 + $0x28] sm:$0xf]
        %v1083 = vld [vmem:[#allocation2 + $0x30] sm:$0xf]
        %v1084 = vld [vmem:[#allocation2 + $0x34] sm:$0xf]
        %v1085 = vld [vmem:[#allocation2 + $0x3c] sm:$0xf]
        %v1086 = vld [vmem:[#allocation2 + $0x40] sm:$0xf]
        %v1087 = vld [vmem:[#allocation2 + $0x48] sm:$0xf]
        %v1088 = vld [vmem:[#allocation2 + $0x4c] sm:$0xf]
        %v1089 = vld [vmem:[#allocation2 + $0x54] sm:$0xf]
        %v1090 = vld [vmem:[#allocation2 + $0x58] sm:$0xf]
        %v1091 = vld [vmem:[#allocation9] sm:$0xf]
        %v1092 = vld [vmem:[#allocation2 + $0x8] sm:$0x1]
        %v1093 = vld [vmem:[#allocation2 + $0x14] sm:$0x1]
        %v1094 = vld [vmem:[#allocation2 + $0x20] sm:$0x1]
        %v1095 = vld [vmem:[#allocation2 + $0x2c] sm:$0x1]
        %v1096 = vld [vmem:[#allocation2 + $0x38] sm:$0x1]
        %v1097 = vld [vmem:[#allocation2 + $0x44] sm:$0x1]
        %v1098 = vld [vmem:[#allocation2 + $0x50] sm:$0x1]
        %v1099 = vld [vmem:[#allocation2 + $0x5c] sm:$0x1]
        %vm1100 = vsmask.f32 3328
        %vm1101 = vsmask.f32 7440
        %vm1102 = vmor %vm1100, %vm1101
        %v1104 = vshrl.u32 %v1075, 16
        %v1106 = vrot.slane %v1104, 4
        %v1107 = vshll.u32 %v1075, 16
        %v1109 = vrot.slane %v1107, 5
        %v1110 = vor.u32 %v1106, %v1109
        %v1111 = vrot.slane %v1110, 4
        %v1113 = vshll.u32 %v1076, 16
        %v1115 = vrot.slane %v1113, 5
        %v1116 = vsel %vm1102, %v1111, %v1115
        %v1117 = vshrl.u32 %v1076, 16
        %v1119 = vrot.slane %v1117, 4
        %v1120 = vor.u32 %v1119, %v1115
        %v1121 = vrot.slane %v1120, 4
        %v1123 = vshll.u32 %v1092, 16
        %v1125 = vrot.slane %v1123, 5
        %v1126 = vsel %vm1102, %v1121, %v1125
        %v1128 = vshrl.u32 %v1077, 16
        %v1130 = vrot.slane %v1128, 4
        %v1131 = vshll.u32 %v1077, 16
        %v1133 = vrot.slane %v1131, 5
        %v1134 = vor.u32 %v1130, %v1133
        %v1135 = vrot.slane %v1134, 4
        %v1137 = vshll.u32 %v1078, 16
        %v1139 = vrot.slane %v1137, 5
        %v1140 = vsel %vm1102, %v1135, %v1139
        %v1141 = vshrl.u32 %v1078, 16
        %v1143 = vrot.slane %v1141, 4
        %v1144 = vor.u32 %v1143, %v1139
        %v1145 = vrot.slane %v1144, 4
        %v1147 = vshll.u32 %v1093, 16
        %v1149 = vrot.slane %v1147, 5
        %v1150 = vsel %vm1102, %v1145, %v1149
        %v1152 = vshrl.u32 %v1079, 16
        %v1154 = vrot.slane %v1152, 4
        %v1155 = vshll.u32 %v1079, 16
        %v1157 = vrot.slane %v1155, 5
        %v1158 = vor.u32 %v1154, %v1157
        %v1159 = vrot.slane %v1158, 4
        %v1161 = vshll.u32 %v1080, 16
        %v1163 = vrot.slane %v1161, 5
        %v1164 = vsel %vm1102, %v1159, %v1163
        %v1165 = vshrl.u32 %v1080, 16
        %v1167 = vrot.slane %v1165, 4
        %v1168 = vor.u32 %v1167, %v1163
        %v1169 = vrot.slane %v1168, 4
        %v1171 = vshll.u32 %v1094, 16
        %v1173 = vrot.slane %v1171, 5
        %v1174 = vsel %vm1102, %v1169, %v1173
        %v1176 = vshrl.u32 %v1081, 16
        %v1178 = vrot.slane %v1176, 4
        %v1179 = vshll.u32 %v1081, 16
        %v1181 = vrot.slane %v1179, 5
        %v1182 = vor.u32 %v1178, %v1181
        %v1183 = vrot.slane %v1182, 4
        %v1185 = vshll.u32 %v1082, 16
        %v1187 = vrot.slane %v1185, 5
        %v1188 = vsel %vm1102, %v1183, %v1187
        %v1189 = vshrl.u32 %v1082, 16
        %v1191 = vrot.slane %v1189, 4
        %v1192 = vor.u32 %v1191, %v1187
        %v1193 = vrot.slane %v1192, 4
        %v1195 = vshll.u32 %v1095, 16
        %v1197 = vrot.slane %v1195, 5
        %v1198 = vsel %vm1102, %v1193, %v1197
        %v1200 = vshrl.u32 %v1083, 16
        %v1202 = vrot.slane %v1200, 4
        %v1203 = vshll.u32 %v1083, 16
        %v1205 = vrot.slane %v1203, 5
        %v1206 = vor.u32 %v1202, %v1205
        %v1207 = vrot.slane %v1206, 4
        %v1209 = vshll.u32 %v1084, 16
        %v1211 = vrot.slane %v1209, 5
        %v1212 = vsel %vm1102, %v1207, %v1211
        %v1213 = vshrl.u32 %v1084, 16
        %v1215 = vrot.slane %v1213, 4
        %v1216 = vor.u32 %v1215, %v1211
        %v1217 = vrot.slane %v1216, 4
        %v1219 = vshll.u32 %v1096, 16
        %v1221 = vrot.slane %v1219, 5
        %v1222 = vsel %vm1102, %v1217, %v1221
        %v1224 = vshrl.u32 %v1085, 16
        %v1226 = vrot.slane %v1224, 4
        %v1227 = vshll.u32 %v1085, 16
        %v1229 = vrot.slane %v1227, 5
        %v1230 = vor.u32 %v1226, %v1229
        %v1231 = vrot.slane %v1230, 4
        %v1233 = vshll.u32 %v1086, 16
        %v1235 = vrot.slane %v1233, 5
        %v1236 = vsel %vm1102, %v1231, %v1235
        %v1237 = vshrl.u32 %v1086, 16
        %v1239 = vrot.slane %v1237, 4
        %v1240 = vor.u32 %v1239, %v1235
        %v1241 = vrot.slane %v1240, 4
        %v1243 = vshll.u32 %v1097, 16
        %v1245 = vrot.slane %v1243, 5
        %v1246 = vsel %vm1102, %v1241, %v1245
        %v1248 = vshrl.u32 %v1087, 16
        %v1250 = vrot.slane %v1248, 4
        %v1251 = vshll.u32 %v1087, 16
        %v1253 = vrot.slane %v1251, 5
        %v1254 = vor.u32 %v1250, %v1253
        %v1255 = vrot.slane %v1254, 4
        %v1257 = vshll.u32 %v1088, 16
        %v1259 = vrot.slane %v1257, 5
        %v1260 = vsel %vm1102, %v1255, %v1259
        %v1261 = vshrl.u32 %v1088, 16
        %v1263 = vrot.slane %v1261, 4
        %v1264 = vor.u32 %v1263, %v1259
        %v1265 = vrot.slane %v1264, 4
        %v1267 = vshll.u32 %v1098, 16
        %v1269 = vrot.slane %v1267, 5
        %v1270 = vsel %vm1102, %v1265, %v1269
        %v1272 = vshrl.u32 %v1089, 16
        %v1274 = vrot.slane %v1272, 4
        %v1275 = vshll.u32 %v1089, 16
        %v1277 = vrot.slane %v1275, 5
        %v1278 = vor.u32 %v1274, %v1277
        %v1279 = vrot.slane %v1278, 4
        %v1281 = vshll.u32 %v1090, 16
        %v1283 = vrot.slane %v1281, 5
        %v1284 = vsel %vm1102, %v1279, %v1283
        %v1285 = vshrl.u32 %v1090, 16
        %v1287 = vrot.slane %v1285, 4
        %v1288 = vor.u32 %v1287, %v1283
        %v1289 = vrot.slane %v1288, 4
        %v1291 = vshll.u32 %v1099, 16
        %v1293 = vrot.slane %v1291, 5
        %v1294 = vsel %vm1102, %v1289, %v1293
        %s1295 = scalar_lea.vmem [#allocation9], 4
        %v1296 = vld [vmem:[%s1295] sm:$0xf]
        %v1297 = vunpack.c.l.b16 %v1116
        %v1298 = vunpack.c.l.b16 %v1126
        %v1299 = vunpack.c.l.b16 %v1140
        %v1300 = vunpack.c.l.b16 %v1150
        %v1301 = vunpack.c.l.b16 %v1164
        %v1302 = vunpack.c.l.b16 %v1174
        %v1303 = vunpack.c.l.b16 %v1188
        %v1304 = vunpack.c.l.b16 %v1198
        %v1305 = vunpack.c.l.b16 %v1212
        %v1306 = vunpack.c.l.b16 %v1222
        %v1307 = vunpack.c.l.b16 %v1236
        %v1308 = vunpack.c.l.b16 %v1246
        %v1309 = vunpack.c.l.b16 %v1260
        %v1310 = vunpack.c.l.b16 %v1270
        %v1311 = vunpack.c.l.b16 %v1284
        %v1312 = vunpack.c.l.b16 %v1294
        %v1313 = vpack.c.b16 %v1298, %v1297
        %v1314 = vpack.c.b16 %v1300, %v1299
        %v1315 = vpack.c.b16 %v1302, %v1301
        %v1316 = vpack.c.b16 %v1304, %v1303
        %v1317 = vpack.c.b16 %v1306, %v1305
        %v1318 = vpack.c.b16 %v1308, %v1307
        %v1319 = vpack.c.b16 %v1310, %v1309
        %v1320 = vpack.c.b16 %v1312, %v1311
        %vm1321 = vcmask 64512
        %v1323 = vsel %vm1321, %v1313, 0
        %v1326 = vsel %vm1321, %v1314, 0
        %v1329 = vsel %vm1321, %v1315, 0
        %v1332 = vsel %vm1321, %v1316, 0
        %v1335 = vsel %vm1321, %v1317, 0
        %v1338 = vsel %vm1321, %v1318, 0
        %v1341 = vsel %vm1321, %v1319, 0
        %v1344 = vsel %vm1321, %v1320, 0
        %vm1346 = vcmask 1043456
        %v1348 = vsel %vm1346, %v1296, 0
        %1350 = vmatprep.subr.bf16.mxu0 0
        %1351 = vmatpush1.bf16.msra.mxu0 %v1348
        %1352 = vmatprep.subr.bf16.mxu0 0
        %1353 = vmatpush1.bf16.msra.mxu0 0
        %1354 = vmatprep.subr.bf16.mxu0 0
        %1355 = vmatpush1.bf16.msra.mxu0 0
        %1356 = vmatprep.subr.bf16.mxu0 0
        %1357 = vmatpush1.bf16.msra.mxu0 0
        %1358 = vmatprep.subr.bf16.mxu0 0
        %1359 = vmatpush1.bf16.msra.mxu0 0
        %1360 = vmatprep.subr.bf16.mxu0 0
        %1361 = vmatpush1.bf16.msra.mxu0 0
        %1362 = vmatprep.subr.bf16.mxu0 0
        %1363 = vmatpush1.bf16.msra.mxu0 0
        %1364 = vmatprep.subr.bf16.mxu0 0
        %1365 = vmatpush1.bf16.msra.mxu0 0
        %1366 = vmatprep.subr.bf16.mxu0 0
        %1367 = vmatpush1.bf16.msra.mxu0 0
        %1368 = vmatprep.subr.bf16.mxu0 0
        %1369 = vmatpush1.bf16.msra.mxu0 0
        %1370 = vmatprep.subr.bf16.mxu0 0
        %1371 = vmatpush1.bf16.msra.mxu0 0
        %1372 = vmatprep.subr.bf16.mxu0 0
        %1373 = vmatpush1.bf16.msra.mxu0 0
        %1374 = vmatprep.subr.bf16.mxu0 0
        %1375 = vmatpush1.bf16.msra.mxu0 0
        %1376 = vmatprep.subr.bf16.mxu0 0
        %1377 = vmatpush1.bf16.msra.mxu0 0
        %1378 = vmatprep.subr.bf16.mxu0 0
        %1379 = vmatpush1.bf16.msra.mxu0 0
        %1380 = vmatprep.subr.bf16.mxu0 0
        %1381 = vmatpush1.bf16.msra.mxu0 0
        %1382 = vmatprep.mubr.bf16.mxu0 0
        %1383 = vmatmul.mubr.bf16.gmra.mrb[0].mxu0 %v1323
        %v1384 = vpop.f32.mrb[0].mxu0
        %v1385 = vadd.f32 0.0, %v1384
        %v1386 = vpop.f32.mrb[0].mxu0
        %v1387 = vpop.f32.mrb[0].mxu0
        %v1388 = vadd.f32 0.0, %v1387
        %v1389 = vpop.f32.mrb[0].mxu0
        %1390 = vmatprep.mubr.bf16.mxu0 0
        %1391 = vmatmul.mubr.bf16.gmra.mrb[0].mxu0 %v1326
        %v1392 = vpop.f32.mrb[0].mxu0
        %v1393 = vadd.f32 0.0, %v1392
        %v1394 = vpop.f32.mrb[0].mxu0
        %v1395 = vpop.f32.mrb[0].mxu0
        %v1396 = vadd.f32 0.0, %v1395
        %v1397 = vpop.f32.mrb[0].mxu0
        %1398 = vmatprep.mubr.bf16.mxu0 0
        %1399 = vmatmul.mubr.bf16.gmra.mrb[0].mxu0 %v1329
        %v1400 = vpop.f32.mrb[0].mxu0
        %v1401 = vadd.f32 0.0, %v1400
        %v1402 = vpop.f32.mrb[0].mxu0
        %v1403 = vpop.f32.mrb[0].mxu0
        %v1404 = vadd.f32 0.0, %v1403
        %v1405 = vpop.f32.mrb[0].mxu0
        %1406 = vmatprep.mubr.bf16.mxu0 0
        %1407 = vmatmul.mubr.bf16.gmra.mrb[0].mxu0 %v1332
        %v1408 = vpop.f32.mrb[0].mxu0
        %v1409 = vadd.f32 0.0, %v1408
        %v1410 = vpop.f32.mrb[0].mxu0
        %v1411 = vpop.f32.mrb[0].mxu0
        %v1412 = vadd.f32 0.0, %v1411
        %v1413 = vpop.f32.mrb[0].mxu0
        %1414 = vmatprep.mubr.bf16.mxu0 0
        %1415 = vmatmul.mubr.bf16.gmra.mrb[0].mxu0 %v1335
        %v1416 = vpop.f32.mrb[0].mxu0
        %v1417 = vadd.f32 0.0, %v1416
        %v1418 = vpop.f32.mrb[0].mxu0
        %v1419 = vpop.f32.mrb[0].mxu0
        %v1420 = vadd.f32 0.0, %v1419
        %v1421 = vpop.f32.mrb[0].mxu0
        %1422 = vmatprep.mubr.bf16.mxu0 0
        %1423 = vmatmul.mubr.bf16.gmra.mrb[0].mxu0 %v1338
        %v1424 = vpop.f32.mrb[0].mxu0
        %v1425 = vadd.f32 0.0, %v1424
        %v1426 = vpop.f32.mrb[0].mxu0
        %v1427 = vpop.f32.mrb[0].mxu0
        %v1428 = vadd.f32 0.0, %v1427
        %v1429 = vpop.f32.mrb[0].mxu0
        %1430 = vmatprep.mubr.bf16.mxu0 0
        %1431 = vmatmul.mubr.bf16.gmra.mrb[0].mxu0 %v1341
        %v1432 = vpop.f32.mrb[0].mxu0
        %v1433 = vadd.f32 0.0, %v1432
        %v1434 = vpop.f32.mrb[0].mxu0
        %v1435 = vpop.f32.mrb[0].mxu0
        %v1436 = vadd.f32 0.0, %v1435
        %v1437 = vpop.f32.mrb[0].mxu0
        %1438 = vmatprep.mubr.bf16.mxu0 0
        %1439 = vmatmul.mubr.bf16.gmra.mrb[0].mxu0 %v1344
        %v1440 = vpop.f32.mrb[0].mxu0
        %v1441 = vadd.f32 0.0, %v1440
        %v1442 = vpop.f32.mrb[0].mxu0
        %v1443 = vpop.f32.mrb[0].mxu0
        %v1444 = vadd.f32 0.0, %v1443
        %v1445 = vpop.f32.mrb[0].mxu0
        %1446 = vdwg.mxu0
        %v1463 = vunpack.c.l.b16 %v1075
        %v1464 = vunpack.c.l.b16 %v1076
        %v1465 = vunpack.c.l.b16 %v1077
        %v1466 = vunpack.c.l.b16 %v1078
        %v1467 = vunpack.c.l.b16 %v1079
        %v1468 = vunpack.c.l.b16 %v1080
        %v1469 = vunpack.c.l.b16 %v1081
        %v1470 = vunpack.c.l.b16 %v1082
        %v1471 = vunpack.c.l.b16 %v1083
        %v1472 = vunpack.c.l.b16 %v1084
        %v1473 = vunpack.c.l.b16 %v1085
        %v1474 = vunpack.c.l.b16 %v1086
        %v1475 = vunpack.c.l.b16 %v1087
        %v1476 = vunpack.c.l.b16 %v1088
        %v1477 = vunpack.c.l.b16 %v1089
        %v1478 = vunpack.c.l.b16 %v1090
        %v1479 = vpack.c.b16 %v1464, %v1463
        %v1480 = vpack.c.b16 %v1466, %v1465
        %v1481 = vpack.c.b16 %v1468, %v1467
        %v1482 = vpack.c.b16 %v1470, %v1469
        %v1483 = vpack.c.b16 %v1472, %v1471
        %v1484 = vpack.c.b16 %v1474, %v1473
        %v1485 = vpack.c.b16 %v1476, %v1475
        %v1486 = vpack.c.b16 %v1478, %v1477
        %v1488 = vsel %vm1321, %v1479, 0
        %v1491 = vsel %vm1321, %v1480, 0
        %v1494 = vsel %vm1321, %v1481, 0
        %v1497 = vsel %vm1321, %v1482, 0
        %v1500 = vsel %vm1321, %v1483, 0
        %v1503 = vsel %vm1321, %v1484, 0
        %v1506 = vsel %vm1321, %v1485, 0
        %v1509 = vsel %vm1321, %v1486, 0
        %v1512 = vsel %vm1346, %v1091, 0
        %1514 = vmatprep.subr.bf16.mxu0 0
        %1515 = vmatpush1.bf16.msra.mxu0 %v1512
        %1516 = vmatprep.subr.bf16.mxu0 0
        %1517 = vmatpush1.bf16.msra.mxu0 0
        %1518 = vmatprep.subr.bf16.mxu0 0
        %1519 = vmatpush1.bf16.msra.mxu0 0
        %1520 = vmatprep.subr.bf16.mxu0 0
        %1521 = vmatpush1.bf16.msra.mxu0 0
        %1522 = vmatprep.subr.bf16.mxu0 0
        %1523 = vmatpush1.bf16.msra.mxu0 0
        %1524 = vmatprep.subr.bf16.mxu0 0
        %1525 = vmatpush1.bf16.msra.mxu0 0
        %1526 = vmatprep.subr.bf16.mxu0 0
        %1527 = vmatpush1.bf16.msra.mxu0 0
        %1528 = vmatprep.subr.bf16.mxu0 0
        %1529 = vmatpush1.bf16.msra.mxu0 0
        %1530 = vmatprep.subr.bf16.mxu0 0
        %1531 = vmatpush1.bf16.msra.mxu0 0
        %1532 = vmatprep.subr.bf16.mxu0 0
        %1533 = vmatpush1.bf16.msra.mxu0 0
        %1534 = vmatprep.subr.bf16.mxu0 0
        %1535 = vmatpush1.bf16.msra.mxu0 0
        %1536 = vmatprep.subr.bf16.mxu0 0
        %1537 = vmatpush1.bf16.msra.mxu0 0
        %1538 = vmatprep.subr.bf16.mxu0 0
        %1539 = vmatpush1.bf16.msra.mxu0 0
        %1540 = vmatprep.subr.bf16.mxu0 0
        %1541 = vmatpush1.bf16.msra.mxu0 0
        %1542 = vmatprep.subr.bf16.mxu0 0
        %1543 = vmatpush1.bf16.msra.mxu0 0
        %1544 = vmatprep.subr.bf16.mxu0 0
        %1545 = vmatpush1.bf16.msra.mxu0 0
        %1546 = vmatprep.mubr.bf16.mxu0 0
        %1547 = vmatmul.mubr.bf16.gmra.mrb[0].mxu0 %v1488
        %v1548 = vpop.f32.mrb[0].mxu0
        %v1549 = vadd.f32 %v1385, %v1548
        %v1550 = vpop.f32.mrb[0].mxu0
        %v1551 = vpop.f32.mrb[0].mxu0
        %v1552 = vadd.f32 %v1388, %v1551
        %v1553 = vpop.f32.mrb[0].mxu0
        %1554 = vmatprep.mubr.bf16.mxu0 0
        %1555 = vmatmul.mubr.bf16.gmra.mrb[0].mxu0 %v1491
        %v1556 = vpop.f32.mrb[0].mxu0
        %v1557 = vadd.f32 %v1393, %v1556
        %v1558 = vpop.f32.mrb[0].mxu0
        %v1559 = vpop.f32.mrb[0].mxu0
        %v1560 = vadd.f32 %v1396, %v1559
        %v1561 = vpop.f32.mrb[0].mxu0
        %1562 = vmatprep.mubr.bf16.mxu0 0
        %1563 = vmatmul.mubr.bf16.gmra.mrb[0].mxu0 %v1494
        %v1564 = vpop.f32.mrb[0].mxu0
        %v1565 = vadd.f32 %v1401, %v1564
        %v1566 = vpop.f32.mrb[0].mxu0
        %v1567 = vpop.f32.mrb[0].mxu0
        %v1568 = vadd.f32 %v1404, %v1567
        %v1569 = vpop.f32.mrb[0].mxu0
        %1570 = vmatprep.mubr.bf16.mxu0 0
        %1571 = vmatmul.mubr.bf16.gmra.mrb[0].mxu0 %v1497
        %v1572 = vpop.f32.mrb[0].mxu0
        %v1573 = vadd.f32 %v1409, %v1572
        %v1574 = vpop.f32.mrb[0].mxu0
        %v1575 = vpop.f32.mrb[0].mxu0
        %v1576 = vadd.f32 %v1412, %v1575
        %v1577 = vpop.f32.mrb[0].mxu0
        %1578 = vmatprep.mubr.bf16.mxu0 0
        %1579 = vmatmul.mubr.bf16.gmra.mrb[0].mxu0 %v1500
        %v1580 = vpop.f32.mrb[0].mxu0
        %v1581 = vadd.f32 %v1417, %v1580
        %v1582 = vpop.f32.mrb[0].mxu0
        %v1583 = vpop.f32.mrb[0].mxu0
        %v1584 = vadd.f32 %v1420, %v1583
        %v1585 = vpop.f32.mrb[0].mxu0
        %1586 = vmatprep.mubr.bf16.mxu0 0
        %1587 = vmatmul.mubr.bf16.gmra.mrb[0].mxu0 %v1503
        %v1588 = vpop.f32.mrb[0].mxu0
        %v1589 = vadd.f32 %v1425, %v1588
        %v1590 = vpop.f32.mrb[0].mxu0
        %v1591 = vpop.f32.mrb[0].mxu0
        %v1592 = vadd.f32 %v1428, %v1591
        %v1593 = vpop.f32.mrb[0].mxu0
        %1594 = vmatprep.mubr.bf16.mxu0 0
        %1595 = vmatmul.mubr.bf16.gmra.mrb[0].mxu0 %v1506
        %v1596 = vpop.f32.mrb[0].mxu0
        %v1597 = vadd.f32 %v1433, %v1596
        %v1598 = vpop.f32.mrb[0].mxu0
        %v1599 = vpop.f32.mrb[0].mxu0
        %v1600 = vadd.f32 %v1436, %v1599
        %v1601 = vpop.f32.mrb[0].mxu0
        %1602 = vmatprep.mubr.bf16.mxu0 0
        %1603 = vmatmul.mubr.bf16.gmra.mrb[0].mxu0 %v1509
        %v1604 = vpop.f32.mrb[0].mxu0
        %v1605 = vadd.f32 %v1441, %v1604
        %v1606 = vpop.f32.mrb[0].mxu0
        %v1607 = vpop.f32.mrb[0].mxu0
        %v1608 = vadd.f32 %v1444, %v1607
        %v1609 = vpop.f32.mrb[0].mxu0
        %1610 = vdwg.mxu0
        %v1611 = vld [vmem:[#allocation2] sm:$0xe]
        %v1612 = vld [vmem:[#allocation2 + $0xc] sm:$0xe]
        %v1613 = vld [vmem:[#allocation2 + $0x18] sm:$0xe]
        %v1614 = vld [vmem:[#allocation2 + $0x24] sm:$0xe]
        %v1615 = vld [vmem:[#allocation2 + $0x30] sm:$0xe]
        %v1616 = vld [vmem:[#allocation2 + $0x3c] sm:$0xe]
        %v1617 = vld [vmem:[#allocation2 + $0x48] sm:$0xe]
        %v1618 = vld [vmem:[#allocation2 + $0x54] sm:$0xe]
        %vm1635 = vcmask 1042432
        %vm1636 = vcmask 1046532
        %vm1637 = vmor %vm1635, %vm1636
        %v1638 = vrot.slane %v1611, 5
        %v1639 = vrot.slane %v1638, 4
        %v1640 = vrot.slane %v1076, 5
        %v1641 = vsel %vm1637, %v1639, %v1640
        %v1642 = vrot.slane %v1640, 4
        %v1643 = vrot.slane %v1092, 5
        %v1644 = vsel %vm1637, %v1642, %v1643
        %v1645 = vrot.slane %v1612, 5
        %v1646 = vrot.slane %v1645, 4
        %v1647 = vrot.slane %v1078, 5
        %v1648 = vsel %vm1637, %v1646, %v1647
        %v1649 = vrot.slane %v1647, 4
        %v1650 = vrot.slane %v1093, 5
        %v1651 = vsel %vm1637, %v1649, %v1650
        %v1652 = vrot.slane %v1613, 5
        %v1653 = vrot.slane %v1652, 4
        %v1654 = vrot.slane %v1080, 5
        %v1655 = vsel %vm1637, %v1653, %v1654
        %v1656 = vrot.slane %v1654, 4
        %v1657 = vrot.slane %v1094, 5
        %v1658 = vsel %vm1637, %v1656, %v1657
        %v1659 = vrot.slane %v1614, 5
        %v1660 = vrot.slane %v1659, 4
        %v1661 = vrot.slane %v1082, 5
        %v1662 = vsel %vm1637, %v1660, %v1661
        %v1663 = vrot.slane %v1661, 4
        %v1664 = vrot.slane %v1095, 5
        %v1665 = vsel %vm1637, %v1663, %v1664
        %v1666 = vrot.slane %v1615, 5
        %v1667 = vrot.slane %v1666, 4
        %v1668 = vrot.slane %v1084, 5
        %v1669 = vsel %vm1637, %v1667, %v1668
        %v1670 = vrot.slane %v1668, 4
        %v1671 = vrot.slane %v1096, 5
        %v1672 = vsel %vm1637, %v1670, %v1671
        %v1673 = vrot.slane %v1616, 5
        %v1674 = vrot.slane %v1673, 4
        %v1675 = vrot.slane %v1086, 5
        %v1676 = vsel %vm1637, %v1674, %v1675
        %v1677 = vrot.slane %v1675, 4
        %v1678 = vrot.slane %v1097, 5
        %v1679 = vsel %vm1637, %v1677, %v1678
        %v1680 = vrot.slane %v1617, 5
        %v1681 = vrot.slane %v1680, 4
        %v1682 = vrot.slane %v1088, 5
        %v1683 = vsel %vm1637, %v1681, %v1682
        %v1684 = vrot.slane %v1682, 4
        %v1685 = vrot.slane %v1098, 5
        %v1686 = vsel %vm1637, %v1684, %v1685
        %v1687 = vrot.slane %v1618, 5
        %v1688 = vrot.slane %v1687, 4
        %v1689 = vrot.slane %v1090, 5
        %v1690 = vsel %vm1637, %v1688, %v1689
        %v1691 = vrot.slane %v1689, 4
        %v1692 = vrot.slane %v1099, 5
        %v1693 = vsel %vm1637, %v1691, %v1692
        %s1694 = scalar_lea.vmem [#allocation9], 8
        %v1695 = vld [vmem:[%s1694] sm:$0xf]
        %v1696 = vunpack.c.l.b16 %v1641
        %v1697 = vunpack.c.l.b16 %v1644
        %v1698 = vunpack.c.l.b16 %v1648
        %v1699 = vunpack.c.l.b16 %v1651
        %v1700 = vunpack.c.l.b16 %v1655
        %v1701 = vunpack.c.l.b16 %v1658
        %v1702 = vunpack.c.l.b16 %v1662
        %v1703 = vunpack.c.l.b16 %v1665
        %v1704 = vunpack.c.l.b16 %v1669
        %v1705 = vunpack.c.l.b16 %v1672
        %v1706 = vunpack.c.l.b16 %v1676
        %v1707 = vunpack.c.l.b16 %v1679
        %v1708 = vunpack.c.l.b16 %v1683
        %v1709 = vunpack.c.l.b16 %v1686
        %v1710 = vunpack.c.l.b16 %v1690
        %v1711 = vunpack.c.l.b16 %v1693
        %v1712 = vpack.c.b16 %v1697, %v1696
        %v1713 = vpack.c.b16 %v1699, %v1698
        %v1714 = vpack.c.b16 %v1701, %v1700
        %v1715 = vpack.c.b16 %v1703, %v1702
        %v1716 = vpack.c.b16 %v1705, %v1704
        %v1717 = vpack.c.b16 %v1707, %v1706
        %v1718 = vpack.c.b16 %v1709, %v1708
        %v1719 = vpack.c.b16 %v1711, %v1710
        %v1721 = vsel %vm1321, %v1712, 0
        %v1724 = vsel %vm1321, %v1713, 0
        %v1727 = vsel %vm1321, %v1714, 0
        %v1730 = vsel %vm1321, %v1715, 0
        %v1733 = vsel %vm1321, %v1716, 0
        %v1736 = vsel %vm1321, %v1717, 0
        %v1739 = vsel %vm1321, %v1718, 0
        %v1742 = vsel %vm1321, %v1719, 0
        %v1745 = vsel %vm1346, %v1695, 0
        %1747 = vmatprep.subr.bf16.mxu0 0
        %1748 = vmatpush1.bf16.msra.mxu0 %v1745
        %1749 = vmatprep.subr.bf16.mxu0 0
        %1750 = vmatpush1.bf16.msra.mxu0 0
        %1751 = vmatprep.subr.bf16.mxu0 0
        %1752 = vmatpush1.bf16.msra.mxu0 0
        %1753 = vmatprep.subr.bf16.mxu0 0
        %1754 = vmatpush1.bf16.msra.mxu0 0
        %1755 = vmatprep.subr.bf16.mxu0 0
        %1756 = vmatpush1.bf16.msra.mxu0 0
        %1757 = vmatprep.subr.bf16.mxu0 0
        %1758 = vmatpush1.bf16.msra.mxu0 0
        %1759 = vmatprep.subr.bf16.mxu0 0
        %1760 = vmatpush1.bf16.msra.mxu0 0
        %1761 = vmatprep.subr.bf16.mxu0 0
        %1762 = vmatpush1.bf16.msra.mxu0 0
        %1763 = vmatprep.subr.bf16.mxu0 0
        %1764 = vmatpush1.bf16.msra.mxu0 0
        %1765 = vmatprep.subr.bf16.mxu0 0
        %1766 = vmatpush1.bf16.msra.mxu0 0
        %1767 = vmatprep.subr.bf16.mxu0 0
        %1768 = vmatpush1.bf16.msra.mxu0 0
        %1769 = vmatprep.subr.bf16.mxu0 0
        %1770 = vmatpush1.bf16.msra.mxu0 0
        %1771 = vmatprep.subr.bf16.mxu0 0
        %1772 = vmatpush1.bf16.msra.mxu0 0
        %1773 = vmatprep.subr.bf16.mxu0 0
        %1774 = vmatpush1.bf16.msra.mxu0 0
        %1775 = vmatprep.subr.bf16.mxu0 0
        %1776 = vmatpush1.bf16.msra.mxu0 0
        %1777 = vmatprep.subr.bf16.mxu0 0
        %1778 = vmatpush1.bf16.msra.mxu0 0
        %1779 = vmatprep.mubr.bf16.mxu0 0
        %1780 = vmatmul.mubr.bf16.gmra.mrb[0].mxu0 %v1721
        %v1781 = vpop.f32.mrb[0].mxu0
        %v1782 = vadd.f32 0.0, %v1781
        %v1783 = vpop.f32.mrb[0].mxu0
        %v1784 = vpop.f32.mrb[0].mxu0
        %v1785 = vadd.f32 0.0, %v1784
        %v1786 = vpop.f32.mrb[0].mxu0
        %1787 = vmatprep.mubr.bf16.mxu0 0
        %1788 = vmatmul.mubr.bf16.gmra.mrb[0].mxu0 %v1724
        %v1789 = vpop.f32.mrb[0].mxu0
        %v1790 = vadd.f32 0.0, %v1789
        %v1791 = vpop.f32.mrb[0].mxu0
        %v1792 = vpop.f32.mrb[0].mxu0
        %v1793 = vadd.f32 0.0, %v1792
        %v1794 = vpop.f32.mrb[0].mxu0
        %1795 = vmatprep.mubr.bf16.mxu0 0
        %1796 = vmatmul.mubr.bf16.gmra.mrb[0].mxu0 %v1727
        %v1797 = vpop.f32.mrb[0].mxu0
        %v1798 = vadd.f32 0.0, %v1797
        %v1799 = vpop.f32.mrb[0].mxu0
        %v1800 = vpop.f32.mrb[0].mxu0
        %v1801 = vadd.f32 0.0, %v1800
        %v1802 = vpop.f32.mrb[0].mxu0
        %1803 = vmatprep.mubr.bf16.mxu0 0
        %1804 = vmatmul.mubr.bf16.gmra.mrb[0].mxu0 %v1730
        %v1805 = vpop.f32.mrb[0].mxu0
        %v1806 = vadd.f32 0.0, %v1805
        %v1807 = vpop.f32.mrb[0].mxu0
        %v1808 = vpop.f32.mrb[0].mxu0
        %v1809 = vadd.f32 0.0, %v1808
        %v1810 = vpop.f32.mrb[0].mxu0
        %1811 = vmatprep.mubr.bf16.mxu0 0
        %1812 = vmatmul.mubr.bf16.gmra.mrb[0].mxu0 %v1733
        %v1813 = vpop.f32.mrb[0].mxu0
        %v1814 = vadd.f32 0.0, %v1813
        %v1815 = vpop.f32.mrb[0].mxu0
        %v1816 = vpop.f32.mrb[0].mxu0
        %v1817 = vadd.f32 0.0, %v1816
        %v1818 = vpop.f32.mrb[0].mxu0
        %1819 = vmatprep.mubr.bf16.mxu0 0
        %1820 = vmatmul.mubr.bf16.gmra.mrb[0].mxu0 %v1736
        %v1821 = vpop.f32.mrb[0].mxu0
        %v1822 = vadd.f32 0.0, %v1821
        %v1823 = vpop.f32.mrb[0].mxu0
        %v1824 = vpop.f32.mrb[0].mxu0
        %v1825 = vadd.f32 0.0, %v1824
        %v1826 = vpop.f32.mrb[0].mxu0
        %1827 = vmatprep.mubr.bf16.mxu0 0
        %1828 = vmatmul.mubr.bf16.gmra.mrb[0].mxu0 %v1739
        %v1829 = vpop.f32.mrb[0].mxu0
        %v1830 = vadd.f32 0.0, %v1829
        %v1831 = vpop.f32.mrb[0].mxu0
        %v1832 = vpop.f32.mrb[0].mxu0
        %v1833 = vadd.f32 0.0, %v1832
        %v1834 = vpop.f32.mrb[0].mxu0
        %1835 = vmatprep.mubr.bf16.mxu0 0
        %1836 = vmatmul.mubr.bf16.gmra.mrb[0].mxu0 %v1742
        %v1837 = vpop.f32.mrb[0].mxu0
        %v1838 = vadd.f32 0.0, %v1837
        %v1839 = vpop.f32.mrb[0].mxu0
        %v1840 = vpop.f32.mrb[0].mxu0
        %v1841 = vadd.f32 0.0, %v1840
        %v1842 = vpop.f32.mrb[0].mxu0
        %1843 = vdwg.mxu0
        %v1844 = vadd.f32 %v1549, %v1782
        %v1845 = vadd.f32 %v1552, %v1785
        %v1846 = vadd.f32 %v1557, %v1790
        %v1847 = vadd.f32 %v1560, %v1793
        %v1848 = vadd.f32 %v1565, %v1798
        %v1849 = vadd.f32 %v1568, %v1801
        %v1850 = vadd.f32 %v1573, %v1806
        %v1851 = vadd.f32 %v1576, %v1809
        %v1852 = vadd.f32 %v1581, %v1814
        %v1853 = vadd.f32 %v1584, %v1817
        %v1854 = vadd.f32 %v1589, %v1822
        %v1855 = vadd.f32 %v1592, %v1825
        %v1856 = vadd.f32 %v1597, %v1830
        %v1857 = vadd.f32 %v1600, %v1833
        %v1858 = vadd.f32 %v1605, %v1838
        %v1859 = vadd.f32 %v1608, %v1841
        %v1860 = vld [vmem:[%s1018] sm:$0xf]
        %v1861 = vld [vmem:[%s1018 + $0x4] sm:$0xf]
        %v1862 = vld [vmem:[%s1018 + $0xc] sm:$0xf]
        %v1863 = vld [vmem:[%s1018 + $0x10] sm:$0xf]
        %v1864 = vld [vmem:[%s1018 + $0x18] sm:$0xf]
        %v1865 = vld [vmem:[%s1018 + $0x1c] sm:$0xf]
        %v1866 = vld [vmem:[%s1018 + $0x24] sm:$0xf]
        %v1867 = vld [vmem:[%s1018 + $0x28] sm:$0xf]
        %v1868 = vld [vmem:[%s1018 + $0x30] sm:$0xf]
        %v1869 = vld [vmem:[%s1018 + $0x34] sm:$0xf]
        %v1870 = vld [vmem:[%s1018 + $0x3c] sm:$0xf]
        %v1871 = vld [vmem:[%s1018 + $0x40] sm:$0xf]
        %v1872 = vld [vmem:[%s1018 + $0x48] sm:$0xf]
        %v1873 = vld [vmem:[%s1018 + $0x4c] sm:$0xf]
        %v1874 = vld [vmem:[%s1018 + $0x54] sm:$0xf]
        %v1875 = vld [vmem:[%s1018 + $0x58] sm:$0xf]
        %s1876 = scalar_lea.vmem [#allocation9], 12
        %v1877 = vld [vmem:[%s1876] sm:$0xf]
        %v1894 = vunpack.c.l.b16 %v1860
        %v1895 = vunpack.c.l.b16 %v1861
        %v1896 = vunpack.c.l.b16 %v1862
        %v1897 = vunpack.c.l.b16 %v1863
        %v1898 = vunpack.c.l.b16 %v1864
        %v1899 = vunpack.c.l.b16 %v1865
        %v1900 = vunpack.c.l.b16 %v1866
        %v1901 = vunpack.c.l.b16 %v1867
        %v1902 = vunpack.c.l.b16 %v1868
        %v1903 = vunpack.c.l.b16 %v1869
        %v1904 = vunpack.c.l.b16 %v1870
        %v1905 = vunpack.c.l.b16 %v1871
        %v1906 = vunpack.c.l.b16 %v1872
        %v1907 = vunpack.c.l.b16 %v1873
        %v1908 = vunpack.c.l.b16 %v1874
        %v1909 = vunpack.c.l.b16 %v1875
        %v1910 = vpack.c.b16 %v1895, %v1894
        %v1911 = vpack.c.b16 %v1897, %v1896
        %v1912 = vpack.c.b16 %v1899, %v1898
        %v1913 = vpack.c.b16 %v1901, %v1900
        %v1914 = vpack.c.b16 %v1903, %v1902
        %v1915 = vpack.c.b16 %v1905, %v1904
        %v1916 = vpack.c.b16 %v1907, %v1906
        %v1917 = vpack.c.b16 %v1909, %v1908
        %v1919 = vsel %vm1321, %v1910, 0
        %v1922 = vsel %vm1321, %v1911, 0
        %v1925 = vsel %vm1321, %v1912, 0
        %v1928 = vsel %vm1321, %v1913, 0
        %v1931 = vsel %vm1321, %v1914, 0
        %v1934 = vsel %vm1321, %v1915, 0
        %v1937 = vsel %vm1321, %v1916, 0
        %v1940 = vsel %vm1321, %v1917, 0
        %v1943 = vsel %vm1346, %v1877, 0
        %1945 = vmatprep.subr.bf16.mxu0 0
        %1946 = vmatpush1.bf16.msra.mxu0 %v1943
        %1947 = vmatprep.subr.bf16.mxu0 0
        %1948 = vmatpush1.bf16.msra.mxu0 0
        %1949 = vmatprep.subr.bf16.mxu0 0
        %1950 = vmatpush1.bf16.msra.mxu0 0
        %1951 = vmatprep.subr.bf16.mxu0 0
        %1952 = vmatpush1.bf16.msra.mxu0 0
        %1953 = vmatprep.subr.bf16.mxu0 0
        %1954 = vmatpush1.bf16.msra.mxu0 0
        %1955 = vmatprep.subr.bf16.mxu0 0
        %1956 = vmatpush1.bf16.msra.mxu0 0
        %1957 = vmatprep.subr.bf16.mxu0 0
        %1958 = vmatpush1.bf16.msra.mxu0 0
        %1959 = vmatprep.subr.bf16.mxu0 0
        %1960 = vmatpush1.bf16.msra.mxu0 0
        %1961 = vmatprep.subr.bf16.mxu0 0
        %1962 = vmatpush1.bf16.msra.mxu0 0
        %1963 = vmatprep.subr.bf16.mxu0 0
        %1964 = vmatpush1.bf16.msra.mxu0 0
        %1965 = vmatprep.subr.bf16.mxu0 0
        %1966 = vmatpush1.bf16.msra.mxu0 0
        %1967 = vmatprep.subr.bf16.mxu0 0
        %1968 = vmatpush1.bf16.msra.mxu0 0
        %1969 = vmatprep.subr.bf16.mxu0 0
        %1970 = vmatpush1.bf16.msra.mxu0 0
        %1971 = vmatprep.subr.bf16.mxu0 0
        %1972 = vmatpush1.bf16.msra.mxu0 0
        %1973 = vmatprep.subr.bf16.mxu0 0
        %1974 = vmatpush1.bf16.msra.mxu0 0
        %1975 = vmatprep.subr.bf16.mxu0 0
        %1976 = vmatpush1.bf16.msra.mxu0 0
        %1977 = vmatprep.mubr.bf16.mxu0 0
        %1978 = vmatmul.mubr.bf16.gmra.mrb[0].mxu0 %v1919
        %v1979 = vpop.f32.mrb[0].mxu0
        %v1980 = vadd.f32 0.0, %v1979
        %v1981 = vpop.f32.mrb[0].mxu0
        %v1982 = vpop.f32.mrb[0].mxu0
        %v1983 = vadd.f32 0.0, %v1982
        %v1984 = vpop.f32.mrb[0].mxu0
        %1985 = vmatprep.mubr.bf16.mxu0 0
        %1986 = vmatmul.mubr.bf16.gmra.mrb[0].mxu0 %v1922
        %v1987 = vpop.f32.mrb[0].mxu0
        %v1988 = vadd.f32 0.0, %v1987
        %v1989 = vpop.f32.mrb[0].mxu0
        %v1990 = vpop.f32.mrb[0].mxu0
        %v1991 = vadd.f32 0.0, %v1990
        %v1992 = vpop.f32.mrb[0].mxu0
        %1993 = vmatprep.mubr.bf16.mxu0 0
        %1994 = vmatmul.mubr.bf16.gmra.mrb[0].mxu0 %v1925
        %v1995 = vpop.f32.mrb[0].mxu0
        %v1996 = vadd.f32 0.0, %v1995
        %v1997 = vpop.f32.mrb[0].mxu0
        %v1998 = vpop.f32.mrb[0].mxu0
        %v1999 = vadd.f32 0.0, %v1998
        %v2000 = vpop.f32.mrb[0].mxu0
        %2001 = vmatprep.mubr.bf16.mxu0 0
        %2002 = vmatmul.mubr.bf16.gmra.mrb[0].mxu0 %v1928
        %v2003 = vpop.f32.mrb[0].mxu0
        %v2004 = vadd.f32 0.0, %v2003
        %v2005 = vpop.f32.mrb[0].mxu0
        %v2006 = vpop.f32.mrb[0].mxu0
        %v2007 = vadd.f32 0.0, %v2006
        %v2008 = vpop.f32.mrb[0].mxu0
        %2009 = vmatprep.mubr.bf16.mxu0 0
        %2010 = vmatmul.mubr.bf16.gmra.mrb[0].mxu0 %v1931
        %v2011 = vpop.f32.mrb[0].mxu0
        %v2012 = vadd.f32 0.0, %v2011
        %v2013 = vpop.f32.mrb[0].mxu0
        %v2014 = vpop.f32.mrb[0].mxu0
        %v2015 = vadd.f32 0.0, %v2014
        %v2016 = vpop.f32.mrb[0].mxu0
        %2017 = vmatprep.mubr.bf16.mxu0 0
        %2018 = vmatmul.mubr.bf16.gmra.mrb[0].mxu0 %v1934
        %v2019 = vpop.f32.mrb[0].mxu0
        %v2020 = vadd.f32 0.0, %v2019
        %v2021 = vpop.f32.mrb[0].mxu0
        %v2022 = vpop.f32.mrb[0].mxu0
        %v2023 = vadd.f32 0.0, %v2022
        %v2024 = vpop.f32.mrb[0].mxu0
        %2025 = vmatprep.mubr.bf16.mxu0 0
        %2026 = vmatmul.mubr.bf16.gmra.mrb[0].mxu0 %v1937
        %v2027 = vpop.f32.mrb[0].mxu0
        %v2028 = vadd.f32 0.0, %v2027
        %v2029 = vpop.f32.mrb[0].mxu0
        %v2030 = vpop.f32.mrb[0].mxu0
        %v2031 = vadd.f32 0.0, %v2030
        %v2032 = vpop.f32.mrb[0].mxu0
        %2033 = vmatprep.mubr.bf16.mxu0 0
        %2034 = vmatmul.mubr.bf16.gmra.mrb[0].mxu0 %v1940
        %v2035 = vpop.f32.mrb[0].mxu0
        %v2036 = vadd.f32 0.0, %v2035
        %v2037 = vpop.f32.mrb[0].mxu0
        %v2038 = vpop.f32.mrb[0].mxu0
        %v2039 = vadd.f32 0.0, %v2038
        %v2040 = vpop.f32.mrb[0].mxu0
        %2041 = vdwg.mxu0
        %v2042 = vadd.f32 %v1844, %v1980
        %v2043 = vadd.f32 %v1845, %v1983
        %v2044 = vadd.f32 %v1846, %v1988
        %v2045 = vadd.f32 %v1847, %v1991
        %v2046 = vadd.f32 %v1848, %v1996
        %v2047 = vadd.f32 %v1849, %v1999
        %v2048 = vadd.f32 %v1850, %v2004
        %v2049 = vadd.f32 %v1851, %v2007
        %v2050 = vadd.f32 %v1852, %v2012
        %v2051 = vadd.f32 %v1853, %v2015
        %v2052 = vadd.f32 %v1854, %v2020
        %v2053 = vadd.f32 %v1855, %v2023
        %v2054 = vadd.f32 %v1856, %v2028
        %v2055 = vadd.f32 %v1857, %v2031
        %v2056 = vadd.f32 %v1858, %v2036
        %v2057 = vadd.f32 %v1859, %v2039
        %v2058 = vld [vmem:[%s1018] sm:$0xf]
        %v2059 = vld [vmem:[%s1018 + $0x4] sm:$0xf]
        %v2060 = vld [vmem:[%s1018 + $0x8] sm:$0x1]
        %v2061 = vld [vmem:[%s1018 + $0xc] sm:$0xf]
        %v2062 = vld [vmem:[%s1018 + $0x10] sm:$0xf]
        %v2063 = vld [vmem:[%s1018 + $0x14] sm:$0x1]
        %v2064 = vld [vmem:[%s1018 + $0x18] sm:$0xf]
        %v2065 = vld [vmem:[%s1018 + $0x1c] sm:$0xf]
        %v2066 = vld [vmem:[%s1018 + $0x20] sm:$0x1]
        %v2067 = vld [vmem:[%s1018 + $0x24] sm:$0xf]
        %v2068 = vld [vmem:[%s1018 + $0x28] sm:$0xf]
        %v2069 = vld [vmem:[%s1018 + $0x2c] sm:$0x1]
        %v2070 = vld [vmem:[%s1018 + $0x30] sm:$0xf]
        %v2071 = vld [vmem:[%s1018 + $0x34] sm:$0xf]
        %v2072 = vld [vmem:[%s1018 + $0x38] sm:$0x1]
        %v2073 = vld [vmem:[%s1018 + $0x3c] sm:$0xf]
        %v2074 = vld [vmem:[%s1018 + $0x40] sm:$0xf]
        %v2075 = vld [vmem:[%s1018 + $0x44] sm:$0x1]
        %v2076 = vld [vmem:[%s1018 + $0x48] sm:$0xf]
        %v2077 = vld [vmem:[%s1018 + $0x4c] sm:$0xf]
        %v2078 = vld [vmem:[%s1018 + $0x50] sm:$0x1]
        %v2079 = vld [vmem:[%s1018 + $0x54] sm:$0xf]
        %v2080 = vld [vmem:[%s1018 + $0x58] sm:$0xf]
        %v2081 = vld [vmem:[%s1018 + $0x5c] sm:$0x1]
        %v2083 = vshrl.u32 %v2058, 16
        %v2085 = vrot.slane %v2083, 4
        %v2086 = vshll.u32 %v2058, 16
        %v2088 = vrot.slane %v2086, 5
        %v2089 = vor.u32 %v2085, %v2088
        %v2090 = vrot.slane %v2089, 4
        %v2092 = vshll.u32 %v2059, 16
        %v2094 = vrot.slane %v2092, 5
        %v2095 = vsel %vm1102, %v2090, %v2094
        %v2096 = vshrl.u32 %v2059, 16
        %v2098 = vrot.slane %v2096, 4
        %v2099 = vor.u32 %v2098, %v2094
        %v2100 = vrot.slane %v2099, 4
        %v2102 = vshll.u32 %v2060, 16
        %v2104 = vrot.slane %v2102, 5
        %v2105 = vsel %vm1102, %v2100, %v2104
        %v2107 = vshrl.u32 %v2061, 16
        %v2109 = vrot.slane %v2107, 4
        %v2110 = vshll.u32 %v2061, 16
        %v2112 = vrot.slane %v2110, 5
        %v2113 = vor.u32 %v2109, %v2112
        %v2114 = vrot.slane %v2113, 4
        %v2116 = vshll.u32 %v2062, 16
        %v2118 = vrot.slane %v2116, 5
        %v2119 = vsel %vm1102, %v2114, %v2118
        %v2120 = vshrl.u32 %v2062, 16
        %v2122 = vrot.slane %v2120, 4
        %v2123 = vor.u32 %v2122, %v2118
        %v2124 = vrot.slane %v2123, 4
        %v2126 = vshll.u32 %v2063, 16
        %v2128 = vrot.slane %v2126, 5
        %v2129 = vsel %vm1102, %v2124, %v2128
        %v2131 = vshrl.u32 %v2064, 16
        %v2133 = vrot.slane %v2131, 4
        %v2134 = vshll.u32 %v2064, 16
        %v2136 = vrot.slane %v2134, 5
        %v2137 = vor.u32 %v2133, %v2136
        %v2138 = vrot.slane %v2137, 4
        %v2140 = vshll.u32 %v2065, 16
        %v2142 = vrot.slane %v2140, 5
        %v2143 = vsel %vm1102, %v2138, %v2142
        %v2144 = vshrl.u32 %v2065, 16
        %v2146 = vrot.slane %v2144, 4
        %v2147 = vor.u32 %v2146, %v2142
        %v2148 = vrot.slane %v2147, 4
        %v2150 = vshll.u32 %v2066, 16
        %v2152 = vrot.slane %v2150, 5
        %v2153 = vsel %vm1102, %v2148, %v2152
        %v2155 = vshrl.u32 %v2067, 16
        %v2157 = vrot.slane %v2155, 4
        %v2158 = vshll.u32 %v2067, 16
        %v2160 = vrot.slane %v2158, 5
        %v2161 = vor.u32 %v2157, %v2160
        %v2162 = vrot.slane %v2161, 4
        %v2164 = vshll.u32 %v2068, 16
        %v2166 = vrot.slane %v2164, 5
        %v2167 = vsel %vm1102, %v2162, %v2166
        %v2168 = vshrl.u32 %v2068, 16
        %v2170 = vrot.slane %v2168, 4
        %v2171 = vor.u32 %v2170, %v2166
        %v2172 = vrot.slane %v2171, 4
        %v2174 = vshll.u32 %v2069, 16
        %v2176 = vrot.slane %v2174, 5
        %v2177 = vsel %vm1102, %v2172, %v2176
        %v2179 = vshrl.u32 %v2070, 16
        %v2181 = vrot.slane %v2179, 4
        %v2182 = vshll.u32 %v2070, 16
        %v2184 = vrot.slane %v2182, 5
        %v2185 = vor.u32 %v2181, %v2184
        %v2186 = vrot.slane %v2185, 4
        %v2188 = vshll.u32 %v2071, 16
        %v2190 = vrot.slane %v2188, 5
        %v2191 = vsel %vm1102, %v2186, %v2190
        %v2192 = vshrl.u32 %v2071, 16
        %v2194 = vrot.slane %v2192, 4
        %v2195 = vor.u32 %v2194, %v2190
        %v2196 = vrot.slane %v2195, 4
        %v2198 = vshll.u32 %v2072, 16
        %v2200 = vrot.slane %v2198, 5
        %v2201 = vsel %vm1102, %v2196, %v2200
        %v2203 = vshrl.u32 %v2073, 16
        %v2205 = vrot.slane %v2203, 4
        %v2206 = vshll.u32 %v2073, 16
        %v2208 = vrot.slane %v2206, 5
        %v2209 = vor.u32 %v2205, %v2208
        %v2210 = vrot.slane %v2209, 4
        %v2212 = vshll.u32 %v2074, 16
        %v2214 = vrot.slane %v2212, 5
        %v2215 = vsel %vm1102, %v2210, %v2214
        %v2216 = vshrl.u32 %v2074, 16
        %v2218 = vrot.slane %v2216, 4
        %v2219 = vor.u32 %v2218, %v2214
        %v2220 = vrot.slane %v2219, 4
        %v2222 = vshll.u32 %v2075, 16
        %v2224 = vrot.slane %v2222, 5
        %v2225 = vsel %vm1102, %v2220, %v2224
        %v2227 = vshrl.u32 %v2076, 16
        %v2229 = vrot.slane %v2227, 4
        %v2230 = vshll.u32 %v2076, 16
        %v2232 = vrot.slane %v2230, 5
        %v2233 = vor.u32 %v2229, %v2232
        %v2234 = vrot.slane %v2233, 4
        %v2236 = vshll.u32 %v2077, 16
        %v2238 = vrot.slane %v2236, 5
        %v2239 = vsel %vm1102, %v2234, %v2238
        %v2240 = vshrl.u32 %v2077, 16
        %v2242 = vrot.slane %v2240, 4
        %v2243 = vor.u32 %v2242, %v2238
        %v2244 = vrot.slane %v2243, 4
        %v2246 = vshll.u32 %v2078, 16
        %v2248 = vrot.slane %v2246, 5
        %v2249 = vsel %vm1102, %v2244, %v2248
        %v2251 = vshrl.u32 %v2079, 16
        %v2253 = vrot.slane %v2251, 4
        %v2254 = vshll.u32 %v2079, 16
        %v2256 = vrot.slane %v2254, 5
        %v2257 = vor.u32 %v2253, %v2256
        %v2258 = vrot.slane %v2257, 4
        %v2260 = vshll.u32 %v2080, 16
        %v2262 = vrot.slane %v2260, 5
        %v2263 = vsel %vm1102, %v2258, %v2262
        %v2264 = vshrl.u32 %v2080, 16
        %v2266 = vrot.slane %v2264, 4
        %v2267 = vor.u32 %v2266, %v2262
        %v2268 = vrot.slane %v2267, 4
        %v2270 = vshll.u32 %v2081, 16
        %v2272 = vrot.slane %v2270, 5
        %v2273 = vsel %vm1102, %v2268, %v2272
        %s2274 = scalar_lea.vmem [#allocation9], 16
        %v2275 = vld [vmem:[%s2274] sm:$0xf]
        %v2276 = vunpack.c.l.b16 %v2095
        %v2277 = vunpack.c.l.b16 %v2105
        %v2278 = vunpack.c.l.b16 %v2119
        %v2279 = vunpack.c.l.b16 %v2129
        %v2280 = vunpack.c.l.b16 %v2143
        %v2281 = vunpack.c.l.b16 %v2153
        %v2282 = vunpack.c.l.b16 %v2167
        %v2283 = vunpack.c.l.b16 %v2177
        %v2284 = vunpack.c.l.b16 %v2191
        %v2285 = vunpack.c.l.b16 %v2201
        %v2286 = vunpack.c.l.b16 %v2215
        %v2287 = vunpack.c.l.b16 %v2225
        %v2288 = vunpack.c.l.b16 %v2239
        %v2289 = vunpack.c.l.b16 %v2249
        %v2290 = vunpack.c.l.b16 %v2263
        %v2291 = vunpack.c.l.b16 %v2273
        %v2292 = vpack.c.b16 %v2277, %v2276
        %v2293 = vpack.c.b16 %v2279, %v2278
        %v2294 = vpack.c.b16 %v2281, %v2280
        %v2295 = vpack.c.b16 %v2283, %v2282
        %v2296 = vpack.c.b16 %v2285, %v2284
        %v2297 = vpack.c.b16 %v2287, %v2286
        %v2298 = vpack.c.b16 %v2289, %v2288
        %v2299 = vpack.c.b16 %v2291, %v2290
        %v2301 = vsel %vm1321, %v2292, 0
        %v2304 = vsel %vm1321, %v2293, 0
        %v2307 = vsel %vm1321, %v2294, 0
        %v2310 = vsel %vm1321, %v2295, 0
        %v2313 = vsel %vm1321, %v2296, 0
        %v2316 = vsel %vm1321, %v2297, 0
        %v2319 = vsel %vm1321, %v2298, 0
        %v2322 = vsel %vm1321, %v2299, 0
        %v2325 = vsel %vm1346, %v2275, 0
        %2327 = vmatprep.subr.bf16.mxu0 0
        %2328 = vmatpush1.bf16.msra.mxu0 %v2325
        %2329 = vmatprep.subr.bf16.mxu0 0
        %2330 = vmatpush1.bf16.msra.mxu0 0
        %2331 = vmatprep.subr.bf16.mxu0 0
        %2332 = vmatpush1.bf16.msra.mxu0 0
        %2333 = vmatprep.subr.bf16.mxu0 0
        %2334 = vmatpush1.bf16.msra.mxu0 0
        %2335 = vmatprep.subr.bf16.mxu0 0
        %2336 = vmatpush1.bf16.msra.mxu0 0
        %2337 = vmatprep.subr.bf16.mxu0 0
        %2338 = vmatpush1.bf16.msra.mxu0 0
        %2339 = vmatprep.subr.bf16.mxu0 0
        %2340 = vmatpush1.bf16.msra.mxu0 0
        %2341 = vmatprep.subr.bf16.mxu0 0
        %2342 = vmatpush1.bf16.msra.mxu0 0
        %2343 = vmatprep.subr.bf16.mxu0 0
        %2344 = vmatpush1.bf16.msra.mxu0 0
        %2345 = vmatprep.subr.bf16.mxu0 0
        %2346 = vmatpush1.bf16.msra.mxu0 0
        %2347 = vmatprep.subr.bf16.mxu0 0
        %2348 = vmatpush1.bf16.msra.mxu0 0
        %2349 = vmatprep.subr.bf16.mxu0 0
        %2350 = vmatpush1.bf16.msra.mxu0 0
        %2351 = vmatprep.subr.bf16.mxu0 0
        %2352 = vmatpush1.bf16.msra.mxu0 0
        %2353 = vmatprep.subr.bf16.mxu0 0
        %2354 = vmatpush1.bf16.msra.mxu0 0
        %2355 = vmatprep.subr.bf16.mxu0 0
        %2356 = vmatpush1.bf16.msra.mxu0 0
        %2357 = vmatprep.subr.bf16.mxu0 0
        %2358 = vmatpush1.bf16.msra.mxu0 0
        %2359 = vmatprep.mubr.bf16.mxu0 0
        %2360 = vmatmul.mubr.bf16.gmra.mrb[0].mxu0 %v2301
        %v2361 = vpop.f32.mrb[0].mxu0
        %v2362 = vadd.f32 0.0, %v2361
        %v2363 = vpop.f32.mrb[0].mxu0
        %v2364 = vpop.f32.mrb[0].mxu0
        %v2365 = vadd.f32 0.0, %v2364
        %v2366 = vpop.f32.mrb[0].mxu0
        %2367 = vmatprep.mubr.bf16.mxu0 0
        %2368 = vmatmul.mubr.bf16.gmra.mrb[0].mxu0 %v2304
        %v2369 = vpop.f32.mrb[0].mxu0
        %v2370 = vadd.f32 0.0, %v2369
        %v2371 = vpop.f32.mrb[0].mxu0
        %v2372 = vpop.f32.mrb[0].mxu0
        %v2373 = vadd.f32 0.0, %v2372
        %v2374 = vpop.f32.mrb[0].mxu0
        %2375 = vmatprep.mubr.bf16.mxu0 0
        %2376 = vmatmul.mubr.bf16.gmra.mrb[0].mxu0 %v2307
        %v2377 = vpop.f32.mrb[0].mxu0
        %v2378 = vadd.f32 0.0, %v2377
        %v2379 = vpop.f32.mrb[0].mxu0
        %v2380 = vpop.f32.mrb[0].mxu0
        %v2381 = vadd.f32 0.0, %v2380
        %v2382 = vpop.f32.mrb[0].mxu0
        %2383 = vmatprep.mubr.bf16.mxu0 0
        %2384 = vmatmul.mubr.bf16.gmra.mrb[0].mxu0 %v2310
        %v2385 = vpop.f32.mrb[0].mxu0
        %v2386 = vadd.f32 0.0, %v2385
        %v2387 = vpop.f32.mrb[0].mxu0
        %v2388 = vpop.f32.mrb[0].mxu0
        %v2389 = vadd.f32 0.0, %v2388
        %v2390 = vpop.f32.mrb[0].mxu0
        %2391 = vmatprep.mubr.bf16.mxu0 0
        %2392 = vmatmul.mubr.bf16.gmra.mrb[0].mxu0 %v2313
        %v2393 = vpop.f32.mrb[0].mxu0
        %v2394 = vadd.f32 0.0, %v2393
        %v2395 = vpop.f32.mrb[0].mxu0
        %v2396 = vpop.f32.mrb[0].mxu0
        %v2397 = vadd.f32 0.0, %v2396
        %v2398 = vpop.f32.mrb[0].mxu0
        %2399 = vmatprep.mubr.bf16.mxu0 0
        %2400 = vmatmul.mubr.bf16.gmra.mrb[0].mxu0 %v2316
        %v2401 = vpop.f32.mrb[0].mxu0
        %v2402 = vadd.f32 0.0, %v2401
        %v2403 = vpop.f32.mrb[0].mxu0
        %v2404 = vpop.f32.mrb[0].mxu0
        %v2405 = vadd.f32 0.0, %v2404
        %v2406 = vpop.f32.mrb[0].mxu0
        %2407 = vmatprep.mubr.bf16.mxu0 0
        %2408 = vmatmul.mubr.bf16.gmra.mrb[0].mxu0 %v2319
        %v2409 = vpop.f32.mrb[0].mxu0
        %v2410 = vadd.f32 0.0, %v2409
        %v2411 = vpop.f32.mrb[0].mxu0
        %v2412 = vpop.f32.mrb[0].mxu0
        %v2413 = vadd.f32 0.0, %v2412
        %v2414 = vpop.f32.mrb[0].mxu0
        %2415 = vmatprep.mubr.bf16.mxu0 0
        %2416 = vmatmul.mubr.bf16.gmra.mrb[0].mxu0 %v2322
        %v2417 = vpop.f32.mrb[0].mxu0
        %v2418 = vadd.f32 0.0, %v2417
        %v2419 = vpop.f32.mrb[0].mxu0
        %v2420 = vpop.f32.mrb[0].mxu0
        %v2421 = vadd.f32 0.0, %v2420
        %v2422 = vpop.f32.mrb[0].mxu0
        %2423 = vdwg.mxu0
        %v2424 = vadd.f32 %v2042, %v2362
        %v2425 = vadd.f32 %v2043, %v2365
        %v2426 = vadd.f32 %v2044, %v2370
        %v2427 = vadd.f32 %v2045, %v2373
        %v2428 = vadd.f32 %v2046, %v2378
        %v2429 = vadd.f32 %v2047, %v2381
        %v2430 = vadd.f32 %v2048, %v2386
        %v2431 = vadd.f32 %v2049, %v2389
        %v2432 = vadd.f32 %v2050, %v2394
        %v2433 = vadd.f32 %v2051, %v2397
        %v2434 = vadd.f32 %v2052, %v2402
        %v2435 = vadd.f32 %v2053, %v2405
        %v2436 = vadd.f32 %v2054, %v2410
        %v2437 = vadd.f32 %v2055, %v2413
        %v2438 = vadd.f32 %v2056, %v2418
        %v2439 = vadd.f32 %v2057, %v2421
        %v2440 = vld [vmem:[%s1018] sm:$0xe]
        %v2441 = vld [vmem:[%s1018 + $0xc] sm:$0xe]
        %v2442 = vld [vmem:[%s1018 + $0x18] sm:$0xe]
        %v2443 = vld [vmem:[%s1018 + $0x24] sm:$0xe]
        %v2444 = vld [vmem:[%s1018 + $0x30] sm:$0xe]
        %v2445 = vld [vmem:[%s1018 + $0x3c] sm:$0xe]
        %v2446 = vld [vmem:[%s1018 + $0x48] sm:$0xe]
        %v2447 = vld [vmem:[%s1018 + $0x54] sm:$0xe]
        %v2472 = vrot.slane %v2440, 5
        %v2473 = vrot.slane %v2472, 4
        %v2474 = vrot.slane %v2059, 5
        %v2475 = vsel %vm1637, %v2473, %v2474
        %v2476 = vrot.slane %v2474, 4
        %v2477 = vrot.slane %v2060, 5
        %v2478 = vsel %vm1637, %v2476, %v2477
        %v2479 = vrot.slane %v2441, 5
        %v2480 = vrot.slane %v2479, 4
        %v2481 = vrot.slane %v2062, 5
        %v2482 = vsel %vm1637, %v2480, %v2481
        %v2483 = vrot.slane %v2481, 4
        %v2484 = vrot.slane %v2063, 5
        %v2485 = vsel %vm1637, %v2483, %v2484
        %v2486 = vrot.slane %v2442, 5
        %v2487 = vrot.slane %v2486, 4
        %v2488 = vrot.slane %v2065, 5
        %v2489 = vsel %vm1637, %v2487, %v2488
        %v2490 = vrot.slane %v2488, 4
        %v2491 = vrot.slane %v2066, 5
        %v2492 = vsel %vm1637, %v2490, %v2491
        %v2493 = vrot.slane %v2443, 5
        %v2494 = vrot.slane %v2493, 4
        %v2495 = vrot.slane %v2068, 5
        %v2496 = vsel %vm1637, %v2494, %v2495
        %v2497 = vrot.slane %v2495, 4
        %v2498 = vrot.slane %v2069, 5
        %v2499 = vsel %vm1637, %v2497, %v2498
        %v2500 = vrot.slane %v2444, 5
        %v2501 = vrot.slane %v2500, 4
        %v2502 = vrot.slane %v2071, 5
        %v2503 = vsel %vm1637, %v2501, %v2502
        %v2504 = vrot.slane %v2502, 4
        %v2505 = vrot.slane %v2072, 5
        %v2506 = vsel %vm1637, %v2504, %v2505
        %v2507 = vrot.slane %v2445, 5
        %v2508 = vrot.slane %v2507, 4
        %v2509 = vrot.slane %v2074, 5
        %v2510 = vsel %vm1637, %v2508, %v2509
        %v2511 = vrot.slane %v2509, 4
        %v2512 = vrot.slane %v2075, 5
        %v2513 = vsel %vm1637, %v2511, %v2512
        %v2514 = vrot.slane %v2446, 5
        %v2515 = vrot.slane %v2514, 4
        %v2516 = vrot.slane %v2077, 5
        %v2517 = vsel %vm1637, %v2515, %v2516
        %v2518 = vrot.slane %v2516, 4
        %v2519 = vrot.slane %v2078, 5
        %v2520 = vsel %vm1637, %v2518, %v2519
        %v2521 = vrot.slane %v2447, 5
        %v2522 = vrot.slane %v2521, 4
        %v2523 = vrot.slane %v2080, 5
        %v2524 = vsel %vm1637, %v2522, %v2523
        %v2525 = vrot.slane %v2523, 4
        %v2526 = vrot.slane %v2081, 5
        %v2527 = vsel %vm1637, %v2525, %v2526
        %s2528 = scalar_lea.vmem [#allocation9], 20
        %v2529 = vld [vmem:[%s2528] sm:$0xf]
        %v2530 = vunpack.c.l.b16 %v2475
        %v2531 = vunpack.c.l.b16 %v2478
        %v2532 = vunpack.c.l.b16 %v2482
        %v2533 = vunpack.c.l.b16 %v2485
        %v2534 = vunpack.c.l.b16 %v2489
        %v2535 = vunpack.c.l.b16 %v2492
        %v2536 = vunpack.c.l.b16 %v2496
        %v2537 = vunpack.c.l.b16 %v2499
        %v2538 = vunpack.c.l.b16 %v2503
        %v2539 = vunpack.c.l.b16 %v2506
        %v2540 = vunpack.c.l.b16 %v2510
        %v2541 = vunpack.c.l.b16 %v2513
        %v2542 = vunpack.c.l.b16 %v2517
        %v2543 = vunpack.c.l.b16 %v2520
        %v2544 = vunpack.c.l.b16 %v2524
        %v2545 = vunpack.c.l.b16 %v2527
        %v2546 = vpack.c.b16 %v2531, %v2530
        %v2547 = vpack.c.b16 %v2533, %v2532
        %v2548 = vpack.c.b16 %v2535, %v2534
        %v2549 = vpack.c.b16 %v2537, %v2536
        %v2550 = vpack.c.b16 %v2539, %v2538
        %v2551 = vpack.c.b16 %v2541, %v2540
        %v2552 = vpack.c.b16 %v2543, %v2542
        %v2553 = vpack.c.b16 %v2545, %v2544
        %v2555 = vsel %vm1321, %v2546, 0
        %v2558 = vsel %vm1321, %v2547, 0
        %v2561 = vsel %vm1321, %v2548, 0
        %v2564 = vsel %vm1321, %v2549, 0
        %v2567 = vsel %vm1321, %v2550, 0
        %v2570 = vsel %vm1321, %v2551, 0
        %v2573 = vsel %vm1321, %v2552, 0
        %v2576 = vsel %vm1321, %v2553, 0
        %v2579 = vsel %vm1346, %v2529, 0
        %2581 = vmatprep.subr.bf16.mxu0 0
        %2582 = vmatpush1.bf16.msra.mxu0 %v2579
        %2583 = vmatprep.subr.bf16.mxu0 0
        %2584 = vmatpush1.bf16.msra.mxu0 0
        %2585 = vmatprep.subr.bf16.mxu0 0
        %2586 = vmatpush1.bf16.msra.mxu0 0
        %2587 = vmatprep.subr.bf16.mxu0 0
        %2588 = vmatpush1.bf16.msra.mxu0 0
        %2589 = vmatprep.subr.bf16.mxu0 0
        %2590 = vmatpush1.bf16.msra.mxu0 0
        %2591 = vmatprep.subr.bf16.mxu0 0
        %2592 = vmatpush1.bf16.msra.mxu0 0
        %2593 = vmatprep.subr.bf16.mxu0 0
        %2594 = vmatpush1.bf16.msra.mxu0 0
        %2595 = vmatprep.subr.bf16.mxu0 0
        %2596 = vmatpush1.bf16.msra.mxu0 0
        %2597 = vmatprep.subr.bf16.mxu0 0
        %2598 = vmatpush1.bf16.msra.mxu0 0
        %2599 = vmatprep.subr.bf16.mxu0 0
        %2600 = vmatpush1.bf16.msra.mxu0 0
        %2601 = vmatprep.subr.bf16.mxu0 0
        %2602 = vmatpush1.bf16.msra.mxu0 0
        %2603 = vmatprep.subr.bf16.mxu0 0
        %2604 = vmatpush1.bf16.msra.mxu0 0
        %2605 = vmatprep.subr.bf16.mxu0 0
        %2606 = vmatpush1.bf16.msra.mxu0 0
        %2607 = vmatprep.subr.bf16.mxu0 0
        %2608 = vmatpush1.bf16.msra.mxu0 0
        %2609 = vmatprep.subr.bf16.mxu0 0
        %2610 = vmatpush1.bf16.msra.mxu0 0
        %2611 = vmatprep.subr.bf16.mxu0 0
        %2612 = vmatpush1.bf16.msra.mxu0 0
        %2613 = vmatprep.mubr.bf16.mxu0 0
        %2614 = vmatmul.mubr.bf16.gmra.mrb[0].mxu0 %v2555
        %v2615 = vpop.f32.mrb[0].mxu0
        %v2616 = vadd.f32 0.0, %v2615
        %v2617 = vpop.f32.mrb[0].mxu0
        %v2618 = vpop.f32.mrb[0].mxu0
        %v2619 = vadd.f32 0.0, %v2618
        %v2620 = vpop.f32.mrb[0].mxu0
        %2621 = vmatprep.mubr.bf16.mxu0 0
        %2622 = vmatmul.mubr.bf16.gmra.mrb[0].mxu0 %v2558
        %v2623 = vpop.f32.mrb[0].mxu0
        %v2624 = vadd.f32 0.0, %v2623
        %v2625 = vpop.f32.mrb[0].mxu0
        %v2626 = vpop.f32.mrb[0].mxu0
        %v2627 = vadd.f32 0.0, %v2626
        %v2628 = vpop.f32.mrb[0].mxu0
        %2629 = vmatprep.mubr.bf16.mxu0 0
        %2630 = vmatmul.mubr.bf16.gmra.mrb[0].mxu0 %v2561
        %v2631 = vpop.f32.mrb[0].mxu0
        %v2632 = vadd.f32 0.0, %v2631
        %v2633 = vpop.f32.mrb[0].mxu0
        %v2634 = vpop.f32.mrb[0].mxu0
        %v2635 = vadd.f32 0.0, %v2634
        %v2636 = vpop.f32.mrb[0].mxu0
        %2637 = vmatprep.mubr.bf16.mxu0 0
        %2638 = vmatmul.mubr.bf16.gmra.mrb[0].mxu0 %v2564
        %v2639 = vpop.f32.mrb[0].mxu0
        %v2640 = vadd.f32 0.0, %v2639
        %v2641 = vpop.f32.mrb[0].mxu0
        %v2642 = vpop.f32.mrb[0].mxu0
        %v2643 = vadd.f32 0.0, %v2642
        %v2644 = vpop.f32.mrb[0].mxu0
        %2645 = vmatprep.mubr.bf16.mxu0 0
        %2646 = vmatmul.mubr.bf16.gmra.mrb[0].mxu0 %v2567
        %v2647 = vpop.f32.mrb[0].mxu0
        %v2648 = vadd.f32 0.0, %v2647
        %v2649 = vpop.f32.mrb[0].mxu0
        %v2650 = vpop.f32.mrb[0].mxu0
        %v2651 = vadd.f32 0.0, %v2650
        %v2652 = vpop.f32.mrb[0].mxu0
        %2653 = vmatprep.mubr.bf16.mxu0 0
        %2654 = vmatmul.mubr.bf16.gmra.mrb[0].mxu0 %v2570
        %v2655 = vpop.f32.mrb[0].mxu0
        %v2656 = vadd.f32 0.0, %v2655
        %v2657 = vpop.f32.mrb[0].mxu0
        %v2658 = vpop.f32.mrb[0].mxu0
        %v2659 = vadd.f32 0.0, %v2658
        %v2660 = vpop.f32.mrb[0].mxu0
        %2661 = vmatprep.mubr.bf16.mxu0 0
        %2662 = vmatmul.mubr.bf16.gmra.mrb[0].mxu0 %v2573
        %v2663 = vpop.f32.mrb[0].mxu0
        %v2664 = vadd.f32 0.0, %v2663
        %v2665 = vpop.f32.mrb[0].mxu0
        %v2666 = vpop.f32.mrb[0].mxu0
        %v2667 = vadd.f32 0.0, %v2666
        %v2668 = vpop.f32.mrb[0].mxu0
        %2669 = vmatprep.mubr.bf16.mxu0 0
        %2670 = vmatmul.mubr.bf16.gmra.mrb[0].mxu0 %v2576
        %v2671 = vpop.f32.mrb[0].mxu0
        %v2672 = vadd.f32 0.0, %v2671
        %v2673 = vpop.f32.mrb[0].mxu0
        %v2674 = vpop.f32.mrb[0].mxu0
        %v2675 = vadd.f32 0.0, %v2674
        %v2676 = vpop.f32.mrb[0].mxu0
        %2677 = vdwg.mxu0
        %v2678 = vadd.f32 %v2424, %v2616
        %v2679 = vadd.f32 %v2425, %v2619
        %v2680 = vadd.f32 %v2426, %v2624
        %v2681 = vadd.f32 %v2427, %v2627
        %v2682 = vadd.f32 %v2428, %v2632
        %v2683 = vadd.f32 %v2429, %v2635
        %v2684 = vadd.f32 %v2430, %v2640
        %v2685 = vadd.f32 %v2431, %v2643
        %v2686 = vadd.f32 %v2432, %v2648
        %v2687 = vadd.f32 %v2433, %v2651
        %v2688 = vadd.f32 %v2434, %v2656
        %v2689 = vadd.f32 %v2435, %v2659
        %v2690 = vadd.f32 %v2436, %v2664
        %v2691 = vadd.f32 %v2437, %v2667
        %v2692 = vadd.f32 %v2438, %v2672
        %v2693 = vadd.f32 %v2439, %v2675
        %s2694 = scalar_lea.vmem [#allocation2], 24
        %v2695 = vld [vmem:[%s2694] sm:$0xf]
        %v2696 = vld [vmem:[%s2694 + $0x4] sm:$0xf]
        %v2697 = vld [vmem:[%s2694 + $0xc] sm:$0xf]
        %v2698 = vld [vmem:[%s2694 + $0x10] sm:$0xf]
        %v2699 = vld [vmem:[%s2694 + $0x18] sm:$0xf]
        %v2700 = vld [vmem:[%s2694 + $0x1c] sm:$0xf]
        %v2701 = vld [vmem:[%s2694 + $0x24] sm:$0xf]
        %v2702 = vld [vmem:[%s2694 + $0x28] sm:$0xf]
        %v2703 = vld [vmem:[%s2694 + $0x30] sm:$0xf]
        %v2704 = vld [vmem:[%s2694 + $0x34] sm:$0xf]
        %v2705 = vld [vmem:[%s2694 + $0x3c] sm:$0xf]
        %v2706 = vld [vmem:[%s2694 + $0x40] sm:$0xf]
        %v2707 = vld [vmem:[%s2694 + $0x48] sm:$0xf]
        %v2708 = vld [vmem:[%s2694 + $0x4c] sm:$0xf]
        %v2709 = vld [vmem:[%s2694 + $0x54] sm:$0xf]
        %v2710 = vld [vmem:[%s2694 + $0x58] sm:$0xf]
        %s2711 = scalar_lea.vmem [#allocation9], 24
        %v2712 = vld [vmem:[%s2711] sm:$0xf]
        %v2729 = vunpack.c.l.b16 %v2695
        %v2730 = vunpack.c.l.b16 %v2696
        %v2731 = vunpack.c.l.b16 %v2697
        %v2732 = vunpack.c.l.b16 %v2698
        %v2733 = vunpack.c.l.b16 %v2699
        %v2734 = vunpack.c.l.b16 %v2700
        %v2735 = vunpack.c.l.b16 %v2701
        %v2736 = vunpack.c.l.b16 %v2702
        %v2737 = vunpack.c.l.b16 %v2703
        %v2738 = vunpack.c.l.b16 %v2704
        %v2739 = vunpack.c.l.b16 %v2705
        %v2740 = vunpack.c.l.b16 %v2706
        %v2741 = vunpack.c.l.b16 %v2707
        %v2742 = vunpack.c.l.b16 %v2708
        %v2743 = vunpack.c.l.b16 %v2709
        %v2744 = vunpack.c.l.b16 %v2710
        %v2745 = vpack.c.b16 %v2730, %v2729
        %v2746 = vpack.c.b16 %v2732, %v2731
        %v2747 = vpack.c.b16 %v2734, %v2733
        %v2748 = vpack.c.b16 %v2736, %v2735
        %v2749 = vpack.c.b16 %v2738, %v2737
        %v2750 = vpack.c.b16 %v2740, %v2739
        %v2751 = vpack.c.b16 %v2742, %v2741
        %v2752 = vpack.c.b16 %v2744, %v2743
        %v2754 = vsel %vm1321, %v2745, 0
        %v2757 = vsel %vm1321, %v2746, 0
        %v2760 = vsel %vm1321, %v2747, 0
        %v2763 = vsel %vm1321, %v2748, 0
        %v2766 = vsel %vm1321, %v2749, 0
        %v2769 = vsel %vm1321, %v2750, 0
        %v2772 = vsel %vm1321, %v2751, 0
        %v2775 = vsel %vm1321, %v2752, 0
        %v2778 = vsel %vm1346, %v2712, 0
        %2780 = vmatprep.subr.bf16.mxu0 0
        %2781 = vmatpush1.bf16.msra.mxu0 %v2778
        %2782 = vmatprep.subr.bf16.mxu0 0
        %2783 = vmatpush1.bf16.msra.mxu0 0
        %2784 = vmatprep.subr.bf16.mxu0 0
        %2785 = vmatpush1.bf16.msra.mxu0 0
        %2786 = vmatprep.subr.bf16.mxu0 0
        %2787 = vmatpush1.bf16.msra.mxu0 0
        %2788 = vmatprep.subr.bf16.mxu0 0
        %2789 = vmatpush1.bf16.msra.mxu0 0
        %2790 = vmatprep.subr.bf16.mxu0 0
        %2791 = vmatpush1.bf16.msra.mxu0 0
        %2792 = vmatprep.subr.bf16.mxu0 0
        %2793 = vmatpush1.bf16.msra.mxu0 0
        %2794 = vmatprep.subr.bf16.mxu0 0
        %2795 = vmatpush1.bf16.msra.mxu0 0
        %2796 = vmatprep.subr.bf16.mxu0 0
        %2797 = vmatpush1.bf16.msra.mxu0 0
        %2798 = vmatprep.subr.bf16.mxu0 0
        %2799 = vmatpush1.bf16.msra.mxu0 0
        %2800 = vmatprep.subr.bf16.mxu0 0
        %2801 = vmatpush1.bf16.msra.mxu0 0
        %2802 = vmatprep.subr.bf16.mxu0 0
        %2803 = vmatpush1.bf16.msra.mxu0 0
        %2804 = vmatprep.subr.bf16.mxu0 0
        %2805 = vmatpush1.bf16.msra.mxu0 0
        %2806 = vmatprep.subr.bf16.mxu0 0
        %2807 = vmatpush1.bf16.msra.mxu0 0
        %2808 = vmatprep.subr.bf16.mxu0 0
        %2809 = vmatpush1.bf16.msra.mxu0 0
        %2810 = vmatprep.subr.bf16.mxu0 0
        %2811 = vmatpush1.bf16.msra.mxu0 0
        %2812 = vmatprep.mubr.bf16.mxu0 0
        %2813 = vmatmul.mubr.bf16.gmra.mrb[0].mxu0 %v2754
        %v2814 = vpop.f32.mrb[0].mxu0
        %v2815 = vadd.f32 0.0, %v2814
        %v2816 = vpop.f32.mrb[0].mxu0
        %v2817 = vpop.f32.mrb[0].mxu0
        %v2818 = vadd.f32 0.0, %v2817
        %v2819 = vpop.f32.mrb[0].mxu0
        %2820 = vmatprep.mubr.bf16.mxu0 0
        %2821 = vmatmul.mubr.bf16.gmra.mrb[0].mxu0 %v2757
        %v2822 = vpop.f32.mrb[0].mxu0
        %v2823 = vadd.f32 0.0, %v2822
        %v2824 = vpop.f32.mrb[0].mxu0
        %v2825 = vpop.f32.mrb[0].mxu0
        %v2826 = vadd.f32 0.0, %v2825
        %v2827 = vpop.f32.mrb[0].mxu0
        %2828 = vmatprep.mubr.bf16.mxu0 0
        %2829 = vmatmul.mubr.bf16.gmra.mrb[0].mxu0 %v2760
        %v2830 = vpop.f32.mrb[0].mxu0
        %v2831 = vadd.f32 0.0, %v2830
        %v2832 = vpop.f32.mrb[0].mxu0
        %v2833 = vpop.f32.mrb[0].mxu0
        %v2834 = vadd.f32 0.0, %v2833
        %v2835 = vpop.f32.mrb[0].mxu0
        %2836 = vmatprep.mubr.bf16.mxu0 0
        %2837 = vmatmul.mubr.bf16.gmra.mrb[0].mxu0 %v2763
        %v2838 = vpop.f32.mrb[0].mxu0
        %v2839 = vadd.f32 0.0, %v2838
        %v2840 = vpop.f32.mrb[0].mxu0
        %v2841 = vpop.f32.mrb[0].mxu0
        %v2842 = vadd.f32 0.0, %v2841
        %v2843 = vpop.f32.mrb[0].mxu0
        %2844 = vmatprep.mubr.bf16.mxu0 0
        %2845 = vmatmul.mubr.bf16.gmra.mrb[0].mxu0 %v2766
        %v2846 = vpop.f32.mrb[0].mxu0
        %v2847 = vadd.f32 0.0, %v2846
        %v2848 = vpop.f32.mrb[0].mxu0
        %v2849 = vpop.f32.mrb[0].mxu0
        %v2850 = vadd.f32 0.0, %v2849
        %v2851 = vpop.f32.mrb[0].mxu0
        %2852 = vmatprep.mubr.bf16.mxu0 0
        %2853 = vmatmul.mubr.bf16.gmra.mrb[0].mxu0 %v2769
        %v2854 = vpop.f32.mrb[0].mxu0
        %v2855 = vadd.f32 0.0, %v2854
        %v2856 = vpop.f32.mrb[0].mxu0
        %v2857 = vpop.f32.mrb[0].mxu0
        %v2858 = vadd.f32 0.0, %v2857
        %v2859 = vpop.f32.mrb[0].mxu0
        %2860 = vmatprep.mubr.bf16.mxu0 0
        %2861 = vmatmul.mubr.bf16.gmra.mrb[0].mxu0 %v2772
        %v2862 = vpop.f32.mrb[0].mxu0
        %v2863 = vadd.f32 0.0, %v2862
        %v2864 = vpop.f32.mrb[0].mxu0
        %v2865 = vpop.f32.mrb[0].mxu0
        %v2866 = vadd.f32 0.0, %v2865
        %v2867 = vpop.f32.mrb[0].mxu0
        %2868 = vmatprep.mubr.bf16.mxu0 0
        %2869 = vmatmul.mubr.bf16.gmra.mrb[0].mxu0 %v2775
        %v2870 = vpop.f32.mrb[0].mxu0
        %v2871 = vadd.f32 0.0, %v2870
        %v2872 = vpop.f32.mrb[0].mxu0
        %v2873 = vpop.f32.mrb[0].mxu0
        %v2874 = vadd.f32 0.0, %v2873
        %v2875 = vpop.f32.mrb[0].mxu0
        %2876 = vdwg.mxu0
        %v2877 = vadd.f32 %v2678, %v2815
        %v2878 = vadd.f32 %v2679, %v2818
        %v2879 = vadd.f32 %v2680, %v2823
        %v2880 = vadd.f32 %v2681, %v2826
        %v2881 = vadd.f32 %v2682, %v2831
        %v2882 = vadd.f32 %v2683, %v2834
        %v2883 = vadd.f32 %v2684, %v2839
        %v2884 = vadd.f32 %v2685, %v2842
        %v2885 = vadd.f32 %v2686, %v2847
        %v2886 = vadd.f32 %v2687, %v2850
        %v2887 = vadd.f32 %v2688, %v2855
        %v2888 = vadd.f32 %v2689, %v2858
        %v2889 = vadd.f32 %v2690, %v2863
        %v2890 = vadd.f32 %v2691, %v2866
        %v2891 = vadd.f32 %v2692, %v2871
        %v2892 = vadd.f32 %v2693, %v2874
        %v2893 = vld [vmem:[%s2694] sm:$0xf]
        %v2894 = vld [vmem:[%s2694 + $0x4] sm:$0xf]
        %v2895 = vld [vmem:[%s2694 + $0x8] sm:$0x1]
        %v2896 = vld [vmem:[%s2694 + $0xc] sm:$0xf]
        %v2897 = vld [vmem:[%s2694 + $0x10] sm:$0xf]
        %v2898 = vld [vmem:[%s2694 + $0x14] sm:$0x1]
        %v2899 = vld [vmem:[%s2694 + $0x18] sm:$0xf]
        %v2900 = vld [vmem:[%s2694 + $0x1c] sm:$0xf]
        %v2901 = vld [vmem:[%s2694 + $0x20] sm:$0x1]
        %v2902 = vld [vmem:[%s2694 + $0x24] sm:$0xf]
        %v2903 = vld [vmem:[%s2694 + $0x28] sm:$0xf]
        %v2904 = vld [vmem:[%s2694 + $0x2c] sm:$0x1]
        %v2905 = vld [vmem:[%s2694 + $0x30] sm:$0xf]
        %v2906 = vld [vmem:[%s2694 + $0x34] sm:$0xf]
        %v2907 = vld [vmem:[%s2694 + $0x38] sm:$0x1]
        %v2908 = vld [vmem:[%s2694 + $0x3c] sm:$0xf]
        %v2909 = vld [vmem:[%s2694 + $0x40] sm:$0xf]
        %v2910 = vld [vmem:[%s2694 + $0x44] sm:$0x1]
        %v2911 = vld [vmem:[%s2694 + $0x48] sm:$0xf]
        %v2912 = vld [vmem:[%s2694 + $0x4c] sm:$0xf]
        %v2913 = vld [vmem:[%s2694 + $0x50] sm:$0x1]
        %v2914 = vld [vmem:[%s2694 + $0x54] sm:$0xf]
        %v2915 = vld [vmem:[%s2694 + $0x58] sm:$0xf]
        %v2916 = vld [vmem:[%s2694 + $0x5c] sm:$0x1]
        %v2918 = vshrl.u32 %v2893, 16
        %v2920 = vrot.slane %v2918, 4
        %v2921 = vshll.u32 %v2893, 16
        %v2923 = vrot.slane %v2921, 5
        %v2924 = vor.u32 %v2920, %v2923
        %v2925 = vrot.slane %v2924, 4
        %v2927 = vshll.u32 %v2894, 16
        %v2929 = vrot.slane %v2927, 5
        %v2930 = vsel %vm1102, %v2925, %v2929
        %v2931 = vshrl.u32 %v2894, 16
        %v2933 = vrot.slane %v2931, 4
        %v2934 = vor.u32 %v2933, %v2929
        %v2935 = vrot.slane %v2934, 4
        %v2937 = vshll.u32 %v2895, 16
        %v2939 = vrot.slane %v2937, 5
        %v2940 = vsel %vm1102, %v2935, %v2939
        %v2942 = vshrl.u32 %v2896, 16
        %v2944 = vrot.slane %v2942, 4
        %v2945 = vshll.u32 %v2896, 16
        %v2947 = vrot.slane %v2945, 5
        %v2948 = vor.u32 %v2944, %v2947
        %v2949 = vrot.slane %v2948, 4
        %v2951 = vshll.u32 %v2897, 16
        %v2953 = vrot.slane %v2951, 5
        %v2954 = vsel %vm1102, %v2949, %v2953
        %v2955 = vshrl.u32 %v2897, 16
        %v2957 = vrot.slane %v2955, 4
        %v2958 = vor.u32 %v2957, %v2953
        %v2959 = vrot.slane %v2958, 4
        %v2961 = vshll.u32 %v2898, 16
        %v2963 = vrot.slane %v2961, 5
        %v2964 = vsel %vm1102, %v2959, %v2963
        %v2966 = vshrl.u32 %v2899, 16
        %v2968 = vrot.slane %v2966, 4
        %v2969 = vshll.u32 %v2899, 16
        %v2971 = vrot.slane %v2969, 5
        %v2972 = vor.u32 %v2968, %v2971
        %v2973 = vrot.slane %v2972, 4
        %v2975 = vshll.u32 %v2900, 16
        %v2977 = vrot.slane %v2975, 5
        %v2978 = vsel %vm1102, %v2973, %v2977
        %v2979 = vshrl.u32 %v2900, 16
        %v2981 = vrot.slane %v2979, 4
        %v2982 = vor.u32 %v2981, %v2977
        %v2983 = vrot.slane %v2982, 4
        %v2985 = vshll.u32 %v2901, 16
        %v2987 = vrot.slane %v2985, 5
        %v2988 = vsel %vm1102, %v2983, %v2987
        %v2990 = vshrl.u32 %v2902, 16
        %v2992 = vrot.slane %v2990, 4
        %v2993 = vshll.u32 %v2902, 16
        %v2995 = vrot.slane %v2993, 5
        %v2996 = vor.u32 %v2992, %v2995
        %v2997 = vrot.slane %v2996, 4
        %v2999 = vshll.u32 %v2903, 16
        %v3001 = vrot.slane %v2999, 5
        %v3002 = vsel %vm1102, %v2997, %v3001
        %v3003 = vshrl.u32 %v2903, 16
        %v3005 = vrot.slane %v3003, 4
        %v3006 = vor.u32 %v3005, %v3001
        %v3007 = vrot.slane %v3006, 4
        %v3009 = vshll.u32 %v2904, 16
        %v3011 = vrot.slane %v3009, 5
        %v3012 = vsel %vm1102, %v3007, %v3011
        %v3014 = vshrl.u32 %v2905, 16
        %v3016 = vrot.slane %v3014, 4
        %v3017 = vshll.u32 %v2905, 16
        %v3019 = vrot.slane %v3017, 5
        %v3020 = vor.u32 %v3016, %v3019
        %v3021 = vrot.slane %v3020, 4
        %v3023 = vshll.u32 %v2906, 16
        %v3025 = vrot.slane %v3023, 5
        %v3026 = vsel %vm1102, %v3021, %v3025
        %v3027 = vshrl.u32 %v2906, 16
        %v3029 = vrot.slane %v3027, 4
        %v3030 = vor.u32 %v3029, %v3025
        %v3031 = vrot.slane %v3030, 4
        %v3033 = vshll.u32 %v2907, 16
        %v3035 = vrot.slane %v3033, 5
        %v3036 = vsel %vm1102, %v3031, %v3035
        %v3038 = vshrl.u32 %v2908, 16
        %v3040 = vrot.slane %v3038, 4
        %v3041 = vshll.u32 %v2908, 16
        %v3043 = vrot.slane %v3041, 5
        %v3044 = vor.u32 %v3040, %v3043
        %v3045 = vrot.slane %v3044, 4
        %v3047 = vshll.u32 %v2909, 16
        %v3049 = vrot.slane %v3047, 5
        %v3050 = vsel %vm1102, %v3045, %v3049
        %v3051 = vshrl.u32 %v2909, 16
        %v3053 = vrot.slane %v3051, 4
        %v3054 = vor.u32 %v3053, %v3049
        %v3055 = vrot.slane %v3054, 4
        %v3057 = vshll.u32 %v2910, 16
        %v3059 = vrot.slane %v3057, 5
        %v3060 = vsel %vm1102, %v3055, %v3059
        %v3062 = vshrl.u32 %v2911, 16
        %v3064 = vrot.slane %v3062, 4
        %v3065 = vshll.u32 %v2911, 16
        %v3067 = vrot.slane %v3065, 5
        %v3068 = vor.u32 %v3064, %v3067
        %v3069 = vrot.slane %v3068, 4
        %v3071 = vshll.u32 %v2912, 16
        %v3073 = vrot.slane %v3071, 5
        %v3074 = vsel %vm1102, %v3069, %v3073
        %v3075 = vshrl.u32 %v2912, 16
        %v3077 = vrot.slane %v3075, 4
        %v3078 = vor.u32 %v3077, %v3073
        %v3079 = vrot.slane %v3078, 4
        %v3081 = vshll.u32 %v2913, 16
        %v3083 = vrot.slane %v3081, 5
        %v3084 = vsel %vm1102, %v3079, %v3083
        %v3086 = vshrl.u32 %v2914, 16
        %v3088 = vrot.slane %v3086, 4
        %v3089 = vshll.u32 %v2914, 16
        %v3091 = vrot.slane %v3089, 5
        %v3092 = vor.u32 %v3088, %v3091
        %v3093 = vrot.slane %v3092, 4
        %v3095 = vshll.u32 %v2915, 16
        %v3097 = vrot.slane %v3095, 5
        %v3098 = vsel %vm1102, %v3093, %v3097
        %v3099 = vshrl.u32 %v2915, 16
        %v3101 = vrot.slane %v3099, 4
        %v3102 = vor.u32 %v3101, %v3097
        %v3103 = vrot.slane %v3102, 4
        %v3105 = vshll.u32 %v2916, 16
        %v3107 = vrot.slane %v3105, 5
        %v3108 = vsel %vm1102, %v3103, %v3107
        %s3109 = scalar_lea.vmem [#allocation9], 28
        %v3110 = vld [vmem:[%s3109] sm:$0xf]
        %v3111 = vunpack.c.l.b16 %v2930
        %v3112 = vunpack.c.l.b16 %v2940
        %v3113 = vunpack.c.l.b16 %v2954
        %v3114 = vunpack.c.l.b16 %v2964
        %v3115 = vunpack.c.l.b16 %v2978
        %v3116 = vunpack.c.l.b16 %v2988
        %v3117 = vunpack.c.l.b16 %v3002
        %v3118 = vunpack.c.l.b16 %v3012
        %v3119 = vunpack.c.l.b16 %v3026
        %v3120 = vunpack.c.l.b16 %v3036
        %v3121 = vunpack.c.l.b16 %v3050
        %v3122 = vunpack.c.l.b16 %v3060
        %v3123 = vunpack.c.l.b16 %v3074
        %v3124 = vunpack.c.l.b16 %v3084
        %v3125 = vunpack.c.l.b16 %v3098
        %v3126 = vunpack.c.l.b16 %v3108
        %v3127 = vpack.c.b16 %v3112, %v3111
        %v3128 = vpack.c.b16 %v3114, %v3113
        %v3129 = vpack.c.b16 %v3116, %v3115
        %v3130 = vpack.c.b16 %v3118, %v3117
        %v3131 = vpack.c.b16 %v3120, %v3119
        %v3132 = vpack.c.b16 %v3122, %v3121
        %v3133 = vpack.c.b16 %v3124, %v3123
        %v3134 = vpack.c.b16 %v3126, %v3125
        %v3136 = vsel %vm1321, %v3127, 0
        %v3139 = vsel %vm1321, %v3128, 0
        %v3142 = vsel %vm1321, %v3129, 0
        %v3145 = vsel %vm1321, %v3130, 0
        %v3148 = vsel %vm1321, %v3131, 0
        %v3151 = vsel %vm1321, %v3132, 0
        %v3154 = vsel %vm1321, %v3133, 0
        %v3157 = vsel %vm1321, %v3134, 0
        %v3160 = vsel %vm1346, %v3110, 0
        %3162 = vmatprep.subr.bf16.mxu0 0
        %3163 = vmatpush1.bf16.msra.mxu0 %v3160
        %3164 = vmatprep.subr.bf16.mxu0 0
        %3165 = vmatpush1.bf16.msra.mxu0 0
        %3166 = vmatprep.subr.bf16.mxu0 0
        %3167 = vmatpush1.bf16.msra.mxu0 0
        %3168 = vmatprep.subr.bf16.mxu0 0
        %3169 = vmatpush1.bf16.msra.mxu0 0
        %3170 = vmatprep.subr.bf16.mxu0 0
        %3171 = vmatpush1.bf16.msra.mxu0 0
        %3172 = vmatprep.subr.bf16.mxu0 0
        %3173 = vmatpush1.bf16.msra.mxu0 0
        %3174 = vmatprep.subr.bf16.mxu0 0
        %3175 = vmatpush1.bf16.msra.mxu0 0
        %3176 = vmatprep.subr.bf16.mxu0 0
        %3177 = vmatpush1.bf16.msra.mxu0 0
        %3178 = vmatprep.subr.bf16.mxu0 0
        %3179 = vmatpush1.bf16.msra.mxu0 0
        %3180 = vmatprep.subr.bf16.mxu0 0
        %3181 = vmatpush1.bf16.msra.mxu0 0
        %3182 = vmatprep.subr.bf16.mxu0 0
        %3183 = vmatpush1.bf16.msra.mxu0 0
        %3184 = vmatprep.subr.bf16.mxu0 0
        %3185 = vmatpush1.bf16.msra.mxu0 0
        %3186 = vmatprep.subr.bf16.mxu0 0
        %3187 = vmatpush1.bf16.msra.mxu0 0
        %3188 = vmatprep.subr.bf16.mxu0 0
        %3189 = vmatpush1.bf16.msra.mxu0 0
        %3190 = vmatprep.subr.bf16.mxu0 0
        %3191 = vmatpush1.bf16.msra.mxu0 0
        %3192 = vmatprep.subr.bf16.mxu0 0
        %3193 = vmatpush1.bf16.msra.mxu0 0
        %3194 = vmatprep.mubr.bf16.mxu0 0
        %3195 = vmatmul.mubr.bf16.gmra.mrb[0].mxu0 %v3136
        %v3196 = vpop.f32.mrb[0].mxu0
        %v3197 = vadd.f32 0.0, %v3196
        %v3198 = vpop.f32.mrb[0].mxu0
        %v3199 = vpop.f32.mrb[0].mxu0
        %v3200 = vadd.f32 0.0, %v3199
        %v3201 = vpop.f32.mrb[0].mxu0
        %3202 = vmatprep.mubr.bf16.mxu0 0
        %3203 = vmatmul.mubr.bf16.gmra.mrb[0].mxu0 %v3139
        %v3204 = vpop.f32.mrb[0].mxu0
        %v3205 = vadd.f32 0.0, %v3204
        %v3206 = vpop.f32.mrb[0].mxu0
        %v3207 = vpop.f32.mrb[0].mxu0
        %v3208 = vadd.f32 0.0, %v3207
        %v3209 = vpop.f32.mrb[0].mxu0
        %3210 = vmatprep.mubr.bf16.mxu0 0
        %3211 = vmatmul.mubr.bf16.gmra.mrb[0].mxu0 %v3142
        %v3212 = vpop.f32.mrb[0].mxu0
        %v3213 = vadd.f32 0.0, %v3212
        %v3214 = vpop.f32.mrb[0].mxu0
        %v3215 = vpop.f32.mrb[0].mxu0
        %v3216 = vadd.f32 0.0, %v3215
        %v3217 = vpop.f32.mrb[0].mxu0
        %3218 = vmatprep.mubr.bf16.mxu0 0
        %3219 = vmatmul.mubr.bf16.gmra.mrb[0].mxu0 %v3145
        %v3220 = vpop.f32.mrb[0].mxu0
        %v3221 = vadd.f32 0.0, %v3220
        %v3222 = vpop.f32.mrb[0].mxu0
        %v3223 = vpop.f32.mrb[0].mxu0
        %v3224 = vadd.f32 0.0, %v3223
        %v3225 = vpop.f32.mrb[0].mxu0
        %3226 = vmatprep.mubr.bf16.mxu0 0
        %3227 = vmatmul.mubr.bf16.gmra.mrb[0].mxu0 %v3148
        %v3228 = vpop.f32.mrb[0].mxu0
        %v3229 = vadd.f32 0.0, %v3228
        %v3230 = vpop.f32.mrb[0].mxu0
        %v3231 = vpop.f32.mrb[0].mxu0
        %v3232 = vadd.f32 0.0, %v3231
        %v3233 = vpop.f32.mrb[0].mxu0
        %3234 = vmatprep.mubr.bf16.mxu0 0
        %3235 = vmatmul.mubr.bf16.gmra.mrb[0].mxu0 %v3151
        %v3236 = vpop.f32.mrb[0].mxu0
        %v3237 = vadd.f32 0.0, %v3236
        %v3238 = vpop.f32.mrb[0].mxu0
        %v3239 = vpop.f32.mrb[0].mxu0
        %v3240 = vadd.f32 0.0, %v3239
        %v3241 = vpop.f32.mrb[0].mxu0
        %3242 = vmatprep.mubr.bf16.mxu0 0
        %3243 = vmatmul.mubr.bf16.gmra.mrb[0].mxu0 %v3154
        %v3244 = vpop.f32.mrb[0].mxu0
        %v3245 = vadd.f32 0.0, %v3244
        %v3246 = vpop.f32.mrb[0].mxu0
        %v3247 = vpop.f32.mrb[0].mxu0
        %v3248 = vadd.f32 0.0, %v3247
        %v3249 = vpop.f32.mrb[0].mxu0
        %3250 = vmatprep.mubr.bf16.mxu0 0
        %3251 = vmatmul.mubr.bf16.gmra.mrb[0].mxu0 %v3157
        %v3252 = vpop.f32.mrb[0].mxu0
        %v3253 = vadd.f32 0.0, %v3252
        %v3254 = vpop.f32.mrb[0].mxu0
        %v3255 = vpop.f32.mrb[0].mxu0
        %v3256 = vadd.f32 0.0, %v3255
        %v3257 = vpop.f32.mrb[0].mxu0
        %3258 = vdwg.mxu0
        %v3259 = vadd.f32 %v2877, %v3197
        %v3260 = vadd.f32 %v2878, %v3200
        %v3261 = vadd.f32 %v2879, %v3205
        %v3262 = vadd.f32 %v2880, %v3208
        %v3263 = vadd.f32 %v2881, %v3213
        %v3264 = vadd.f32 %v2882, %v3216
        %v3265 = vadd.f32 %v2883, %v3221
        %v3266 = vadd.f32 %v2884, %v3224
        %v3267 = vadd.f32 %v2885, %v3229
        %v3268 = vadd.f32 %v2886, %v3232
        %v3269 = vadd.f32 %v2887, %v3237
        %v3270 = vadd.f32 %v2888, %v3240
        %v3271 = vadd.f32 %v2889, %v3245
        %v3272 = vadd.f32 %v2890, %v3248
        %v3273 = vadd.f32 %v2891, %v3253
        %v3274 = vadd.f32 %v2892, %v3256
        %v3275 = vld [vmem:[%s2694] sm:$0xe]
        %v3276 = vld [vmem:[%s2694 + $0xc] sm:$0xe]
        %v3277 = vld [vmem:[%s2694 + $0x18] sm:$0xe]
        %v3278 = vld [vmem:[%s2694 + $0x24] sm:$0xe]
        %v3279 = vld [vmem:[%s2694 + $0x30] sm:$0xe]
        %v3280 = vld [vmem:[%s2694 + $0x3c] sm:$0xe]
        %v3281 = vld [vmem:[%s2694 + $0x48] sm:$0xe]
        %v3282 = vld [vmem:[%s2694 + $0x54] sm:$0xe]
        %v3307 = vrot.slane %v3275, 5
        %v3308 = vrot.slane %v3307, 4
        %v3309 = vrot.slane %v2894, 5
        %v3310 = vsel %vm1637, %v3308, %v3309
        %v3311 = vrot.slane %v3309, 4
        %v3312 = vrot.slane %v2895, 5
        %v3313 = vsel %vm1637, %v3311, %v3312
        %v3314 = vrot.slane %v3276, 5
        %v3315 = vrot.slane %v3314, 4
        %v3316 = vrot.slane %v2897, 5
        %v3317 = vsel %vm1637, %v3315, %v3316
        %v3318 = vrot.slane %v3316, 4
        %v3319 = vrot.slane %v2898, 5
        %v3320 = vsel %vm1637, %v3318, %v3319
        %v3321 = vrot.slane %v3277, 5
        %v3322 = vrot.slane %v3321, 4
        %v3323 = vrot.slane %v2900, 5
        %v3324 = vsel %vm1637, %v3322, %v3323
        %v3325 = vrot.slane %v3323, 4
        %v3326 = vrot.slane %v2901, 5
        %v3327 = vsel %vm1637, %v3325, %v3326
        %v3328 = vrot.slane %v3278, 5
        %v3329 = vrot.slane %v3328, 4
        %v3330 = vrot.slane %v2903, 5
        %v3331 = vsel %vm1637, %v3329, %v3330
        %v3332 = vrot.slane %v3330, 4
        %v3333 = vrot.slane %v2904, 5
        %v3334 = vsel %vm1637, %v3332, %v3333
        %v3335 = vrot.slane %v3279, 5
        %v3336 = vrot.slane %v3335, 4
        %v3337 = vrot.slane %v2906, 5
        %v3338 = vsel %vm1637, %v3336, %v3337
        %v3339 = vrot.slane %v3337, 4
        %v3340 = vrot.slane %v2907, 5
        %v3341 = vsel %vm1637, %v3339, %v3340
        %v3342 = vrot.slane %v3280, 5
        %v3343 = vrot.slane %v3342, 4
        %v3344 = vrot.slane %v2909, 5
        %v3345 = vsel %vm1637, %v3343, %v3344
        %v3346 = vrot.slane %v3344, 4
        %v3347 = vrot.slane %v2910, 5
        %v3348 = vsel %vm1637, %v3346, %v3347
        %v3349 = vrot.slane %v3281, 5
        %v3350 = vrot.slane %v3349, 4
        %v3351 = vrot.slane %v2912, 5
        %v3352 = vsel %vm1637, %v3350, %v3351
        %v3353 = vrot.slane %v3351, 4
        %v3354 = vrot.slane %v2913, 5
        %v3355 = vsel %vm1637, %v3353, %v3354
        %v3356 = vrot.slane %v3282, 5
        %v3357 = vrot.slane %v3356, 4
        %v3358 = vrot.slane %v2915, 5
        %v3359 = vsel %vm1637, %v3357, %v3358
        %v3360 = vrot.slane %v3358, 4
        %v3361 = vrot.slane %v2916, 5
        %v3362 = vsel %vm1637, %v3360, %v3361
        %s3363 = scalar_lea.vmem [#allocation9], 32
        %v3364 = vld [vmem:[%s3363] sm:$0xf]
        %v3365 = vunpack.c.l.b16 %v3310
        %v3366 = vunpack.c.l.b16 %v3313
        %v3367 = vunpack.c.l.b16 %v3317
        %v3368 = vunpack.c.l.b16 %v3320
        %v3369 = vunpack.c.l.b16 %v3324
        %v3370 = vunpack.c.l.b16 %v3327
        %v3371 = vunpack.c.l.b16 %v3331
        %v3372 = vunpack.c.l.b16 %v3334
        %v3373 = vunpack.c.l.b16 %v3338
        %v3374 = vunpack.c.l.b16 %v3341
        %v3375 = vunpack.c.l.b16 %v3345
        %v3376 = vunpack.c.l.b16 %v3348
        %v3377 = vunpack.c.l.b16 %v3352
        %v3378 = vunpack.c.l.b16 %v3355
        %v3379 = vunpack.c.l.b16 %v3359
        %v3380 = vunpack.c.l.b16 %v3362
        %v3381 = vpack.c.b16 %v3366, %v3365
        %v3382 = vpack.c.b16 %v3368, %v3367
        %v3383 = vpack.c.b16 %v3370, %v3369
        %v3384 = vpack.c.b16 %v3372, %v3371
        %v3385 = vpack.c.b16 %v3374, %v3373
        %v3386 = vpack.c.b16 %v3376, %v3375
        %v3387 = vpack.c.b16 %v3378, %v3377
        %v3388 = vpack.c.b16 %v3380, %v3379
        %v3390 = vsel %vm1321, %v3381, 0
        %v3393 = vsel %vm1321, %v3382, 0
        %v3396 = vsel %vm1321, %v3383, 0
        %v3399 = vsel %vm1321, %v3384, 0
        %v3402 = vsel %vm1321, %v3385, 0
        %v3405 = vsel %vm1321, %v3386, 0
        %v3408 = vsel %vm1321, %v3387, 0
        %v3411 = vsel %vm1321, %v3388, 0
        %v3414 = vsel %vm1346, %v3364, 0
        %3416 = vmatprep.subr.bf16.mxu0 0
        %3417 = vmatpush1.bf16.msra.mxu0 %v3414
        %3418 = vmatprep.subr.bf16.mxu0 0
        %3419 = vmatpush1.bf16.msra.mxu0 0
        %3420 = vmatprep.subr.bf16.mxu0 0
        %3421 = vmatpush1.bf16.msra.mxu0 0
        %3422 = vmatprep.subr.bf16.mxu0 0
        %3423 = vmatpush1.bf16.msra.mxu0 0
        %3424 = vmatprep.subr.bf16.mxu0 0
        %3425 = vmatpush1.bf16.msra.mxu0 0
        %3426 = vmatprep.subr.bf16.mxu0 0
        %3427 = vmatpush1.bf16.msra.mxu0 0
        %3428 = vmatprep.subr.bf16.mxu0 0
        %3429 = vmatpush1.bf16.msra.mxu0 0
        %3430 = vmatprep.subr.bf16.mxu0 0
        %3431 = vmatpush1.bf16.msra.mxu0 0
        %3432 = vmatprep.subr.bf16.mxu0 0
        %3433 = vmatpush1.bf16.msra.mxu0 0
        %3434 = vmatprep.subr.bf16.mxu0 0
        %3435 = vmatpush1.bf16.msra.mxu0 0
        %3436 = vmatprep.subr.bf16.mxu0 0
        %3437 = vmatpush1.bf16.msra.mxu0 0
        %3438 = vmatprep.subr.bf16.mxu0 0
        %3439 = vmatpush1.bf16.msra.mxu0 0
        %3440 = vmatprep.subr.bf16.mxu0 0
        %3441 = vmatpush1.bf16.msra.mxu0 0
        %3442 = vmatprep.subr.bf16.mxu0 0
        %3443 = vmatpush1.bf16.msra.mxu0 0
        %3444 = vmatprep.subr.bf16.mxu0 0
        %3445 = vmatpush1.bf16.msra.mxu0 0
        %3446 = vmatprep.subr.bf16.mxu0 0
        %3447 = vmatpush1.bf16.msra.mxu0 0
        %3448 = vmatprep.mubr.bf16.mxu0 0
        %3449 = vmatmul.mubr.bf16.gmra.mrb[0].mxu0 %v3390
        %v3450 = vpop.f32.mrb[0].mxu0
        %v3451 = vadd.f32 0.0, %v3450
        %v3452 = vpop.f32.mrb[0].mxu0
        %v3453 = vpop.f32.mrb[0].mxu0
        %v3454 = vadd.f32 0.0, %v3453
        %v3455 = vpop.f32.mrb[0].mxu0
        %3456 = vmatprep.mubr.bf16.mxu0 0
        %3457 = vmatmul.mubr.bf16.gmra.mrb[0].mxu0 %v3393
        %v3458 = vpop.f32.mrb[0].mxu0
        %v3459 = vadd.f32 0.0, %v3458
        %v3460 = vpop.f32.mrb[0].mxu0
        %v3461 = vpop.f32.mrb[0].mxu0
        %v3462 = vadd.f32 0.0, %v3461
        %v3463 = vpop.f32.mrb[0].mxu0
        %3464 = vmatprep.mubr.bf16.mxu0 0
        %3465 = vmatmul.mubr.bf16.gmra.mrb[0].mxu0 %v3396
        %v3466 = vpop.f32.mrb[0].mxu0
        %v3467 = vadd.f32 0.0, %v3466
        %v3468 = vpop.f32.mrb[0].mxu0
        %v3469 = vpop.f32.mrb[0].mxu0
        %v3470 = vadd.f32 0.0, %v3469
        %v3471 = vpop.f32.mrb[0].mxu0
        %3472 = vmatprep.mubr.bf16.mxu0 0
        %3473 = vmatmul.mubr.bf16.gmra.mrb[0].mxu0 %v3399
        %v3474 = vpop.f32.mrb[0].mxu0
        %v3475 = vadd.f32 0.0, %v3474
        %v3476 = vpop.f32.mrb[0].mxu0
        %v3477 = vpop.f32.mrb[0].mxu0
        %v3478 = vadd.f32 0.0, %v3477
        %v3479 = vpop.f32.mrb[0].mxu0
        %3480 = vmatprep.mubr.bf16.mxu0 0
        %3481 = vmatmul.mubr.bf16.gmra.mrb[0].mxu0 %v3402
        %v3482 = vpop.f32.mrb[0].mxu0
        %v3483 = vadd.f32 0.0, %v3482
        %v3484 = vpop.f32.mrb[0].mxu0
        %v3485 = vpop.f32.mrb[0].mxu0
        %v3486 = vadd.f32 0.0, %v3485
        %v3487 = vpop.f32.mrb[0].mxu0
        %3488 = vmatprep.mubr.bf16.mxu0 0
        %3489 = vmatmul.mubr.bf16.gmra.mrb[0].mxu0 %v3405
        %v3490 = vpop.f32.mrb[0].mxu0
        %v3491 = vadd.f32 0.0, %v3490
        %v3492 = vpop.f32.mrb[0].mxu0
        %v3493 = vpop.f32.mrb[0].mxu0
        %v3494 = vadd.f32 0.0, %v3493
        %v3495 = vpop.f32.mrb[0].mxu0
        %3496 = vmatprep.mubr.bf16.mxu0 0
        %3497 = vmatmul.mubr.bf16.gmra.mrb[0].mxu0 %v3408
        %v3498 = vpop.f32.mrb[0].mxu0
        %v3499 = vadd.f32 0.0, %v3498
        %v3500 = vpop.f32.mrb[0].mxu0
        %v3501 = vpop.f32.mrb[0].mxu0
        %v3502 = vadd.f32 0.0, %v3501
        %v3503 = vpop.f32.mrb[0].mxu0
        %3504 = vmatprep.mubr.bf16.mxu0 0
        %3505 = vmatmul.mubr.bf16.gmra.mrb[0].mxu0 %v3411
        %v3506 = vpop.f32.mrb[0].mxu0
        %v3507 = vadd.f32 0.0, %v3506
        %v3508 = vpop.f32.mrb[0].mxu0
        %v3509 = vpop.f32.mrb[0].mxu0
        %v3510 = vadd.f32 0.0, %v3509
        %v3511 = vpop.f32.mrb[0].mxu0
        %3512 = vdwg.mxu0
        %v3513 = vadd.f32 %v3259, %v3451
        %v3514 = vadd.f32 %v3260, %v3454
        %v3515 = vadd.f32 %v3261, %v3459
        %v3516 = vadd.f32 %v3262, %v3462
        %v3517 = vadd.f32 %v3263, %v3467
        %v3518 = vadd.f32 %v3264, %v3470
        %v3519 = vadd.f32 %v3265, %v3475
        %v3520 = vadd.f32 %v3266, %v3478
        %v3521 = vadd.f32 %v3267, %v3483
        %v3522 = vadd.f32 %v3268, %v3486
        %v3523 = vadd.f32 %v3269, %v3491
        %v3524 = vadd.f32 %v3270, %v3494
        %v3525 = vadd.f32 %v3271, %v3499
        %v3526 = vadd.f32 %v3272, %v3502
        %v3527 = vadd.f32 %v3273, %v3507
        %v3528 = vadd.f32 %v3274, %v3510
        %v3529 = vpack.c.bf16 %v3514, %v3513
        %v3530 = vpack.c.bf16 %v3516, %v3515
        %v3531 = vpack.c.bf16 %v3518, %v3517
        %v3532 = vpack.c.bf16 %v3520, %v3519
        %v3533 = vpack.c.bf16 %v3522, %v3521
        %v3534 = vpack.c.bf16 %v3524, %v3523
        %v3535 = vpack.c.bf16 %v3526, %v3525
        %v3536 = vpack.c.bf16 %v3528, %v3527
        %v3545 = vunpack.c.l.b16 %v3529
        %v3546 = vunpack.c.h.b16 %v3529
        %v3547 = vunpack.c.l.b16 %v3530
        %v3548 = vunpack.c.h.b16 %v3530
        %v3549 = vunpack.c.l.b16 %v3531
        %v3550 = vunpack.c.h.b16 %v3531
        %v3551 = vunpack.c.l.b16 %v3532
        %v3552 = vunpack.c.h.b16 %v3532
        %v3553 = vunpack.c.l.b16 %v3533
        %v3554 = vunpack.c.h.b16 %v3533
        %v3555 = vunpack.c.l.b16 %v3534
        %v3556 = vunpack.c.h.b16 %v3534
        %v3557 = vunpack.c.l.b16 %v3535
        %v3558 = vunpack.c.h.b16 %v3535
        %v3559 = vunpack.c.l.b16 %v3536
        %v3560 = vunpack.c.h.b16 %v3536
        %v3561 = vpack.c.b16 %v3545, %v3545
        %v3562 = vpack.c.b16 %v3546, %v3546
        %v3563 = vpack.c.b16 %v3547, %v3547
        %v3564 = vpack.c.b16 %v3548, %v3548
        %v3565 = vpack.c.b16 %v3549, %v3549
        %v3566 = vpack.c.b16 %v3550, %v3550
        %v3567 = vpack.c.b16 %v3551, %v3551
        %v3568 = vpack.c.b16 %v3552, %v3552
        %v3569 = vpack.c.b16 %v3553, %v3553
        %v3570 = vpack.c.b16 %v3554, %v3554
        %v3571 = vpack.c.b16 %v3555, %v3555
        %v3572 = vpack.c.b16 %v3556, %v3556
        %v3573 = vpack.c.b16 %v3557, %v3557
        %v3574 = vpack.c.b16 %v3558, %v3558
        %v3575 = vpack.c.b16 %v3559, %v3559
        %v3576 = vpack.c.b16 %v3560, %v3560
        %3593 = vst.msk [vmem:[%s499] sm:$0xf] %vm780, %v3561
        %3594 = vst.msk [vmem:[%s499 + $0x4] sm:$0xf] %vm780, %v3562
        %3595 = vst.msk [vmem:[%s499 + $0x8] sm:$0xf] %vm780, %v3563
        %3596 = vst.msk [vmem:[%s499 + $0xc] sm:$0xf] %vm780, %v3564
        %3597 = vst.msk [vmem:[%s499 + $0x10] sm:$0xf] %vm780, %v3565
        %3598 = vst.msk [vmem:[%s499 + $0x14] sm:$0xf] %vm780, %v3566
        %3599 = vst.msk [vmem:[%s499 + $0x18] sm:$0xf] %vm780, %v3567
        %3600 = vst.msk [vmem:[%s499 + $0x1c] sm:$0xf] %vm780, %v3568
        %3601 = vst.msk [vmem:[%s499 + $0x20] sm:$0xf] %vm780, %v3569
        %3602 = vst.msk [vmem:[%s499 + $0x24] sm:$0xf] %vm780, %v3570
        %3603 = vst.msk [vmem:[%s499 + $0x28] sm:$0xf] %vm780, %v3571
        %3604 = vst.msk [vmem:[%s499 + $0x2c] sm:$0xf] %vm780, %v3572
        %3605 = vst.msk [vmem:[%s499 + $0x30] sm:$0xf] %vm780, %v3573
        %3606 = vst.msk [vmem:[%s499 + $0x34] sm:$0xf] %vm780, %v3574
        %3607 = vst.msk [vmem:[%s499 + $0x38] sm:$0xf] %vm780, %v3575
        %3608 = vst.msk [vmem:[%s499 + $0x3c] sm:$0xf] %vm780, %v3576
        %v3609 = vsel %vm1321, %v3513, 0.0
        %v3610 = vsel %vm1321, %v3514, 0.0
        %v3611 = vadd.f32 %v3609, %v3610
        %v3612 = vsel %vm1321, %v3515, 0.0
        %v3613 = vadd.f32 %v3611, %v3612
        %v3614 = vsel %vm1321, %v3516, 0.0
        %v3615 = vadd.f32 %v3613, %v3614
        %v3616 = vsel %vm1321, %v3517, 0.0
        %v3617 = vadd.f32 %v3615, %v3616
        %v3618 = vsel %vm1321, %v3518, 0.0
        %v3619 = vadd.f32 %v3617, %v3618
        %v3620 = vsel %vm1321, %v3519, 0.0
        %v3621 = vadd.f32 %v3619, %v3620
        %v3622 = vsel %vm1321, %v3520, 0.0
        %v3623 = vadd.f32 %v3621, %v3622
        %v3624 = vsel %vm1321, %v3521, 0.0
        %v3625 = vadd.f32 %v3623, %v3624
        %v3626 = vsel %vm1321, %v3522, 0.0
        %v3627 = vadd.f32 %v3625, %v3626
        %v3628 = vsel %vm1321, %v3523, 0.0
        %v3629 = vadd.f32 %v3627, %v3628
        %v3630 = vsel %vm1321, %v3524, 0.0
        %v3631 = vadd.f32 %v3629, %v3630
        %v3632 = vsel %vm1321, %v3525, 0.0
        %v3633 = vadd.f32 %v3631, %v3632
        %v3634 = vsel %vm1321, %v3526, 0.0
        %v3635 = vadd.f32 %v3633, %v3634
        %v3636 = vsel %vm1321, %v3527, 0.0
        %v3637 = vadd.f32 %v3635, %v3636
        %v3638 = vsel %vm1321, %v3528, 0.0
        %v3639 = vadd.f32 %v3637, %v3638
        %v3640 = vrot.slane %v3639, 4
        %v3641 = vadd.f32 %v3639, %v3640
        %v3642 = vrot.slane %v3641, 2
        %v3643 = vadd.f32 %v3641, %v3642
        %v3644 = vrot.slane %v3643, 1
        %v3645 = vadd.f32 %v3643, %v3644
        %vm3646 = vcmask 57344
        %3647 = vst.msk [vmem:[%s505] sm:$0x1] %vm3646, %v3645
        %v3648 = vmul.f32 %v3513, %v3513
        %v3649 = vmul.f32 %v3514, %v3514
        %v3650 = vmul.f32 %v3515, %v3515
        %v3651 = vmul.f32 %v3516, %v3516
        %v3652 = vmul.f32 %v3517, %v3517
        %v3653 = vmul.f32 %v3518, %v3518
        %v3654 = vmul.f32 %v3519, %v3519
        %v3655 = vmul.f32 %v3520, %v3520
        %v3656 = vmul.f32 %v3521, %v3521
        %v3657 = vmul.f32 %v3522, %v3522
        %v3658 = vmul.f32 %v3523, %v3523
        %v3659 = vmul.f32 %v3524, %v3524
        %v3660 = vmul.f32 %v3525, %v3525
        %v3661 = vmul.f32 %v3526, %v3526
        %v3662 = vmul.f32 %v3527, %v3527
        %v3663 = vmul.f32 %v3528, %v3528
        %v3664 = vsel %vm1321, %v3648, 0.0
        %v3665 = vsel %vm1321, %v3649, 0.0
        %v3666 = vadd.f32 %v3664, %v3665
        %v3667 = vsel %vm1321, %v3650, 0.0
        %v3668 = vadd.f32 %v3666, %v3667
        %v3669 = vsel %vm1321, %v3651, 0.0
        %v3670 = vadd.f32 %v3668, %v3669
        %v3671 = vsel %vm1321, %v3652, 0.0
        %v3672 = vadd.f32 %v3670, %v3671
        %v3673 = vsel %vm1321, %v3653, 0.0
        %v3674 = vadd.f32 %v3672, %v3673
        %v3675 = vsel %vm1321, %v3654, 0.0
        %v3676 = vadd.f32 %v3674, %v3675
        %v3677 = vsel %vm1321, %v3655, 0.0
        %v3678 = vadd.f32 %v3676, %v3677
        %v3679 = vsel %vm1321, %v3656, 0.0
        %v3680 = vadd.f32 %v3678, %v3679
        %v3681 = vsel %vm1321, %v3657, 0.0
        %v3682 = vadd.f32 %v3680, %v3681
        %v3683 = vsel %vm1321, %v3658, 0.0
        %v3684 = vadd.f32 %v3682, %v3683
        %v3685 = vsel %vm1321, %v3659, 0.0
        %v3686 = vadd.f32 %v3684, %v3685
        %v3687 = vsel %vm1321, %v3660, 0.0
        %v3688 = vadd.f32 %v3686, %v3687
        %v3689 = vsel %vm1321, %v3661, 0.0
        %v3690 = vadd.f32 %v3688, %v3689
        %v3691 = vsel %vm1321, %v3662, 0.0
        %v3692 = vadd.f32 %v3690, %v3691
        %v3693 = vsel %vm1321, %v3663, 0.0
        %v3694 = vadd.f32 %v3692, %v3693
        %v3695 = vrot.slane %v3694, 4
        %v3696 = vadd.f32 %v3694, %v3695
        %v3697 = vrot.slane %v3696, 2
        %v3698 = vadd.f32 %v3696, %v3697
        %v3699 = vrot.slane %v3698, 1
        %v3700 = vadd.f32 %v3698, %v3699
        %3701 = vst.msk [vmem:[%s511] sm:$0x1] %vm3646, %v3700
        %s3702 = sand.u32 %s219, 1
        %s3703 = scalar_lea.sflag [#allocation5], %s3702
        %s3704 = sand.u32 %s219, 1
        %s3705 = smul.addr %s3704, 64
        %s3706 = scalar_lea.vmem [#allocation14], %s3705
        %s3707 = sand.u32 %s34, 1
        %s3708 = scalar_lea.sflag [#allocation16], %s3707
        %s3709 = sand.u32 %s247, 1
        %s3710 = scalar_lea.vmem [#allocation15], %s3709
        %s3711 = sand.u32 %s34, 1
        %s3712 = scalar_lea.sflag [#allocation16], %s3711
        %s3713 = sand.u32 %s275, 1
        %s3714 = scalar_lea.vmem [#allocation17], %s3713
        // Predicated region
        $region69: #{a_call__.4} parent=43 // pred_check
          %p3715 = pneg %p229
        $region70: #{a_call__.4} parent=43 // pred_check_branch
          %3717 = sbr.rel (%p3715) target = $region72
        $region71: #{a_call__.4} parent=43 // pred_region
          %s3718 = smul.u32 8, %s39
          %s3720 = ssub.s32 1024, 1024
          %3721 = vsyncadd %s3703, %s3720
          %s3722 = smul.addr %s3718, 2
          %s3723 = smul.addr %s38, 32
          %s3724 = sadd.s32 %s3722, %s3723
          %s3725 = smul.addr %s3724, 64
          %s3726 = scalar_lea.hbm %s6, %s3725
          %s3727 = sshll.u32 %s3706, 4
          %s3728 = int_to_ptr.vmem [resolvable:$true] %s3727
          %3733 = dma.vmem_to_hbm [thread:$0]  %s3728, 1024, %s3726, %s3703, 64, 64, 4
        $region72: #{a_call__.4} parent=43 // pred_fallthru
          _
        // Predicated region
        $region73: #{a_call__.4} parent=43 // pred_check
          %p3734 = pneg %p257
        $region74: #{a_call__.4} parent=43 // pred_check_branch
          %3736 = sbr.rel (%p3734) target = $region76
        $region75: #{a_call__.4} parent=43 // pred_region
          %s3738 = ssub.s32 16, 16
          %3739 = vsyncadd %s3708, %s3738
          %s3740 = smul.addr %s38, 2
          %s3741 = sadd.s32 %s39, %s3740
          %s3742 = smul.addr %s3741, 16
          %s3743 = scalar_lea.hbm %s7, %s3742
          %s3745 = sshll.u32 %s3710, 4
          %s3746 = int_to_ptr.vmem [resolvable:$true] %s3745
          %3748 = dma.vmem_to_hbm [thread:$0]  %s3746, 16, %s3743, %s3708
        $region76: #{a_call__.4} parent=43 // pred_fallthru
          _
        // Predicated region
        $region77: #{a_call__.4} parent=43 // pred_check
          %p3749 = pneg %p285
        $region78: #{a_call__.4} parent=43 // pred_check_branch
          %3751 = sbr.rel (%p3749) target = $region80
        $region79: #{a_call__.4} parent=43 // pred_region
          %s3753 = ssub.s32 16, 16
          %3754 = vsyncadd %s3712, %s3753
          %s3755 = smul.addr %s38, 2
          %s3756 = sadd.s32 %s39, %s3755
          %s3757 = smul.addr %s3756, 16
          %s3758 = scalar_lea.hbm %s8, %s3757
          %s3760 = sshll.u32 %s3714, 4
          %s3761 = int_to_ptr.vmem [resolvable:$true] %s3760
          %3763 = dma.vmem_to_hbm [thread:$0]  %s3761, 16, %s3758, %s3712
        $region80: #{a_call__.4} parent=43 // pred_fallthru
          _
      $region44: #{a_call__.4} parent=5 // pred_fallthru
        _
      %p3764 = scmp.le.s32.totalorder 2, %s29
      // Predicated region
      $region81: #{a_call__.4} parent=5 // pred_check
        %p3765 = pneg %p3764
      $region82: #{a_call__.4} parent=5 // pred_check_branch
        %3767 = sbr.rel (%p3765) target = $region84
      $region83: #{a_call__.4} parent=5 // pred_region
        %s3768 = ssub.s32 %s29, 2
        // Predicated region
        $region85: #{a_call__.4} parent=83 // pred_check
          %p3769 = pneg %p235
        $region86: #{a_call__.4} parent=83 // pred_check_branch
          %3771 = sbr.rel (%p3769) target = $region88
        $region87: #{a_call__.4} parent=83 // pred_region
          %s3772 = sand.u32 %s220, 1
          %s3773 = scalar_lea.sflag [#allocation5], %s3772
          %s3774 = sand.u32 %s220, 1
          %s3775 = smul.addr %s3774, 64
          %s3776 = scalar_lea.vmem [#allocation14], %s3775
          %3777 = dma.done %s3773, 1024
        $region88: #{a_call__.4} parent=83 // pred_fallthru
          _
        // Predicated region
        $region89: #{a_call__.4} parent=83 // pred_check
          %p3778 = pneg %p263
        $region90: #{a_call__.4} parent=83 // pred_check_branch
          %3780 = sbr.rel (%p3778) target = $region92
        $region91: #{a_call__.4} parent=83 // pred_region
          %s3781 = sand.u32 %s35, 1
          %s3782 = scalar_lea.sflag [#allocation16], %s3781
          %s3783 = sand.u32 %s248, 1
          %s3784 = scalar_lea.vmem [#allocation15], %s3783
          %3785 = dma.done %s3782, 16
        $region92: #{a_call__.4} parent=83 // pred_fallthru
          _
        // Predicated region
        $region93: #{a_call__.4} parent=83 // pred_check
          %p3786 = pneg %p291
        $region94: #{a_call__.4} parent=83 // pred_check_branch
          %3788 = sbr.rel (%p3786) target = $region96
        $region95: #{a_call__.4} parent=83 // pred_region
          %s3789 = sand.u32 %s35, 1
          %s3790 = scalar_lea.sflag [#allocation16], %s3789
          %s3791 = sand.u32 %s276, 1
          %s3792 = scalar_lea.vmem [#allocation17], %s3791
          %3793 = dma.done %s3790, 16
        $region96: #{a_call__.4} parent=83 // pred_fallthru
          _
      $region84: #{a_call__.4} parent=5 // pred_fallthru
        _
    $region6: #{a_call__.4} parent=1 // loop_footer
      %s33 = sadd.s32 1, %s29
    $region7: #{a_call__.4} parent=1 // loop_footer_branch
      %28 = sbr.rel target = $region3
    $region8: #{a_call__.4} parent=1 // loop_exit
      _
    %3794 = vsyncpa [#allocation4], 1
    %s3795 = scalar_lea.sflag [#allocation4], 1
    %3796 = vsyncpa %s3795, 1
    %3797 = vsyncpa [#allocation7], 1
    %s3798 = scalar_lea.sflag [#allocation7], 1
    %3799 = vsyncpa %s3798, 1
    %3800 = vsyncpa [#allocation10], 1
    %3801 = vsyncpa [#allocation13], 1
    %3802 = vsyncpa [#allocation5], 1
    %s3803 = scalar_lea.sflag [#allocation5], 1
    %3804 = vsyncpa %s3803, 1
    %3805 = vsyncpa [#allocation16], 1
    %s3806 = scalar_lea.sflag [#allocation16], 1
    %3807 = vsyncpa %s3806, 1

</llo_original>
